<compile_context>
chip_gen: v7x
topology: tpu7x:2x2x1
jax: 0.10.0
libtpu: 0.0.40
codegen_flags: <defaults>
</compile_context>

<pallas_src>
import jax
import jax.numpy as jnp
from jax.experimental import pallas as pl
from jax.experimental.pallas import tpu as pltpu

BF16 = jnp.bfloat16
F32 = jnp.float32


def _round_up(x, m):
    return ((x + m - 1) // m) * m


# ----------------------------------------------------------------------------
# Fused kernel: 2-layer GRU + additive attention + gated-tanh classifier.
# GRU gate order matches PyTorch: [r, z, n].  All hidden/gate dims are padded
# to multiples of 128 by pack_params(), so gate slices are lane-aligned.
# ----------------------------------------------------------------------------
def vqa_kernel(emb_ref, img_ref,
               wih0_ref, whh0_ref, bi0_ref, bh0_ref,
               wih1_ref, whh1_ref, bi1_ref, bh1_ref,
               wimg_ref, bimg_ref, wq_ref, bq_ref, vscore_ref, bscore_ref,
               wproj_ref, bproj_ref, wt_ref, bt_ref, wg_ref, bg_ref,
               w1_ref, bd1_ref, w2_ref, b2_ref,
               out_ref, attnw_ref):
    T, Bt, E = emb_ref.shape                 # time-major embedding block
    H = whh0_ref.shape[0]                    # padded hidden dim (multiple of 128)
    _, R, Fd = img_ref.shape
    A = wimg_ref.shape[1]
    R_pad = attnw_ref.shape[1]

    f32 = jnp.float32
    bf16 = jnp.bfloat16

    # ------------------------- 2-layer GRU -------------------------
    # Hoisted layer-0 input projection: ONE (T*Bt, E) @ (E, 3H) matmul.
    # Time-major so per-timestep slices below are leading-axis (no relayout).
    emb2 = emb_ref[...].reshape(T * Bt, E)                            # bf16
    gi0_all = (jnp.dot(emb2, wih0_ref[...], preferred_element_type=f32)
               + bi0_ref[...]).reshape(T, Bt, 3 * H)

    # Hoist weight/bias loads out of the unrolled loop.
    whh0 = whh0_ref[...]
    wih1 = wih1_ref[...]
    whh1 = whh1_ref[...]
    bh0 = bh0_ref[...]
    bi1 = bi1_ref[...]
    bh1 = bh1_ref[...]

    h0 = jnp.zeros((Bt, H), f32)
    h1 = jnp.zeros((Bt, H), f32)

    # Static fully-unrolled time loop (T small & fixed) — gives the scheduler
    # cross-iteration visibility.  Only 3 fused (.., 3H) matmuls per step.
    for t in range(T):
        # ---- layer 0: single fused hidden-to-hidden matmul ----
        gi0 = gi0_all[t]                                              # (Bt, 3H)
        gh0 = jnp.dot(h0.astype(bf16), whh0, preferred_element_type=f32) + bh0
        r0 = jax.nn.sigmoid(gi0[:, 0:H] + gh0[:, 0:H])
        z0 = jax.nn.sigmoid(gi0[:, H:2 * H] + gh0[:, H:2 * H])
        n0 = jnp.tanh(gi0[:, 2 * H:] + r0 * gh0[:, 2 * H:])
        h0 = (1.0 - z0) * n0 + z0 * h0

        # ---- layer 1: fused input + fused hidden matmuls ----
        x1 = h0.astype(bf16)
        gi1 = jnp.dot(x1, wih1, preferred_element_type=f32) + bi1
        gh1 = jnp.dot(h1.astype(bf16), whh1, preferred_element_type=f32) + bh1
        r1 = jax.nn.sigmoid(gi1[:, 0:H] + gh1[:, 0:H])
        z1 = jax.nn.sigmoid(gi1[:, H:2 * H] + gh1[:, H:2 * H])
        n1 = jnp.tanh(gi1[:, 2 * H:] + r1 * gh1[:, 2 * H:])
        h1 = (1.0 - z1) * n1 + z1 * h1

    q = h1                                                            # (Bt, H) f32

    # ------------------------- attention head -------------------------
    img = img_ref[...]                                                # (Bt, R, F) bf16
    img2 = img.reshape(Bt * R, Fd)
    ip = (jnp.dot(img2, wimg_ref[...], preferred_element_type=f32)
          + bimg_ref[...])                                            # (Bt*R, A)
    qp = (jnp.dot(q.astype(bf16), wq_ref[...], preferred_element_type=f32)
          + bq_ref[...])                                              # (Bt, A)
    joint = jnp.tanh(ip.reshape(Bt, R, A) + qp[:, None, :])
    scores = (jnp.sum(joint * vscore_ref[...].reshape(1, 1, A), axis=-1)
              + bscore_ref[0, 0])                                     # scalar from SMEM
    scores = scores - jnp.max(scores, axis=1, keepdims=True)
    e = jnp.exp(scores)
    attn_w = e / jnp.sum(e, axis=1, keepdims=True)                    # (Bt, R) f32

    # Lane-dense (multiple-of-128) store of the attention weights.
    if R_pad > R:
        attnw_ref[...] = jnp.concatenate(
            [attn_w, jnp.zeros((Bt, R_pad - R), f32)], axis=1)
    else:
        attnw_ref[...] = attn_w

    # Attention pooling on the VPU (multiply + sublane reduce) — avoids B
    # degenerate M=1 batched MXU matmuls competing with img @ wimg.
    weighted = jnp.sum(attn_w[:, :, None] * img.astype(f32), axis=1)  # (Bt, F)

    proj = (jnp.dot(weighted.astype(bf16), wproj_ref[...],
                    preferred_element_type=f32) + bproj_ref[...])
    combined = proj * q
    cb = combined.astype(bf16)
    gated_tanh = jnp.tanh(
        jnp.dot(cb, wt_ref[...], preferred_element_type=f32) + bt_ref[...])
    gate = jax.nn.sigmoid(
        jnp.dot(cb, wg_ref[...], preferred_element_type=f32) + bg_ref[...])
    x = gated_tanh * gate
    x = jnp.maximum(
        jnp.dot(x.astype(bf16), w1_ref[...], preferred_element_type=f32)
        + bd1_ref[...], 0.0)
    # TODO(synk): nn.Dropout(p=0.5) is identity in eval mode; no mask applied.
    out_ref[...] = (jnp.dot(x.astype(bf16), w2_ref[...],
                            preferred_element_type=f32) + b2_ref[...])


# ----------------------------------------------------------------------------
# One-time parameter packing (bf16 cast, gate fusion, 128-lane padding).
# Call ONCE outside the jitted forward — no per-call repacking / casts.
# ----------------------------------------------------------------------------
def pack_params(params):
    H = params["whh0"].shape[0]
    E = params["wih0"].shape[0]
    Fd = params["wimg"].shape[0]
    A = params["wimg"].shape[1]
    ans = params["w2"].shape[1]

    Hp = _round_up(H, 128)
    Ep = _round_up(E, 128)
    Ap = _round_up(A, 128)
    ansp = _round_up(ans, 128)

    def pad2(w, rows, cols):
        return jnp.pad(w, ((0, rows - w.shape[0]), (0, cols - w.shape[1])))

    def fuse_gru(wih, whh, bih, bhh, in_pad):
        # (in,3H)/(H,3H) stacked [r|z|n] -> lane-aligned fused (in_pad, 3*Hp).
        # NOTE: real PyTorch GRU weights are (3H, in) and used as x @ W^T —
        # transpose before feeding checkpoints through this packer.
        wih_g = [pad2(wih[:, g * H:(g + 1) * H], in_pad, Hp) for g in range(3)]
        whh_g = [pad2(whh[:, g * H:(g + 1) * H], Hp, Hp) for g in range(3)]

        def pad_b(b):
            return jnp.pad(b.reshape(1, -1), ((0, 0), (0, Hp - H)))

        bi = jnp.concatenate([pad_b(bih[:, 0:H] + bhh[:, 0:H]),        # r
                              pad_b(bih[:, H:2 * H] + bhh[:, H:2 * H]),  # z
                              pad_b(bih[:, 2 * H:])], axis=1)           # n (input)
        bh = jnp.concatenate([jnp.zeros((1, Hp), jnp.float32),
                              jnp.zeros((1, Hp), jnp.float32),
                              pad_b(bhh[:, 2 * H:])], axis=1)           # n (hidden)
        return (jnp.concatenate(wih_g, axis=1).astype(BF16),
                jnp.concatenate(whh_g, axis=1).astype(BF16),
                bi.astype(F32), bh.astype(F32))

    p = {}
    p["embedding"] = jnp.pad(params["embedding"],
                             ((0, 0), (0, Ep - E))).astype(BF16)
    p["wih0"], p["whh0"], p["bi0"], p["bh0"] = fuse_gru(
        params["wih0"], params["whh0"], params["bih0"], params["bhh0"], Ep)
    p["wih1"], p["whh1"], p["bi1"], p["bh1"] = fuse_gru(
        params["wih1"], params["whh1"], params["bih1"], params["bhh1"], Hp)

    p["wimg"] = pad2(params["wimg"], Fd, Ap).astype(BF16)
    p["bimg"] = pad2(params["bimg"], 1, Ap).astype(F32)
    p["wq"] = pad2(params["wq"], Hp, Ap).astype(BF16)
    p["bq"] = pad2(params["bq"], 1, Ap).astype(F32)
    p["vscore"] = pad2(params["vscore"], 1, Ap).astype(F32)
    p["bscore"] = params["bscore"].astype(F32)
    p["wproj"] = pad2(params["wproj"], Fd, Hp).astype(BF16)
    p["bproj"] = pad2(params["bproj"], 1, Hp).astype(F32)
    p["wt"] = pad2(params["wt"], Hp, Hp).astype(BF16)
    p["bt"] = pad2(params["bt"], 1, Hp).astype(F32)
    p["wg"] = pad2(params["wg"], Hp, Hp).astype(BF16)
    p["bg"] = pad2(params["bg"], 1, Hp).astype(F32)
    p["w1"] = pad2(params["w1"], Hp, Hp).astype(BF16)
    p["b1"] = pad2(params["b1"], 1, Hp).astype(F32)
    p["w2"] = pad2(params["w2"], Hp, ansp).astype(BF16)
    p["b2"] = pad2(params["b2"], 1, ansp).astype(F32)
    return p


# ----------------------------------------------------------------------------
# Wrapper
# ----------------------------------------------------------------------------
def vqa_forward(packed, image_features, questions, *, n_answers, b_tile=64):
    B, T = questions.shape
    R, Fd = image_features.shape[1], image_features.shape[2]
    Ep = packed["embedding"].shape[1]
    ansp = packed["w2"].shape[1]
    r_pad = _round_up(R, 128)

    # Batch tile: multiple of 8 sublanes; 64 keeps per-block VMEM under v7x's
    # 64 MiB at production shapes (raise to 128 on v5e/v6e if desired).
    b_tile = _round_up(min(b_tile, _round_up(B, 8)), 8)
    B_pad = _round_up(B, b_tile)

    # Frozen-embedding gather stays in plain JAX (data-dependent).
    emb = packed["embedding"][questions]                  # (B, T, Ep) bf16
    # TODO(synk): provide image_features as bf16 upstream; astype is a no-op
    # then, otherwise it is an extra HBM pass before the kernel.
    img = image_features.astype(BF16)
    if B_pad != B:
        emb = jnp.pad(emb, ((0, B_pad - B), (0, 0), (0, 0)))
        img = jnp.pad(img, ((0, B_pad - B), (0, 0), (0, 0)))
    emb_tm = jnp.transpose(emb, (1, 0, 2))                # (T, B_pad, Ep) time-major

    vmem_full = pl.BlockSpec(memory_space=pltpu.MemorySpace.VMEM)  # whole array, resident
    smem_full = pl.BlockSpec(memory_space=pltpu.MemorySpace.SMEM)  # scalar attention bias

    in_specs = (
        [pl.BlockSpec((T, b_tile, Ep), lambda i: (0, i, 0)),   # embeddings (time-major)
         pl.BlockSpec((b_tile, R, Fd), lambda i: (i, 0, 0))]   # image features
        + [vmem_full] * 13 + [smem_full] + [vmem_full] * 10)   # weights / biases

    out_specs = (pl.BlockSpec((b_tile, ansp), lambda i: (i, 0)),
                 pl.BlockSpec((b_tile, r_pad), lambda i: (i, 0)))

    out_pad, attn_pad = pl.pallas_call(
        vqa_kernel,
        out_shape=(jax.ShapeDtypeStruct((B_pad, ansp), F32),
                   jax.ShapeDtypeStruct((B_pad, r_pad), F32)),
        grid=(B_pad // b_tile,),
        in_specs=in_specs,
        out_specs=out_specs,
        compiler_params=pltpu.CompilerParams(
            dimension_semantics=("parallel",),          # shards over v7x's 2 TCs
            vmem_limit_bytes=48 * 1024 * 1024),         # headroom under v7x 64 MiB
    )(emb_tm, img,
      packed["wih0"], packed["whh0"], packed["bi0"], packed["bh0"],
      packed["wih1"], packed["whh1"], packed["bi1"], packed["bh1"],
      packed["wimg"], packed["bimg"], packed["wq"], packed["bq"],
      packed["vscore"], packed["bscore"],
      packed["wproj"], packed["bproj"], packed["wt"], packed["bt"],
      packed["wg"], packed["bg"], packed["w1"], packed["b1"],
      packed["w2"], packed["b2"])

    return out_pad[:B, :n_answers], attn_pad[:B, :R]


# ----------------------------------------------------------------------------
# Deterministic parameter construction (synthetic, xavier-uniform style).
# Weights stored as (in, out) so y = x @ W + b.
# ----------------------------------------------------------------------------
def make_params(key, vocab_size, embed_dim, hidden_dim, feature_dim,
                attention_dim, answer_vocab_size):
    ks = iter(jax.random.split(key, 32))

    def xavier(k, shape):
        limit = (6.0 / (shape[0] + shape[1])) ** 0.5
        return jax.random.uniform(k, shape, jnp.float32, -limit, limit)

    H, E, Fd, A = hidden_dim, embed_dim, feature_dim, attention_dim
    p = {}
    p["embedding"] = jax.random.normal(next(ks), (vocab_size, E), jnp.float32) * 0.1
    # GRU (gate order r,z,n; biases filled with 0 per _initialize_weights)
    p["wih0"] = xavier(next(ks), (E, 3 * H))
    p["whh0"] = xavier(next(ks), (H, 3 * H))
    p["bih0"] = jnp.zeros((1, 3 * H), jnp.float32)
    p["bhh0"] = jnp.zeros((1, 3 * H), jnp.float32)
    p["wih1"] = xavier(next(ks), (H, 3 * H))
    p["whh1"] = xavier(next(ks), (H, 3 * H))
    p["bih1"] = jnp.zeros((1, 3 * H), jnp.float32)
    p["bhh1"] = jnp.zeros((1, 3 * H), jnp.float32)
    # Attention (additive: proj image + proj question -> tanh -> score -> softmax)
    p["wimg"] = xavier(next(ks), (Fd, A))
    p["bimg"] = jnp.zeros((1, A), jnp.float32)
    p["wq"] = xavier(next(ks), (H, A))
    p["bq"] = jnp.zeros((1, A), jnp.float32)
    p["vscore"] = xavier(next(ks), (1, A))
    p["bscore"] = jnp.zeros((1, 1), jnp.float32)
    # Projection / gates / classifier
    p["wproj"] = xavier(next(ks), (Fd, H))
    p["bproj"] = jnp.zeros((1, H), jnp.float32)
    p["wt"] = xavier(next(ks), (H, H))
    p["bt"] = jnp.zeros((1, H), jnp.float32)
    p["wg"] = xavier(next(ks), (H, H))
    p["bg"] = jnp.zeros((1, H), jnp.float32)
    p["w1"] = xavier(next(ks), (H, H))
    p["b1"] = jnp.zeros((1, H), jnp.float32)
    p["w2"] = xavier(next(ks), (H, answer_vocab_size))
    p["b2"] = jnp.zeros((1, answer_vocab_size), jnp.float32)
    return p


if __name__ == "__main__":
    # Small, forward-consistent shapes (B=16 with b_tile=8 exercises a
    # 2-step parallel batch grid).
    B, T = 16, 8                # batch, question length
    vocab_size = 100
    embed_dim = 32
    hidden_dim = 32
    feature_dim = 64
    attention_dim = 32
    answer_vocab_size = 16
    num_regions = 16

    key = jax.random.PRNGKey(0)
    k_params, k_img, k_q = jax.random.split(key, 3)

    params = make_params(k_params, vocab_size, embed_dim, hidden_dim,
                         feature_dim, attention_dim, answer_vocab_size)
    packed = pack_params(params)    # one-time packing OUTSIDE the jitted forward

    image_features = jax.random.normal(k_img, (B, num_regions, feature_dim),
                                       jnp.float32)
    questions = jax.random.randint(k_q, (B, T), 0, vocab_size, jnp.int32)

    fwd = jax.jit(vqa_forward, static_argnames=("n_answers", "b_tile"))
    output, attn_weights = fwd(packed, image_features, questions,
                               n_answers=answer_vocab_size, b_tile=8)
    jax.block_until_ready((output, attn_weights))

    assert output.shape == (B, answer_vocab_size)
    assert attn_weights.shape == (B, num_regions)
    assert bool(jnp.all(jnp.isfinite(output)))
    assert bool(jnp.allclose(jnp.sum(attn_weights, axis=1), 1.0, atol=1e-3))
    print("KERNEL_OK")
</pallas_src>

<mosaic_0001>
module attributes {stable_mosaic.version = 11 : i64} {
  func.func @vqa_kernel(%arg0: i32, %arg1: memref<8x8x128xbf16, #tpu.memory_space<vmem>>, %arg2: memref<8x16x64xbf16, #tpu.memory_space<vmem>>, %arg3: memref<128x384xbf16, #tpu.memory_space<vmem>>, %arg4: memref<128x384xbf16, #tpu.memory_space<vmem>>, %arg5: memref<1x384xf32, #tpu.memory_space<vmem>>, %arg6: memref<1x384xf32, #tpu.memory_space<vmem>>, %arg7: memref<128x384xbf16, #tpu.memory_space<vmem>>, %arg8: memref<128x384xbf16, #tpu.memory_space<vmem>>, %arg9: memref<1x384xf32, #tpu.memory_space<vmem>>, %arg10: memref<1x384xf32, #tpu.memory_space<vmem>>, %arg11: memref<64x128xbf16, #tpu.memory_space<vmem>>, %arg12: memref<1x128xf32, #tpu.memory_space<vmem>>, %arg13: memref<128x128xbf16, #tpu.memory_space<vmem>>, %arg14: memref<1x128xf32, #tpu.memory_space<vmem>>, %arg15: memref<1x128xf32, #tpu.memory_space<vmem>>, %arg16: memref<1x1xf32, #tpu.memory_space<smem>>, %arg17: memref<64x128xbf16, #tpu.memory_space<vmem>>, %arg18: memref<1x128xf32, #tpu.memory_space<vmem>>, %arg19: memref<128x128xbf16, #tpu.memory_space<vmem>>, %arg20: memref<1x128xf32, #tpu.memory_space<vmem>>, %arg21: memref<128x128xbf16, #tpu.memory_space<vmem>>, %arg22: memref<1x128xf32, #tpu.memory_space<vmem>>, %arg23: memref<128x128xbf16, #tpu.memory_space<vmem>>, %arg24: memref<1x128xf32, #tpu.memory_space<vmem>>, %arg25: memref<128x128xbf16, #tpu.memory_space<vmem>>, %arg26: memref<1x128xf32, #tpu.memory_space<vmem>>, %arg27: memref<8x128xf32, #tpu.memory_space<vmem>>, %arg28: memref<8x128xf32, #tpu.memory_space<vmem>>) attributes {dimension_semantics = [#tpu.dimension_semantics<parallel>], iteration_bounds = array<i64: 2>, scalar_prefetch = 0 : i64, scratch_operands = 0 : i64, tpu.core_type = #tpu.core_type<tc>, window_params = [{transform_indices = @transform_0, window_bounds = array<i64: 8, 8, 128>}, {transform_indices = @transform_1, window_bounds = array<i64: 8, 16, 64>}, {pipeline_mode = #tpu.pipeline_mode<synchronous>, transform_indices = @transform_2, window_bounds = array<i64: 128, 384>}, {pipeline_mode = #tpu.pipeline_mode<synchronous>, transform_indices = @transform_3, window_bounds = array<i64: 128, 384>}, {pipeline_mode = #tpu.pipeline_mode<synchronous>, transform_indices = @transform_4, window_bounds = array<i64: 1, 384>}, {pipeline_mode = #tpu.pipeline_mode<synchronous>, transform_indices = @transform_5, window_bounds = array<i64: 1, 384>}, {pipeline_mode = #tpu.pipeline_mode<synchronous>, transform_indices = @transform_6, window_bounds = array<i64: 128, 384>}, {pipeline_mode = #tpu.pipeline_mode<synchronous>, transform_indices = @transform_7, window_bounds = array<i64: 128, 384>}, {pipeline_mode = #tpu.pipeline_mode<synchronous>, transform_indices = @transform_8, window_bounds = array<i64: 1, 384>}, {pipeline_mode = #tpu.pipeline_mode<synchronous>, transform_indices = @transform_9, window_bounds = array<i64: 1, 384>}, {pipeline_mode = #tpu.pipeline_mode<synchronous>, transform_indices = @transform_10, window_bounds = array<i64: 64, 128>}, {pipeline_mode = #tpu.pipeline_mode<synchronous>, transform_indices = @transform_11, window_bounds = array<i64: 1, 128>}, {pipeline_mode = #tpu.pipeline_mode<synchronous>, transform_indices = @transform_12, window_bounds = array<i64: 128, 128>}, {pipeline_mode = #tpu.pipeline_mode<synchronous>, transform_indices = @transform_13, window_bounds = array<i64: 1, 128>}, {pipeline_mode = #tpu.pipeline_mode<synchronous>, transform_indices = @transform_14, window_bounds = array<i64: 1, 128>}, {transform_indices = @transform_15, window_bounds = array<i64: 1, 1>}, {pipeline_mode = #tpu.pipeline_mode<synchronous>, transform_indices = @transform_16, window_bounds = array<i64: 64, 128>}, {pipeline_mode = #tpu.pipeline_mode<synchronous>, transform_indices = @transform_17, window_bounds = array<i64: 1, 128>}, {pipeline_mode = #tpu.pipeline_mode<synchronous>, transform_indices = @transform_18, window_bounds = array<i64: 128, 128>}, {pipeline_mode = #tpu.pipeline_mode<synchronous>, transform_indices = @transform_19, window_bounds = array<i64: 1, 128>}, {pipeline_mode = #tpu.pipeline_mode<synchronous>, transform_indices = @transform_20, window_bounds = array<i64: 128, 128>}, {pipeline_mode = #tpu.pipeline_mode<synchronous>, transform_indices = @transform_21, window_bounds = array<i64: 1, 128>}, {pipeline_mode = #tpu.pipeline_mode<synchronous>, transform_indices = @transform_22, window_bounds = array<i64: 128, 128>}, {pipeline_mode = #tpu.pipeline_mode<synchronous>, transform_indices = @transform_23, window_bounds = array<i64: 1, 128>}, {pipeline_mode = #tpu.pipeline_mode<synchronous>, transform_indices = @transform_24, window_bounds = array<i64: 128, 128>}, {pipeline_mode = #tpu.pipeline_mode<synchronous>, transform_indices = @transform_25, window_bounds = array<i64: 1, 128>}, {transform_indices = @transform_26, window_bounds = array<i64: 8, 128>}, {transform_indices = @transform_27, window_bounds = array<i64: 8, 128>}]} {
    %c0 = arith.constant 0 : index
    %c0_0 = arith.constant 0 : index
    %c0_1 = arith.constant 0 : index
    %0 = vector.load %arg1[%c0, %c0_0, %c0_1] : memref<8x8x128xbf16, #tpu.memory_space<vmem>>, vector<8x8x128xbf16>
    %1 = vector.shape_cast %0 : vector<8x8x128xbf16> to vector<64x128xbf16>
    %c0_2 = arith.constant 0 : index
    %c0_3 = arith.constant 0 : index
    %2 = vector.load %arg3[%c0_2, %c0_3] : memref<128x384xbf16, #tpu.memory_space<vmem>>, vector<128x384xbf16>
    %cst = arith.constant dense<0.000000e+00> : vector<64x384xf32>
    %3 = tpu.matmul %1, %2, %cst {dimension_numbers = #tpu.dot_dimension_numbers<[1], [0], [0], [1], [0, 0, 1, 1], [], []>} : vector<64x128xbf16>, vector<128x384xbf16>, vector<64x384xf32> -> vector<64x384xf32>
    %c0_4 = arith.constant 0 : index
    %c0_5 = arith.constant 0 : index
    %4 = vector.load %arg5[%c0_4, %c0_5] : memref<1x384xf32, #tpu.memory_space<vmem>>, vector<1x384xf32>
    %5 = vector.broadcast %4 : vector<1x384xf32> to vector<64x384xf32>
    %6 = arith.addf %3, %5 : vector<64x384xf32>
    %7 = vector.shape_cast %6 : vector<64x384xf32> to vector<8x8x384xf32>
    %c0_6 = arith.constant 0 : index
    %c0_7 = arith.constant 0 : index
    %8 = vector.load %arg4[%c0_6, %c0_7] : memref<128x384xbf16, #tpu.memory_space<vmem>>, vector<128x384xbf16>
    %c0_8 = arith.constant 0 : index
    %c0_9 = arith.constant 0 : index
    %9 = vector.load %arg7[%c0_8, %c0_9] : memref<128x384xbf16, #tpu.memory_space<vmem>>, vector<128x384xbf16>
    %c0_10 = arith.constant 0 : index
    %c0_11 = arith.constant 0 : index
    %10 = vector.load %arg8[%c0_10, %c0_11] : memref<128x384xbf16, #tpu.memory_space<vmem>>, vector<128x384xbf16>
    %c0_12 = arith.constant 0 : index
    %c0_13 = arith.constant 0 : index
    %11 = vector.load %arg6[%c0_12, %c0_13] : memref<1x384xf32, #tpu.memory_space<vmem>>, vector<1x384xf32>
    %c0_14 = arith.constant 0 : index
    %c0_15 = arith.constant 0 : index
    %12 = vector.load %arg9[%c0_14, %c0_15] : memref<1x384xf32, #tpu.memory_space<vmem>>, vector<1x384xf32>
    %c0_16 = arith.constant 0 : index
    %c0_17 = arith.constant 0 : index
    %13 = vector.load %arg10[%c0_16, %c0_17] : memref<1x384xf32, #tpu.memory_space<vmem>>, vector<1x384xf32>
    %cst_18 = arith.constant 0.000000e+00 : f32
    %14 = vector.broadcast %cst_18 : f32 to vector<8x128xf32>
    %cst_19 = arith.constant 0.000000e+00 : f32
    %15 = vector.broadcast %cst_19 : f32 to vector<8x128xf32>
    %16 = vector.extract_strided_slice %7 {offsets = [0, 0, 0], sizes = [1, 8, 384], strides = [1, 1, 1]} : vector<8x8x384xf32> to vector<1x8x384xf32>
    %17 = vector.shape_cast %16 : vector<1x8x384xf32> to vector<8x384xf32>
    %18 = arith.truncf %14 : vector<8x128xf32> to vector<8x128xbf16>
    %cst_20 = arith.constant dense<0.000000e+00> : vector<8x384xf32>
    %19 = tpu.matmul %18, %8, %cst_20 {dimension_numbers = #tpu.dot_dimension_numbers<[1], [0], [0], [1], [0, 0, 1, 1], [], []>} : vector<8x128xbf16>, vector<128x384xbf16>, vector<8x384xf32> -> vector<8x384xf32>
    %20 = vector.broadcast %11 : vector<1x384xf32> to vector<8x384xf32>
    %21 = arith.addf %19, %20 : vector<8x384xf32>
    %22 = vector.extract_strided_slice %17 {offsets = [0, 0], sizes = [8, 128], strides = [1, 1]} : vector<8x384xf32> to vector<8x128xf32>
    %23 = vector.extract_strided_slice %21 {offsets = [0, 0], sizes = [8, 128], strides = [1, 1]} : vector<8x384xf32> to vector<8x128xf32>
    %24 = arith.addf %22, %23 : vector<8x128xf32>
    %25 = arith.negf %24 : vector<8x128xf32>
    %26 = math.exp %25 : vector<8x128xf32>
    %cst_21 = arith.constant 1.000000e+00 : f32
    %27 = vector.broadcast %cst_21 : f32 to vector<8x128xf32>
    %28 = arith.addf %27, %26 : vector<8x128xf32>
    %29 = arith.divf %27, %28 : vector<8x128xf32>
    %30 = vector.extract_strided_slice %17 {offsets = [0, 128], sizes = [8, 128], strides = [1, 1]} : vector<8x384xf32> to vector<8x128xf32>
    %31 = vector.extract_strided_slice %21 {offsets = [0, 128], sizes = [8, 128], strides = [1, 1]} : vector<8x384xf32> to vector<8x128xf32>
    %32 = arith.addf %30, %31 : vector<8x128xf32>
    %33 = arith.negf %32 : vector<8x128xf32>
    %34 = math.exp %33 : vector<8x128xf32>
    %cst_22 = arith.constant 1.000000e+00 : f32
    %35 = vector.broadcast %cst_22 : f32 to vector<8x128xf32>
    %36 = arith.addf %35, %34 : vector<8x128xf32>
    %37 = arith.divf %35, %36 : vector<8x128xf32>
    %38 = vector.extract_strided_slice %17 {offsets = [0, 256], sizes = [8, 128], strides = [1, 1]} : vector<8x384xf32> to vector<8x128xf32>
    %39 = vector.extract_strided_slice %21 {offsets = [0, 256], sizes = [8, 128], strides = [1, 1]} : vector<8x384xf32> to vector<8x128xf32>
    %40 = arith.mulf %29, %39 : vector<8x128xf32>
    %41 = arith.addf %38, %40 : vector<8x128xf32>
    %42 = math.tanh %41 : vector<8x128xf32>
    %cst_23 = arith.constant 1.000000e+00 : f32
    %43 = vector.broadcast %cst_23 : f32 to vector<8x128xf32>
    %44 = arith.subf %43, %37 : vector<8x128xf32>
    %45 = arith.mulf %44, %42 : vector<8x128xf32>
    %46 = arith.mulf %37, %14 : vector<8x128xf32>
    %47 = arith.addf %45, %46 : vector<8x128xf32>
    %48 = arith.truncf %47 : vector<8x128xf32> to vector<8x128xbf16>
    %cst_24 = arith.constant dense<0.000000e+00> : vector<8x384xf32>
    %49 = tpu.matmul %48, %9, %cst_24 {dimension_numbers = #tpu.dot_dimension_numbers<[1], [0], [0], [1], [0, 0, 1, 1], [], []>} : vector<8x128xbf16>, vector<128x384xbf16>, vector<8x384xf32> -> vector<8x384xf32>
    %50 = vector.broadcast %12 : vector<1x384xf32> to vector<8x384xf32>
    %51 = arith.addf %49, %50 : vector<8x384xf32>
    %52 = arith.truncf %15 : vector<8x128xf32> to vector<8x128xbf16>
    %cst_25 = arith.constant dense<0.000000e+00> : vector<8x384xf32>
    %53 = tpu.matmul %52, %10, %cst_25 {dimension_numbers = #tpu.dot_dimension_numbers<[1], [0], [0], [1], [0, 0, 1, 1], [], []>} : vector<8x128xbf16>, vector<128x384xbf16>, vector<8x384xf32> -> vector<8x384xf32>
    %54 = vector.broadcast %13 : vector<1x384xf32> to vector<8x384xf32>
    %55 = arith.addf %53, %54 : vector<8x384xf32>
    %56 = vector.extract_strided_slice %51 {offsets = [0, 0], sizes = [8, 128], strides = [1, 1]} : vector<8x384xf32> to vector<8x128xf32>
    %57 = vector.extract_strided_slice %55 {offsets = [0, 0], sizes = [8, 128], strides = [1, 1]} : vector<8x384xf32> to vector<8x128xf32>
    %58 = arith.addf %56, %57 : vector<8x128xf32>
    %59 = arith.negf %58 : vector<8x128xf32>
    %60 = math.exp %59 : vector<8x128xf32>
    %cst_26 = arith.constant 1.000000e+00 : f32
    %61 = vector.broadcast %cst_26 : f32 to vector<8x128xf32>
    %62 = arith.addf %61, %60 : vector<8x128xf32>
    %63 = arith.divf %61, %62 : vector<8x128xf32>
    %64 = vector.extract_strided_slice %51 {offsets = [0, 128], sizes = [8, 128], strides = [1, 1]} : vector<8x384xf32> to vector<8x128xf32>
    %65 = vector.extract_strided_slice %55 {offsets = [0, 128], sizes = [8, 128], strides = [1, 1]} : vector<8x384xf32> to vector<8x128xf32>
    %66 = arith.addf %64, %65 : vector<8x128xf32>
    %67 = arith.negf %66 : vector<8x128xf32>
    %68 = math.exp %67 : vector<8x128xf32>
    %cst_27 = arith.constant 1.000000e+00 : f32
    %69 = vector.broadcast %cst_27 : f32 to vector<8x128xf32>
    %70 = arith.addf %69, %68 : vector<8x128xf32>
    %71 = arith.divf %69, %70 : vector<8x128xf32>
    %72 = vector.extract_strided_slice %51 {offsets = [0, 256], sizes = [8, 128], strides = [1, 1]} : vector<8x384xf32> to vector<8x128xf32>
    %73 = vector.extract_strided_slice %55 {offsets = [0, 256], sizes = [8, 128], strides = [1, 1]} : vector<8x384xf32> to vector<8x128xf32>
    %74 = arith.mulf %63, %73 : vector<8x128xf32>
    %75 = arith.addf %72, %74 : vector<8x128xf32>
    %76 = math.tanh %75 : vector<8x128xf32>
    %cst_28 = arith.constant 1.000000e+00 : f32
    %77 = vector.broadcast %cst_28 : f32 to vector<8x128xf32>
    %78 = arith.subf %77, %71 : vector<8x128xf32>
    %79 = arith.mulf %78, %76 : vector<8x128xf32>
    %80 = arith.mulf %71, %15 : vector<8x128xf32>
    %81 = arith.addf %79, %80 : vector<8x128xf32>
    %82 = vector.extract_strided_slice %7 {offsets = [1, 0, 0], sizes = [1, 8, 384], strides = [1, 1, 1]} : vector<8x8x384xf32> to vector<1x8x384xf32>
    %83 = vector.shape_cast %82 : vector<1x8x384xf32> to vector<8x384xf32>
    %84 = arith.truncf %47 : vector<8x128xf32> to vector<8x128xbf16>
    %cst_29 = arith.constant dense<0.000000e+00> : vector<8x384xf32>
    %85 = tpu.matmul %84, %8, %cst_29 {dimension_numbers = #tpu.dot_dimension_numbers<[1], [0], [0], [1], [0, 0, 1, 1], [], []>} : vector<8x128xbf16>, vector<128x384xbf16>, vector<8x384xf32> -> vector<8x384xf32>
    %86 = vector.broadcast %11 : vector<1x384xf32> to vector<8x384xf32>
    %87 = arith.addf %85, %86 : vector<8x384xf32>
    %88 = vector.extract_strided_slice %83 {offsets = [0, 0], sizes = [8, 128], strides = [1, 1]} : vector<8x384xf32> to vector<8x128xf32>
    %89 = vector.extract_strided_slice %87 {offsets = [0, 0], sizes = [8, 128], strides = [1, 1]} : vector<8x384xf32> to vector<8x128xf32>
    %90 = arith.addf %88, %89 : vector<8x128xf32>
    %91 = arith.negf %90 : vector<8x128xf32>
    %92 = math.exp %91 : vector<8x128xf32>
    %cst_30 = arith.constant 1.000000e+00 : f32
    %93 = vector.broadcast %cst_30 : f32 to vector<8x128xf32>
    %94 = arith.addf %93, %92 : vector<8x128xf32>
    %95 = arith.divf %93, %94 : vector<8x128xf32>
    %96 = vector.extract_strided_slice %83 {offsets = [0, 128], sizes = [8, 128], strides = [1, 1]} : vector<8x384xf32> to vector<8x128xf32>
    %97 = vector.extract_strided_slice %87 {offsets = [0, 128], sizes = [8, 128], strides = [1, 1]} : vector<8x384xf32> to vector<8x128xf32>
    %98 = arith.addf %96, %97 : vector<8x128xf32>
    %99 = arith.negf %98 : vector<8x128xf32>
    %100 = math.exp %99 : vector<8x128xf32>
    %cst_31 = arith.constant 1.000000e+00 : f32
    %101 = vector.broadcast %cst_31 : f32 to vector<8x128xf32>
    %102 = arith.addf %101, %100 : vector<8x128xf32>
    %103 = arith.divf %101, %102 : vector<8x128xf32>
    %104 = vector.extract_strided_slice %83 {offsets = [0, 256], sizes = [8, 128], strides = [1, 1]} : vector<8x384xf32> to vector<8x128xf32>
    %105 = vector.extract_strided_slice %87 {offsets = [0, 256], sizes = [8, 128], strides = [1, 1]} : vector<8x384xf32> to vector<8x128xf32>
    %106 = arith.mulf %95, %105 : vector<8x128xf32>
    %107 = arith.addf %104, %106 : vector<8x128xf32>
    %108 = math.tanh %107 : vector<8x128xf32>
    %cst_32 = arith.constant 1.000000e+00 : f32
    %109 = vector.broadcast %cst_32 : f32 to vector<8x128xf32>
    %110 = arith.subf %109, %103 : vector<8x128xf32>
    %111 = arith.mulf %110, %108 : vector<8x128xf32>
    %112 = arith.mulf %103, %47 : vector<8x128xf32>
    %113 = arith.addf %111, %112 : vector<8x128xf32>
    %114 = arith.truncf %113 : vector<8x128xf32> to vector<8x128xbf16>
    %cst_33 = arith.constant dense<0.000000e+00> : vector<8x384xf32>
    %115 = tpu.matmul %114, %9, %cst_33 {dimension_numbers = #tpu.dot_dimension_numbers<[1], [0], [0], [1], [0, 0, 1, 1], [], []>} : vector<8x128xbf16>, vector<128x384xbf16>, vector<8x384xf32> -> vector<8x384xf32>
    %116 = vector.broadcast %12 : vector<1x384xf32> to vector<8x384xf32>
    %117 = arith.addf %115, %116 : vector<8x384xf32>
    %118 = arith.truncf %81 : vector<8x128xf32> to vector<8x128xbf16>
    %cst_34 = arith.constant dense<0.000000e+00> : vector<8x384xf32>
    %119 = tpu.matmul %118, %10, %cst_34 {dimension_numbers = #tpu.dot_dimension_numbers<[1], [0], [0], [1], [0, 0, 1, 1], [], []>} : vector<8x128xbf16>, vector<128x384xbf16>, vector<8x384xf32> -> vector<8x384xf32>
    %120 = vector.broadcast %13 : vector<1x384xf32> to vector<8x384xf32>
    %121 = arith.addf %119, %120 : vector<8x384xf32>
    %122 = vector.extract_strided_slice %117 {offsets = [0, 0], sizes = [8, 128], strides = [1, 1]} : vector<8x384xf32> to vector<8x128xf32>
    %123 = vector.extract_strided_slice %121 {offsets = [0, 0], sizes = [8, 128], strides = [1, 1]} : vector<8x384xf32> to vector<8x128xf32>
    %124 = arith.addf %122, %123 : vector<8x128xf32>
    %125 = arith.negf %124 : vector<8x128xf32>
    %126 = math.exp %125 : vector<8x128xf32>
    %cst_35 = arith.constant 1.000000e+00 : f32
    %127 = vector.broadcast %cst_35 : f32 to vector<8x128xf32>
    %128 = arith.addf %127, %126 : vector<8x128xf32>
    %129 = arith.divf %127, %128 : vector<8x128xf32>
    %130 = vector.extract_strided_slice %117 {offsets = [0, 128], sizes = [8, 128], strides = [1, 1]} : vector<8x384xf32> to vector<8x128xf32>
    %131 = vector.extract_strided_slice %121 {offsets = [0, 128], sizes = [8, 128], strides = [1, 1]} : vector<8x384xf32> to vector<8x128xf32>
    %132 = arith.addf %130, %131 : vector<8x128xf32>
    %133 = arith.negf %132 : vector<8x128xf32>
    %134 = math.exp %133 : vector<8x128xf32>
    %cst_36 = arith.constant 1.000000e+00 : f32
    %135 = vector.broadcast %cst_36 : f32 to vector<8x128xf32>
    %136 = arith.addf %135, %134 : vector<8x128xf32>
    %137 = arith.divf %135, %136 : vector<8x128xf32>
    %138 = vector.extract_strided_slice %117 {offsets = [0, 256], sizes = [8, 128], strides = [1, 1]} : vector<8x384xf32> to vector<8x128xf32>
    %139 = vector.extract_strided_slice %121 {offsets = [0, 256], sizes = [8, 128], strides = [1, 1]} : vector<8x384xf32> to vector<8x128xf32>
    %140 = arith.mulf %129, %139 : vector<8x128xf32>
    %141 = arith.addf %138, %140 : vector<8x128xf32>
    %142 = math.tanh %141 : vector<8x128xf32>
    %cst_37 = arith.constant 1.000000e+00 : f32
    %143 = vector.broadcast %cst_37 : f32 to vector<8x128xf32>
    %144 = arith.subf %143, %137 : vector<8x128xf32>
    %145 = arith.mulf %144, %142 : vector<8x128xf32>
    %146 = arith.mulf %137, %81 : vector<8x128xf32>
    %147 = arith.addf %145, %146 : vector<8x128xf32>
    %148 = vector.extract_strided_slice %7 {offsets = [2, 0, 0], sizes = [1, 8, 384], strides = [1, 1, 1]} : vector<8x8x384xf32> to vector<1x8x384xf32>
    %149 = vector.shape_cast %148 : vector<1x8x384xf32> to vector<8x384xf32>
    %150 = arith.truncf %113 : vector<8x128xf32> to vector<8x128xbf16>
    %cst_38 = arith.constant dense<0.000000e+00> : vector<8x384xf32>
    %151 = tpu.matmul %150, %8, %cst_38 {dimension_numbers = #tpu.dot_dimension_numbers<[1], [0], [0], [1], [0, 0, 1, 1], [], []>} : vector<8x128xbf16>, vector<128x384xbf16>, vector<8x384xf32> -> vector<8x384xf32>
    %152 = vector.broadcast %11 : vector<1x384xf32> to vector<8x384xf32>
    %153 = arith.addf %151, %152 : vector<8x384xf32>
    %154 = vector.extract_strided_slice %149 {offsets = [0, 0], sizes = [8, 128], strides = [1, 1]} : vector<8x384xf32> to vector<8x128xf32>
    %155 = vector.extract_strided_slice %153 {offsets = [0, 0], sizes = [8, 128], strides = [1, 1]} : vector<8x384xf32> to vector<8x128xf32>
    %156 = arith.addf %154, %155 : vector<8x128xf32>
    %157 = arith.negf %156 : vector<8x128xf32>
    %158 = math.exp %157 : vector<8x128xf32>
    %cst_39 = arith.constant 1.000000e+00 : f32
    %159 = vector.broadcast %cst_39 : f32 to vector<8x128xf32>
    %160 = arith.addf %159, %158 : vector<8x128xf32>
    %161 = arith.divf %159, %160 : vector<8x128xf32>
    %162 = vector.extract_strided_slice %149 {offsets = [0, 128], sizes = [8, 128], strides = [1, 1]} : vector<8x384xf32> to vector<8x128xf32>
    %163 = vector.extract_strided_slice %153 {offsets = [0, 128], sizes = [8, 128], strides = [1, 1]} : vector<8x384xf32> to vector<8x128xf32>
    %164 = arith.addf %162, %163 : vector<8x128xf32>
    %165 = arith.negf %164 : vector<8x128xf32>
    %166 = math.exp %165 : vector<8x128xf32>
    %cst_40 = arith.constant 1.000000e+00 : f32
    %167 = vector.broadcast %cst_40 : f32 to vector<8x128xf32>
    %168 = arith.addf %167, %166 : vector<8x128xf32>
    %169 = arith.divf %167, %168 : vector<8x128xf32>
    %170 = vector.extract_strided_slice %149 {offsets = [0, 256], sizes = [8, 128], strides = [1, 1]} : vector<8x384xf32> to vector<8x128xf32>
    %171 = vector.extract_strided_slice %153 {offsets = [0, 256], sizes = [8, 128], strides = [1, 1]} : vector<8x384xf32> to vector<8x128xf32>
    %172 = arith.mulf %161, %171 : vector<8x128xf32>
    %173 = arith.addf %170, %172 : vector<8x128xf32>
    %174 = math.tanh %173 : vector<8x128xf32>
    %cst_41 = arith.constant 1.000000e+00 : f32
    %175 = vector.broadcast %cst_41 : f32 to vector<8x128xf32>
    %176 = arith.subf %175, %169 : vector<8x128xf32>
    %177 = arith.mulf %176, %174 : vector<8x128xf32>
    %178 = arith.mulf %169, %113 : vector<8x128xf32>
    %179 = arith.addf %177, %178 : vector<8x128xf32>
    %180 = arith.truncf %179 : vector<8x128xf32> to vector<8x128xbf16>
    %cst_42 = arith.constant dense<0.000000e+00> : vector<8x384xf32>
    %181 = tpu.matmul %180, %9, %cst_42 {dimension_numbers = #tpu.dot_dimension_numbers<[1], [0], [0], [1], [0, 0, 1, 1], [], []>} : vector<8x128xbf16>, vector<128x384xbf16>, vector<8x384xf32> -> vector<8x384xf32>
    %182 = vector.broadcast %12 : vector<1x384xf32> to vector<8x384xf32>
    %183 = arith.addf %181, %182 : vector<8x384xf32>
    %184 = arith.truncf %147 : vector<8x128xf32> to vector<8x128xbf16>
    %cst_43 = arith.constant dense<0.000000e+00> : vector<8x384xf32>
    %185 = tpu.matmul %184, %10, %cst_43 {dimension_numbers = #tpu.dot_dimension_numbers<[1], [0], [0], [1], [0, 0, 1, 1], [], []>} : vector<8x128xbf16>, vector<128x384xbf16>, vector<8x384xf32> -> vector<8x384xf32>
    %186 = vector.broadcast %13 : vector<1x384xf32> to vector<8x384xf32>
    %187 = arith.addf %185, %186 : vector<8x384xf32>
    %188 = vector.extract_strided_slice %183 {offsets = [0, 0], sizes = [8, 128], strides = [1, 1]} : vector<8x384xf32> to vector<8x128xf32>
    %189 = vector.extract_strided_slice %187 {offsets = [0, 0], sizes = [8, 128], strides = [1, 1]} : vector<8x384xf32> to vector<8x128xf32>
    %190 = arith.addf %188, %189 : vector<8x128xf32>
    %191 = arith.negf %190 : vector<8x128xf32>
    %192 = math.exp %191 : vector<8x128xf32>
    %cst_44 = arith.constant 1.000000e+00 : f32
    %193 = vector.broadcast %cst_44 : f32 to vector<8x128xf32>
    %194 = arith.addf %193, %192 : vector<8x128xf32>
    %195 = arith.divf %193, %194 : vector<8x128xf32>
    %196 = vector.extract_strided_slice %183 {offsets = [0, 128], sizes = [8, 128], strides = [1, 1]} : vector<8x384xf32> to vector<8x128xf32>
    %197 = vector.extract_strided_slice %187 {offsets = [0, 128], sizes = [8, 128], strides = [1, 1]} : vector<8x384xf32> to vector<8x128xf32>
    %198 = arith.addf %196, %197 : vector<8x128xf32>
    %199 = arith.negf %198 : vector<8x128xf32>
    %200 = math.exp %199 : vector<8x128xf32>
    %cst_45 = arith.constant 1.000000e+00 : f32
    %201 = vector.broadcast %cst_45 : f32 to vector<8x128xf32>
    %202 = arith.addf %201, %200 : vector<8x128xf32>
    %203 = arith.divf %201, %202 : vector<8x128xf32>
    %204 = vector.extract_strided_slice %183 {offsets = [0, 256], sizes = [8, 128], strides = [1, 1]} : vector<8x384xf32> to vector<8x128xf32>
    %205 = vector.extract_strided_slice %187 {offsets = [0, 256], sizes = [8, 128], strides = [1, 1]} : vector<8x384xf32> to vector<8x128xf32>
    %206 = arith.mulf %195, %205 : vector<8x128xf32>
    %207 = arith.addf %204, %206 : vector<8x128xf32>
    %208 = math.tanh %207 : vector<8x128xf32>
    %cst_46 = arith.constant 1.000000e+00 : f32
    %209 = vector.broadcast %cst_46 : f32 to vector<8x128xf32>
    %210 = arith.subf %209, %203 : vector<8x128xf32>
    %211 = arith.mulf %210, %208 : vector<8x128xf32>
    %212 = arith.mulf %203, %147 : vector<8x128xf32>
    %213 = arith.addf %211, %212 : vector<8x128xf32>
    %214 = vector.extract_strided_slice %7 {offsets = [3, 0, 0], sizes = [1, 8, 384], strides = [1, 1, 1]} : vector<8x8x384xf32> to vector<1x8x384xf32>
    %215 = vector.shape_cast %214 : vector<1x8x384xf32> to vector<8x384xf32>
    %216 = arith.truncf %179 : vector<8x128xf32> to vector<8x128xbf16>
    %cst_47 = arith.constant dense<0.000000e+00> : vector<8x384xf32>
    %217 = tpu.matmul %216, %8, %cst_47 {dimension_numbers = #tpu.dot_dimension_numbers<[1], [0], [0], [1], [0, 0, 1, 1], [], []>} : vector<8x128xbf16>, vector<128x384xbf16>, vector<8x384xf32> -> vector<8x384xf32>
    %218 = vector.broadcast %11 : vector<1x384xf32> to vector<8x384xf32>
    %219 = arith.addf %217, %218 : vector<8x384xf32>
    %220 = vector.extract_strided_slice %215 {offsets = [0, 0], sizes = [8, 128], strides = [1, 1]} : vector<8x384xf32> to vector<8x128xf32>
    %221 = vector.extract_strided_slice %219 {offsets = [0, 0], sizes = [8, 128], strides = [1, 1]} : vector<8x384xf32> to vector<8x128xf32>
    %222 = arith.addf %220, %221 : vector<8x128xf32>
    %223 = arith.negf %222 : vector<8x128xf32>
    %224 = math.exp %223 : vector<8x128xf32>
    %cst_48 = arith.constant 1.000000e+00 : f32
    %225 = vector.broadcast %cst_48 : f32 to vector<8x128xf32>
    %226 = arith.addf %225, %224 : vector<8x128xf32>
    %227 = arith.divf %225, %226 : vector<8x128xf32>
    %228 = vector.extract_strided_slice %215 {offsets = [0, 128], sizes = [8, 128], strides = [1, 1]} : vector<8x384xf32> to vector<8x128xf32>
    %229 = vector.extract_strided_slice %219 {offsets = [0, 128], sizes = [8, 128], strides = [1, 1]} : vector<8x384xf32> to vector<8x128xf32>
    %230 = arith.addf %228, %229 : vector<8x128xf32>
    %231 = arith.negf %230 : vector<8x128xf32>
    %232 = math.exp %231 : vector<8x128xf32>
    %cst_49 = arith.constant 1.000000e+00 : f32
    %233 = vector.broadcast %cst_49 : f32 to vector<8x128xf32>
    %234 = arith.addf %233, %232 : vector<8x128xf32>
    %235 = arith.divf %233, %234 : vector<8x128xf32>
    %236 = vector.extract_strided_slice %215 {offsets = [0, 256], sizes = [8, 128], strides = [1, 1]} : vector<8x384xf32> to vector<8x128xf32>
    %237 = vector.extract_strided_slice %219 {offsets = [0, 256], sizes = [8, 128], strides = [1, 1]} : vector<8x384xf32> to vector<8x128xf32>
    %238 = arith.mulf %227, %237 : vector<8x128xf32>
    %239 = arith.addf %236, %238 : vector<8x128xf32>
    %240 = math.tanh %239 : vector<8x128xf32>
    %cst_50 = arith.constant 1.000000e+00 : f32
    %241 = vector.broadcast %cst_50 : f32 to vector<8x128xf32>
    %242 = arith.subf %241, %235 : vector<8x128xf32>
    %243 = arith.mulf %242, %240 : vector<8x128xf32>
    %244 = arith.mulf %235, %179 : vector<8x128xf32>
    %245 = arith.addf %243, %244 : vector<8x128xf32>
    %246 = arith.truncf %245 : vector<8x128xf32> to vector<8x128xbf16>
    %cst_51 = arith.constant dense<0.000000e+00> : vector<8x384xf32>
    %247 = tpu.matmul %246, %9, %cst_51 {dimension_numbers = #tpu.dot_dimension_numbers<[1], [0], [0], [1], [0, 0, 1, 1], [], []>} : vector<8x128xbf16>, vector<128x384xbf16>, vector<8x384xf32> -> vector<8x384xf32>
    %248 = vector.broadcast %12 : vector<1x384xf32> to vector<8x384xf32>
    %249 = arith.addf %247, %248 : vector<8x384xf32>
    %250 = arith.truncf %213 : vector<8x128xf32> to vector<8x128xbf16>
    %cst_52 = arith.constant dense<0.000000e+00> : vector<8x384xf32>
    %251 = tpu.matmul %250, %10, %cst_52 {dimension_numbers = #tpu.dot_dimension_numbers<[1], [0], [0], [1], [0, 0, 1, 1], [], []>} : vector<8x128xbf16>, vector<128x384xbf16>, vector<8x384xf32> -> vector<8x384xf32>
    %252 = vector.broadcast %13 : vector<1x384xf32> to vector<8x384xf32>
    %253 = arith.addf %251, %252 : vector<8x384xf32>
    %254 = vector.extract_strided_slice %249 {offsets = [0, 0], sizes = [8, 128], strides = [1, 1]} : vector<8x384xf32> to vector<8x128xf32>
    %255 = vector.extract_strided_slice %253 {offsets = [0, 0], sizes = [8, 128], strides = [1, 1]} : vector<8x384xf32> to vector<8x128xf32>
    %256 = arith.addf %254, %255 : vector<8x128xf32>
    %257 = arith.negf %256 : vector<8x128xf32>
    %258 = math.exp %257 : vector<8x128xf32>
    %cst_53 = arith.constant 1.000000e+00 : f32
    %259 = vector.broadcast %cst_53 : f32 to vector<8x128xf32>
    %260 = arith.addf %259, %258 : vector<8x128xf32>
    %261 = arith.divf %259, %260 : vector<8x128xf32>
    %262 = vector.extract_strided_slice %249 {offsets = [0, 128], sizes = [8, 128], strides = [1, 1]} : vector<8x384xf32> to vector<8x128xf32>
    %263 = vector.extract_strided_slice %253 {offsets = [0, 128], sizes = [8, 128], strides = [1, 1]} : vector<8x384xf32> to vector<8x128xf32>
    %264 = arith.addf %262, %263 : vector<8x128xf32>
    %265 = arith.negf %264 : vector<8x128xf32>
    %266 = math.exp %265 : vector<8x128xf32>
    %cst_54 = arith.constant 1.000000e+00 : f32
    %267 = vector.broadcast %cst_54 : f32 to vector<8x128xf32>
    %268 = arith.addf %267, %266 : vector<8x128xf32>
    %269 = arith.divf %267, %268 : vector<8x128xf32>
    %270 = vector.extract_strided_slice %249 {offsets = [0, 256], sizes = [8, 128], strides = [1, 1]} : vector<8x384xf32> to vector<8x128xf32>
    %271 = vector.extract_strided_slice %253 {offsets = [0, 256], sizes = [8, 128], strides = [1, 1]} : vector<8x384xf32> to vector<8x128xf32>
    %272 = arith.mulf %261, %271 : vector<8x128xf32>
    %273 = arith.addf %270, %272 : vector<8x128xf32>
    %274 = math.tanh %273 : vector<8x128xf32>
    %cst_55 = arith.constant 1.000000e+00 : f32
    %275 = vector.broadcast %cst_55 : f32 to vector<8x128xf32>
    %276 = arith.subf %275, %269 : vector<8x128xf32>
    %277 = arith.mulf %276, %274 : vector<8x128xf32>
    %278 = arith.mulf %269, %213 : vector<8x128xf32>
    %279 = arith.addf %277, %278 : vector<8x128xf32>
    %280 = vector.extract_strided_slice %7 {offsets = [4, 0, 0], sizes = [1, 8, 384], strides = [1, 1, 1]} : vector<8x8x384xf32> to vector<1x8x384xf32>
    %281 = vector.shape_cast %280 : vector<1x8x384xf32> to vector<8x384xf32>
    %282 = arith.truncf %245 : vector<8x128xf32> to vector<8x128xbf16>
    %cst_56 = arith.constant dense<0.000000e+00> : vector<8x384xf32>
    %283 = tpu.matmul %282, %8, %cst_56 {dimension_numbers = #tpu.dot_dimension_numbers<[1], [0], [0], [1], [0, 0, 1, 1], [], []>} : vector<8x128xbf16>, vector<128x384xbf16>, vector<8x384xf32> -> vector<8x384xf32>
    %284 = vector.broadcast %11 : vector<1x384xf32> to vector<8x384xf32>
    %285 = arith.addf %283, %284 : vector<8x384xf32>
    %286 = vector.extract_strided_slice %281 {offsets = [0, 0], sizes = [8, 128], strides = [1, 1]} : vector<8x384xf32> to vector<8x128xf32>
    %287 = vector.extract_strided_slice %285 {offsets = [0, 0], sizes = [8, 128], strides = [1, 1]} : vector<8x384xf32> to vector<8x128xf32>
    %288 = arith.addf %286, %287 : vector<8x128xf32>
    %289 = arith.negf %288 : vector<8x128xf32>
    %290 = math.exp %289 : vector<8x128xf32>
    %cst_57 = arith.constant 1.000000e+00 : f32
    %291 = vector.broadcast %cst_57 : f32 to vector<8x128xf32>
    %292 = arith.addf %291, %290 : vector<8x128xf32>
    %293 = arith.divf %291, %292 : vector<8x128xf32>
    %294 = vector.extract_strided_slice %281 {offsets = [0, 128], sizes = [8, 128], strides = [1, 1]} : vector<8x384xf32> to vector<8x128xf32>
    %295 = vector.extract_strided_slice %285 {offsets = [0, 128], sizes = [8, 128], strides = [1, 1]} : vector<8x384xf32> to vector<8x128xf32>
    %296 = arith.addf %294, %295 : vector<8x128xf32>
    %297 = arith.negf %296 : vector<8x128xf32>
    %298 = math.exp %297 : vector<8x128xf32>
    %cst_58 = arith.constant 1.000000e+00 : f32
    %299 = vector.broadcast %cst_58 : f32 to vector<8x128xf32>
    %300 = arith.addf %299, %298 : vector<8x128xf32>
    %301 = arith.divf %299, %300 : vector<8x128xf32>
    %302 = vector.extract_strided_slice %281 {offsets = [0, 256], sizes = [8, 128], strides = [1, 1]} : vector<8x384xf32> to vector<8x128xf32>
    %303 = vector.extract_strided_slice %285 {offsets = [0, 256], sizes = [8, 128], strides = [1, 1]} : vector<8x384xf32> to vector<8x128xf32>
    %304 = arith.mulf %293, %303 : vector<8x128xf32>
    %305 = arith.addf %302, %304 : vector<8x128xf32>
    %306 = math.tanh %305 : vector<8x128xf32>
    %cst_59 = arith.constant 1.000000e+00 : f32
    %307 = vector.broadcast %cst_59 : f32 to vector<8x128xf32>
    %308 = arith.subf %307, %301 : vector<8x128xf32>
    %309 = arith.mulf %308, %306 : vector<8x128xf32>
    %310 = arith.mulf %301, %245 : vector<8x128xf32>
    %311 = arith.addf %309, %310 : vector<8x128xf32>
    %312 = arith.truncf %311 : vector<8x128xf32> to vector<8x128xbf16>
    %cst_60 = arith.constant dense<0.000000e+00> : vector<8x384xf32>
    %313 = tpu.matmul %312, %9, %cst_60 {dimension_numbers = #tpu.dot_dimension_numbers<[1], [0], [0], [1], [0, 0, 1, 1], [], []>} : vector<8x128xbf16>, vector<128x384xbf16>, vector<8x384xf32> -> vector<8x384xf32>
    %314 = vector.broadcast %12 : vector<1x384xf32> to vector<8x384xf32>
    %315 = arith.addf %313, %314 : vector<8x384xf32>
    %316 = arith.truncf %279 : vector<8x128xf32> to vector<8x128xbf16>
    %cst_61 = arith.constant dense<0.000000e+00> : vector<8x384xf32>
    %317 = tpu.matmul %316, %10, %cst_61 {dimension_numbers = #tpu.dot_dimension_numbers<[1], [0], [0], [1], [0, 0, 1, 1], [], []>} : vector<8x128xbf16>, vector<128x384xbf16>, vector<8x384xf32> -> vector<8x384xf32>
    %318 = vector.broadcast %13 : vector<1x384xf32> to vector<8x384xf32>
    %319 = arith.addf %317, %318 : vector<8x384xf32>
    %320 = vector.extract_strided_slice %315 {offsets = [0, 0], sizes = [8, 128], strides = [1, 1]} : vector<8x384xf32> to vector<8x128xf32>
    %321 = vector.extract_strided_slice %319 {offsets = [0, 0], sizes = [8, 128], strides = [1, 1]} : vector<8x384xf32> to vector<8x128xf32>
    %322 = arith.addf %320, %321 : vector<8x128xf32>
    %323 = arith.negf %322 : vector<8x128xf32>
    %324 = math.exp %323 : vector<8x128xf32>
    %cst_62 = arith.constant 1.000000e+00 : f32
    %325 = vector.broadcast %cst_62 : f32 to vector<8x128xf32>
    %326 = arith.addf %325, %324 : vector<8x128xf32>
    %327 = arith.divf %325, %326 : vector<8x128xf32>
    %328 = vector.extract_strided_slice %315 {offsets = [0, 128], sizes = [8, 128], strides = [1, 1]} : vector<8x384xf32> to vector<8x128xf32>
    %329 = vector.extract_strided_slice %319 {offsets = [0, 128], sizes = [8, 128], strides = [1, 1]} : vector<8x384xf32> to vector<8x128xf32>
    %330 = arith.addf %328, %329 : vector<8x128xf32>
    %331 = arith.negf %330 : vector<8x128xf32>
    %332 = math.exp %331 : vector<8x128xf32>
    %cst_63 = arith.constant 1.000000e+00 : f32
    %333 = vector.broadcast %cst_63 : f32 to vector<8x128xf32>
    %334 = arith.addf %333, %332 : vector<8x128xf32>
    %335 = arith.divf %333, %334 : vector<8x128xf32>
    %336 = vector.extract_strided_slice %315 {offsets = [0, 256], sizes = [8, 128], strides = [1, 1]} : vector<8x384xf32> to vector<8x128xf32>
    %337 = vector.extract_strided_slice %319 {offsets = [0, 256], sizes = [8, 128], strides = [1, 1]} : vector<8x384xf32> to vector<8x128xf32>
    %338 = arith.mulf %327, %337 : vector<8x128xf32>
    %339 = arith.addf %336, %338 : vector<8x128xf32>
    %340 = math.tanh %339 : vector<8x128xf32>
    %cst_64 = arith.constant 1.000000e+00 : f32
    %341 = vector.broadcast %cst_64 : f32 to vector<8x128xf32>
    %342 = arith.subf %341, %335 : vector<8x128xf32>
    %343 = arith.mulf %342, %340 : vector<8x128xf32>
    %344 = arith.mulf %335, %279 : vector<8x128xf32>
    %345 = arith.addf %343, %344 : vector<8x128xf32>
    %346 = vector.extract_strided_slice %7 {offsets = [5, 0, 0], sizes = [1, 8, 384], strides = [1, 1, 1]} : vector<8x8x384xf32> to vector<1x8x384xf32>
    %347 = vector.shape_cast %346 : vector<1x8x384xf32> to vector<8x384xf32>
    %348 = arith.truncf %311 : vector<8x128xf32> to vector<8x128xbf16>
    %cst_65 = arith.constant dense<0.000000e+00> : vector<8x384xf32>
    %349 = tpu.matmul %348, %8, %cst_65 {dimension_numbers = #tpu.dot_dimension_numbers<[1], [0], [0], [1], [0, 0, 1, 1], [], []>} : vector<8x128xbf16>, vector<128x384xbf16>, vector<8x384xf32> -> vector<8x384xf32>
    %350 = vector.broadcast %11 : vector<1x384xf32> to vector<8x384xf32>
    %351 = arith.addf %349, %350 : vector<8x384xf32>
    %352 = vector.extract_strided_slice %347 {offsets = [0, 0], sizes = [8, 128], strides = [1, 1]} : vector<8x384xf32> to vector<8x128xf32>
    %353 = vector.extract_strided_slice %351 {offsets = [0, 0], sizes = [8, 128], strides = [1, 1]} : vector<8x384xf32> to vector<8x128xf32>
    %354 = arith.addf %352, %353 : vector<8x128xf32>
    %355 = arith.negf %354 : vector<8x128xf32>
    %356 = math.exp %355 : vector<8x128xf32>
    %cst_66 = arith.constant 1.000000e+00 : f32
    %357 = vector.broadcast %cst_66 : f32 to vector<8x128xf32>
    %358 = arith.addf %357, %356 : vector<8x128xf32>
    %359 = arith.divf %357, %358 : vector<8x128xf32>
    %360 = vector.extract_strided_slice %347 {offsets = [0, 128], sizes = [8, 128], strides = [1, 1]} : vector<8x384xf32> to vector<8x128xf32>
    %361 = vector.extract_strided_slice %351 {offsets = [0, 128], sizes = [8, 128], strides = [1, 1]} : vector<8x384xf32> to vector<8x128xf32>
    %362 = arith.addf %360, %361 : vector<8x128xf32>
    %363 = arith.negf %362 : vector<8x128xf32>
    %364 = math.exp %363 : vector<8x128xf32>
    %cst_67 = arith.constant 1.000000e+00 : f32
    %365 = vector.broadcast %cst_67 : f32 to vector<8x128xf32>
    %366 = arith.addf %365, %364 : vector<8x128xf32>
    %367 = arith.divf %365, %366 : vector<8x128xf32>
    %368 = vector.extract_strided_slice %347 {offsets = [0, 256], sizes = [8, 128], strides = [1, 1]} : vector<8x384xf32> to vector<8x128xf32>
    %369 = vector.extract_strided_slice %351 {offsets = [0, 256], sizes = [8, 128], strides = [1, 1]} : vector<8x384xf32> to vector<8x128xf32>
    %370 = arith.mulf %359, %369 : vector<8x128xf32>
    %371 = arith.addf %368, %370 : vector<8x128xf32>
    %372 = math.tanh %371 : vector<8x128xf32>
    %cst_68 = arith.constant 1.000000e+00 : f32
    %373 = vector.broadcast %cst_68 : f32 to vector<8x128xf32>
    %374 = arith.subf %373, %367 : vector<8x128xf32>
    %375 = arith.mulf %374, %372 : vector<8x128xf32>
    %376 = arith.mulf %367, %311 : vector<8x128xf32>
    %377 = arith.addf %375, %376 : vector<8x128xf32>
    %378 = arith.truncf %377 : vector<8x128xf32> to vector<8x128xbf16>
    %cst_69 = arith.constant dense<0.000000e+00> : vector<8x384xf32>
    %379 = tpu.matmul %378, %9, %cst_69 {dimension_numbers = #tpu.dot_dimension_numbers<[1], [0], [0], [1], [0, 0, 1, 1], [], []>} : vector<8x128xbf16>, vector<128x384xbf16>, vector<8x384xf32> -> vector<8x384xf32>
    %380 = vector.broadcast %12 : vector<1x384xf32> to vector<8x384xf32>
    %381 = arith.addf %379, %380 : vector<8x384xf32>
    %382 = arith.truncf %345 : vector<8x128xf32> to vector<8x128xbf16>
    %cst_70 = arith.constant dense<0.000000e+00> : vector<8x384xf32>
    %383 = tpu.matmul %382, %10, %cst_70 {dimension_numbers = #tpu.dot_dimension_numbers<[1], [0], [0], [1], [0, 0, 1, 1], [], []>} : vector<8x128xbf16>, vector<128x384xbf16>, vector<8x384xf32> -> vector<8x384xf32>
    %384 = vector.broadcast %13 : vector<1x384xf32> to vector<8x384xf32>
    %385 = arith.addf %383, %384 : vector<8x384xf32>
    %386 = vector.extract_strided_slice %381 {offsets = [0, 0], sizes = [8, 128], strides = [1, 1]} : vector<8x384xf32> to vector<8x128xf32>
    %387 = vector.extract_strided_slice %385 {offsets = [0, 0], sizes = [8, 128], strides = [1, 1]} : vector<8x384xf32> to vector<8x128xf32>
    %388 = arith.addf %386, %387 : vector<8x128xf32>
    %389 = arith.negf %388 : vector<8x128xf32>
    %390 = math.exp %389 : vector<8x128xf32>
    %cst_71 = arith.constant 1.000000e+00 : f32
    %391 = vector.broadcast %cst_71 : f32 to vector<8x128xf32>
    %392 = arith.addf %391, %390 : vector<8x128xf32>
    %393 = arith.divf %391, %392 : vector<8x128xf32>
    %394 = vector.extract_strided_slice %381 {offsets = [0, 128], sizes = [8, 128], strides = [1, 1]} : vector<8x384xf32> to vector<8x128xf32>
    %395 = vector.extract_strided_slice %385 {offsets = [0, 128], sizes = [8, 128], strides = [1, 1]} : vector<8x384xf32> to vector<8x128xf32>
    %396 = arith.addf %394, %395 : vector<8x128xf32>
    %397 = arith.negf %396 : vector<8x128xf32>
    %398 = math.exp %397 : vector<8x128xf32>
    %cst_72 = arith.constant 1.000000e+00 : f32
    %399 = vector.broadcast %cst_72 : f32 to vector<8x128xf32>
    %400 = arith.addf %399, %398 : vector<8x128xf32>
    %401 = arith.divf %399, %400 : vector<8x128xf32>
    %402 = vector.extract_strided_slice %381 {offsets = [0, 256], sizes = [8, 128], strides = [1, 1]} : vector<8x384xf32> to vector<8x128xf32>
    %403 = vector.extract_strided_slice %385 {offsets = [0, 256], sizes = [8, 128], strides = [1, 1]} : vector<8x384xf32> to vector<8x128xf32>
    %404 = arith.mulf %393, %403 : vector<8x128xf32>
    %405 = arith.addf %402, %404 : vector<8x128xf32>
    %406 = math.tanh %405 : vector<8x128xf32>
    %cst_73 = arith.constant 1.000000e+00 : f32
    %407 = vector.broadcast %cst_73 : f32 to vector<8x128xf32>
    %408 = arith.subf %407, %401 : vector<8x128xf32>
    %409 = arith.mulf %408, %406 : vector<8x128xf32>
    %410 = arith.mulf %401, %345 : vector<8x128xf32>
    %411 = arith.addf %409, %410 : vector<8x128xf32>
    %412 = vector.extract_strided_slice %7 {offsets = [6, 0, 0], sizes = [1, 8, 384], strides = [1, 1, 1]} : vector<8x8x384xf32> to vector<1x8x384xf32>
    %413 = vector.shape_cast %412 : vector<1x8x384xf32> to vector<8x384xf32>
    %414 = arith.truncf %377 : vector<8x128xf32> to vector<8x128xbf16>
    %cst_74 = arith.constant dense<0.000000e+00> : vector<8x384xf32>
    %415 = tpu.matmul %414, %8, %cst_74 {dimension_numbers = #tpu.dot_dimension_numbers<[1], [0], [0], [1], [0, 0, 1, 1], [], []>} : vector<8x128xbf16>, vector<128x384xbf16>, vector<8x384xf32> -> vector<8x384xf32>
    %416 = vector.broadcast %11 : vector<1x384xf32> to vector<8x384xf32>
    %417 = arith.addf %415, %416 : vector<8x384xf32>
    %418 = vector.extract_strided_slice %413 {offsets = [0, 0], sizes = [8, 128], strides = [1, 1]} : vector<8x384xf32> to vector<8x128xf32>
    %419 = vector.extract_strided_slice %417 {offsets = [0, 0], sizes = [8, 128], strides = [1, 1]} : vector<8x384xf32> to vector<8x128xf32>
    %420 = arith.addf %418, %419 : vector<8x128xf32>
    %421 = arith.negf %420 : vector<8x128xf32>
    %422 = math.exp %421 : vector<8x128xf32>
    %cst_75 = arith.constant 1.000000e+00 : f32
    %423 = vector.broadcast %cst_75 : f32 to vector<8x128xf32>
    %424 = arith.addf %423, %422 : vector<8x128xf32>
    %425 = arith.divf %423, %424 : vector<8x128xf32>
    %426 = vector.extract_strided_slice %413 {offsets = [0, 128], sizes = [8, 128], strides = [1, 1]} : vector<8x384xf32> to vector<8x128xf32>
    %427 = vector.extract_strided_slice %417 {offsets = [0, 128], sizes = [8, 128], strides = [1, 1]} : vector<8x384xf32> to vector<8x128xf32>
    %428 = arith.addf %426, %427 : vector<8x128xf32>
    %429 = arith.negf %428 : vector<8x128xf32>
    %430 = math.exp %429 : vector<8x128xf32>
    %cst_76 = arith.constant 1.000000e+00 : f32
    %431 = vector.broadcast %cst_76 : f32 to vector<8x128xf32>
    %432 = arith.addf %431, %430 : vector<8x128xf32>
    %433 = arith.divf %431, %432 : vector<8x128xf32>
    %434 = vector.extract_strided_slice %413 {offsets = [0, 256], sizes = [8, 128], strides = [1, 1]} : vector<8x384xf32> to vector<8x128xf32>
    %435 = vector.extract_strided_slice %417 {offsets = [0, 256], sizes = [8, 128], strides = [1, 1]} : vector<8x384xf32> to vector<8x128xf32>
    %436 = arith.mulf %425, %435 : vector<8x128xf32>
    %437 = arith.addf %434, %436 : vector<8x128xf32>
    %438 = math.tanh %437 : vector<8x128xf32>
    %cst_77 = arith.constant 1.000000e+00 : f32
    %439 = vector.broadcast %cst_77 : f32 to vector<8x128xf32>
    %440 = arith.subf %439, %433 : vector<8x128xf32>
    %441 = arith.mulf %440, %438 : vector<8x128xf32>
    %442 = arith.mulf %433, %377 : vector<8x128xf32>
    %443 = arith.addf %441, %442 : vector<8x128xf32>
    %444 = arith.truncf %443 : vector<8x128xf32> to vector<8x128xbf16>
    %cst_78 = arith.constant dense<0.000000e+00> : vector<8x384xf32>
    %445 = tpu.matmul %444, %9, %cst_78 {dimension_numbers = #tpu.dot_dimension_numbers<[1], [0], [0], [1], [0, 0, 1, 1], [], []>} : vector<8x128xbf16>, vector<128x384xbf16>, vector<8x384xf32> -> vector<8x384xf32>
    %446 = vector.broadcast %12 : vector<1x384xf32> to vector<8x384xf32>
    %447 = arith.addf %445, %446 : vector<8x384xf32>
    %448 = arith.truncf %411 : vector<8x128xf32> to vector<8x128xbf16>
    %cst_79 = arith.constant dense<0.000000e+00> : vector<8x384xf32>
    %449 = tpu.matmul %448, %10, %cst_79 {dimension_numbers = #tpu.dot_dimension_numbers<[1], [0], [0], [1], [0, 0, 1, 1], [], []>} : vector<8x128xbf16>, vector<128x384xbf16>, vector<8x384xf32> -> vector<8x384xf32>
    %450 = vector.broadcast %13 : vector<1x384xf32> to vector<8x384xf32>
    %451 = arith.addf %449, %450 : vector<8x384xf32>
    %452 = vector.extract_strided_slice %447 {offsets = [0, 0], sizes = [8, 128], strides = [1, 1]} : vector<8x384xf32> to vector<8x128xf32>
    %453 = vector.extract_strided_slice %451 {offsets = [0, 0], sizes = [8, 128], strides = [1, 1]} : vector<8x384xf32> to vector<8x128xf32>
    %454 = arith.addf %452, %453 : vector<8x128xf32>
    %455 = arith.negf %454 : vector<8x128xf32>
    %456 = math.exp %455 : vector<8x128xf32>
    %cst_80 = arith.constant 1.000000e+00 : f32
    %457 = vector.broadcast %cst_80 : f32 to vector<8x128xf32>
    %458 = arith.addf %457, %456 : vector<8x128xf32>
    %459 = arith.divf %457, %458 : vector<8x128xf32>
    %460 = vector.extract_strided_slice %447 {offsets = [0, 128], sizes = [8, 128], strides = [1, 1]} : vector<8x384xf32> to vector<8x128xf32>
    %461 = vector.extract_strided_slice %451 {offsets = [0, 128], sizes = [8, 128], strides = [1, 1]} : vector<8x384xf32> to vector<8x128xf32>
    %462 = arith.addf %460, %461 : vector<8x128xf32>
    %463 = arith.negf %462 : vector<8x128xf32>
    %464 = math.exp %463 : vector<8x128xf32>
    %cst_81 = arith.constant 1.000000e+00 : f32
    %465 = vector.broadcast %cst_81 : f32 to vector<8x128xf32>
    %466 = arith.addf %465, %464 : vector<8x128xf32>
    %467 = arith.divf %465, %466 : vector<8x128xf32>
    %468 = vector.extract_strided_slice %447 {offsets = [0, 256], sizes = [8, 128], strides = [1, 1]} : vector<8x384xf32> to vector<8x128xf32>
    %469 = vector.extract_strided_slice %451 {offsets = [0, 256], sizes = [8, 128], strides = [1, 1]} : vector<8x384xf32> to vector<8x128xf32>
    %470 = arith.mulf %459, %469 : vector<8x128xf32>
    %471 = arith.addf %468, %470 : vector<8x128xf32>
    %472 = math.tanh %471 : vector<8x128xf32>
    %cst_82 = arith.constant 1.000000e+00 : f32
    %473 = vector.broadcast %cst_82 : f32 to vector<8x128xf32>
    %474 = arith.subf %473, %467 : vector<8x128xf32>
    %475 = arith.mulf %474, %472 : vector<8x128xf32>
    %476 = arith.mulf %467, %411 : vector<8x128xf32>
    %477 = arith.addf %475, %476 : vector<8x128xf32>
    %478 = vector.extract_strided_slice %7 {offsets = [7, 0, 0], sizes = [1, 8, 384], strides = [1, 1, 1]} : vector<8x8x384xf32> to vector<1x8x384xf32>
    %479 = vector.shape_cast %478 : vector<1x8x384xf32> to vector<8x384xf32>
    %480 = arith.truncf %443 : vector<8x128xf32> to vector<8x128xbf16>
    %cst_83 = arith.constant dense<0.000000e+00> : vector<8x384xf32>
    %481 = tpu.matmul %480, %8, %cst_83 {dimension_numbers = #tpu.dot_dimension_numbers<[1], [0], [0], [1], [0, 0, 1, 1], [], []>} : vector<8x128xbf16>, vector<128x384xbf16>, vector<8x384xf32> -> vector<8x384xf32>
    %482 = vector.broadcast %11 : vector<1x384xf32> to vector<8x384xf32>
    %483 = arith.addf %481, %482 : vector<8x384xf32>
    %484 = vector.extract_strided_slice %479 {offsets = [0, 0], sizes = [8, 128], strides = [1, 1]} : vector<8x384xf32> to vector<8x128xf32>
    %485 = vector.extract_strided_slice %483 {offsets = [0, 0], sizes = [8, 128], strides = [1, 1]} : vector<8x384xf32> to vector<8x128xf32>
    %486 = arith.addf %484, %485 : vector<8x128xf32>
    %487 = arith.negf %486 : vector<8x128xf32>
    %488 = math.exp %487 : vector<8x128xf32>
    %cst_84 = arith.constant 1.000000e+00 : f32
    %489 = vector.broadcast %cst_84 : f32 to vector<8x128xf32>
    %490 = arith.addf %489, %488 : vector<8x128xf32>
    %491 = arith.divf %489, %490 : vector<8x128xf32>
    %492 = vector.extract_strided_slice %479 {offsets = [0, 128], sizes = [8, 128], strides = [1, 1]} : vector<8x384xf32> to vector<8x128xf32>
    %493 = vector.extract_strided_slice %483 {offsets = [0, 128], sizes = [8, 128], strides = [1, 1]} : vector<8x384xf32> to vector<8x128xf32>
    %494 = arith.addf %492, %493 : vector<8x128xf32>
    %495 = arith.negf %494 : vector<8x128xf32>
    %496 = math.exp %495 : vector<8x128xf32>
    %cst_85 = arith.constant 1.000000e+00 : f32
    %497 = vector.broadcast %cst_85 : f32 to vector<8x128xf32>
    %498 = arith.addf %497, %496 : vector<8x128xf32>
    %499 = arith.divf %497, %498 : vector<8x128xf32>
    %500 = vector.extract_strided_slice %479 {offsets = [0, 256], sizes = [8, 128], strides = [1, 1]} : vector<8x384xf32> to vector<8x128xf32>
    %501 = vector.extract_strided_slice %483 {offsets = [0, 256], sizes = [8, 128], strides = [1, 1]} : vector<8x384xf32> to vector<8x128xf32>
    %502 = arith.mulf %491, %501 : vector<8x128xf32>
    %503 = arith.addf %500, %502 : vector<8x128xf32>
    %504 = math.tanh %503 : vector<8x128xf32>
    %cst_86 = arith.constant 1.000000e+00 : f32
    %505 = vector.broadcast %cst_86 : f32 to vector<8x128xf32>
    %506 = arith.subf %505, %499 : vector<8x128xf32>
    %507 = arith.mulf %506, %504 : vector<8x128xf32>
    %508 = arith.mulf %499, %443 : vector<8x128xf32>
    %509 = arith.addf %507, %508 : vector<8x128xf32>
    %510 = arith.truncf %509 : vector<8x128xf32> to vector<8x128xbf16>
    %cst_87 = arith.constant dense<0.000000e+00> : vector<8x384xf32>
    %511 = tpu.matmul %510, %9, %cst_87 {dimension_numbers = #tpu.dot_dimension_numbers<[1], [0], [0], [1], [0, 0, 1, 1], [], []>} : vector<8x128xbf16>, vector<128x384xbf16>, vector<8x384xf32> -> vector<8x384xf32>
    %512 = vector.broadcast %12 : vector<1x384xf32> to vector<8x384xf32>
    %513 = arith.addf %511, %512 : vector<8x384xf32>
    %514 = arith.truncf %477 : vector<8x128xf32> to vector<8x128xbf16>
    %cst_88 = arith.constant dense<0.000000e+00> : vector<8x384xf32>
    %515 = tpu.matmul %514, %10, %cst_88 {dimension_numbers = #tpu.dot_dimension_numbers<[1], [0], [0], [1], [0, 0, 1, 1], [], []>} : vector<8x128xbf16>, vector<128x384xbf16>, vector<8x384xf32> -> vector<8x384xf32>
    %516 = vector.broadcast %13 : vector<1x384xf32> to vector<8x384xf32>
    %517 = arith.addf %515, %516 : vector<8x384xf32>
    %518 = vector.extract_strided_slice %513 {offsets = [0, 0], sizes = [8, 128], strides = [1, 1]} : vector<8x384xf32> to vector<8x128xf32>
    %519 = vector.extract_strided_slice %517 {offsets = [0, 0], sizes = [8, 128], strides = [1, 1]} : vector<8x384xf32> to vector<8x128xf32>
    %520 = arith.addf %518, %519 : vector<8x128xf32>
    %521 = arith.negf %520 : vector<8x128xf32>
    %522 = math.exp %521 : vector<8x128xf32>
    %cst_89 = arith.constant 1.000000e+00 : f32
    %523 = vector.broadcast %cst_89 : f32 to vector<8x128xf32>
    %524 = arith.addf %523, %522 : vector<8x128xf32>
    %525 = arith.divf %523, %524 : vector<8x128xf32>
    %526 = vector.extract_strided_slice %513 {offsets = [0, 128], sizes = [8, 128], strides = [1, 1]} : vector<8x384xf32> to vector<8x128xf32>
    %527 = vector.extract_strided_slice %517 {offsets = [0, 128], sizes = [8, 128], strides = [1, 1]} : vector<8x384xf32> to vector<8x128xf32>
    %528 = arith.addf %526, %527 : vector<8x128xf32>
    %529 = arith.negf %528 : vector<8x128xf32>
    %530 = math.exp %529 : vector<8x128xf32>
    %cst_90 = arith.constant 1.000000e+00 : f32
    %531 = vector.broadcast %cst_90 : f32 to vector<8x128xf32>
    %532 = arith.addf %531, %530 : vector<8x128xf32>
    %533 = arith.divf %531, %532 : vector<8x128xf32>
    %534 = vector.extract_strided_slice %513 {offsets = [0, 256], sizes = [8, 128], strides = [1, 1]} : vector<8x384xf32> to vector<8x128xf32>
    %535 = vector.extract_strided_slice %517 {offsets = [0, 256], sizes = [8, 128], strides = [1, 1]} : vector<8x384xf32> to vector<8x128xf32>
    %536 = arith.mulf %525, %535 : vector<8x128xf32>
    %537 = arith.addf %534, %536 : vector<8x128xf32>
    %538 = math.tanh %537 : vector<8x128xf32>
    %cst_91 = arith.constant 1.000000e+00 : f32
    %539 = vector.broadcast %cst_91 : f32 to vector<8x128xf32>
    %540 = arith.subf %539, %533 : vector<8x128xf32>
    %541 = arith.mulf %540, %538 : vector<8x128xf32>
    %542 = arith.mulf %533, %477 : vector<8x128xf32>
    %543 = arith.addf %541, %542 : vector<8x128xf32>
    %c0_92 = arith.constant 0 : index
    %c0_93 = arith.constant 0 : index
    %c0_94 = arith.constant 0 : index
    %544 = vector.load %arg2[%c0_92, %c0_93, %c0_94] : memref<8x16x64xbf16, #tpu.memory_space<vmem>>, vector<8x16x64xbf16>
    %545 = vector.shape_cast %544 : vector<8x16x64xbf16> to vector<128x64xbf16>
    %c0_95 = arith.constant 0 : index
    %c0_96 = arith.constant 0 : index
    %546 = vector.load %arg11[%c0_95, %c0_96] : memref<64x128xbf16, #tpu.memory_space<vmem>>, vector<64x128xbf16>
    %cst_97 = arith.constant dense<0.000000e+00> : vector<128x128xf32>
    %547 = tpu.matmul %545, %546, %cst_97 {dimension_numbers = #tpu.dot_dimension_numbers<[1], [0], [0], [1], [0, 0, 1, 1], [], []>} : vector<128x64xbf16>, vector<64x128xbf16>, vector<128x128xf32> -> vector<128x128xf32>
    %c0_98 = arith.constant 0 : index
    %c0_99 = arith.constant 0 : index
    %548 = vector.load %arg12[%c0_98, %c0_99] : memref<1x128xf32, #tpu.memory_space<vmem>>, vector<1x128xf32>
    %549 = vector.broadcast %548 : vector<1x128xf32> to vector<128x128xf32>
    %550 = arith.addf %547, %549 : vector<128x128xf32>
    %551 = arith.truncf %543 : vector<8x128xf32> to vector<8x128xbf16>
    %c0_100 = arith.constant 0 : index
    %c0_101 = arith.constant 0 : index
    %552 = vector.load %arg13[%c0_100, %c0_101] : memref<128x128xbf16, #tpu.memory_space<vmem>>, vector<128x128xbf16>
    %cst_102 = arith.constant dense<0.000000e+00> : vector<8x128xf32>
    %553 = tpu.matmul %551, %552, %cst_102 {dimension_numbers = #tpu.dot_dimension_numbers<[1], [0], [0], [1], [0, 0, 1, 1], [], []>} : vector<8x128xbf16>, vector<128x128xbf16>, vector<8x128xf32> -> vector<8x128xf32>
    %c0_103 = arith.constant 0 : index
    %c0_104 = arith.constant 0 : index
    %554 = vector.load %arg14[%c0_103, %c0_104] : memref<1x128xf32, #tpu.memory_space<vmem>>, vector<1x128xf32>
    %555 = vector.broadcast %554 : vector<1x128xf32> to vector<8x128xf32>
    %556 = arith.addf %553, %555 : vector<8x128xf32>
    %557 = vector.shape_cast %550 : vector<128x128xf32> to vector<8x16x128xf32>
    %558 = vector.shape_cast %556 : vector<8x128xf32> to vector<8x1x128xf32>
    %559 = vector.broadcast %558 : vector<8x1x128xf32> to vector<8x16x128xf32>
    %560 = arith.addf %557, %559 : vector<8x16x128xf32>
    %561 = math.tanh %560 : vector<8x16x128xf32>
    %c0_105 = arith.constant 0 : index
    %c0_106 = arith.constant 0 : index
    %562 = vector.load %arg15[%c0_105, %c0_106] : memref<1x128xf32, #tpu.memory_space<vmem>>, vector<1x128xf32>
    %563 = vector.shape_cast %562 : vector<1x128xf32> to vector<1x1x128xf32>
    %564 = vector.broadcast %563 : vector<1x1x128xf32> to vector<8x16x128xf32>
    %565 = arith.mulf %561, %564 : vector<8x16x128xf32>
    %cst_107 = arith.constant dense<0.000000e+00> : vector<8x16xf32>
    %566 = vector.multi_reduction <add>, %565, %cst_107 [2] : vector<8x16x128xf32> to vector<8x16xf32>
    %c0_108 = arith.constant 0 : index
    %c0_109 = arith.constant 0 : index
    %567 = memref.load %arg16[%c0_108, %c0_109] : memref<1x1xf32, #tpu.memory_space<smem>>
    %568 = vector.broadcast %567 : f32 to vector<8x16xf32>
    %569 = arith.addf %566, %568 : vector<8x16xf32>
    %cst_110 = arith.constant dense<0xFF800000> : vector<8xf32>
    %570 = vector.multi_reduction <maximumf>, %569, %cst_110 [1] : vector<8x16xf32> to vector<8xf32>
    %571 = vector.shape_cast %570 : vector<8xf32> to vector<8x1xf32>
    %572 = vector.broadcast %571 : vector<8x1xf32> to vector<8x16xf32>
    %573 = arith.subf %569, %572 : vector<8x16xf32>
    %574 = math.exp %573 : vector<8x16xf32>
    %cst_111 = arith.constant dense<0.000000e+00> : vector<8xf32>
    %575 = vector.multi_reduction <add>, %574, %cst_111 [1] : vector<8x16xf32> to vector<8xf32>
    %576 = vector.shape_cast %575 : vector<8xf32> to vector<8x1xf32>
    %577 = vector.broadcast %576 : vector<8x1xf32> to vector<8x16xf32>
    %578 = arith.divf %574, %577 : vector<8x16xf32>
    %cst_112 = arith.constant 0.000000e+00 : f32
    %579 = vector.broadcast %cst_112 : f32 to vector<8x112xf32>
    %580 = tpu.concatenate %578, %579 in 1 : vector<8x16xf32>, vector<8x112xf32> -> vector<8x128xf32>
    %c0_113 = arith.constant 0 : index
    %c0_114 = arith.constant 0 : index
    %581 = vector.load %arg28[%c0_113, %c0_114] : memref<8x128xf32, #tpu.memory_space<vmem>>, vector<8x128xf32>
    tpu.vector_store %arg28[%c0_113, %c0_114], %580 {strides = array<i32>} : memref<8x128xf32, #tpu.memory_space<vmem>>, vector<8x128xf32>,
    %582 = vector.shape_cast %578 : vector<8x16xf32> to vector<8x16x1xf32>
    %583 = arith.extf %544 : vector<8x16x64xbf16> to vector<8x16x64xf32>
    %584 = vector.broadcast %582 : vector<8x16x1xf32> to vector<8x16x64xf32>
    %585 = arith.mulf %584, %583 : vector<8x16x64xf32>
    %cst_115 = arith.constant dense<0.000000e+00> : vector<8x64xf32>
    %586 = vector.multi_reduction <add>, %585, %cst_115 [1] : vector<8x16x64xf32> to vector<8x64xf32>
    %587 = arith.truncf %586 : vector<8x64xf32> to vector<8x64xbf16>
    %c0_116 = arith.constant 0 : index
    %c0_117 = arith.constant 0 : index
    %588 = vector.load %arg17[%c0_116, %c0_117] : memref<64x128xbf16, #tpu.memory_space<vmem>>, vector<64x128xbf16>
    %cst_118 = arith.constant dense<0.000000e+00> : vector<8x128xf32>
    %589 = tpu.matmul %587, %588, %cst_118 {dimension_numbers = #tpu.dot_dimension_numbers<[1], [0], [0], [1], [0, 0, 1, 1], [], []>} : vector<8x64xbf16>, vector<64x128xbf16>, vector<8x128xf32> -> vector<8x128xf32>
    %c0_119 = arith.constant 0 : index
    %c0_120 = arith.constant 0 : index
    %590 = vector.load %arg18[%c0_119, %c0_120] : memref<1x128xf32, #tpu.memory_space<vmem>>, vector<1x128xf32>
    %591 = vector.broadcast %590 : vector<1x128xf32> to vector<8x128xf32>
    %592 = arith.addf %589, %591 : vector<8x128xf32>
    %593 = arith.mulf %592, %543 : vector<8x128xf32>
    %594 = arith.truncf %593 : vector<8x128xf32> to vector<8x128xbf16>
    %c0_121 = arith.constant 0 : index
    %c0_122 = arith.constant 0 : index
    %595 = vector.load %arg19[%c0_121, %c0_122] : memref<128x128xbf16, #tpu.memory_space<vmem>>, vector<128x128xbf16>
    %cst_123 = arith.constant dense<0.000000e+00> : vector<8x128xf32>
    %596 = tpu.matmul %594, %595, %cst_123 {dimension_numbers = #tpu.dot_dimension_numbers<[1], [0], [0], [1], [0, 0, 1, 1], [], []>} : vector<8x128xbf16>, vector<128x128xbf16>, vector<8x128xf32> -> vector<8x128xf32>
    %c0_124 = arith.constant 0 : index
    %c0_125 = arith.constant 0 : index
    %597 = vector.load %arg20[%c0_124, %c0_125] : memref<1x128xf32, #tpu.memory_space<vmem>>, vector<1x128xf32>
    %598 = vector.broadcast %597 : vector<1x128xf32> to vector<8x128xf32>
    %599 = arith.addf %596, %598 : vector<8x128xf32>
    %600 = math.tanh %599 : vector<8x128xf32>
    %c0_126 = arith.constant 0 : index
    %c0_127 = arith.constant 0 : index
    %601 = vector.load %arg21[%c0_126, %c0_127] : memref<128x128xbf16, #tpu.memory_space<vmem>>, vector<128x128xbf16>
    %cst_128 = arith.constant dense<0.000000e+00> : vector<8x128xf32>
    %602 = tpu.matmul %594, %601, %cst_128 {dimension_numbers = #tpu.dot_dimension_numbers<[1], [0], [0], [1], [0, 0, 1, 1], [], []>} : vector<8x128xbf16>, vector<128x128xbf16>, vector<8x128xf32> -> vector<8x128xf32>
    %c0_129 = arith.constant 0 : index
    %c0_130 = arith.constant 0 : index
    %603 = vector.load %arg22[%c0_129, %c0_130] : memref<1x128xf32, #tpu.memory_space<vmem>>, vector<1x128xf32>
    %604 = vector.broadcast %603 : vector<1x128xf32> to vector<8x128xf32>
    %605 = arith.addf %602, %604 : vector<8x128xf32>
    %606 = arith.negf %605 : vector<8x128xf32>
    %607 = math.exp %606 : vector<8x128xf32>
    %cst_131 = arith.constant 1.000000e+00 : f32
    %608 = vector.broadcast %cst_131 : f32 to vector<8x128xf32>
    %609 = arith.addf %608, %607 : vector<8x128xf32>
    %610 = arith.divf %608, %609 : vector<8x128xf32>
    %611 = arith.mulf %600, %610 : vector<8x128xf32>
    %612 = arith.truncf %611 : vector<8x128xf32> to vector<8x128xbf16>
    %c0_132 = arith.constant 0 : index
    %c0_133 = arith.constant 0 : index
    %613 = vector.load %arg23[%c0_132, %c0_133] : memref<128x128xbf16, #tpu.memory_space<vmem>>, vector<128x128xbf16>
    %cst_134 = arith.constant dense<0.000000e+00> : vector<8x128xf32>
    %614 = tpu.matmul %612, %613, %cst_134 {dimension_numbers = #tpu.dot_dimension_numbers<[1], [0], [0], [1], [0, 0, 1, 1], [], []>} : vector<8x128xbf16>, vector<128x128xbf16>, vector<8x128xf32> -> vector<8x128xf32>
    %c0_135 = arith.constant 0 : index
    %c0_136 = arith.constant 0 : index
    %615 = vector.load %arg24[%c0_135, %c0_136] : memref<1x128xf32, #tpu.memory_space<vmem>>, vector<1x128xf32>
    %616 = vector.broadcast %615 : vector<1x128xf32> to vector<8x128xf32>
    %617 = arith.addf %614, %616 : vector<8x128xf32>
    %cst_137 = arith.constant 0.000000e+00 : f32
    %618 = vector.broadcast %cst_137 : f32 to vector<8x128xf32>
    %619 = arith.maximumf %617, %618 : vector<8x128xf32>
    %620 = arith.truncf %619 : vector<8x128xf32> to vector<8x128xbf16>
    %c0_138 = arith.constant 0 : index
    %c0_139 = arith.constant 0 : index
    %621 = vector.load %arg25[%c0_138, %c0_139] : memref<128x128xbf16, #tpu.memory_space<vmem>>, vector<128x128xbf16>
    %cst_140 = arith.constant dense<0.000000e+00> : vector<8x128xf32>
    %622 = tpu.matmul %620, %621, %cst_140 {dimension_numbers = #tpu.dot_dimension_numbers<[1], [0], [0], [1], [0, 0, 1, 1], [], []>} : vector<8x128xbf16>, vector<128x128xbf16>, vector<8x128xf32> -> vector<8x128xf32>
    %c0_141 = arith.constant 0 : index
    %c0_142 = arith.constant 0 : index
    %623 = vector.load %arg26[%c0_141, %c0_142] : memref<1x128xf32, #tpu.memory_space<vmem>>, vector<1x128xf32>
    %624 = vector.broadcast %623 : vector<1x128xf32> to vector<8x128xf32>
    %625 = arith.addf %622, %624 : vector<8x128xf32>
    %c0_143 = arith.constant 0 : index
    %c0_144 = arith.constant 0 : index
    %626 = vector.load %arg27[%c0_143, %c0_144] : memref<8x128xf32, #tpu.memory_space<vmem>>, vector<8x128xf32>
    tpu.vector_store %arg27[%c0_143, %c0_144], %625 {strides = array<i32>} : memref<8x128xf32, #tpu.memory_space<vmem>>, vector<8x128xf32>,
    return
  }
  func.func @transform_0(%arg0: i32) -> (i32, i32, i32) {
    %c0_i32 = arith.constant 0 : i32
    %c0_i32_0 = arith.constant 0 : i32
    %c0_i32_1 = arith.constant 0 : i32
    return %c0_i32, %arg0, %c0_i32_0 : i32, i32, i32
  }
  func.func @transform_1(%arg0: i32) -> (i32, i32, i32) {
    %c0_i32 = arith.constant 0 : i32
    %c0_i32_0 = arith.constant 0 : i32
    %c0_i32_1 = arith.constant 0 : i32
    return %arg0, %c0_i32, %c0_i32_0 : i32, i32, i32
  }
  func.func @transform_2(%arg0: i32) -> (i32, i32) {
    %c0_i32 = arith.constant 0 : i32
    %c0_i32_0 = arith.constant 0 : i32
    %c0_i32_1 = arith.constant 0 : i32
    return %c0_i32, %c0_i32_0 : i32, i32
  }
  func.func @transform_3(%arg0: i32) -> (i32, i32) {
    %c0_i32 = arith.constant 0 : i32
    %c0_i32_0 = arith.constant 0 : i32
    %c0_i32_1 = arith.constant 0 : i32
    return %c0_i32, %c0_i32_0 : i32, i32
  }
  func.func @transform_4(%arg0: i32) -> (i32, i32) {
    %c0_i32 = arith.constant 0 : i32
    %c0_i32_0 = arith.constant 0 : i32
    %c0_i32_1 = arith.constant 0 : i32
    return %c0_i32, %c0_i32_0 : i32, i32
  }
  func.func @transform_5(%arg0: i32) -> (i32, i32) {
    %c0_i32 = arith.constant 0 : i32
    %c0_i32_0 = arith.constant 0 : i32
    %c0_i32_1 = arith.constant 0 : i32
    return %c0_i32, %c0_i32_0 : i32, i32
  }
  func.func @transform_6(%arg0: i32) -> (i32, i32) {
    %c0_i32 = arith.constant 0 : i32
    %c0_i32_0 = arith.constant 0 : i32
    %c0_i32_1 = arith.constant 0 : i32
    return %c0_i32, %c0_i32_0 : i32, i32
  }
  func.func @transform_7(%arg0: i32) -> (i32, i32) {
    %c0_i32 = arith.constant 0 : i32
    %c0_i32_0 = arith.constant 0 : i32
    %c0_i32_1 = arith.constant 0 : i32
    return %c0_i32, %c0_i32_0 : i32, i32
  }
  func.func @transform_8(%arg0: i32) -> (i32, i32) {
    %c0_i32 = arith.constant 0 : i32
    %c0_i32_0 = arith.constant 0 : i32
    %c0_i32_1 = arith.constant 0 : i32
    return %c0_i32, %c0_i32_0 : i32, i32
  }
  func.func @transform_9(%arg0: i32) -> (i32, i32) {
    %c0_i32 = arith.constant 0 : i32
    %c0_i32_0 = arith.constant 0 : i32
    %c0_i32_1 = arith.constant 0 : i32
    return %c0_i32, %c0_i32_0 : i32, i32
  }
  func.func @transform_10(%arg0: i32) -> (i32, i32) {
    %c0_i32 = arith.constant 0 : i32
    %c0_i32_0 = arith.constant 0 : i32
    %c0_i32_1 = arith.constant 0 : i32
    return %c0_i32, %c0_i32_0 : i32, i32
  }
  func.func @transform_11(%arg0: i32) -> (i32, i32) {
    %c0_i32 = arith.constant 0 : i32
    %c0_i32_0 = arith.constant 0 : i32
    %c0_i32_1 = arith.constant 0 : i32
    return %c0_i32, %c0_i32_0 : i32, i32
  }
  func.func @transform_12(%arg0: i32) -> (i32, i32) {
    %c0_i32 = arith.constant 0 : i32
    %c0_i32_0 = arith.constant 0 : i32
    %c0_i32_1 = arith.constant 0 : i32
    return %c0_i32, %c0_i32_0 : i32, i32
  }
  func.func @transform_13(%arg0: i32) -> (i32, i32) {
    %c0_i32 = arith.constant 0 : i32
    %c0_i32_0 = arith.constant 0 : i32
    %c0_i32_1 = arith.constant 0 : i32
    return %c0_i32, %c0_i32_0 : i32, i32
  }
  func.func @transform_14(%arg0: i32) -> (i32, i32) {
    %c0_i32 = arith.constant 0 : i32
    %c0_i32_0 = arith.constant 0 : i32
    %c0_i32_1 = arith.constant 0 : i32
    return %c0_i32, %c0_i32_0 : i32, i32
  }
  func.func @transform_15(%arg0: i32) -> (i32, i32) {
    %c0_i32 = arith.constant 0 : i32
    %c0_i32_0 = arith.constant 0 : i32
    %c0_i32_1 = arith.constant 0 : i32
    return %c0_i32, %c0_i32_0 : i32, i32
  }
  func.func @transform_16(%arg0: i32) -> (i32, i32) {
    %c0_i32 = arith.constant 0 : i32
    %c0_i32_0 = arith.constant 0 : i32
    %c0_i32_1 = arith.constant 0 : i32
    return %c0_i32, %c0_i32_0 : i32, i32
  }
  func.func @transform_17(%arg0: i32) -> (i32, i32) {
    %c0_i32 = arith.constant 0 : i32
    %c0_i32_0 = arith.constant 0 : i32
    %c0_i32_1 = arith.constant 0 : i32
    return %c0_i32, %c0_i32_0 : i32, i32
  }
  func.func @transform_18(%arg0: i32) -> (i32, i32) {
    %c0_i32 = arith.constant 0 : i32
    %c0_i32_0 = arith.constant 0 : i32
    %c0_i32_1 = arith.constant 0 : i32
    return %c0_i32, %c0_i32_0 : i32, i32
  }
  func.func @transform_19(%arg0: i32) -> (i32, i32) {
    %c0_i32 = arith.constant 0 : i32
    %c0_i32_0 = arith.constant 0 : i32
    %c0_i32_1 = arith.constant 0 : i32
    return %c0_i32, %c0_i32_0 : i32, i32
  }
  func.func @transform_20(%arg0: i32) -> (i32, i32) {
    %c0_i32 = arith.constant 0 : i32
    %c0_i32_0 = arith.constant 0 : i32
    %c0_i32_1 = arith.constant 0 : i32
    return %c0_i32, %c0_i32_0 : i32, i32
  }
  func.func @transform_21(%arg0: i32) -> (i32, i32) {
    %c0_i32 = arith.constant 0 : i32
    %c0_i32_0 = arith.constant 0 : i32
    %c0_i32_1 = arith.constant 0 : i32
    return %c0_i32, %c0_i32_0 : i32, i32
  }
  func.func @transform_22(%arg0: i32) -> (i32, i32) {
    %c0_i32 = arith.constant 0 : i32
    %c0_i32_0 = arith.constant 0 : i32
    %c0_i32_1 = arith.constant 0 : i32
    return %c0_i32, %c0_i32_0 : i32, i32
  }
  func.func @transform_23(%arg0: i32) -> (i32, i32) {
    %c0_i32 = arith.constant 0 : i32
    %c0_i32_0 = arith.constant 0 : i32
    %c0_i32_1 = arith.constant 0 : i32
    return %c0_i32, %c0_i32_0 : i32, i32
  }
  func.func @transform_24(%arg0: i32) -> (i32, i32) {
    %c0_i32 = arith.constant 0 : i32
    %c0_i32_0 = arith.constant 0 : i32
    %c0_i32_1 = arith.constant 0 : i32
    return %c0_i32, %c0_i32_0 : i32, i32
  }
  func.func @transform_25(%arg0: i32) -> (i32, i32) {
    %c0_i32 = arith.constant 0 : i32
    %c0_i32_0 = arith.constant 0 : i32
    %c0_i32_1 = arith.constant 0 : i32
    return %c0_i32, %c0_i32_0 : i32, i32
  }
  func.func @transform_26(%arg0: i32) -> (i32, i32) {
    %c0_i32 = arith.constant 0 : i32
    %c0_i32_0 = arith.constant 0 : i32
    return %arg0, %c0_i32 : i32, i32
  }
  func.func @transform_27(%arg0: i32) -> (i32, i32) {
    %c0_i32 = arith.constant 0 : i32
    %c0_i32_0 = arith.constant 0 : i32
    return %arg0, %c0_i32 : i32, i32
  }
}

</mosaic_0001>

<llo_original>
// kernel: vqa_forward.1
$region0: #{vqa_forward.1}
  #allocation0 [shape = 'u32[]', space=smem, size = 0x4, offset = 0x4, fixed_abs, tag = 'smem constant byte address 0x4 - core index']
  #allocation1 [shape = 'u32[144,128]{1,0:T(1,128)}', space=vmem, size = 0x12000, scoped, tag = 'internal scratch']
  #allocation2 [shape = 'f32[1,1]{1,0:T(1,128)S(6)}', space=smem, size = 0x200, scoped, tag = 'scoped memory for vqa_forward.1']
  %s0 = inlined_call_operand.vmem [shape: bf16[8,16,128], index: 0, kind: input, shape index: {}]
  %s1 = inlined_call_operand.vmem [shape: bf16[16,16,64], index: 1, kind: input, shape index: {}]
  %s2 = inlined_call_operand.vmem [shape: bf16[128,384], index: 2, kind: input, shape index: {}]
  %s3 = inlined_call_operand.vmem [shape: bf16[128,384], index: 3, kind: input, shape index: {}]
  %s4 = inlined_call_operand.hbm [shape: f32[1,384], index: 4, kind: input, shape index: {}]
  %s5 = inlined_call_operand.hbm [shape: f32[1,384], index: 5, kind: input, shape index: {}]
  %s6 = inlined_call_operand.vmem [shape: bf16[128,384], index: 6, kind: input, shape index: {}]
  %s7 = inlined_call_operand.vmem [shape: bf16[128,384], index: 7, kind: input, shape index: {}]
  %s8 = inlined_call_operand.hbm [shape: f32[1,384], index: 8, kind: input, shape index: {}]
  %s9 = inlined_call_operand.hbm [shape: f32[1,384], index: 9, kind: input, shape index: {}]
  %s10 = inlined_call_operand.vmem [shape: bf16[64,128], index: 10, kind: input, shape index: {}]
  %s11 = inlined_call_operand.vmem [shape: f32[1,128], index: 11, kind: input, shape index: {}]
  %s12 = inlined_call_operand.vmem [shape: bf16[128,128], index: 12, kind: input, shape index: {}]
  %s13 = inlined_call_operand.hbm [shape: f32[1,128], index: 13, kind: input, shape index: {}]
  %s14 = inlined_call_operand.hbm [shape: f32[1,128], index: 14, kind: input, shape index: {}]
  %s15 = inlined_call_operand.<no memory space> [shape: f32[1,1], index: 15, kind: input, shape index: {}]
  %s16 = inlined_call_operand.hbm [shape: bf16[64,128], index: 16, kind: input, shape index: {}]
  %s17 = inlined_call_operand.hbm [shape: f32[1,128], index: 17, kind: input, shape index: {}]
  %s18 = inlined_call_operand.vmem [shape: bf16[128,128], index: 18, kind: input, shape index: {}]
  %s19 = inlined_call_operand.hbm [shape: f32[1,128], index: 19, kind: input, shape index: {}]
  %s20 = inlined_call_operand.vmem [shape: bf16[128,128], index: 20, kind: input, shape index: {}]
  %s21 = inlined_call_operand.hbm [shape: f32[1,128], index: 21, kind: input, shape index: {}]
  %s22 = inlined_call_operand.hbm [shape: bf16[128,128], index: 22, kind: input, shape index: {}]
  %s23 = inlined_call_operand.hbm [shape: f32[1,128], index: 23, kind: input, shape index: {}]
  %s24 = inlined_call_operand.hbm [shape: bf16[128,128], index: 24, kind: input, shape index: {}]
  %s25 = inlined_call_operand.hbm [shape: f32[1,128], index: 25, kind: input, shape index: {}]
  %s26 = inlined_call_operand.hbm [shape: f32[16,128], index: 26, kind: output, shape index: {0}]
  %s27 = inlined_call_operand.hbm [shape: f32[16,128], index: 27, kind: output, shape index: {1}]
  %28 = xla_tuple %s26, %s27
  %s29 = sld [smem:[#allocation0]]
  $region242: #{vqa_forward.1} parent=0
    _
  %s31 = ssub.s32 1, %s29
  %s32 = scalar_select 0, %s31, %s29
  %33 = sst [smem:[#allocation2]] %s15
  $region1: #{vqa_forward.1} parent=0
    #allocation3 [shape = 'u8[32768]{0}', space=vmem, size = 0x8000, scoped, tag = 'input window, operand 0']
    #allocation4 [shape = 'u8[1536]{0}', space=vmem, size = 0x800, scoped, tag = 'input window, operand 4, single buffered']
    #allocation5 [shape = 's32[2]{0}', space=sflag, size = 0x8, scoped, tag = 'scoped memory for vqa_forward.1']
    #allocation6 [shape = 's32[2]{0}', space=sflag, size = 0x8, scoped, tag = 'scoped memory for vqa_forward.1']
    #allocation7 [shape = 'u8[1536]{0}', space=vmem, size = 0x800, scoped, tag = 'input window, operand 5, single buffered']
    #allocation8 [shape = 's32[1]{0}', space=sflag, size = 0x4, scoped, tag = 'scoped memory for vqa_forward.1']
    #allocation9 [shape = 'u8[1536]{0}', space=vmem, size = 0x800, scoped, tag = 'input window, operand 8, single buffered']
    #allocation10 [shape = 'u8[1536]{0}', space=vmem, size = 0x800, scoped, tag = 'input window, operand 9, single buffered']
    #allocation11 [shape = 's32[1]{0}', space=sflag, size = 0x4, scoped, tag = 'scoped memory for vqa_forward.1']
    #allocation12 [shape = 'u8[512]{0}', space=vmem, size = 0x400, scoped, tag = 'input window, operand 13, single buffered']
    #allocation13 [shape = 'u8[512]{0}', space=vmem, size = 0x400, scoped, tag = 'input window, operand 14, single buffered']
    #allocation14 [shape = 's32[1]{0}', space=sflag, size = 0x4, scoped, tag = 'scoped memory for vqa_forward.1']
    #allocation15 [shape = 'u8[16384]{0}', space=vmem, size = 0x4000, scoped, tag = 'input window, operand 16, single buffered']
    #allocation16 [shape = 'u8[512]{0}', space=vmem, size = 0x400, scoped, tag = 'input window, operand 17, single buffered']
    #allocation17 [shape = 's32[1]{0}', space=sflag, size = 0x4, scoped, tag = 'scoped memory for vqa_forward.1']
    #allocation18 [shape = 'u8[512]{0}', space=vmem, size = 0x400, scoped, tag = 'input window, operand 19, single buffered']
    #allocation19 [shape = 'u8[512]{0}', space=vmem, size = 0x400, scoped, tag = 'input window, operand 21, single buffered']
    #allocation20 [shape = 's32[1]{0}', space=sflag, size = 0x4, scoped, tag = 'scoped memory for vqa_forward.1']
    #allocation21 [shape = 'u8[32768]{0}', space=vmem, size = 0x8000, scoped, tag = 'input window, operand 22, single buffered']
    #allocation22 [shape = 'u8[512]{0}', space=vmem, size = 0x400, scoped, tag = 'input window, operand 23, single buffered']
    #allocation23 [shape = 's32[1]{0}', space=sflag, size = 0x4, scoped, tag = 'scoped memory for vqa_forward.1']
    #allocation24 [shape = 'u8[32768]{0}', space=vmem, size = 0x8000, scoped, tag = 'input window, operand 24, single buffered']
    #allocation25 [shape = 'u8[512]{0}', space=vmem, size = 0x400, scoped, tag = 'input window, operand 25, single buffered']
    #allocation26 [shape = 's32[1]{0}', space=sflag, size = 0x4, scoped, tag = 'scoped memory for vqa_forward.1']
    #allocation27 [shape = 'u8[8192]{0}', space=vmem, size = 0x2000, scoped, tag = 'output window, operand 0']
    #allocation28 [shape = 'u8[8192]{0}', space=vmem, size = 0x2000, scoped, tag = 'output window, operand 1']
    #allocation29 [shape = 's32[2]{0}', space=sflag, size = 0x8, scoped, tag = 'scoped memory for vqa_forward.1']
    %34 = vsyncpa [#allocation5], 0
    %35 = vsyncpa [#allocation8], 0
    %36 = vsyncpa [#allocation11], 0
    %37 = vsyncpa [#allocation14], 0
    %38 = vsyncpa [#allocation17], 0
    %39 = vsyncpa [#allocation20], 0
    %40 = vsyncpa [#allocation23], 0
    %41 = vsyncpa [#allocation26], 0
    %42 = vsyncpa [#allocation6], 0
    %s43 = scalar_lea.sflag [#allocation6], 1
    %44 = vsyncpa %s43, 0
    %45 = vsyncpa [#allocation29], 0
    %s46 = scalar_lea.sflag [#allocation29], 1
    %47 = vsyncpa %s46, 0
    loop: start=0, step=1, limit=4
    $region2: #{vqa_forward.1} parent=1 // loop_pre_header
      _
    $region3: #{vqa_forward.1} parent=1 // loop_header
      %s49 = sphi 0, %s53
      %p50 = scmp.ge.s32.totalorder %s49, 4
      %s59 = sphi 0, %s61
      %s62 = sphi 0, %s59
      %s63 = sphi 0, %s62
      %s79 = sphi 0, %s63
      %s85 = sphi 0, %s87
      %s88 = sphi 0, %s85
      %s89 = sphi 0, %s88
      %s105 = sphi 0, %s89
      %s109 = sphi 0, %s109
      %s111 = sphi 0, %s109
      %s112 = sphi 0, %s111
      %s126 = sphi 0, %s112
      %s130 = sphi 0, %s130
      %s132 = sphi 0, %s130
      %s133 = sphi 0, %s132
      %s147 = sphi 0, %s133
      %s151 = sphi 0, %s151
      %s153 = sphi 0, %s151
      %s154 = sphi 0, %s153
      %s168 = sphi 0, %s154
      %s172 = sphi 0, %s172
      %s174 = sphi 0, %s172
      %s175 = sphi 0, %s174
      %s189 = sphi 0, %s175
      %s193 = sphi 0, %s193
      %s195 = sphi 0, %s193
      %s196 = sphi 0, %s195
      %s210 = sphi 0, %s196
      %s214 = sphi 0, %s214
      %s216 = sphi 0, %s214
      %s217 = sphi 0, %s216
      %s231 = sphi 0, %s217
      %s235 = sphi 0, %s235
      %s237 = sphi 0, %s235
      %s238 = sphi 0, %s237
      %s252 = sphi 0, %s238
      %s256 = sphi 0, %s256
      %s258 = sphi 0, %s256
      %s259 = sphi 0, %s258
      %s273 = sphi 0, %s259
      %s277 = sphi 0, %s277
      %s279 = sphi 0, %s277
      %s280 = sphi 0, %s279
      %s294 = sphi 0, %s280
      %s298 = sphi 0, %s298
      %s300 = sphi 0, %s298
      %s301 = sphi 0, %s300
      %s315 = sphi 0, %s301
      %s319 = sphi 0, %s319
      %s321 = sphi 0, %s319
      %s322 = sphi 0, %s321
      %s336 = sphi 0, %s322
      %s340 = sphi 0, %s340
      %s342 = sphi 0, %s340
      %s343 = sphi 0, %s342
      %s357 = sphi 0, %s343
      %s361 = sphi 0, %s361
      %s363 = sphi 0, %s361
      %s364 = sphi 0, %s363
      %s378 = sphi 0, %s364
      %s382 = sphi 0, %s382
      %s384 = sphi 0, %s382
      %s385 = sphi 0, %s384
      %s399 = sphi 0, %s385
      %s403 = sphi 0, %s403
      %s405 = sphi 0, %s403
      %s406 = sphi 0, %s405
      %s420 = sphi 0, %s406
      %s424 = sphi 0, %s424
      %s426 = sphi 0, %s424
      %s427 = sphi 0, %s426
      %s441 = sphi 0, %s427
      %s445 = sphi 0, %s445
      %s447 = sphi 0, %s445
      %s448 = sphi 0, %s447
      %s462 = sphi 0, %s448
      %s466 = sphi 0, %s466
      %s468 = sphi 0, %s466
      %s469 = sphi 0, %s468
      %s483 = sphi 0, %s469
      %s487 = sphi 0, %s487
      %s489 = sphi 0, %s487
      %s490 = sphi 0, %s489
      %s504 = sphi 0, %s490
      %s508 = sphi 0, %s508
      %s510 = sphi 0, %s508
      %s511 = sphi 0, %s510
      %s525 = sphi 0, %s511
      %s529 = sphi 0, %s529
      %s531 = sphi 0, %s529
      %s532 = sphi 0, %s531
      %s546 = sphi 0, %s532
      %s550 = sphi 0, %s550
      %s552 = sphi 0, %s550
      %s553 = sphi 0, %s552
      %s567 = sphi 0, %s553
      %s571 = sphi 0, %s571
      %s573 = sphi 0, %s571
      %s574 = sphi 0, %s573
      %s588 = sphi 0, %s574
      %s592 = sphi 0, %s592
      %s594 = sphi 0, %s592
      %s595 = sphi 0, %s594
      %s609 = sphi 0, %s595
      %s615 = sphi 0, %s617
      %s618 = sphi 0, %s615
      %s619 = sphi 0, %s618
      %s635 = sphi 0, %s619
      %s641 = sphi 0, %s643
      %s644 = sphi 0, %s641
      %s645 = sphi 0, %s644
      %s661 = sphi 0, %s645
    $region4: #{vqa_forward.1} parent=1 // loop_header_branch
      %52 = sbr.rel (%p50) target = $region8
    $region5: #{vqa_forward.1} parent=1 // loop_body
      %s54 = ssub.s32 %s49, 1
      %s55 = ssub.s32 %s49, 2
      %s56 = sadd.s32 %s49, 1
      %s57 = ssub.s32 %s49, %s56
      %p58 = scmp.eq.s32.totalorder %s57, 0
      %s60 = sadd.s32 %s59, 1
      %s61 = scalar_select %p58, %s59, %s60
      %p64 = pneg %p58
      %p65 = scmp.eq.s32.totalorder %s49, 1
      %p66 = por %p64, %p65
      %p67 = scmp.ne.s32.totalorder %s59, %s62
      %p68 = scmp.eq.s32.totalorder %s49, 0
      %p69 = por %p67, %p68
      %p70 = scmp.ne.s32.totalorder %s59, %s62
      %p71 = scmp.eq.s32.totalorder %s54, 1
      %p72 = por %p70, %p71
      %p73 = scmp.ne.s32.totalorder %s62, %s63
      %p74 = scmp.eq.s32.totalorder %s54, 0
      %p75 = por %p73, %p74
      %p76 = scmp.ne.s32.totalorder %s62, %s63
      %p77 = scmp.eq.s32.totalorder %s55, 1
      %p78 = por %p76, %p77
      %p80 = scmp.ne.s32.totalorder %s63, %s79
      %p81 = scmp.eq.s32.totalorder %s55, 0
      %p82 = por %p80, %p81
      %s83 = ssub.s32 %s49, %s56
      %p84 = scmp.eq.s32.totalorder %s83, 0
      %s86 = sadd.s32 %s85, 1
      %s87 = scalar_select %p84, %s85, %s86
      %p90 = pneg %p84
      %p91 = scmp.eq.s32.totalorder %s49, 1
      %p92 = por %p90, %p91
      %p93 = scmp.ne.s32.totalorder %s85, %s88
      %p94 = scmp.eq.s32.totalorder %s49, 0
      %p95 = por %p93, %p94
      %p96 = scmp.ne.s32.totalorder %s85, %s88
      %p97 = scmp.eq.s32.totalorder %s54, 1
      %p98 = por %p96, %p97
      %p99 = scmp.ne.s32.totalorder %s88, %s89
      %p100 = scmp.eq.s32.totalorder %s54, 0
      %p101 = por %p99, %p100
      %p102 = scmp.ne.s32.totalorder %s88, %s89
      %p103 = scmp.eq.s32.totalorder %s55, 1
      %p104 = por %p102, %p103
      %p106 = scmp.ne.s32.totalorder %s89, %s105
      %p107 = scmp.eq.s32.totalorder %s55, 0
      %p108 = por %p106, %p107
      %s110 = sadd.s32 %s109, 1
      %p113 = scmp.eq.s32.totalorder %s49, 1
      %p114 = scmp.ne.s32.totalorder %s109, %s111
      %p115 = scmp.eq.s32.totalorder %s49, 0
      %p116 = por %p114, %p115
      %p117 = scmp.ne.s32.totalorder %s109, %s111
      %p118 = scmp.eq.s32.totalorder %s54, 1
      %p119 = por %p117, %p118
      %p120 = scmp.ne.s32.totalorder %s111, %s112
      %p121 = scmp.eq.s32.totalorder %s54, 0
      %p122 = por %p120, %p121
      %p123 = scmp.ne.s32.totalorder %s111, %s112
      %p124 = scmp.eq.s32.totalorder %s55, 1
      %p125 = por %p123, %p124
      %p127 = scmp.ne.s32.totalorder %s112, %s126
      %p128 = scmp.eq.s32.totalorder %s55, 0
      %p129 = por %p127, %p128
      %s131 = sadd.s32 %s130, 1
      %p134 = scmp.eq.s32.totalorder %s49, 1
      %p135 = scmp.ne.s32.totalorder %s130, %s132
      %p136 = scmp.eq.s32.totalorder %s49, 0
      %p137 = por %p135, %p136
      %p138 = scmp.ne.s32.totalorder %s130, %s132
      %p139 = scmp.eq.s32.totalorder %s54, 1
      %p140 = por %p138, %p139
      %p141 = scmp.ne.s32.totalorder %s132, %s133
      %p142 = scmp.eq.s32.totalorder %s54, 0
      %p143 = por %p141, %p142
      %p144 = scmp.ne.s32.totalorder %s132, %s133
      %p145 = scmp.eq.s32.totalorder %s55, 1
      %p146 = por %p144, %p145
      %p148 = scmp.ne.s32.totalorder %s133, %s147
      %p149 = scmp.eq.s32.totalorder %s55, 0
      %p150 = por %p148, %p149
      %s152 = sadd.s32 %s151, 1
      %p155 = scmp.eq.s32.totalorder %s49, 1
      %p156 = scmp.ne.s32.totalorder %s151, %s153
      %p157 = scmp.eq.s32.totalorder %s49, 0
      %p158 = por %p156, %p157
      %p159 = scmp.ne.s32.totalorder %s151, %s153
      %p160 = scmp.eq.s32.totalorder %s54, 1
      %p161 = por %p159, %p160
      %p162 = scmp.ne.s32.totalorder %s153, %s154
      %p163 = scmp.eq.s32.totalorder %s54, 0
      %p164 = por %p162, %p163
      %p165 = scmp.ne.s32.totalorder %s153, %s154
      %p166 = scmp.eq.s32.totalorder %s55, 1
      %p167 = por %p165, %p166
      %p169 = scmp.ne.s32.totalorder %s154, %s168
      %p170 = scmp.eq.s32.totalorder %s55, 0
      %p171 = por %p169, %p170
      %s173 = sadd.s32 %s172, 1
      %p176 = scmp.eq.s32.totalorder %s49, 1
      %p177 = scmp.ne.s32.totalorder %s172, %s174
      %p178 = scmp.eq.s32.totalorder %s49, 0
      %p179 = por %p177, %p178
      %p180 = scmp.ne.s32.totalorder %s172, %s174
      %p181 = scmp.eq.s32.totalorder %s54, 1
      %p182 = por %p180, %p181
      %p183 = scmp.ne.s32.totalorder %s174, %s175
      %p184 = scmp.eq.s32.totalorder %s54, 0
      %p185 = por %p183, %p184
      %p186 = scmp.ne.s32.totalorder %s174, %s175
      %p187 = scmp.eq.s32.totalorder %s55, 1
      %p188 = por %p186, %p187
      %p190 = scmp.ne.s32.totalorder %s175, %s189
      %p191 = scmp.eq.s32.totalorder %s55, 0
      %p192 = por %p190, %p191
      %s194 = sadd.s32 %s193, 1
      %p197 = scmp.eq.s32.totalorder %s49, 1
      %p198 = scmp.ne.s32.totalorder %s193, %s195
      %p199 = scmp.eq.s32.totalorder %s49, 0
      %p200 = por %p198, %p199
      %p201 = scmp.ne.s32.totalorder %s193, %s195
      %p202 = scmp.eq.s32.totalorder %s54, 1
      %p203 = por %p201, %p202
      %p204 = scmp.ne.s32.totalorder %s195, %s196
      %p205 = scmp.eq.s32.totalorder %s54, 0
      %p206 = por %p204, %p205
      %p207 = scmp.ne.s32.totalorder %s195, %s196
      %p208 = scmp.eq.s32.totalorder %s55, 1
      %p209 = por %p207, %p208
      %p211 = scmp.ne.s32.totalorder %s196, %s210
      %p212 = scmp.eq.s32.totalorder %s55, 0
      %p213 = por %p211, %p212
      %s215 = sadd.s32 %s214, 1
      %p218 = scmp.eq.s32.totalorder %s49, 1
      %p219 = scmp.ne.s32.totalorder %s214, %s216
      %p220 = scmp.eq.s32.totalorder %s49, 0
      %p221 = por %p219, %p220
      %p222 = scmp.ne.s32.totalorder %s214, %s216
      %p223 = scmp.eq.s32.totalorder %s54, 1
      %p224 = por %p222, %p223
      %p225 = scmp.ne.s32.totalorder %s216, %s217
      %p226 = scmp.eq.s32.totalorder %s54, 0
      %p227 = por %p225, %p226
      %p228 = scmp.ne.s32.totalorder %s216, %s217
      %p229 = scmp.eq.s32.totalorder %s55, 1
      %p230 = por %p228, %p229
      %p232 = scmp.ne.s32.totalorder %s217, %s231
      %p233 = scmp.eq.s32.totalorder %s55, 0
      %p234 = por %p232, %p233
      %s236 = sadd.s32 %s235, 1
      %p239 = scmp.eq.s32.totalorder %s49, 1
      %p240 = scmp.ne.s32.totalorder %s235, %s237
      %p241 = scmp.eq.s32.totalorder %s49, 0
      %p242 = por %p240, %p241
      %p243 = scmp.ne.s32.totalorder %s235, %s237
      %p244 = scmp.eq.s32.totalorder %s54, 1
      %p245 = por %p243, %p244
      %p246 = scmp.ne.s32.totalorder %s237, %s238
      %p247 = scmp.eq.s32.totalorder %s54, 0
      %p248 = por %p246, %p247
      %p249 = scmp.ne.s32.totalorder %s237, %s238
      %p250 = scmp.eq.s32.totalorder %s55, 1
      %p251 = por %p249, %p250
      %p253 = scmp.ne.s32.totalorder %s238, %s252
      %p254 = scmp.eq.s32.totalorder %s55, 0
      %p255 = por %p253, %p254
      %s257 = sadd.s32 %s256, 1
      %p260 = scmp.eq.s32.totalorder %s49, 1
      %p261 = scmp.ne.s32.totalorder %s256, %s258
      %p262 = scmp.eq.s32.totalorder %s49, 0
      %p263 = por %p261, %p262
      %p264 = scmp.ne.s32.totalorder %s256, %s258
      %p265 = scmp.eq.s32.totalorder %s54, 1
      %p266 = por %p264, %p265
      %p267 = scmp.ne.s32.totalorder %s258, %s259
      %p268 = scmp.eq.s32.totalorder %s54, 0
      %p269 = por %p267, %p268
      %p270 = scmp.ne.s32.totalorder %s258, %s259
      %p271 = scmp.eq.s32.totalorder %s55, 1
      %p272 = por %p270, %p271
      %p274 = scmp.ne.s32.totalorder %s259, %s273
      %p275 = scmp.eq.s32.totalorder %s55, 0
      %p276 = por %p274, %p275
      %s278 = sadd.s32 %s277, 1
      %p281 = scmp.eq.s32.totalorder %s49, 1
      %p282 = scmp.ne.s32.totalorder %s277, %s279
      %p283 = scmp.eq.s32.totalorder %s49, 0
      %p284 = por %p282, %p283
      %p285 = scmp.ne.s32.totalorder %s277, %s279
      %p286 = scmp.eq.s32.totalorder %s54, 1
      %p287 = por %p285, %p286
      %p288 = scmp.ne.s32.totalorder %s279, %s280
      %p289 = scmp.eq.s32.totalorder %s54, 0
      %p290 = por %p288, %p289
      %p291 = scmp.ne.s32.totalorder %s279, %s280
      %p292 = scmp.eq.s32.totalorder %s55, 1
      %p293 = por %p291, %p292
      %p295 = scmp.ne.s32.totalorder %s280, %s294
      %p296 = scmp.eq.s32.totalorder %s55, 0
      %p297 = por %p295, %p296
      %s299 = sadd.s32 %s298, 1
      %p302 = scmp.eq.s32.totalorder %s49, 1
      %p303 = scmp.ne.s32.totalorder %s298, %s300
      %p304 = scmp.eq.s32.totalorder %s49, 0
      %p305 = por %p303, %p304
      %p306 = scmp.ne.s32.totalorder %s298, %s300
      %p307 = scmp.eq.s32.totalorder %s54, 1
      %p308 = por %p306, %p307
      %p309 = scmp.ne.s32.totalorder %s300, %s301
      %p310 = scmp.eq.s32.totalorder %s54, 0
      %p311 = por %p309, %p310
      %p312 = scmp.ne.s32.totalorder %s300, %s301
      %p313 = scmp.eq.s32.totalorder %s55, 1
      %p314 = por %p312, %p313
      %p316 = scmp.ne.s32.totalorder %s301, %s315
      %p317 = scmp.eq.s32.totalorder %s55, 0
      %p318 = por %p316, %p317
      %s320 = sadd.s32 %s319, 1
      %p323 = scmp.eq.s32.totalorder %s49, 1
      %p324 = scmp.ne.s32.totalorder %s319, %s321
      %p325 = scmp.eq.s32.totalorder %s49, 0
      %p326 = por %p324, %p325
      %p327 = scmp.ne.s32.totalorder %s319, %s321
      %p328 = scmp.eq.s32.totalorder %s54, 1
      %p329 = por %p327, %p328
      %p330 = scmp.ne.s32.totalorder %s321, %s322
      %p331 = scmp.eq.s32.totalorder %s54, 0
      %p332 = por %p330, %p331
      %p333 = scmp.ne.s32.totalorder %s321, %s322
      %p334 = scmp.eq.s32.totalorder %s55, 1
      %p335 = por %p333, %p334
      %p337 = scmp.ne.s32.totalorder %s322, %s336
      %p338 = scmp.eq.s32.totalorder %s55, 0
      %p339 = por %p337, %p338
      %s341 = sadd.s32 %s340, 1
      %p344 = scmp.eq.s32.totalorder %s49, 1
      %p345 = scmp.ne.s32.totalorder %s340, %s342
      %p346 = scmp.eq.s32.totalorder %s49, 0
      %p347 = por %p345, %p346
      %p348 = scmp.ne.s32.totalorder %s340, %s342
      %p349 = scmp.eq.s32.totalorder %s54, 1
      %p350 = por %p348, %p349
      %p351 = scmp.ne.s32.totalorder %s342, %s343
      %p352 = scmp.eq.s32.totalorder %s54, 0
      %p353 = por %p351, %p352
      %p354 = scmp.ne.s32.totalorder %s342, %s343
      %p355 = scmp.eq.s32.totalorder %s55, 1
      %p356 = por %p354, %p355
      %p358 = scmp.ne.s32.totalorder %s343, %s357
      %p359 = scmp.eq.s32.totalorder %s55, 0
      %p360 = por %p358, %p359
      %s362 = sadd.s32 %s361, 1
      %p365 = scmp.eq.s32.totalorder %s49, 1
      %p366 = scmp.ne.s32.totalorder %s361, %s363
      %p367 = scmp.eq.s32.totalorder %s49, 0
      %p368 = por %p366, %p367
      %p369 = scmp.ne.s32.totalorder %s361, %s363
      %p370 = scmp.eq.s32.totalorder %s54, 1
      %p371 = por %p369, %p370
      %p372 = scmp.ne.s32.totalorder %s363, %s364
      %p373 = scmp.eq.s32.totalorder %s54, 0
      %p374 = por %p372, %p373
      %p375 = scmp.ne.s32.totalorder %s363, %s364
      %p376 = scmp.eq.s32.totalorder %s55, 1
      %p377 = por %p375, %p376
      %p379 = scmp.ne.s32.totalorder %s364, %s378
      %p380 = scmp.eq.s32.totalorder %s55, 0
      %p381 = por %p379, %p380
      %s383 = sadd.s32 %s382, 1
      %p386 = scmp.eq.s32.totalorder %s49, 1
      %p387 = scmp.ne.s32.totalorder %s382, %s384
      %p388 = scmp.eq.s32.totalorder %s49, 0
      %p389 = por %p387, %p388
      %p390 = scmp.ne.s32.totalorder %s382, %s384
      %p391 = scmp.eq.s32.totalorder %s54, 1
      %p392 = por %p390, %p391
      %p393 = scmp.ne.s32.totalorder %s384, %s385
      %p394 = scmp.eq.s32.totalorder %s54, 0
      %p395 = por %p393, %p394
      %p396 = scmp.ne.s32.totalorder %s384, %s385
      %p397 = scmp.eq.s32.totalorder %s55, 1
      %p398 = por %p396, %p397
      %p400 = scmp.ne.s32.totalorder %s385, %s399
      %p401 = scmp.eq.s32.totalorder %s55, 0
      %p402 = por %p400, %p401
      %s404 = sadd.s32 %s403, 1
      %p407 = scmp.eq.s32.totalorder %s49, 1
      %p408 = scmp.ne.s32.totalorder %s403, %s405
      %p409 = scmp.eq.s32.totalorder %s49, 0
      %p410 = por %p408, %p409
      %p411 = scmp.ne.s32.totalorder %s403, %s405
      %p412 = scmp.eq.s32.totalorder %s54, 1
      %p413 = por %p411, %p412
      %p414 = scmp.ne.s32.totalorder %s405, %s406
      %p415 = scmp.eq.s32.totalorder %s54, 0
      %p416 = por %p414, %p415
      %p417 = scmp.ne.s32.totalorder %s405, %s406
      %p418 = scmp.eq.s32.totalorder %s55, 1
      %p419 = por %p417, %p418
      %p421 = scmp.ne.s32.totalorder %s406, %s420
      %p422 = scmp.eq.s32.totalorder %s55, 0
      %p423 = por %p421, %p422
      %s425 = sadd.s32 %s424, 1
      %p428 = scmp.eq.s32.totalorder %s49, 1
      %p429 = scmp.ne.s32.totalorder %s424, %s426
      %p430 = scmp.eq.s32.totalorder %s49, 0
      %p431 = por %p429, %p430
      %p432 = scmp.ne.s32.totalorder %s424, %s426
      %p433 = scmp.eq.s32.totalorder %s54, 1
      %p434 = por %p432, %p433
      %p435 = scmp.ne.s32.totalorder %s426, %s427
      %p436 = scmp.eq.s32.totalorder %s54, 0
      %p437 = por %p435, %p436
      %p438 = scmp.ne.s32.totalorder %s426, %s427
      %p439 = scmp.eq.s32.totalorder %s55, 1
      %p440 = por %p438, %p439
      %p442 = scmp.ne.s32.totalorder %s427, %s441
      %p443 = scmp.eq.s32.totalorder %s55, 0
      %p444 = por %p442, %p443
      %s446 = sadd.s32 %s445, 1
      %p449 = scmp.eq.s32.totalorder %s49, 1
      %p450 = scmp.ne.s32.totalorder %s445, %s447
      %p451 = scmp.eq.s32.totalorder %s49, 0
      %p452 = por %p450, %p451
      %p453 = scmp.ne.s32.totalorder %s445, %s447
      %p454 = scmp.eq.s32.totalorder %s54, 1
      %p455 = por %p453, %p454
      %p456 = scmp.ne.s32.totalorder %s447, %s448
      %p457 = scmp.eq.s32.totalorder %s54, 0
      %p458 = por %p456, %p457
      %p459 = scmp.ne.s32.totalorder %s447, %s448
      %p460 = scmp.eq.s32.totalorder %s55, 1
      %p461 = por %p459, %p460
      %p463 = scmp.ne.s32.totalorder %s448, %s462
      %p464 = scmp.eq.s32.totalorder %s55, 0
      %p465 = por %p463, %p464
      %s467 = sadd.s32 %s466, 1
      %p470 = scmp.eq.s32.totalorder %s49, 1
      %p471 = scmp.ne.s32.totalorder %s466, %s468
      %p472 = scmp.eq.s32.totalorder %s49, 0
      %p473 = por %p471, %p472
      %p474 = scmp.ne.s32.totalorder %s466, %s468
      %p475 = scmp.eq.s32.totalorder %s54, 1
      %p476 = por %p474, %p475
      %p477 = scmp.ne.s32.totalorder %s468, %s469
      %p478 = scmp.eq.s32.totalorder %s54, 0
      %p479 = por %p477, %p478
      %p480 = scmp.ne.s32.totalorder %s468, %s469
      %p481 = scmp.eq.s32.totalorder %s55, 1
      %p482 = por %p480, %p481
      %p484 = scmp.ne.s32.totalorder %s469, %s483
      %p485 = scmp.eq.s32.totalorder %s55, 0
      %p486 = por %p484, %p485
      %s488 = sadd.s32 %s487, 1
      %p491 = scmp.eq.s32.totalorder %s49, 1
      %p492 = scmp.ne.s32.totalorder %s487, %s489
      %p493 = scmp.eq.s32.totalorder %s49, 0
      %p494 = por %p492, %p493
      %p495 = scmp.ne.s32.totalorder %s487, %s489
      %p496 = scmp.eq.s32.totalorder %s54, 1
      %p497 = por %p495, %p496
      %p498 = scmp.ne.s32.totalorder %s489, %s490
      %p499 = scmp.eq.s32.totalorder %s54, 0
      %p500 = por %p498, %p499
      %p501 = scmp.ne.s32.totalorder %s489, %s490
      %p502 = scmp.eq.s32.totalorder %s55, 1
      %p503 = por %p501, %p502
      %p505 = scmp.ne.s32.totalorder %s490, %s504
      %p506 = scmp.eq.s32.totalorder %s55, 0
      %p507 = por %p505, %p506
      %s509 = sadd.s32 %s508, 1
      %p512 = scmp.eq.s32.totalorder %s49, 1
      %p513 = scmp.ne.s32.totalorder %s508, %s510
      %p514 = scmp.eq.s32.totalorder %s49, 0
      %p515 = por %p513, %p514
      %p516 = scmp.ne.s32.totalorder %s508, %s510
      %p517 = scmp.eq.s32.totalorder %s54, 1
      %p518 = por %p516, %p517
      %p519 = scmp.ne.s32.totalorder %s510, %s511
      %p520 = scmp.eq.s32.totalorder %s54, 0
      %p521 = por %p519, %p520
      %p522 = scmp.ne.s32.totalorder %s510, %s511
      %p523 = scmp.eq.s32.totalorder %s55, 1
      %p524 = por %p522, %p523
      %p526 = scmp.ne.s32.totalorder %s511, %s525
      %p527 = scmp.eq.s32.totalorder %s55, 0
      %p528 = por %p526, %p527
      %s530 = sadd.s32 %s529, 1
      %p533 = scmp.eq.s32.totalorder %s49, 1
      %p534 = scmp.ne.s32.totalorder %s529, %s531
      %p535 = scmp.eq.s32.totalorder %s49, 0
      %p536 = por %p534, %p535
      %p537 = scmp.ne.s32.totalorder %s529, %s531
      %p538 = scmp.eq.s32.totalorder %s54, 1
      %p539 = por %p537, %p538
      %p540 = scmp.ne.s32.totalorder %s531, %s532
      %p541 = scmp.eq.s32.totalorder %s54, 0
      %p542 = por %p540, %p541
      %p543 = scmp.ne.s32.totalorder %s531, %s532
      %p544 = scmp.eq.s32.totalorder %s55, 1
      %p545 = por %p543, %p544
      %p547 = scmp.ne.s32.totalorder %s532, %s546
      %p548 = scmp.eq.s32.totalorder %s55, 0
      %p549 = por %p547, %p548
      %s551 = sadd.s32 %s550, 1
      %p554 = scmp.eq.s32.totalorder %s49, 1
      %p555 = scmp.ne.s32.totalorder %s550, %s552
      %p556 = scmp.eq.s32.totalorder %s49, 0
      %p557 = por %p555, %p556
      %p558 = scmp.ne.s32.totalorder %s550, %s552
      %p559 = scmp.eq.s32.totalorder %s54, 1
      %p560 = por %p558, %p559
      %p561 = scmp.ne.s32.totalorder %s552, %s553
      %p562 = scmp.eq.s32.totalorder %s54, 0
      %p563 = por %p561, %p562
      %p564 = scmp.ne.s32.totalorder %s552, %s553
      %p565 = scmp.eq.s32.totalorder %s55, 1
      %p566 = por %p564, %p565
      %p568 = scmp.ne.s32.totalorder %s553, %s567
      %p569 = scmp.eq.s32.totalorder %s55, 0
      %p570 = por %p568, %p569
      %s572 = sadd.s32 %s571, 1
      %p575 = scmp.eq.s32.totalorder %s49, 1
      %p576 = scmp.ne.s32.totalorder %s571, %s573
      %p577 = scmp.eq.s32.totalorder %s49, 0
      %p578 = por %p576, %p577
      %p579 = scmp.ne.s32.totalorder %s571, %s573
      %p580 = scmp.eq.s32.totalorder %s54, 1
      %p581 = por %p579, %p580
      %p582 = scmp.ne.s32.totalorder %s573, %s574
      %p583 = scmp.eq.s32.totalorder %s54, 0
      %p584 = por %p582, %p583
      %p585 = scmp.ne.s32.totalorder %s573, %s574
      %p586 = scmp.eq.s32.totalorder %s55, 1
      %p587 = por %p585, %p586
      %p589 = scmp.ne.s32.totalorder %s574, %s588
      %p590 = scmp.eq.s32.totalorder %s55, 0
      %p591 = por %p589, %p590
      %s593 = sadd.s32 %s592, 1
      %p596 = scmp.eq.s32.totalorder %s49, 1
      %p597 = scmp.ne.s32.totalorder %s592, %s594
      %p598 = scmp.eq.s32.totalorder %s49, 0
      %p599 = por %p597, %p598
      %p600 = scmp.ne.s32.totalorder %s592, %s594
      %p601 = scmp.eq.s32.totalorder %s54, 1
      %p602 = por %p600, %p601
      %p603 = scmp.ne.s32.totalorder %s594, %s595
      %p604 = scmp.eq.s32.totalorder %s54, 0
      %p605 = por %p603, %p604
      %p606 = scmp.ne.s32.totalorder %s594, %s595
      %p607 = scmp.eq.s32.totalorder %s55, 1
      %p608 = por %p606, %p607
      %p610 = scmp.ne.s32.totalorder %s595, %s609
      %p611 = scmp.eq.s32.totalorder %s55, 0
      %p612 = por %p610, %p611
      %s613 = ssub.s32 %s49, %s56
      %p614 = scmp.eq.s32.totalorder %s613, 0
      %s616 = sadd.s32 %s615, 1
      %s617 = scalar_select %p614, %s615, %s616
      %p620 = pneg %p614
      %p621 = scmp.eq.s32.totalorder %s49, 1
      %p622 = por %p620, %p621
      %p623 = scmp.ne.s32.totalorder %s615, %s618
      %p624 = scmp.eq.s32.totalorder %s49, 0
      %p625 = por %p623, %p624
      %p626 = scmp.ne.s32.totalorder %s615, %s618
      %p627 = scmp.eq.s32.totalorder %s54, 1
      %p628 = por %p626, %p627
      %p629 = scmp.ne.s32.totalorder %s618, %s619
      %p630 = scmp.eq.s32.totalorder %s54, 0
      %p631 = por %p629, %p630
      %p632 = scmp.ne.s32.totalorder %s618, %s619
      %p633 = scmp.eq.s32.totalorder %s55, 1
      %p634 = por %p632, %p633
      %p636 = scmp.ne.s32.totalorder %s619, %s635
      %p637 = scmp.eq.s32.totalorder %s55, 0
      %p638 = por %p636, %p637
      %s639 = ssub.s32 %s49, %s56
      %p640 = scmp.eq.s32.totalorder %s639, 0
      %s642 = sadd.s32 %s641, 1
      %s643 = scalar_select %p640, %s641, %s642
      %p646 = pneg %p640
      %p647 = scmp.eq.s32.totalorder %s49, 1
      %p648 = por %p646, %p647
      %p649 = scmp.ne.s32.totalorder %s641, %s644
      %p650 = scmp.eq.s32.totalorder %s49, 0
      %p651 = por %p649, %p650
      %p652 = scmp.ne.s32.totalorder %s641, %s644
      %p653 = scmp.eq.s32.totalorder %s54, 1
      %p654 = por %p652, %p653
      %p655 = scmp.ne.s32.totalorder %s644, %s645
      %p656 = scmp.eq.s32.totalorder %s54, 0
      %p657 = por %p655, %p656
      %p658 = scmp.ne.s32.totalorder %s644, %s645
      %p659 = scmp.eq.s32.totalorder %s55, 1
      %p660 = por %p658, %p659
      %p662 = scmp.ne.s32.totalorder %s645, %s661
      %p663 = scmp.eq.s32.totalorder %s55, 0
      %p664 = por %p662, %p663
      %p665 = scmp.le.s32.totalorder 1, %s49
      %p666 = scmp.lt.s32.totalorder %s49, 3
      %p667 = pnand %p665, %p666
      %p668 = pneg %p667
      // Predicated region
      $region9: #{vqa_forward.1} parent=5 // pred_check
        _
      $region10: #{vqa_forward.1} parent=5 // pred_check_branch
        %670 = sbr.rel (%p667) target = $region12
      $region11: #{vqa_forward.1} parent=5 // pred_region
        %s671 = ssub.s32 %s49, 1
        // Predicated region
        $region13: #{vqa_forward.1} parent=11 // pred_check
          %p672 = pneg %p122
        $region14: #{vqa_forward.1} parent=11 // pred_check_branch
          %674 = sbr.rel (%p672) target = $region16
        $region15: #{vqa_forward.1} parent=11 // pred_region
          _
        $region16: #{vqa_forward.1} parent=11 // pred_fallthru
          _
        // Predicated region
        $region17: #{vqa_forward.1} parent=11 // pred_check
          %p675 = pneg %p143
        $region18: #{vqa_forward.1} parent=11 // pred_check_branch
          %677 = sbr.rel (%p675) target = $region20
        $region19: #{vqa_forward.1} parent=11 // pred_region
          _
        $region20: #{vqa_forward.1} parent=11 // pred_fallthru
          _
        // Predicated region
        $region21: #{vqa_forward.1} parent=11 // pred_check
          %p678 = pneg %p164
        $region22: #{vqa_forward.1} parent=11 // pred_check_branch
          %680 = sbr.rel (%p678) target = $region24
        $region23: #{vqa_forward.1} parent=11 // pred_region
          %s682 = ssub.s32 48, 48
          %683 = vsyncadd [#allocation5], %s682
          %s685 = sshll.u32 [#allocation4], 4
          %s686 = int_to_ptr.vmem [resolvable:$true] %s685
          %688 = dma.hbm_to_vmem [thread:$0]  %s4, 48, %s686, [#allocation5]
        $region24: #{vqa_forward.1} parent=11 // pred_fallthru
          _
        // Predicated region
        $region25: #{vqa_forward.1} parent=11 // pred_check
          %p689 = pneg %p185
        $region26: #{vqa_forward.1} parent=11 // pred_check_branch
          %691 = sbr.rel (%p689) target = $region28
        $region27: #{vqa_forward.1} parent=11 // pred_region
          %s693 = ssub.s32 48, 48
          %694 = vsyncadd [#allocation8], %s693
          %s696 = sshll.u32 [#allocation7], 4
          %s697 = int_to_ptr.vmem [resolvable:$true] %s696
          %699 = dma.hbm_to_vmem [thread:$0]  %s5, 48, %s697, [#allocation8]
        $region28: #{vqa_forward.1} parent=11 // pred_fallthru
          _
        // Predicated region
        $region29: #{vqa_forward.1} parent=11 // pred_check
          %p700 = pneg %p206
        $region30: #{vqa_forward.1} parent=11 // pred_check_branch
          %702 = sbr.rel (%p700) target = $region32
        $region31: #{vqa_forward.1} parent=11 // pred_region
          _
        $region32: #{vqa_forward.1} parent=11 // pred_fallthru
          _
        // Predicated region
        $region33: #{vqa_forward.1} parent=11 // pred_check
          %p703 = pneg %p227
        $region34: #{vqa_forward.1} parent=11 // pred_check_branch
          %705 = sbr.rel (%p703) target = $region36
        $region35: #{vqa_forward.1} parent=11 // pred_region
          _
        $region36: #{vqa_forward.1} parent=11 // pred_fallthru
          _
        // Predicated region
        $region37: #{vqa_forward.1} parent=11 // pred_check
          %p706 = pneg %p248
        $region38: #{vqa_forward.1} parent=11 // pred_check_branch
          %708 = sbr.rel (%p706) target = $region40
        $region39: #{vqa_forward.1} parent=11 // pred_region
          %s710 = ssub.s32 48, 48
          %711 = vsyncadd [#allocation8], %s710
          %s713 = sshll.u32 [#allocation9], 4
          %s714 = int_to_ptr.vmem [resolvable:$true] %s713
          %716 = dma.hbm_to_vmem [thread:$0]  %s8, 48, %s714, [#allocation8]
        $region40: #{vqa_forward.1} parent=11 // pred_fallthru
          _
        // Predicated region
        $region41: #{vqa_forward.1} parent=11 // pred_check
          %p717 = pneg %p269
        $region42: #{vqa_forward.1} parent=11 // pred_check_branch
          %719 = sbr.rel (%p717) target = $region44
        $region43: #{vqa_forward.1} parent=11 // pred_region
          %s721 = ssub.s32 48, 48
          %722 = vsyncadd [#allocation11], %s721
          %s724 = sshll.u32 [#allocation10], 4
          %s725 = int_to_ptr.vmem [resolvable:$true] %s724
          %727 = dma.hbm_to_vmem [thread:$0]  %s9, 48, %s725, [#allocation11]
        $region44: #{vqa_forward.1} parent=11 // pred_fallthru
          _
        // Predicated region
        $region45: #{vqa_forward.1} parent=11 // pred_check
          %p728 = pneg %p290
        $region46: #{vqa_forward.1} parent=11 // pred_check_branch
          %730 = sbr.rel (%p728) target = $region48
        $region47: #{vqa_forward.1} parent=11 // pred_region
          _
        $region48: #{vqa_forward.1} parent=11 // pred_fallthru
          _
        // Predicated region
        $region49: #{vqa_forward.1} parent=11 // pred_check
          %p731 = pneg %p311
        $region50: #{vqa_forward.1} parent=11 // pred_check_branch
          %733 = sbr.rel (%p731) target = $region52
        $region51: #{vqa_forward.1} parent=11 // pred_region
          _
        $region52: #{vqa_forward.1} parent=11 // pred_fallthru
          _
        // Predicated region
        $region53: #{vqa_forward.1} parent=11 // pred_check
          %p734 = pneg %p332
        $region54: #{vqa_forward.1} parent=11 // pred_check_branch
          %736 = sbr.rel (%p734) target = $region56
        $region55: #{vqa_forward.1} parent=11 // pred_region
          _
        $region56: #{vqa_forward.1} parent=11 // pred_fallthru
          _
        // Predicated region
        $region57: #{vqa_forward.1} parent=11 // pred_check
          %p737 = pneg %p353
        $region58: #{vqa_forward.1} parent=11 // pred_check_branch
          %739 = sbr.rel (%p737) target = $region60
        $region59: #{vqa_forward.1} parent=11 // pred_region
          %s741 = ssub.s32 16, 16
          %742 = vsyncadd [#allocation11], %s741
          %s744 = sshll.u32 [#allocation12], 4
          %s745 = int_to_ptr.vmem [resolvable:$true] %s744
          %747 = dma.hbm_to_vmem [thread:$0]  %s13, 16, %s745, [#allocation11]
        $region60: #{vqa_forward.1} parent=11 // pred_fallthru
          _
        // Predicated region
        $region61: #{vqa_forward.1} parent=11 // pred_check
          %p748 = pneg %p374
        $region62: #{vqa_forward.1} parent=11 // pred_check_branch
          %750 = sbr.rel (%p748) target = $region64
        $region63: #{vqa_forward.1} parent=11 // pred_region
          %s752 = ssub.s32 16, 16
          %753 = vsyncadd [#allocation14], %s752
          %s755 = sshll.u32 [#allocation13], 4
          %s756 = int_to_ptr.vmem [resolvable:$true] %s755
          %758 = dma.hbm_to_vmem [thread:$0]  %s14, 16, %s756, [#allocation14]
        $region64: #{vqa_forward.1} parent=11 // pred_fallthru
          _
        // Predicated region
        $region65: #{vqa_forward.1} parent=11 // pred_check
          %p759 = pneg %p395
        $region66: #{vqa_forward.1} parent=11 // pred_check_branch
          %761 = sbr.rel (%p759) target = $region68
        $region67: #{vqa_forward.1} parent=11 // pred_region
          _
        $region68: #{vqa_forward.1} parent=11 // pred_fallthru
          _
        // Predicated region
        $region69: #{vqa_forward.1} parent=11 // pred_check
          %p762 = pneg %p416
        $region70: #{vqa_forward.1} parent=11 // pred_check_branch
          %764 = sbr.rel (%p762) target = $region72
        $region71: #{vqa_forward.1} parent=11 // pred_region
          %s766 = ssub.s32 512, 512
          %767 = vsyncadd [#allocation14], %s766
          %s768 = sshll.u32 [#allocation15], 4
          %s769 = int_to_ptr.vmem [resolvable:$true] %s768
          %774 = dma.hbm_to_vmem [thread:$0]  %s16, 512, %s769, [#allocation14], 64, 64, 4
        $region72: #{vqa_forward.1} parent=11 // pred_fallthru
          _
        // Predicated region
        $region73: #{vqa_forward.1} parent=11 // pred_check
          %p775 = pneg %p437
        $region74: #{vqa_forward.1} parent=11 // pred_check_branch
          %777 = sbr.rel (%p775) target = $region76
        $region75: #{vqa_forward.1} parent=11 // pred_region
          %s779 = ssub.s32 16, 16
          %780 = vsyncadd [#allocation17], %s779
          %s782 = sshll.u32 [#allocation16], 4
          %s783 = int_to_ptr.vmem [resolvable:$true] %s782
          %785 = dma.hbm_to_vmem [thread:$0]  %s17, 16, %s783, [#allocation17]
        $region76: #{vqa_forward.1} parent=11 // pred_fallthru
          _
        // Predicated region
        $region77: #{vqa_forward.1} parent=11 // pred_check
          %p786 = pneg %p458
        $region78: #{vqa_forward.1} parent=11 // pred_check_branch
          %788 = sbr.rel (%p786) target = $region80
        $region79: #{vqa_forward.1} parent=11 // pred_region
          _
        $region80: #{vqa_forward.1} parent=11 // pred_fallthru
          _
        // Predicated region
        $region81: #{vqa_forward.1} parent=11 // pred_check
          %p789 = pneg %p479
        $region82: #{vqa_forward.1} parent=11 // pred_check_branch
          %791 = sbr.rel (%p789) target = $region84
        $region83: #{vqa_forward.1} parent=11 // pred_region
          %s793 = ssub.s32 16, 16
          %794 = vsyncadd [#allocation17], %s793
          %s796 = sshll.u32 [#allocation18], 4
          %s797 = int_to_ptr.vmem [resolvable:$true] %s796
          %799 = dma.hbm_to_vmem [thread:$0]  %s19, 16, %s797, [#allocation17]
        $region84: #{vqa_forward.1} parent=11 // pred_fallthru
          _
        // Predicated region
        $region85: #{vqa_forward.1} parent=11 // pred_check
          %p800 = pneg %p500
        $region86: #{vqa_forward.1} parent=11 // pred_check_branch
          %802 = sbr.rel (%p800) target = $region88
        $region87: #{vqa_forward.1} parent=11 // pred_region
          _
        $region88: #{vqa_forward.1} parent=11 // pred_fallthru
          _
        // Predicated region
        $region89: #{vqa_forward.1} parent=11 // pred_check
          %p803 = pneg %p521
        $region90: #{vqa_forward.1} parent=11 // pred_check_branch
          %805 = sbr.rel (%p803) target = $region92
        $region91: #{vqa_forward.1} parent=11 // pred_region
          %s807 = ssub.s32 16, 16
          %808 = vsyncadd [#allocation20], %s807
          %s810 = sshll.u32 [#allocation19], 4
          %s811 = int_to_ptr.vmem [resolvable:$true] %s810
          %813 = dma.hbm_to_vmem [thread:$0]  %s21, 16, %s811, [#allocation20]
        $region92: #{vqa_forward.1} parent=11 // pred_fallthru
          _
        // Predicated region
        $region93: #{vqa_forward.1} parent=11 // pred_check
          %p814 = pneg %p542
        $region94: #{vqa_forward.1} parent=11 // pred_check_branch
          %816 = sbr.rel (%p814) target = $region96
        $region95: #{vqa_forward.1} parent=11 // pred_region
          %s818 = ssub.s32 1024, 1024
          %819 = vsyncadd [#allocation20], %s818
          %s820 = sshll.u32 [#allocation21], 4
          %s821 = int_to_ptr.vmem [resolvable:$true] %s820
          %826 = dma.hbm_to_vmem [thread:$0]  %s22, 1024, %s821, [#allocation20], 64, 64, 4
        $region96: #{vqa_forward.1} parent=11 // pred_fallthru
          _
        // Predicated region
        $region97: #{vqa_forward.1} parent=11 // pred_check
          %p827 = pneg %p563
        $region98: #{vqa_forward.1} parent=11 // pred_check_branch
          %829 = sbr.rel (%p827) target = $region100
        $region99: #{vqa_forward.1} parent=11 // pred_region
          %s831 = ssub.s32 16, 16
          %832 = vsyncadd [#allocation23], %s831
          %s834 = sshll.u32 [#allocation22], 4
          %s835 = int_to_ptr.vmem [resolvable:$true] %s834
          %837 = dma.hbm_to_vmem [thread:$0]  %s23, 16, %s835, [#allocation23]
        $region100: #{vqa_forward.1} parent=11 // pred_fallthru
          _
        // Predicated region
        $region101: #{vqa_forward.1} parent=11 // pred_check
          %p838 = pneg %p584
        $region102: #{vqa_forward.1} parent=11 // pred_check_branch
          %840 = sbr.rel (%p838) target = $region104
        $region103: #{vqa_forward.1} parent=11 // pred_region
          %s842 = ssub.s32 1024, 1024
          %843 = vsyncadd [#allocation23], %s842
          %s844 = sshll.u32 [#allocation24], 4
          %s845 = int_to_ptr.vmem [resolvable:$true] %s844
          %850 = dma.hbm_to_vmem [thread:$0]  %s24, 1024, %s845, [#allocation23], 64, 64, 4
        $region104: #{vqa_forward.1} parent=11 // pred_fallthru
          _
        // Predicated region
        $region105: #{vqa_forward.1} parent=11 // pred_check
          %p851 = pneg %p605
        $region106: #{vqa_forward.1} parent=11 // pred_check_branch
          %853 = sbr.rel (%p851) target = $region108
        $region107: #{vqa_forward.1} parent=11 // pred_region
          %s855 = ssub.s32 16, 16
          %856 = vsyncadd [#allocation26], %s855
          %s858 = sshll.u32 [#allocation25], 4
          %s859 = int_to_ptr.vmem [resolvable:$true] %s858
          %861 = dma.hbm_to_vmem [thread:$0]  %s25, 16, %s859, [#allocation26]
        $region108: #{vqa_forward.1} parent=11 // pred_fallthru
          _
      $region12: #{vqa_forward.1} parent=5 // pred_fallthru
        _
      %p862 = scmp.lt.s32.totalorder %s49, 2
      // Predicated region
      $region109: #{vqa_forward.1} parent=5 // pred_check
        %p863 = pneg %p862
      $region110: #{vqa_forward.1} parent=5 // pred_check_branch
        %865 = sbr.rel (%p863) target = $region112
      $region111: #{vqa_forward.1} parent=5 // pred_region
        // Predicated region
        $region113: #{vqa_forward.1} parent=111 // pred_check
          %p866 = pneg %p69
        $region114: #{vqa_forward.1} parent=111 // pred_check_branch
          %868 = sbr.rel (%p866) target = $region116
        $region115: #{vqa_forward.1} parent=111 // pred_region
          %s869 = sand.u32 %s59, 1
          %s870 = sand.u32 %s59, 1
          %s871 = smul.addr %s870, 32
          %s872 = scalar_lea.vmem [#allocation3], %s871
          %s873 = smul.addr %s49, 4
          %s874 = scalar_lea.vmem %s0, %s873
          // Predicated region
          $region117: #{vqa_forward.1} parent=115 // pred_check
            _
          $region118: #{vqa_forward.1} parent=115 // pred_check_branch
            %876 = sbr.rel (0) target = $region120
          $region119: #{vqa_forward.1} parent=115 // pred_region
            // Predicated region
            $region121: #{vqa_forward.1} parent=119 // pred_check
              _
            $region122: #{vqa_forward.1} parent=119 // pred_check_branch
              %878 = sbr.rel target = $region124
            $region123: #{vqa_forward.1} parent=119 // pred_region
              // Predicated region
              $region136: #{vqa_forward.1} parent=123 // pred_check
                _
              $region137: #{vqa_forward.1} parent=123 // pred_check_branch
                %907 = sbr.rel (0) target = $region139
              $region138: #{vqa_forward.1} parent=123 // pred_region
                loop: start=0, step=1, limit=1
                $region140: #{vqa_forward.1} parent=138 // loop_pre_header
                  _
                $region141: #{vqa_forward.1} parent=138 // loop_header
                  %s909 = sphi 0, %s913
                  %p910 = scmp.ge.s32.totalorder %s909, 1
                  %s914 = sphi %s874, %s874
                  %s915 = sphi %s872, %s872
                $region142: #{vqa_forward.1} parent=138 // loop_header_branch
                  %912 = sbr.rel (%p910) target = $region146
                $region143: #{vqa_forward.1} parent=138 // loop_body
                  _
                $region144: #{vqa_forward.1} parent=138 // loop_footer
                  %s913 = sadd.s32 1, %s909
                $region145: #{vqa_forward.1} parent=138 // loop_footer_branch
                  %908 = sbr.rel target = $region141
                $region146: #{vqa_forward.1} parent=138 // loop_exit
                  _
                loop: start=0, step=1, limit=1
                $region147: #{vqa_forward.1} parent=138 // loop_pre_header
                  _
                $region148: #{vqa_forward.1} parent=138 // loop_header
                  %s918 = sphi 0, %s922
                  %p919 = scmp.ge.s32.totalorder %s918, 1
                  %s923 = sphi %s874, %s874
                  %s924 = sphi %s872, %s872
                $region149: #{vqa_forward.1} parent=138 // loop_header_branch
                  %921 = sbr.rel (%p919) target = $region153
                $region150: #{vqa_forward.1} parent=138 // loop_body
                  %v925 = vld [vmem:[%s923] sm:$0xf]
                  %926 = vst [vmem:[%s924] sm:$0xf] %v925
                  %v927 = vld [vmem:[%s923 + $0x8] sm:$0xf]
                  %928 = vst [vmem:[%s924 + $0x4] sm:$0xf] %v927
                  %v929 = vld [vmem:[%s923 + $0x10] sm:$0xf]
                  %930 = vst [vmem:[%s924 + $0x8] sm:$0xf] %v929
                  %v931 = vld [vmem:[%s923 + $0x18] sm:$0xf]
                  %932 = vst [vmem:[%s924 + $0xc] sm:$0xf] %v931
                  %v933 = vld [vmem:[%s923 + $0x20] sm:$0xf]
                  %934 = vst [vmem:[%s924 + $0x10] sm:$0xf] %v933
                  %v935 = vld [vmem:[%s923 + $0x28] sm:$0xf]
                  %936 = vst [vmem:[%s924 + $0x14] sm:$0xf] %v935
                  %v937 = vld [vmem:[%s923 + $0x30] sm:$0xf]
                  %938 = vst [vmem:[%s924 + $0x18] sm:$0xf] %v937
                  %v939 = vld [vmem:[%s923 + $0x38] sm:$0xf]
                  %940 = vst [vmem:[%s924 + $0x1c] sm:$0xf] %v939
                $region151: #{vqa_forward.1} parent=138 // loop_footer
                  %s922 = sadd.s32 1, %s918
                $region152: #{vqa_forward.1} parent=138 // loop_footer_branch
                  %917 = sbr.rel target = $region148
                $region153: #{vqa_forward.1} parent=138 // loop_exit
                  _
              $region139: #{vqa_forward.1} parent=123 // pred_fallthru
                _
            $region124: #{vqa_forward.1} parent=119 // pred_fallthru
              _
            // Predicated region
            $region125: #{vqa_forward.1} parent=119 // pred_check
              _
            $region126: #{vqa_forward.1} parent=119 // pred_check_branch
              %880 = sbr.rel (0) target = $region128
            $region127: #{vqa_forward.1} parent=119 // pred_region
              loop: start=0, step=1, limit=1
              $region129: #{vqa_forward.1} parent=127 // loop_pre_header
                _
              $region130: #{vqa_forward.1} parent=127 // loop_header
                %s883 = sphi 0, %s887
                %p884 = scmp.ge.s32.totalorder %s883, 1
                %s888 = sphi %s874, %s874
                %s889 = sphi %s872, %s872
              $region131: #{vqa_forward.1} parent=127 // loop_header_branch
                %886 = sbr.rel (%p884) target = $region135
              $region132: #{vqa_forward.1} parent=127 // loop_body
                %v890 = vld [vmem:[%s888] sm:$0xf]
                %891 = vst [vmem:[%s889] sm:$0xf] %v890
                %v892 = vld [vmem:[%s888 + $0x8] sm:$0xf]
                %893 = vst [vmem:[%s889 + $0x4] sm:$0xf] %v892
                %v894 = vld [vmem:[%s888 + $0x10] sm:$0xf]
                %895 = vst [vmem:[%s889 + $0x8] sm:$0xf] %v894
                %v896 = vld [vmem:[%s888 + $0x18] sm:$0xf]
                %897 = vst [vmem:[%s889 + $0xc] sm:$0xf] %v896
                %v898 = vld [vmem:[%s888 + $0x20] sm:$0xf]
                %899 = vst [vmem:[%s889 + $0x10] sm:$0xf] %v898
                %v900 = vld [vmem:[%s888 + $0x28] sm:$0xf]
                %901 = vst [vmem:[%s889 + $0x14] sm:$0xf] %v900
                %v902 = vld [vmem:[%s888 + $0x30] sm:$0xf]
                %903 = vst [vmem:[%s889 + $0x18] sm:$0xf] %v902
                %v904 = vld [vmem:[%s888 + $0x38] sm:$0xf]
                %905 = vst [vmem:[%s889 + $0x1c] sm:$0xf] %v904
              $region133: #{vqa_forward.1} parent=127 // loop_footer
                %s887 = sadd.s32 1, %s883
              $region134: #{vqa_forward.1} parent=127 // loop_footer_branch
                %882 = sbr.rel target = $region130
              $region135: #{vqa_forward.1} parent=127 // loop_exit
                _
            $region128: #{vqa_forward.1} parent=119 // pred_fallthru
              _
          $region120: #{vqa_forward.1} parent=115 // pred_fallthru
            _
          %941 = vnop
        $region116: #{vqa_forward.1} parent=111 // pred_fallthru
          _
        // Predicated region
        $region154: #{vqa_forward.1} parent=111 // pred_check
          %p942 = pneg %p95
        $region155: #{vqa_forward.1} parent=111 // pred_check_branch
          %944 = sbr.rel (%p942) target = $region157
        $region156: #{vqa_forward.1} parent=111 // pred_region
          %s945 = smul.u32 8, %s49
          %p946 = scmp.lt.s32.totalorder %s945, 15
          %s947 = scalar_select %p946, %s945, 15
          %s948 = smul.addr %s947, 2
          %s949 = smul.addr %s948, 4
          %s950 = scalar_lea.vmem %s1, %s949
          %s951 = smul.u32 8, %s49
        $region157: #{vqa_forward.1} parent=111 // pred_fallthru
          _
      $region112: #{vqa_forward.1} parent=5 // pred_fallthru
        _
      %p952 = scmp.le.s32.totalorder 1, %s49
      %p953 = scmp.lt.s32.totalorder %s49, 3
      %p954 = pnand %p952, %p953
      %p955 = pneg %p954
      // Predicated region
      $region158: #{vqa_forward.1} parent=5 // pred_check
        _
      $region159: #{vqa_forward.1} parent=5 // pred_check_branch
        %957 = sbr.rel (%p954) target = $region161
      $region160: #{vqa_forward.1} parent=5 // pred_region
        %s958 = ssub.s32 %s49, 1
        %s959 = sand.u32 %s62, 1
        %s960 = sand.u32 %s62, 1
        %s961 = smul.addr %s960, 32
        %s962 = scalar_lea.vmem [#allocation3], %s961
        // Predicated region
        $region162: #{vqa_forward.1} parent=160 // pred_check
          %p963 = pneg %p75
        $region163: #{vqa_forward.1} parent=160 // pred_check_branch
          %965 = sbr.rel (%p963) target = $region165
        $region164: #{vqa_forward.1} parent=160 // pred_region
          _
        $region165: #{vqa_forward.1} parent=160 // pred_fallthru
          _
        // Predicated region
        $region166: #{vqa_forward.1} parent=160 // pred_check
          %p966 = pneg %p164
        $region167: #{vqa_forward.1} parent=160 // pred_check_branch
          %968 = sbr.rel (%p966) target = $region169
        $region168: #{vqa_forward.1} parent=160 // pred_region
          %969 = dma.done [#allocation5], 48
        $region169: #{vqa_forward.1} parent=160 // pred_fallthru
          _
        // Predicated region
        $region170: #{vqa_forward.1} parent=160 // pred_check
          %p970 = pneg %p185
        $region171: #{vqa_forward.1} parent=160 // pred_check_branch
          %972 = sbr.rel (%p970) target = $region173
        $region172: #{vqa_forward.1} parent=160 // pred_region
          %973 = dma.done [#allocation8], 48
        $region173: #{vqa_forward.1} parent=160 // pred_fallthru
          _
        // Predicated region
        $region174: #{vqa_forward.1} parent=160 // pred_check
          %p974 = pneg %p248
        $region175: #{vqa_forward.1} parent=160 // pred_check_branch
          %976 = sbr.rel (%p974) target = $region177
        $region176: #{vqa_forward.1} parent=160 // pred_region
          %977 = dma.done [#allocation8], 48
        $region177: #{vqa_forward.1} parent=160 // pred_fallthru
          _
        // Predicated region
        $region178: #{vqa_forward.1} parent=160 // pred_check
          %p978 = pneg %p269
        $region179: #{vqa_forward.1} parent=160 // pred_check_branch
          %980 = sbr.rel (%p978) target = $region181
        $region180: #{vqa_forward.1} parent=160 // pred_region
          %981 = dma.done [#allocation11], 48
        $region181: #{vqa_forward.1} parent=160 // pred_fallthru
          _
        // Predicated region
        $region182: #{vqa_forward.1} parent=160 // pred_check
          %p982 = pneg %p353
        $region183: #{vqa_forward.1} parent=160 // pred_check_branch
          %984 = sbr.rel (%p982) target = $region185
        $region184: #{vqa_forward.1} parent=160 // pred_region
          %985 = dma.done [#allocation11], 16
        $region185: #{vqa_forward.1} parent=160 // pred_fallthru
          _
        // Predicated region
        $region186: #{vqa_forward.1} parent=160 // pred_check
          %p986 = pneg %p374
        $region187: #{vqa_forward.1} parent=160 // pred_check_branch
          %988 = sbr.rel (%p986) target = $region189
        $region188: #{vqa_forward.1} parent=160 // pred_region
          %989 = dma.done [#allocation14], 16
        $region189: #{vqa_forward.1} parent=160 // pred_fallthru
          _
        // Predicated region
        $region190: #{vqa_forward.1} parent=160 // pred_check
          %p990 = pneg %p416
        $region191: #{vqa_forward.1} parent=160 // pred_check_branch
          %992 = sbr.rel (%p990) target = $region193
        $region192: #{vqa_forward.1} parent=160 // pred_region
          %993 = dma.done [#allocation14], 512
        $region193: #{vqa_forward.1} parent=160 // pred_fallthru
          _
        // Predicated region
        $region194: #{vqa_forward.1} parent=160 // pred_check
          %p994 = pneg %p437
        $region195: #{vqa_forward.1} parent=160 // pred_check_branch
          %996 = sbr.rel (%p994) target = $region197
        $region196: #{vqa_forward.1} parent=160 // pred_region
          %997 = dma.done [#allocation17], 16
        $region197: #{vqa_forward.1} parent=160 // pred_fallthru
          _
        // Predicated region
        $region198: #{vqa_forward.1} parent=160 // pred_check
          %p998 = pneg %p479
        $region199: #{vqa_forward.1} parent=160 // pred_check_branch
          %1000 = sbr.rel (%p998) target = $region201
        $region200: #{vqa_forward.1} parent=160 // pred_region
          %1001 = dma.done [#allocation17], 16
        $region201: #{vqa_forward.1} parent=160 // pred_fallthru
          _
        // Predicated region
        $region202: #{vqa_forward.1} parent=160 // pred_check
          %p1002 = pneg %p521
        $region203: #{vqa_forward.1} parent=160 // pred_check_branch
          %1004 = sbr.rel (%p1002) target = $region205
        $region204: #{vqa_forward.1} parent=160 // pred_region
          %1005 = dma.done [#allocation20], 16
        $region205: #{vqa_forward.1} parent=160 // pred_fallthru
          _
        // Predicated region
        $region206: #{vqa_forward.1} parent=160 // pred_check
          %p1006 = pneg %p542
        $region207: #{vqa_forward.1} parent=160 // pred_check_branch
          %1008 = sbr.rel (%p1006) target = $region209
        $region208: #{vqa_forward.1} parent=160 // pred_region
          %1009 = dma.done [#allocation20], 1024
        $region209: #{vqa_forward.1} parent=160 // pred_fallthru
          _
        // Predicated region
        $region210: #{vqa_forward.1} parent=160 // pred_check
          %p1010 = pneg %p563
        $region211: #{vqa_forward.1} parent=160 // pred_check_branch
          %1012 = sbr.rel (%p1010) target = $region213
        $region212: #{vqa_forward.1} parent=160 // pred_region
          %1013 = dma.done [#allocation23], 16
        $region213: #{vqa_forward.1} parent=160 // pred_fallthru
          _
        // Predicated region
        $region214: #{vqa_forward.1} parent=160 // pred_check
          %p1014 = pneg %p584
        $region215: #{vqa_forward.1} parent=160 // pred_check_branch
          %1016 = sbr.rel (%p1014) target = $region217
        $region216: #{vqa_forward.1} parent=160 // pred_region
          %1017 = dma.done [#allocation23], 1024
        $region217: #{vqa_forward.1} parent=160 // pred_fallthru
          _
        // Predicated region
        $region218: #{vqa_forward.1} parent=160 // pred_check
          %p1018 = pneg %p605
        $region219: #{vqa_forward.1} parent=160 // pred_check_branch
          %1020 = sbr.rel (%p1018) target = $region221
        $region220: #{vqa_forward.1} parent=160 // pred_region
          %1021 = dma.done [#allocation26], 16
        $region221: #{vqa_forward.1} parent=160 // pred_fallthru
          _
        %s1022 = sand.u32 %s62, 1
        %s1023 = sand.u32 %s62, 1
        %s1024 = smul.addr %s1023, 32
        %s1025 = scalar_lea.vmem [#allocation3], %s1024
        %p1026 = pneg %p75
        %p1027 = pneg %p72
        %s1028 = smul.u32 8, %s54
        %p1029 = scmp.lt.s32.totalorder %s1028, 15
        %s1030 = scalar_select %p1029, %s1028, 15
        %s1031 = smul.addr %s1030, 2
        %s1032 = smul.addr %s1031, 4
        %s1033 = scalar_lea.vmem %s1, %s1032
        %p1034 = pneg %p101
        %p1035 = pneg %p98
        %p1036 = pneg %p122
        %p1037 = pneg %p119
        %p1038 = pneg %p143
        %p1039 = pneg %p140
        %p1040 = pneg %p164
        %p1041 = pneg %p161
        %p1042 = pneg %p185
        %p1043 = pneg %p182
        %p1044 = pneg %p206
        %p1045 = pneg %p203
        %p1046 = pneg %p227
        %p1047 = pneg %p224
        %p1048 = pneg %p248
        %p1049 = pneg %p245
        %p1050 = pneg %p269
        %p1051 = pneg %p266
        %p1052 = pneg %p290
        %p1053 = pneg %p287
        %p1054 = pneg %p311
        %p1055 = pneg %p308
        %p1056 = pneg %p332
        %p1057 = pneg %p329
        %p1058 = pneg %p353
        %p1059 = pneg %p350
        %p1060 = pneg %p374
        %p1061 = pneg %p371
        %p1062 = pneg %p395
        %p1063 = pneg %p392
        %p1064 = pneg %p416
        %p1065 = pneg %p413
        %p1066 = pneg %p437
        %p1067 = pneg %p434
        %p1068 = pneg %p458
        %p1069 = pneg %p455
        %p1070 = pneg %p479
        %p1071 = pneg %p476
        %p1072 = pneg %p500
        %p1073 = pneg %p497
        %p1074 = pneg %p521
        %p1075 = pneg %p518
        %p1076 = pneg %p542
        %p1077 = pneg %p539
        %p1078 = pneg %p563
        %p1079 = pneg %p560
        %p1080 = pneg %p584
        %p1081 = pneg %p581
        %p1082 = pneg %p605
        %p1083 = pneg %p602
        %p1084 = pneg %p631
        %p1085 = pneg %p628
        %s1086 = sand.u32 %s618, 1
        %s1087 = scalar_lea.sflag [#allocation6], %s1086
        %s1088 = sand.u32 %s618, 1
        %s1089 = smul.addr %s1088, 8
        %s1090 = scalar_lea.vmem [#allocation27], %s1089
        %p1091 = pneg %p657
        %p1092 = pneg %p654
        %s1093 = sand.u32 %s644, 1
        %s1094 = scalar_lea.sflag [#allocation29], %s1093
        %s1095 = sand.u32 %s644, 1
        %s1096 = smul.addr %s1095, 8
        %s1097 = scalar_lea.vmem [#allocation28], %s1096
        %s1098 = smul.u32 8, %s54
        %p1099 = scmp.lt.s32.totalorder %s1098, 15
        %s1100 = scalar_select %p1099, %s1098, 15
        %s1101 = smul.addr %s1100, 2
        %s1102 = smul.addr %s1101, 4
        %s1103 = scalar_lea.vmem %s1, %s1102
        %s1104 = smul.u32 8, %s54
        %v1106 = vld [vmem:[%s962] sm:$0xf]
        %v1107 = vld [vmem:[%s962 + $0x4] sm:$0xf]
        %v1108 = vld [vmem:[%s962 + $0x8] sm:$0xf]
        %v1109 = vld [vmem:[%s962 + $0xc] sm:$0xf]
        %v1110 = vld [vmem:[%s962 + $0x10] sm:$0xf]
        %v1111 = vld [vmem:[%s962 + $0x14] sm:$0xf]
        %v1112 = vld [vmem:[%s962 + $0x18] sm:$0xf]
        %v1113 = vld [vmem:[%s962 + $0x1c] sm:$0xf]
        %v1114 = vld [vmem:[%s2] sm:$0xff]
        %v1115 = vld [vmem:[%s2 + $0x8] sm:$0xf]
        %v1116 = vld [vmem:[%s2 + $0xc] sm:$0xff]
        %v1117 = vld [vmem:[%s2 + $0x14] sm:$0xf]
        %v1118 = vld [vmem:[%s2 + $0x18] sm:$0xff]
        %v1119 = vld [vmem:[%s2 + $0x20] sm:$0xf]
        %v1120 = vld [vmem:[%s2 + $0x24] sm:$0xff]
        %v1121 = vld [vmem:[%s2 + $0x2c] sm:$0xf]
        %v1122 = vld [vmem:[%s2 + $0x30] sm:$0xff]
        %v1123 = vld [vmem:[%s2 + $0x38] sm:$0xf]
        %v1124 = vld [vmem:[%s2 + $0x3c] sm:$0xff]
        %v1125 = vld [vmem:[%s2 + $0x44] sm:$0xf]
        %v1126 = vld [vmem:[%s2 + $0x48] sm:$0xff]
        %v1127 = vld [vmem:[%s2 + $0x50] sm:$0xf]
        %v1128 = vld [vmem:[%s2 + $0x54] sm:$0xff]
        %v1129 = vld [vmem:[%s2 + $0x5c] sm:$0xf]
        %v1130 = vld [vmem:[%s2 + $0x60] sm:$0xff]
        %v1131 = vld [vmem:[%s2 + $0x68] sm:$0xf]
        %v1132 = vld [vmem:[%s2 + $0x6c] sm:$0xff]
        %v1133 = vld [vmem:[%s2 + $0x74] sm:$0xf]
        %v1134 = vld [vmem:[%s2 + $0x78] sm:$0xff]
        %v1135 = vld [vmem:[%s2 + $0x80] sm:$0xf]
        %v1136 = vld [vmem:[%s2 + $0x84] sm:$0xff]
        %v1137 = vld [vmem:[%s2 + $0x8c] sm:$0xf]
        %v1138 = vld [vmem:[%s2 + $0x90] sm:$0xff]
        %v1139 = vld [vmem:[%s2 + $0x98] sm:$0xf]
        %v1140 = vld [vmem:[%s2 + $0x9c] sm:$0xff]
        %v1141 = vld [vmem:[%s2 + $0xa4] sm:$0xf]
        %v1142 = vld [vmem:[%s2 + $0xa8] sm:$0xff]
        %v1143 = vld [vmem:[%s2 + $0xb0] sm:$0xf]
        %v1144 = vld [vmem:[%s2 + $0xb4] sm:$0xff]
        %v1145 = vld [vmem:[%s2 + $0xbc] sm:$0xf]
        %v1146 = vld [vmem:[#allocation4] sm:$0x7]
        %v1148 = vlaneseq
        %v1149 = vshrl.u32 %v1148, 7
        %v1150 = vsub.s32 0, %v1149
        %v1151 = vrot.slane %v1146, %v1150
        %v1152 = vlaneseq
        %v1153 = vshrl.u32 %v1152, 7
        %v1154 = vsub.s32 1, %v1153
        %v1155 = vrot.slane %v1146, %v1154
        %v1156 = vlaneseq
        %v1157 = vshrl.u32 %v1156, 7
        %v1158 = vsub.s32 2, %v1157
        %v1159 = vrot.slane %v1146, %v1158
        %v1171 = vunpack.c.l.b16 %v1106
        %v1172 = vunpack.c.l.b16 %v1107
        %v1173 = vunpack.c.l.b16 %v1108
        %v1174 = vunpack.c.l.b16 %v1109
        %v1175 = vunpack.c.l.b16 %v1110
        %v1176 = vunpack.c.l.b16 %v1111
        %v1177 = vunpack.c.l.b16 %v1112
        %v1178 = vunpack.c.l.b16 %v1113
        %v1179 = vpack.c.b16 %v1172, %v1171
        %v1180 = vpack.c.b16 %v1174, %v1173
        %v1181 = vpack.c.b16 %v1176, %v1175
        %v1182 = vpack.c.b16 %v1178, %v1177
        %v1219 = vunpack.c.l.b16 %v1114
        %v1220 = vunpack.c.h.b16 %v1114
        %v1221 = vunpack.c.l.b16 %v1115
        %v1222 = vunpack.c.l.b16 %v1116
        %v1223 = vunpack.c.h.b16 %v1116
        %v1224 = vunpack.c.l.b16 %v1117
        %v1225 = vunpack.c.l.b16 %v1118
        %v1226 = vunpack.c.h.b16 %v1118
        %v1227 = vunpack.c.l.b16 %v1119
        %v1228 = vunpack.c.l.b16 %v1120
        %v1229 = vunpack.c.h.b16 %v1120
        %v1230 = vunpack.c.l.b16 %v1121
        %v1231 = vunpack.c.l.b16 %v1122
        %v1232 = vunpack.c.h.b16 %v1122
        %v1233 = vunpack.c.l.b16 %v1123
        %v1234 = vunpack.c.l.b16 %v1124
        %v1235 = vunpack.c.h.b16 %v1124
        %v1236 = vunpack.c.l.b16 %v1125
        %v1237 = vunpack.c.l.b16 %v1126
        %v1238 = vunpack.c.h.b16 %v1126
        %v1239 = vunpack.c.l.b16 %v1127
        %v1240 = vunpack.c.l.b16 %v1128
        %v1241 = vunpack.c.h.b16 %v1128
        %v1242 = vunpack.c.l.b16 %v1129
        %v1243 = vunpack.c.l.b16 %v1130
        %v1244 = vunpack.c.h.b16 %v1130
        %v1245 = vunpack.c.l.b16 %v1131
        %v1246 = vunpack.c.l.b16 %v1132
        %v1247 = vunpack.c.h.b16 %v1132
        %v1248 = vunpack.c.l.b16 %v1133
        %v1249 = vunpack.c.l.b16 %v1134
        %v1250 = vunpack.c.h.b16 %v1134
        %v1251 = vunpack.c.l.b16 %v1135
        %v1252 = vunpack.c.l.b16 %v1136
        %v1253 = vunpack.c.h.b16 %v1136
        %v1254 = vunpack.c.l.b16 %v1137
        %v1255 = vunpack.c.l.b16 %v1138
        %v1256 = vunpack.c.h.b16 %v1138
        %v1257 = vunpack.c.l.b16 %v1139
        %v1258 = vunpack.c.l.b16 %v1140
        %v1259 = vunpack.c.h.b16 %v1140
        %v1260 = vunpack.c.l.b16 %v1141
        %v1261 = vunpack.c.l.b16 %v1142
        %v1262 = vunpack.c.h.b16 %v1142
        %v1263 = vunpack.c.l.b16 %v1143
        %v1264 = vunpack.c.l.b16 %v1144
        %v1265 = vunpack.c.h.b16 %v1144
        %v1266 = vunpack.c.l.b16 %v1145
        %v1267 = vpack.c.b16 %v1222, %v1219
        %v1268 = vpack.c.b16 %v1223, %v1220
        %v1269 = vpack.c.b16 %v1224, %v1221
        %v1270 = vpack.c.b16 %v1228, %v1225
        %v1271 = vpack.c.b16 %v1229, %v1226
        %v1272 = vpack.c.b16 %v1230, %v1227
        %v1273 = vpack.c.b16 %v1234, %v1231
        %v1274 = vpack.c.b16 %v1235, %v1232
        %v1275 = vpack.c.b16 %v1236, %v1233
        %v1276 = vpack.c.b16 %v1240, %v1237
        %v1277 = vpack.c.b16 %v1241, %v1238
        %v1278 = vpack.c.b16 %v1242, %v1239
        %v1279 = vpack.c.b16 %v1246, %v1243
        %v1280 = vpack.c.b16 %v1247, %v1244
        %v1281 = vpack.c.b16 %v1248, %v1245
        %v1282 = vpack.c.b16 %v1252, %v1249
        %v1283 = vpack.c.b16 %v1253, %v1250
        %v1284 = vpack.c.b16 %v1254, %v1251
        %v1285 = vpack.c.b16 %v1258, %v1255
        %v1286 = vpack.c.b16 %v1259, %v1256
        %v1287 = vpack.c.b16 %v1260, %v1257
        %v1288 = vpack.c.b16 %v1264, %v1261
        %v1289 = vpack.c.b16 %v1265, %v1262
        %v1290 = vpack.c.b16 %v1266, %v1263
        %1315 = vmatprep.subr.bf16.mxu0 %v1268
        %1316 = vmatpush1.bf16.msra.mxu0 %v1267
        %1317 = vmatprep.subr.bf16.mxu0 %v1271
        %1318 = vmatpush1.bf16.msra.mxu0 %v1270
        %1319 = vmatprep.subr.bf16.mxu0 %v1274
        %1320 = vmatpush1.bf16.msra.mxu0 %v1273
        %1321 = vmatprep.subr.bf16.mxu0 %v1277
        %1322 = vmatpush1.bf16.msra.mxu0 %v1276
        %1323 = vmatprep.subr.bf16.mxu0 %v1280
        %1324 = vmatpush1.bf16.msra.mxu0 %v1279
        %1325 = vmatprep.subr.bf16.mxu0 %v1283
        %1326 = vmatpush1.bf16.msra.mxu0 %v1282
        %1327 = vmatprep.subr.bf16.mxu0 %v1286
        %1328 = vmatpush1.bf16.msra.mxu0 %v1285
        %1329 = vmatprep.subr.bf16.mxu0 %v1289
        %1330 = vmatpush1.bf16.msra.mxu0 %v1288
        %1331 = vmatprep.subr.bf16.mxu0 0
        %1332 = vmatpush1.bf16.msra.mxu0 0
        %1333 = vmatprep.subr.bf16.mxu0 0
        %1334 = vmatpush1.bf16.msra.mxu0 0
        %1335 = vmatprep.subr.bf16.mxu0 0
        %1336 = vmatpush1.bf16.msra.mxu0 0
        %1337 = vmatprep.subr.bf16.mxu0 0
        %1338 = vmatpush1.bf16.msra.mxu0 0
        %1339 = vmatprep.subr.bf16.mxu0 0
        %1340 = vmatpush1.bf16.msra.mxu0 0
        %1341 = vmatprep.subr.bf16.mxu0 0
        %1342 = vmatpush1.bf16.msra.mxu0 0
        %1343 = vmatprep.subr.bf16.mxu0 0
        %1344 = vmatpush1.bf16.msra.mxu0 0
        %1345 = vmatprep.subr.bf16.mxu0 0
        %1346 = vmatpush1.bf16.msra.mxu0 0
        %1347 = vmatprep.mubr.bf16.mxu0 0
        %1348 = vmatmul.mubr.bf16.gmra.mrb[0].mxu0 %v1179
        %v1349 = vpop.f32.mrb[0].mxu0
        %v1350 = vadd.f32 %v1151, %v1349
        %v1351 = vpop.f32.mrb[0].mxu0
        %v1352 = vadd.f32 %v1155, %v1351
        %v1353 = vpop.f32.mrb[0].mxu0
        %v1354 = vadd.f32 %v1151, %v1353
        %v1355 = vpop.f32.mrb[0].mxu0
        %v1356 = vadd.f32 %v1155, %v1355
        %1357 = vmatprep.mubr.bf16.mxu0 0
        %1358 = vmatmul.mubr.bf16.gmra.mrb[0].mxu0 %v1180
        %v1359 = vpop.f32.mrb[0].mxu0
        %v1360 = vadd.f32 %v1151, %v1359
        %v1361 = vpop.f32.mrb[0].mxu0
        %v1362 = vadd.f32 %v1155, %v1361
        %v1363 = vpop.f32.mrb[0].mxu0
        %v1364 = vadd.f32 %v1151, %v1363
        %v1365 = vpop.f32.mrb[0].mxu0
        %v1366 = vadd.f32 %v1155, %v1365
        %1367 = vmatprep.mubr.bf16.mxu0 0
        %1368 = vmatmul.mubr.bf16.gmra.mrb[0].mxu0 %v1181
        %v1369 = vpop.f32.mrb[0].mxu0
        %v1370 = vadd.f32 %v1151, %v1369
        %v1371 = vpop.f32.mrb[0].mxu0
        %v1372 = vadd.f32 %v1155, %v1371
        %v1373 = vpop.f32.mrb[0].mxu0
        %v1374 = vadd.f32 %v1151, %v1373
        %v1375 = vpop.f32.mrb[0].mxu0
        %v1376 = vadd.f32 %v1155, %v1375
        %1377 = vmatprep.mubr.bf16.mxu0 0
        %1378 = vmatmul.mubr.bf16.gmra.mrb[0].mxu0 %v1182
        %v1379 = vpop.f32.mrb[0].mxu0
        %v1380 = vadd.f32 %v1151, %v1379
        %v1381 = vpop.f32.mrb[0].mxu0
        %v1382 = vadd.f32 %v1155, %v1381
        %v1383 = vpop.f32.mrb[0].mxu0
        %v1384 = vadd.f32 %v1151, %v1383
        %v1385 = vpop.f32.mrb[0].mxu0
        %v1386 = vadd.f32 %v1155, %v1385
        %1387 = vdwg.mxu0
        %1388 = vmatprep.subr.bf16.mxu0 0
        %1389 = vmatpush1.bf16.msra.mxu0 %v1269
        %1390 = vmatprep.subr.bf16.mxu0 0
        %1391 = vmatpush1.bf16.msra.mxu0 %v1272
        %1392 = vmatprep.subr.bf16.mxu0 0
        %1393 = vmatpush1.bf16.msra.mxu0 %v1275
        %1394 = vmatprep.subr.bf16.mxu0 0
        %1395 = vmatpush1.bf16.msra.mxu0 %v1278
        %1396 = vmatprep.subr.bf16.mxu0 0
        %1397 = vmatpush1.bf16.msra.mxu0 %v1281
        %1398 = vmatprep.subr.bf16.mxu0 0
        %1399 = vmatpush1.bf16.msra.mxu0 %v1284
        %1400 = vmatprep.subr.bf16.mxu0 0
        %1401 = vmatpush1.bf16.msra.mxu0 %v1287
        %1402 = vmatprep.subr.bf16.mxu0 0
        %1403 = vmatpush1.bf16.msra.mxu0 %v1290
        %1404 = vmatprep.subr.bf16.mxu0 0
        %1405 = vmatpush1.bf16.msra.mxu0 0
        %1406 = vmatprep.subr.bf16.mxu0 0
        %1407 = vmatpush1.bf16.msra.mxu0 0
        %1408 = vmatprep.subr.bf16.mxu0 0
        %1409 = vmatpush1.bf16.msra.mxu0 0
        %1410 = vmatprep.subr.bf16.mxu0 0
        %1411 = vmatpush1.bf16.msra.mxu0 0
        %1412 = vmatprep.subr.bf16.mxu0 0
        %1413 = vmatpush1.bf16.msra.mxu0 0
        %1414 = vmatprep.subr.bf16.mxu0 0
        %1415 = vmatpush1.bf16.msra.mxu0 0
        %1416 = vmatprep.subr.bf16.mxu0 0
        %1417 = vmatpush1.bf16.msra.mxu0 0
        %1418 = vmatprep.subr.bf16.mxu0 0
        %1419 = vmatpush1.bf16.msra.mxu0 0
        %1420 = vmatprep.mubr.bf16.mxu0 0
        %1421 = vmatmul.mubr.bf16.gmra.mrb[0].mxu0 %v1179
        %v1422 = vpop.f32.mrb[0].mxu0
        %v1423 = vadd.f32 %v1159, %v1422
        %v1424 = vpop.f32.mrb[0].mxu0
        %v1425 = vpop.f32.mrb[0].mxu0
        %v1426 = vadd.f32 %v1159, %v1425
        %v1427 = vpop.f32.mrb[0].mxu0
        %1428 = vmatprep.mubr.bf16.mxu0 0
        %1429 = vmatmul.mubr.bf16.gmra.mrb[0].mxu0 %v1180
        %v1430 = vpop.f32.mrb[0].mxu0
        %v1431 = vadd.f32 %v1159, %v1430
        %v1432 = vpop.f32.mrb[0].mxu0
        %v1433 = vpop.f32.mrb[0].mxu0
        %v1434 = vadd.f32 %v1159, %v1433
        %v1435 = vpop.f32.mrb[0].mxu0
        %1436 = vmatprep.mubr.bf16.mxu0 0
        %1437 = vmatmul.mubr.bf16.gmra.mrb[0].mxu0 %v1181
        %v1438 = vpop.f32.mrb[0].mxu0
        %v1439 = vadd.f32 %v1159, %v1438
        %v1440 = vpop.f32.mrb[0].mxu0
        %v1441 = vpop.f32.mrb[0].mxu0
        %v1442 = vadd.f32 %v1159, %v1441
        %v1443 = vpop.f32.mrb[0].mxu0
        %1444 = vmatprep.mubr.bf16.mxu0 0
        %1445 = vmatmul.mubr.bf16.gmra.mrb[0].mxu0 %v1182
        %v1446 = vpop.f32.mrb[0].mxu0
        %v1447 = vadd.f32 %v1159, %v1446
        %v1448 = vpop.f32.mrb[0].mxu0
        %v1449 = vpop.f32.mrb[0].mxu0
        %v1450 = vadd.f32 %v1159, %v1449
        %v1451 = vpop.f32.mrb[0].mxu0
        %1452 = vdwg.mxu0
        %v1453 = vld [vmem:[%s3] sm:$0xff]
        %v1454 = vld [vmem:[%s3 + $0x8] sm:$0xf]
        %v1455 = vld [vmem:[%s3 + $0xc] sm:$0xff]
        %v1456 = vld [vmem:[%s3 + $0x14] sm:$0xf]
        %v1457 = vld [vmem:[%s3 + $0x18] sm:$0xff]
        %v1458 = vld [vmem:[%s3 + $0x20] sm:$0xf]
        %v1459 = vld [vmem:[%s3 + $0x24] sm:$0xff]
        %v1460 = vld [vmem:[%s3 + $0x2c] sm:$0xf]
        %v1461 = vld [vmem:[%s3 + $0x30] sm:$0xff]
        %v1462 = vld [vmem:[%s3 + $0x38] sm:$0xf]
        %v1463 = vld [vmem:[%s3 + $0x3c] sm:$0xff]
        %v1464 = vld [vmem:[%s3 + $0x44] sm:$0xf]
        %v1465 = vld [vmem:[%s3 + $0x48] sm:$0xff]
        %v1466 = vld [vmem:[%s3 + $0x50] sm:$0xf]
        %v1467 = vld [vmem:[%s3 + $0x54] sm:$0xff]
        %v1468 = vld [vmem:[%s3 + $0x5c] sm:$0xf]
        %v1469 = vld [vmem:[%s3 + $0x60] sm:$0xff]
        %v1470 = vld [vmem:[%s3 + $0x68] sm:$0xf]
        %v1471 = vld [vmem:[%s3 + $0x6c] sm:$0xff]
        %v1472 = vld [vmem:[%s3 + $0x74] sm:$0xf]
        %v1473 = vld [vmem:[%s3 + $0x78] sm:$0xff]
        %v1474 = vld [vmem:[%s3 + $0x80] sm:$0xf]
        %v1475 = vld [vmem:[%s3 + $0x84] sm:$0xff]
        %v1476 = vld [vmem:[%s3 + $0x8c] sm:$0xf]
        %v1477 = vld [vmem:[%s3 + $0x90] sm:$0xff]
        %v1478 = vld [vmem:[%s3 + $0x98] sm:$0xf]
        %v1479 = vld [vmem:[%s3 + $0x9c] sm:$0xff]
        %v1480 = vld [vmem:[%s3 + $0xa4] sm:$0xf]
        %v1481 = vld [vmem:[%s3 + $0xa8] sm:$0xff]
        %v1482 = vld [vmem:[%s3 + $0xb0] sm:$0xf]
        %v1483 = vld [vmem:[%s3 + $0xb4] sm:$0xff]
        %v1484 = vld [vmem:[%s3 + $0xbc] sm:$0xf]
        %v1485 = vld [vmem:[%s6] sm:$0xff]
        %v1486 = vld [vmem:[%s6 + $0x8] sm:$0xf]
        %v1487 = vld [vmem:[%s6 + $0xc] sm:$0xff]
        %v1488 = vld [vmem:[%s6 + $0x14] sm:$0xf]
        %v1489 = vld [vmem:[%s6 + $0x18] sm:$0xff]
        %v1490 = vld [vmem:[%s6 + $0x20] sm:$0xf]
        %v1491 = vld [vmem:[%s6 + $0x24] sm:$0xff]
        %v1492 = vld [vmem:[%s6 + $0x2c] sm:$0xf]
        %v1493 = vld [vmem:[%s6 + $0x30] sm:$0xff]
        %v1494 = vld [vmem:[%s6 + $0x38] sm:$0xf]
        %v1495 = vld [vmem:[%s6 + $0x3c] sm:$0xff]
        %v1496 = vld [vmem:[%s6 + $0x44] sm:$0xf]
        %v1497 = vld [vmem:[%s6 + $0x48] sm:$0xff]
        %v1498 = vld [vmem:[%s6 + $0x50] sm:$0xf]
        %v1499 = vld [vmem:[%s6 + $0x54] sm:$0xff]
        %v1500 = vld [vmem:[%s6 + $0x5c] sm:$0xf]
        %v1501 = vld [vmem:[%s6 + $0x60] sm:$0xff]
        %v1502 = vld [vmem:[%s6 + $0x68] sm:$0xf]
        %v1503 = vld [vmem:[%s6 + $0x6c] sm:$0xff]
        %v1504 = vld [vmem:[%s6 + $0x74] sm:$0xf]
        %v1505 = vld [vmem:[%s6 + $0x78] sm:$0xff]
        %v1506 = vld [vmem:[%s6 + $0x80] sm:$0xf]
        %v1507 = vld [vmem:[%s6 + $0x84] sm:$0xff]
        %v1508 = vld [vmem:[%s6 + $0x8c] sm:$0xf]
        %v1509 = vld [vmem:[%s6 + $0x90] sm:$0xff]
        %v1510 = vld [vmem:[%s6 + $0x98] sm:$0xf]
        %v1511 = vld [vmem:[%s6 + $0x9c] sm:$0xff]
        %v1512 = vld [vmem:[%s6 + $0xa4] sm:$0xf]
        %v1513 = vld [vmem:[%s6 + $0xa8] sm:$0xff]
        %v1514 = vld [vmem:[%s6 + $0xb0] sm:$0xf]
        %v1515 = vld [vmem:[%s6 + $0xb4] sm:$0xff]
        %v1516 = vld [vmem:[%s6 + $0xbc] sm:$0xf]
        %v1517 = vld [vmem:[%s7] sm:$0xff]
        %v1518 = vld [vmem:[%s7 + $0x8] sm:$0xf]
        %v1519 = vld [vmem:[%s7 + $0xc] sm:$0xff]
        %v1520 = vld [vmem:[%s7 + $0x14] sm:$0xf]
        %v1521 = vld [vmem:[%s7 + $0x18] sm:$0xff]
        %v1522 = vld [vmem:[%s7 + $0x20] sm:$0xf]
        %v1523 = vld [vmem:[%s7 + $0x24] sm:$0xff]
        %v1524 = vld [vmem:[%s7 + $0x2c] sm:$0xf]
        %v1525 = vld [vmem:[%s7 + $0x30] sm:$0xff]
        %v1526 = vld [vmem:[%s7 + $0x38] sm:$0xf]
        %v1527 = vld [vmem:[%s7 + $0x3c] sm:$0xff]
        %v1528 = vld [vmem:[%s7 + $0x44] sm:$0xf]
        %v1529 = vld [vmem:[%s7 + $0x48] sm:$0xff]
        %v1530 = vld [vmem:[%s7 + $0x50] sm:$0xf]
        %v1531 = vld [vmem:[%s7 + $0x54] sm:$0xff]
        %v1532 = vld [vmem:[%s7 + $0x5c] sm:$0xf]
        %v1533 = vld [vmem:[%s7 + $0x60] sm:$0xff]
        %v1534 = vld [vmem:[%s7 + $0x68] sm:$0xf]
        %v1535 = vld [vmem:[%s7 + $0x6c] sm:$0xff]
        %v1536 = vld [vmem:[%s7 + $0x74] sm:$0xf]
        %v1537 = vld [vmem:[%s7 + $0x78] sm:$0xff]
        %v1538 = vld [vmem:[%s7 + $0x80] sm:$0xf]
        %v1539 = vld [vmem:[%s7 + $0x84] sm:$0xff]
        %v1540 = vld [vmem:[%s7 + $0x8c] sm:$0xf]
        %v1541 = vld [vmem:[%s7 + $0x90] sm:$0xff]
        %v1542 = vld [vmem:[%s7 + $0x98] sm:$0xf]
        %v1543 = vld [vmem:[%s7 + $0x9c] sm:$0xff]
        %v1544 = vld [vmem:[%s7 + $0xa4] sm:$0xf]
        %v1545 = vld [vmem:[%s7 + $0xa8] sm:$0xff]
        %v1546 = vld [vmem:[%s7 + $0xb0] sm:$0xf]
        %v1547 = vld [vmem:[%s7 + $0xb4] sm:$0xff]
        %v1548 = vld [vmem:[%s7 + $0xbc] sm:$0xf]
        %v1549 = vld [vmem:[#allocation7] sm:$0x7]
        %v1550 = vld [vmem:[#allocation9] sm:$0x7]
        %v1551 = vld [vmem:[#allocation10] sm:$0x7]
        %v1553 = vlaneseq
        %v1554 = vshrl.u32 %v1553, 7
        %v1555 = vsub.s32 0, %v1554
        %v1556 = vrot.slane %v1549, %v1555
        %v1557 = vlaneseq
        %v1558 = vshrl.u32 %v1557, 7
        %v1559 = vsub.s32 1, %v1558
        %v1560 = vrot.slane %v1549, %v1559
        %v1561 = vlaneseq
        %v1562 = vshrl.u32 %v1561, 7
        %v1563 = vsub.s32 2, %v1562
        %v1564 = vrot.slane %v1549, %v1563
        %v1600 = vunpack.c.l.b16 %v1453
        %v1601 = vunpack.c.h.b16 %v1453
        %v1602 = vunpack.c.l.b16 %v1454
        %v1603 = vunpack.c.l.b16 %v1455
        %v1604 = vunpack.c.h.b16 %v1455
        %v1605 = vunpack.c.l.b16 %v1456
        %v1606 = vunpack.c.l.b16 %v1457
        %v1607 = vunpack.c.h.b16 %v1457
        %v1608 = vunpack.c.l.b16 %v1458
        %v1609 = vunpack.c.l.b16 %v1459
        %v1610 = vunpack.c.h.b16 %v1459
        %v1611 = vunpack.c.l.b16 %v1460
        %v1612 = vunpack.c.l.b16 %v1461
        %v1613 = vunpack.c.h.b16 %v1461
        %v1614 = vunpack.c.l.b16 %v1462
        %v1615 = vunpack.c.l.b16 %v1463
        %v1616 = vunpack.c.h.b16 %v1463
        %v1617 = vunpack.c.l.b16 %v1464
        %v1618 = vunpack.c.l.b16 %v1465
        %v1619 = vunpack.c.h.b16 %v1465
        %v1620 = vunpack.c.l.b16 %v1466
        %v1621 = vunpack.c.l.b16 %v1467
        %v1622 = vunpack.c.h.b16 %v1467
        %v1623 = vunpack.c.l.b16 %v1468
        %v1624 = vunpack.c.l.b16 %v1469
        %v1625 = vunpack.c.h.b16 %v1469
        %v1626 = vunpack.c.l.b16 %v1470
        %v1627 = vunpack.c.l.b16 %v1471
        %v1628 = vunpack.c.h.b16 %v1471
        %v1629 = vunpack.c.l.b16 %v1472
        %v1630 = vunpack.c.l.b16 %v1473
        %v1631 = vunpack.c.h.b16 %v1473
        %v1632 = vunpack.c.l.b16 %v1474
        %v1633 = vunpack.c.l.b16 %v1475
        %v1634 = vunpack.c.h.b16 %v1475
        %v1635 = vunpack.c.l.b16 %v1476
        %v1636 = vunpack.c.l.b16 %v1477
        %v1637 = vunpack.c.h.b16 %v1477
        %v1638 = vunpack.c.l.b16 %v1478
        %v1639 = vunpack.c.l.b16 %v1479
        %v1640 = vunpack.c.h.b16 %v1479
        %v1641 = vunpack.c.l.b16 %v1480
        %v1642 = vunpack.c.l.b16 %v1481
        %v1643 = vunpack.c.h.b16 %v1481
        %v1644 = vunpack.c.l.b16 %v1482
        %v1645 = vunpack.c.l.b16 %v1483
        %v1646 = vunpack.c.h.b16 %v1483
        %v1647 = vunpack.c.l.b16 %v1484
        %v1648 = vpack.c.b16 %v1603, %v1600
        %v1649 = vpack.c.b16 %v1604, %v1601
        %v1650 = vpack.c.b16 %v1605, %v1602
        %v1651 = vpack.c.b16 %v1609, %v1606
        %v1652 = vpack.c.b16 %v1610, %v1607
        %v1653 = vpack.c.b16 %v1611, %v1608
        %v1654 = vpack.c.b16 %v1615, %v1612
        %v1655 = vpack.c.b16 %v1616, %v1613
        %v1656 = vpack.c.b16 %v1617, %v1614
        %v1657 = vpack.c.b16 %v1621, %v1618
        %v1658 = vpack.c.b16 %v1622, %v1619
        %v1659 = vpack.c.b16 %v1623, %v1620
        %v1660 = vpack.c.b16 %v1627, %v1624
        %v1661 = vpack.c.b16 %v1628, %v1625
        %v1662 = vpack.c.b16 %v1629, %v1626
        %v1663 = vpack.c.b16 %v1633, %v1630
        %v1664 = vpack.c.b16 %v1634, %v1631
        %v1665 = vpack.c.b16 %v1635, %v1632
        %v1666 = vpack.c.b16 %v1639, %v1636
        %v1667 = vpack.c.b16 %v1640, %v1637
        %v1668 = vpack.c.b16 %v1641, %v1638
        %v1669 = vpack.c.b16 %v1645, %v1642
        %v1670 = vpack.c.b16 %v1646, %v1643
        %v1671 = vpack.c.b16 %v1647, %v1644
        %1696 = vmatprep.subr.bf16.mxu0 %v1649
        %1697 = vmatpush1.bf16.msra.mxu0 %v1648
        %1698 = vmatprep.subr.bf16.mxu0 %v1652
        %1699 = vmatpush1.bf16.msra.mxu0 %v1651
        %1700 = vmatprep.subr.bf16.mxu0 %v1655
        %1701 = vmatpush1.bf16.msra.mxu0 %v1654
        %1702 = vmatprep.subr.bf16.mxu0 %v1658
        %1703 = vmatpush1.bf16.msra.mxu0 %v1657
        %1704 = vmatprep.subr.bf16.mxu0 %v1661
        %1705 = vmatpush1.bf16.msra.mxu0 %v1660
        %1706 = vmatprep.subr.bf16.mxu0 %v1664
        %1707 = vmatpush1.bf16.msra.mxu0 %v1663
        %1708 = vmatprep.subr.bf16.mxu0 %v1667
        %1709 = vmatpush1.bf16.msra.mxu0 %v1666
        %1710 = vmatprep.subr.bf16.mxu0 %v1670
        %1711 = vmatpush1.bf16.msra.mxu0 %v1669
        %1712 = vmatprep.subr.bf16.mxu0 0
        %1713 = vmatpush1.bf16.msra.mxu0 0
        %1714 = vmatprep.subr.bf16.mxu0 0
        %1715 = vmatpush1.bf16.msra.mxu0 0
        %1716 = vmatprep.subr.bf16.mxu0 0
        %1717 = vmatpush1.bf16.msra.mxu0 0
        %1718 = vmatprep.subr.bf16.mxu0 0
        %1719 = vmatpush1.bf16.msra.mxu0 0
        %1720 = vmatprep.subr.bf16.mxu0 0
        %1721 = vmatpush1.bf16.msra.mxu0 0
        %1722 = vmatprep.subr.bf16.mxu0 0
        %1723 = vmatpush1.bf16.msra.mxu0 0
        %1724 = vmatprep.subr.bf16.mxu0 0
        %1725 = vmatpush1.bf16.msra.mxu0 0
        %1726 = vmatprep.subr.bf16.mxu0 0
        %1727 = vmatpush1.bf16.msra.mxu0 0
        %1728 = vmatprep.mubr.bf16.mxu0 0
        %1729 = vmatmul.mubr.bf16.gmra.mrb[0].mxu0 0
        %v1730 = vpop.f32.mrb[0].mxu0
        %v1731 = vadd.f32 %v1556, %v1730
        %v1732 = vpop.f32.mrb[0].mxu0
        %v1733 = vadd.f32 %v1560, %v1732
        %v1734 = vpop.f32.mrb[0].mxu0
        %v1735 = vpop.f32.mrb[0].mxu0
        %1736 = vdwg.mxu0
        %1737 = vmatprep.subr.bf16.mxu0 0
        %1738 = vmatpush1.bf16.msra.mxu0 %v1650
        %1739 = vmatprep.subr.bf16.mxu0 0
        %1740 = vmatpush1.bf16.msra.mxu0 %v1653
        %1741 = vmatprep.subr.bf16.mxu0 0
        %1742 = vmatpush1.bf16.msra.mxu0 %v1656
        %1743 = vmatprep.subr.bf16.mxu0 0
        %1744 = vmatpush1.bf16.msra.mxu0 %v1659
        %1745 = vmatprep.subr.bf16.mxu0 0
        %1746 = vmatpush1.bf16.msra.mxu0 %v1662
        %1747 = vmatprep.subr.bf16.mxu0 0
        %1748 = vmatpush1.bf16.msra.mxu0 %v1665
        %1749 = vmatprep.subr.bf16.mxu0 0
        %1750 = vmatpush1.bf16.msra.mxu0 %v1668
        %1751 = vmatprep.subr.bf16.mxu0 0
        %1752 = vmatpush1.bf16.msra.mxu0 %v1671
        %1753 = vmatprep.subr.bf16.mxu0 0
        %1754 = vmatpush1.bf16.msra.mxu0 0
        %1755 = vmatprep.subr.bf16.mxu0 0
        %1756 = vmatpush1.bf16.msra.mxu0 0
        %1757 = vmatprep.subr.bf16.mxu0 0
        %1758 = vmatpush1.bf16.msra.mxu0 0
        %1759 = vmatprep.subr.bf16.mxu0 0
        %1760 = vmatpush1.bf16.msra.mxu0 0
        %1761 = vmatprep.subr.bf16.mxu0 0
        %1762 = vmatpush1.bf16.msra.mxu0 0
        %1763 = vmatprep.subr.bf16.mxu0 0
        %1764 = vmatpush1.bf16.msra.mxu0 0
        %1765 = vmatprep.subr.bf16.mxu0 0
        %1766 = vmatpush1.bf16.msra.mxu0 0
        %1767 = vmatprep.subr.bf16.mxu0 0
        %1768 = vmatpush1.bf16.msra.mxu0 0
        %1769 = vmatprep.mubr.bf16.mxu0 0
        %1770 = vmatmul.mubr.bf16.gmra.mrb[0].mxu0 0
        %v1771 = vpop.f32.mrb[0].mxu0
        %v1772 = vadd.f32 %v1564, %v1771
        %v1773 = vpop.f32.mrb[0].mxu0
        %v1774 = vpop.f32.mrb[0].mxu0
        %v1775 = vpop.f32.mrb[0].mxu0
        %1776 = vdwg.mxu0
        %v1777 = vadd.f32 %v1350, %v1731
        %v1778 = vxor.u32 %v1777, 2147483648
        %v1779 = vmul.f32 %v1778, 1.442695
        %v1780 = vpow.pop %v1779
        %v1781 = vadd.f32 %v1780, 1.0
        %v1782 = vrcp.pop %v1781
        %v1783 = vmul.f32 1.0, %v1782
        %v1784 = vadd.f32 %v1352, %v1733
        %v1785 = vxor.u32 %v1784, 2147483648
        %v1786 = vmul.f32 %v1785, 1.442695
        %v1787 = vpow.pop %v1786
        %v1788 = vadd.f32 %v1787, 1.0
        %v1789 = vrcp.pop %v1788
        %v1790 = vmul.f32 1.0, %v1789
        %v1791 = vmul.f32 %v1783, %v1772
        %v1792 = vadd.f32 %v1423, %v1791
        %v1793 = vtanh.pop %v1792
        %v1794 = vsub.f32 1.0, %v1790
        %v1795 = vmul.f32 %v1794, %v1793
        %v1796 = vmul.f32 %v1790, 0.0
        %v1797 = vadd.f32 %v1795, %v1796
        %v1798 = vpack.c.bf16 %v1797, %v1797
        %v1800 = vlaneseq
        %v1801 = vshrl.u32 %v1800, 7
        %v1802 = vsub.s32 0, %v1801
        %v1803 = vrot.slane %v1550, %v1802
        %v1804 = vlaneseq
        %v1805 = vshrl.u32 %v1804, 7
        %v1806 = vsub.s32 1, %v1805
        %v1807 = vrot.slane %v1550, %v1806
        %v1808 = vlaneseq
        %v1809 = vshrl.u32 %v1808, 7
        %v1810 = vsub.s32 2, %v1809
        %v1811 = vrot.slane %v1550, %v1810
        %v1847 = vunpack.c.l.b16 %v1485
        %v1848 = vunpack.c.h.b16 %v1485
        %v1849 = vunpack.c.l.b16 %v1486
        %v1850 = vunpack.c.l.b16 %v1487
        %v1851 = vunpack.c.h.b16 %v1487
        %v1852 = vunpack.c.l.b16 %v1488
        %v1853 = vunpack.c.l.b16 %v1489
        %v1854 = vunpack.c.h.b16 %v1489
        %v1855 = vunpack.c.l.b16 %v1490
        %v1856 = vunpack.c.l.b16 %v1491
        %v1857 = vunpack.c.h.b16 %v1491
        %v1858 = vunpack.c.l.b16 %v1492
        %v1859 = vunpack.c.l.b16 %v1493
        %v1860 = vunpack.c.h.b16 %v1493
        %v1861 = vunpack.c.l.b16 %v1494
        %v1862 = vunpack.c.l.b16 %v1495
        %v1863 = vunpack.c.h.b16 %v1495
        %v1864 = vunpack.c.l.b16 %v1496
        %v1865 = vunpack.c.l.b16 %v1497
        %v1866 = vunpack.c.h.b16 %v1497
        %v1867 = vunpack.c.l.b16 %v1498
        %v1868 = vunpack.c.l.b16 %v1499
        %v1869 = vunpack.c.h.b16 %v1499
        %v1870 = vunpack.c.l.b16 %v1500
        %v1871 = vunpack.c.l.b16 %v1501
        %v1872 = vunpack.c.h.b16 %v1501
        %v1873 = vunpack.c.l.b16 %v1502
        %v1874 = vunpack.c.l.b16 %v1503
        %v1875 = vunpack.c.h.b16 %v1503
        %v1876 = vunpack.c.l.b16 %v1504
        %v1877 = vunpack.c.l.b16 %v1505
        %v1878 = vunpack.c.h.b16 %v1505
        %v1879 = vunpack.c.l.b16 %v1506
        %v1880 = vunpack.c.l.b16 %v1507
        %v1881 = vunpack.c.h.b16 %v1507
        %v1882 = vunpack.c.l.b16 %v1508
        %v1883 = vunpack.c.l.b16 %v1509
        %v1884 = vunpack.c.h.b16 %v1509
        %v1885 = vunpack.c.l.b16 %v1510
        %v1886 = vunpack.c.l.b16 %v1511
        %v1887 = vunpack.c.h.b16 %v1511
        %v1888 = vunpack.c.l.b16 %v1512
        %v1889 = vunpack.c.l.b16 %v1513
        %v1890 = vunpack.c.h.b16 %v1513
        %v1891 = vunpack.c.l.b16 %v1514
        %v1892 = vunpack.c.l.b16 %v1515
        %v1893 = vunpack.c.h.b16 %v1515
        %v1894 = vunpack.c.l.b16 %v1516
        %v1895 = vpack.c.b16 %v1850, %v1847
        %v1896 = vpack.c.b16 %v1851, %v1848
        %v1897 = vpack.c.b16 %v1852, %v1849
        %v1898 = vpack.c.b16 %v1856, %v1853
        %v1899 = vpack.c.b16 %v1857, %v1854
        %v1900 = vpack.c.b16 %v1858, %v1855
        %v1901 = vpack.c.b16 %v1862, %v1859
        %v1902 = vpack.c.b16 %v1863, %v1860
        %v1903 = vpack.c.b16 %v1864, %v1861
        %v1904 = vpack.c.b16 %v1868, %v1865
        %v1905 = vpack.c.b16 %v1869, %v1866
        %v1906 = vpack.c.b16 %v1870, %v1867
        %v1907 = vpack.c.b16 %v1874, %v1871
        %v1908 = vpack.c.b16 %v1875, %v1872
        %v1909 = vpack.c.b16 %v1876, %v1873
        %v1910 = vpack.c.b16 %v1880, %v1877
        %v1911 = vpack.c.b16 %v1881, %v1878
        %v1912 = vpack.c.b16 %v1882, %v1879
        %v1913 = vpack.c.b16 %v1886, %v1883
        %v1914 = vpack.c.b16 %v1887, %v1884
        %v1915 = vpack.c.b16 %v1888, %v1885
        %v1916 = vpack.c.b16 %v1892, %v1889
        %v1917 = vpack.c.b16 %v1893, %v1890
        %v1918 = vpack.c.b16 %v1894, %v1891
        %1943 = vmatprep.subr.bf16.mxu0 %v1896
        %1944 = vmatpush1.bf16.msra.mxu0 %v1895
        %1945 = vmatprep.subr.bf16.mxu0 %v1899
        %1946 = vmatpush1.bf16.msra.mxu0 %v1898
        %1947 = vmatprep.subr.bf16.mxu0 %v1902
        %1948 = vmatpush1.bf16.msra.mxu0 %v1901
        %1949 = vmatprep.subr.bf16.mxu0 %v1905
        %1950 = vmatpush1.bf16.msra.mxu0 %v1904
        %1951 = vmatprep.subr.bf16.mxu0 %v1908
        %1952 = vmatpush1.bf16.msra.mxu0 %v1907
        %1953 = vmatprep.subr.bf16.mxu0 %v1911
        %1954 = vmatpush1.bf16.msra.mxu0 %v1910
        %1955 = vmatprep.subr.bf16.mxu0 %v1914
        %1956 = vmatpush1.bf16.msra.mxu0 %v1913
        %1957 = vmatprep.subr.bf16.mxu0 %v1917
        %1958 = vmatpush1.bf16.msra.mxu0 %v1916
        %1959 = vmatprep.subr.bf16.mxu0 0
        %1960 = vmatpush1.bf16.msra.mxu0 0
        %1961 = vmatprep.subr.bf16.mxu0 0
        %1962 = vmatpush1.bf16.msra.mxu0 0
        %1963 = vmatprep.subr.bf16.mxu0 0
        %1964 = vmatpush1.bf16.msra.mxu0 0
        %1965 = vmatprep.subr.bf16.mxu0 0
        %1966 = vmatpush1.bf16.msra.mxu0 0
        %1967 = vmatprep.subr.bf16.mxu0 0
        %1968 = vmatpush1.bf16.msra.mxu0 0
        %1969 = vmatprep.subr.bf16.mxu0 0
        %1970 = vmatpush1.bf16.msra.mxu0 0
        %1971 = vmatprep.subr.bf16.mxu0 0
        %1972 = vmatpush1.bf16.msra.mxu0 0
        %1973 = vmatprep.subr.bf16.mxu0 0
        %1974 = vmatpush1.bf16.msra.mxu0 0
        %1975 = vmatprep.mubr.bf16.mxu0 0
        %1976 = vmatmul.mubr.bf16.gmra.mrb[0].mxu0 %v1798
        %v1977 = vpop.f32.mrb[0].mxu0
        %v1978 = vadd.f32 %v1803, %v1977
        %v1979 = vpop.f32.mrb[0].mxu0
        %v1980 = vadd.f32 %v1807, %v1979
        %v1981 = vpop.f32.mrb[0].mxu0
        %v1982 = vpop.f32.mrb[0].mxu0
        %1983 = vdwg.mxu0
        %1984 = vmatprep.subr.bf16.mxu0 0
        %1985 = vmatpush1.bf16.msra.mxu0 %v1897
        %1986 = vmatprep.subr.bf16.mxu0 0
        %1987 = vmatpush1.bf16.msra.mxu0 %v1900
        %1988 = vmatprep.subr.bf16.mxu0 0
        %1989 = vmatpush1.bf16.msra.mxu0 %v1903
        %1990 = vmatprep.subr.bf16.mxu0 0
        %1991 = vmatpush1.bf16.msra.mxu0 %v1906
        %1992 = vmatprep.subr.bf16.mxu0 0
        %1993 = vmatpush1.bf16.msra.mxu0 %v1909
        %1994 = vmatprep.subr.bf16.mxu0 0
        %1995 = vmatpush1.bf16.msra.mxu0 %v1912
        %1996 = vmatprep.subr.bf16.mxu0 0
        %1997 = vmatpush1.bf16.msra.mxu0 %v1915
        %1998 = vmatprep.subr.bf16.mxu0 0
        %1999 = vmatpush1.bf16.msra.mxu0 %v1918
        %2000 = vmatprep.subr.bf16.mxu0 0
        %2001 = vmatpush1.bf16.msra.mxu0 0
        %2002 = vmatprep.subr.bf16.mxu0 0
        %2003 = vmatpush1.bf16.msra.mxu0 0
        %2004 = vmatprep.subr.bf16.mxu0 0
        %2005 = vmatpush1.bf16.msra.mxu0 0
        %2006 = vmatprep.subr.bf16.mxu0 0
        %2007 = vmatpush1.bf16.msra.mxu0 0
        %2008 = vmatprep.subr.bf16.mxu0 0
        %2009 = vmatpush1.bf16.msra.mxu0 0
        %2010 = vmatprep.subr.bf16.mxu0 0
        %2011 = vmatpush1.bf16.msra.mxu0 0
        %2012 = vmatprep.subr.bf16.mxu0 0
        %2013 = vmatpush1.bf16.msra.mxu0 0
        %2014 = vmatprep.subr.bf16.mxu0 0
        %2015 = vmatpush1.bf16.msra.mxu0 0
        %2016 = vmatprep.mubr.bf16.mxu0 0
        %2017 = vmatmul.mubr.bf16.gmra.mrb[0].mxu0 %v1798
        %v2018 = vpop.f32.mrb[0].mxu0
        %v2019 = vadd.f32 %v1811, %v2018
        %v2020 = vpop.f32.mrb[0].mxu0
        %v2021 = vpop.f32.mrb[0].mxu0
        %v2022 = vpop.f32.mrb[0].mxu0
        %2023 = vdwg.mxu0
        %v2025 = vlaneseq
        %v2026 = vshrl.u32 %v2025, 7
        %v2027 = vsub.s32 0, %v2026
        %v2028 = vrot.slane %v1551, %v2027
        %v2029 = vlaneseq
        %v2030 = vshrl.u32 %v2029, 7
        %v2031 = vsub.s32 1, %v2030
        %v2032 = vrot.slane %v1551, %v2031
        %v2033 = vlaneseq
        %v2034 = vshrl.u32 %v2033, 7
        %v2035 = vsub.s32 2, %v2034
        %v2036 = vrot.slane %v1551, %v2035
        %v2072 = vunpack.c.l.b16 %v1517
        %v2073 = vunpack.c.h.b16 %v1517
        %v2074 = vunpack.c.l.b16 %v1518
        %v2075 = vunpack.c.l.b16 %v1519
        %v2076 = vunpack.c.h.b16 %v1519
        %v2077 = vunpack.c.l.b16 %v1520
        %v2078 = vunpack.c.l.b16 %v1521
        %v2079 = vunpack.c.h.b16 %v1521
        %v2080 = vunpack.c.l.b16 %v1522
        %v2081 = vunpack.c.l.b16 %v1523
        %v2082 = vunpack.c.h.b16 %v1523
        %v2083 = vunpack.c.l.b16 %v1524
        %v2084 = vunpack.c.l.b16 %v1525
        %v2085 = vunpack.c.h.b16 %v1525
        %v2086 = vunpack.c.l.b16 %v1526
        %v2087 = vunpack.c.l.b16 %v1527
        %v2088 = vunpack.c.h.b16 %v1527
        %v2089 = vunpack.c.l.b16 %v1528
        %v2090 = vunpack.c.l.b16 %v1529
        %v2091 = vunpack.c.h.b16 %v1529
        %v2092 = vunpack.c.l.b16 %v1530
        %v2093 = vunpack.c.l.b16 %v1531
        %v2094 = vunpack.c.h.b16 %v1531
        %v2095 = vunpack.c.l.b16 %v1532
        %v2096 = vunpack.c.l.b16 %v1533
        %v2097 = vunpack.c.h.b16 %v1533
        %v2098 = vunpack.c.l.b16 %v1534
        %v2099 = vunpack.c.l.b16 %v1535
        %v2100 = vunpack.c.h.b16 %v1535
        %v2101 = vunpack.c.l.b16 %v1536
        %v2102 = vunpack.c.l.b16 %v1537
        %v2103 = vunpack.c.h.b16 %v1537
        %v2104 = vunpack.c.l.b16 %v1538
        %v2105 = vunpack.c.l.b16 %v1539
        %v2106 = vunpack.c.h.b16 %v1539
        %v2107 = vunpack.c.l.b16 %v1540
        %v2108 = vunpack.c.l.b16 %v1541
        %v2109 = vunpack.c.h.b16 %v1541
        %v2110 = vunpack.c.l.b16 %v1542
        %v2111 = vunpack.c.l.b16 %v1543
        %v2112 = vunpack.c.h.b16 %v1543
        %v2113 = vunpack.c.l.b16 %v1544
        %v2114 = vunpack.c.l.b16 %v1545
        %v2115 = vunpack.c.h.b16 %v1545
        %v2116 = vunpack.c.l.b16 %v1546
        %v2117 = vunpack.c.l.b16 %v1547
        %v2118 = vunpack.c.h.b16 %v1547
        %v2119 = vunpack.c.l.b16 %v1548
        %v2120 = vpack.c.b16 %v2075, %v2072
        %v2121 = vpack.c.b16 %v2076, %v2073
        %v2122 = vpack.c.b16 %v2077, %v2074
        %v2123 = vpack.c.b16 %v2081, %v2078
        %v2124 = vpack.c.b16 %v2082, %v2079
        %v2125 = vpack.c.b16 %v2083, %v2080
        %v2126 = vpack.c.b16 %v2087, %v2084
        %v2127 = vpack.c.b16 %v2088, %v2085
        %v2128 = vpack.c.b16 %v2089, %v2086
        %v2129 = vpack.c.b16 %v2093, %v2090
        %v2130 = vpack.c.b16 %v2094, %v2091
        %v2131 = vpack.c.b16 %v2095, %v2092
        %v2132 = vpack.c.b16 %v2099, %v2096
        %v2133 = vpack.c.b16 %v2100, %v2097
        %v2134 = vpack.c.b16 %v2101, %v2098
        %v2135 = vpack.c.b16 %v2105, %v2102
        %v2136 = vpack.c.b16 %v2106, %v2103
        %v2137 = vpack.c.b16 %v2107, %v2104
        %v2138 = vpack.c.b16 %v2111, %v2108
        %v2139 = vpack.c.b16 %v2112, %v2109
        %v2140 = vpack.c.b16 %v2113, %v2110
        %v2141 = vpack.c.b16 %v2117, %v2114
        %v2142 = vpack.c.b16 %v2118, %v2115
        %v2143 = vpack.c.b16 %v2119, %v2116
        %2168 = vmatprep.subr.bf16.mxu0 %v2121
        %2169 = vmatpush1.bf16.msra.mxu0 %v2120
        %2170 = vmatprep.subr.bf16.mxu0 %v2124
        %2171 = vmatpush1.bf16.msra.mxu0 %v2123
        %2172 = vmatprep.subr.bf16.mxu0 %v2127
        %2173 = vmatpush1.bf16.msra.mxu0 %v2126
        %2174 = vmatprep.subr.bf16.mxu0 %v2130
        %2175 = vmatpush1.bf16.msra.mxu0 %v2129
        %2176 = vmatprep.subr.bf16.mxu0 %v2133
        %2177 = vmatpush1.bf16.msra.mxu0 %v2132
        %2178 = vmatprep.subr.bf16.mxu0 %v2136
        %2179 = vmatpush1.bf16.msra.mxu0 %v2135
        %2180 = vmatprep.subr.bf16.mxu0 %v2139
        %2181 = vmatpush1.bf16.msra.mxu0 %v2138
        %2182 = vmatprep.subr.bf16.mxu0 %v2142
        %2183 = vmatpush1.bf16.msra.mxu0 %v2141
        %2184 = vmatprep.subr.bf16.mxu0 0
        %2185 = vmatpush1.bf16.msra.mxu0 0
        %2186 = vmatprep.subr.bf16.mxu0 0
        %2187 = vmatpush1.bf16.msra.mxu0 0
        %2188 = vmatprep.subr.bf16.mxu0 0
        %2189 = vmatpush1.bf16.msra.mxu0 0
        %2190 = vmatprep.subr.bf16.mxu0 0
        %2191 = vmatpush1.bf16.msra.mxu0 0
        %2192 = vmatprep.subr.bf16.mxu0 0
        %2193 = vmatpush1.bf16.msra.mxu0 0
        %2194 = vmatprep.subr.bf16.mxu0 0
        %2195 = vmatpush1.bf16.msra.mxu0 0
        %2196 = vmatprep.subr.bf16.mxu0 0
        %2197 = vmatpush1.bf16.msra.mxu0 0
        %2198 = vmatprep.subr.bf16.mxu0 0
        %2199 = vmatpush1.bf16.msra.mxu0 0
        %2200 = vmatprep.mubr.bf16.mxu0 0
        %2201 = vmatmul.mubr.bf16.gmra.mrb[0].mxu0 0
        %v2202 = vpop.f32.mrb[0].mxu0
        %v2203 = vadd.f32 %v2028, %v2202
        %v2204 = vpop.f32.mrb[0].mxu0
        %v2205 = vadd.f32 %v2032, %v2204
        %v2206 = vpop.f32.mrb[0].mxu0
        %v2207 = vpop.f32.mrb[0].mxu0
        %2208 = vdwg.mxu0
        %2209 = vmatprep.subr.bf16.mxu0 0
        %2210 = vmatpush1.bf16.msra.mxu0 %v2122
        %2211 = vmatprep.subr.bf16.mxu0 0
        %2212 = vmatpush1.bf16.msra.mxu0 %v2125
        %2213 = vmatprep.subr.bf16.mxu0 0
        %2214 = vmatpush1.bf16.msra.mxu0 %v2128
        %2215 = vmatprep.subr.bf16.mxu0 0
        %2216 = vmatpush1.bf16.msra.mxu0 %v2131
        %2217 = vmatprep.subr.bf16.mxu0 0
        %2218 = vmatpush1.bf16.msra.mxu0 %v2134
        %2219 = vmatprep.subr.bf16.mxu0 0
        %2220 = vmatpush1.bf16.msra.mxu0 %v2137
        %2221 = vmatprep.subr.bf16.mxu0 0
        %2222 = vmatpush1.bf16.msra.mxu0 %v2140
        %2223 = vmatprep.subr.bf16.mxu0 0
        %2224 = vmatpush1.bf16.msra.mxu0 %v2143
        %2225 = vmatprep.subr.bf16.mxu0 0
        %2226 = vmatpush1.bf16.msra.mxu0 0
        %2227 = vmatprep.subr.bf16.mxu0 0
        %2228 = vmatpush1.bf16.msra.mxu0 0
        %2229 = vmatprep.subr.bf16.mxu0 0
        %2230 = vmatpush1.bf16.msra.mxu0 0
        %2231 = vmatprep.subr.bf16.mxu0 0
        %2232 = vmatpush1.bf16.msra.mxu0 0
        %2233 = vmatprep.subr.bf16.mxu0 0
        %2234 = vmatpush1.bf16.msra.mxu0 0
        %2235 = vmatprep.subr.bf16.mxu0 0
        %2236 = vmatpush1.bf16.msra.mxu0 0
        %2237 = vmatprep.subr.bf16.mxu0 0
        %2238 = vmatpush1.bf16.msra.mxu0 0
        %2239 = vmatprep.subr.bf16.mxu0 0
        %2240 = vmatpush1.bf16.msra.mxu0 0
        %2241 = vmatprep.mubr.bf16.mxu0 0
        %2242 = vmatmul.mubr.bf16.gmra.mrb[0].mxu0 0
        %v2243 = vpop.f32.mrb[0].mxu0
        %v2244 = vadd.f32 %v2036, %v2243
        %v2245 = vpop.f32.mrb[0].mxu0
        %v2246 = vpop.f32.mrb[0].mxu0
        %v2247 = vpop.f32.mrb[0].mxu0
        %2248 = vdwg.mxu0
        %v2249 = vadd.f32 %v1978, %v2203
        %v2250 = vxor.u32 %v2249, 2147483648
        %v2251 = vmul.f32 %v2250, 1.442695
        %v2252 = vpow.pop %v2251
        %v2253 = vadd.f32 %v2252, 1.0
        %v2254 = vrcp.pop %v2253
        %v2255 = vmul.f32 1.0, %v2254
        %v2256 = vadd.f32 %v1980, %v2205
        %v2257 = vxor.u32 %v2256, 2147483648
        %v2258 = vmul.f32 %v2257, 1.442695
        %v2259 = vpow.pop %v2258
        %v2260 = vadd.f32 %v2259, 1.0
        %v2261 = vrcp.pop %v2260
        %v2262 = vmul.f32 1.0, %v2261
        %v2263 = vmul.f32 %v2255, %v2244
        %v2264 = vadd.f32 %v2019, %v2263
        %v2265 = vtanh.pop %v2264
        %v2266 = vsub.f32 1.0, %v2262
        %v2267 = vmul.f32 %v2266, %v2265
        %v2268 = vmul.f32 %v2262, 0.0
        %v2269 = vadd.f32 %v2267, %v2268
        %2270 = vmatprep.subr.bf16.mxu0 %v1649
        %2271 = vmatpush1.bf16.msra.mxu0 %v1648
        %2272 = vmatprep.subr.bf16.mxu0 %v1652
        %2273 = vmatpush1.bf16.msra.mxu0 %v1651
        %2274 = vmatprep.subr.bf16.mxu0 %v1655
        %2275 = vmatpush1.bf16.msra.mxu0 %v1654
        %2276 = vmatprep.subr.bf16.mxu0 %v1658
        %2277 = vmatpush1.bf16.msra.mxu0 %v1657
        %2278 = vmatprep.subr.bf16.mxu0 %v1661
        %2279 = vmatpush1.bf16.msra.mxu0 %v1660
        %2280 = vmatprep.subr.bf16.mxu0 %v1664
        %2281 = vmatpush1.bf16.msra.mxu0 %v1663
        %2282 = vmatprep.subr.bf16.mxu0 %v1667
        %2283 = vmatpush1.bf16.msra.mxu0 %v1666
        %2284 = vmatprep.subr.bf16.mxu0 %v1670
        %2285 = vmatpush1.bf16.msra.mxu0 %v1669
        %2286 = vmatprep.subr.bf16.mxu0 0
        %2287 = vmatpush1.bf16.msra.mxu0 0
        %2288 = vmatprep.subr.bf16.mxu0 0
        %2289 = vmatpush1.bf16.msra.mxu0 0
        %2290 = vmatprep.subr.bf16.mxu0 0
        %2291 = vmatpush1.bf16.msra.mxu0 0
        %2292 = vmatprep.subr.bf16.mxu0 0
        %2293 = vmatpush1.bf16.msra.mxu0 0
        %2294 = vmatprep.subr.bf16.mxu0 0
        %2295 = vmatpush1.bf16.msra.mxu0 0
        %2296 = vmatprep.subr.bf16.mxu0 0
        %2297 = vmatpush1.bf16.msra.mxu0 0
        %2298 = vmatprep.subr.bf16.mxu0 0
        %2299 = vmatpush1.bf16.msra.mxu0 0
        %2300 = vmatprep.subr.bf16.mxu0 0
        %2301 = vmatpush1.bf16.msra.mxu0 0
        %2302 = vmatprep.mubr.bf16.mxu0 0
        %2303 = vmatmul.mubr.bf16.gmra.mrb[0].mxu0 %v1798
        %v2304 = vpop.f32.mrb[0].mxu0
        %v2305 = vadd.f32 %v1556, %v2304
        %v2306 = vpop.f32.mrb[0].mxu0
        %v2307 = vadd.f32 %v1560, %v2306
        %v2308 = vpop.f32.mrb[0].mxu0
        %v2309 = vpop.f32.mrb[0].mxu0
        %2310 = vdwg.mxu0
        %2311 = vmatprep.subr.bf16.mxu0 0
        %2312 = vmatpush1.bf16.msra.mxu0 %v1650
        %2313 = vmatprep.subr.bf16.mxu0 0
        %2314 = vmatpush1.bf16.msra.mxu0 %v1653
        %2315 = vmatprep.subr.bf16.mxu0 0
        %2316 = vmatpush1.bf16.msra.mxu0 %v1656
        %2317 = vmatprep.subr.bf16.mxu0 0
        %2318 = vmatpush1.bf16.msra.mxu0 %v1659
        %2319 = vmatprep.subr.bf16.mxu0 0
        %2320 = vmatpush1.bf16.msra.mxu0 %v1662
        %2321 = vmatprep.subr.bf16.mxu0 0
        %2322 = vmatpush1.bf16.msra.mxu0 %v1665
        %2323 = vmatprep.subr.bf16.mxu0 0
        %2324 = vmatpush1.bf16.msra.mxu0 %v1668
        %2325 = vmatprep.subr.bf16.mxu0 0
        %2326 = vmatpush1.bf16.msra.mxu0 %v1671
        %2327 = vmatprep.subr.bf16.mxu0 0
        %2328 = vmatpush1.bf16.msra.mxu0 0
        %2329 = vmatprep.subr.bf16.mxu0 0
        %2330 = vmatpush1.bf16.msra.mxu0 0
        %2331 = vmatprep.subr.bf16.mxu0 0
        %2332 = vmatpush1.bf16.msra.mxu0 0
        %2333 = vmatprep.subr.bf16.mxu0 0
        %2334 = vmatpush1.bf16.msra.mxu0 0
        %2335 = vmatprep.subr.bf16.mxu0 0
        %2336 = vmatpush1.bf16.msra.mxu0 0
        %2337 = vmatprep.subr.bf16.mxu0 0
        %2338 = vmatpush1.bf16.msra.mxu0 0
        %2339 = vmatprep.subr.bf16.mxu0 0
        %2340 = vmatpush1.bf16.msra.mxu0 0
        %2341 = vmatprep.subr.bf16.mxu0 0
        %2342 = vmatpush1.bf16.msra.mxu0 0
        %2343 = vmatprep.mubr.bf16.mxu0 0
        %2344 = vmatmul.mubr.bf16.gmra.mrb[0].mxu0 %v1798
        %v2345 = vpop.f32.mrb[0].mxu0
        %v2346 = vadd.f32 %v1564, %v2345
        %v2347 = vpop.f32.mrb[0].mxu0
        %v2348 = vpop.f32.mrb[0].mxu0
        %v2349 = vpop.f32.mrb[0].mxu0
        %2350 = vdwg.mxu0
        %v2351 = vadd.f32 %v1354, %v2305
        %v2352 = vxor.u32 %v2351, 2147483648
        %v2353 = vmul.f32 %v2352, 1.442695
        %v2354 = vpow.pop %v2353
        %v2355 = vadd.f32 %v2354, 1.0
        %v2356 = vrcp.pop %v2355
        %v2357 = vmul.f32 1.0, %v2356
        %v2358 = vadd.f32 %v1356, %v2307
        %v2359 = vxor.u32 %v2358, 2147483648
        %v2360 = vmul.f32 %v2359, 1.442695
        %v2361 = vpow.pop %v2360
        %v2362 = vadd.f32 %v2361, 1.0
        %v2363 = vrcp.pop %v2362
        %v2364 = vmul.f32 1.0, %v2363
        %v2365 = vmul.f32 %v2357, %v2346
        %v2366 = vadd.f32 %v1426, %v2365
        %v2367 = vtanh.pop %v2366
        %v2368 = vsub.f32 1.0, %v2364
        %v2369 = vmul.f32 %v2368, %v2367
        %v2370 = vmul.f32 %v2364, %v1797
        %v2371 = vadd.f32 %v2369, %v2370
        %v2372 = vpack.c.bf16 %v2371, %v2371
        %2373 = vmatprep.subr.bf16.mxu0 %v1896
        %2374 = vmatpush1.bf16.msra.mxu0 %v1895
        %2375 = vmatprep.subr.bf16.mxu0 %v1899
        %2376 = vmatpush1.bf16.msra.mxu0 %v1898
        %2377 = vmatprep.subr.bf16.mxu0 %v1902
        %2378 = vmatpush1.bf16.msra.mxu0 %v1901
        %2379 = vmatprep.subr.bf16.mxu0 %v1905
        %2380 = vmatpush1.bf16.msra.mxu0 %v1904
        %2381 = vmatprep.subr.bf16.mxu0 %v1908
        %2382 = vmatpush1.bf16.msra.mxu0 %v1907
        %2383 = vmatprep.subr.bf16.mxu0 %v1911
        %2384 = vmatpush1.bf16.msra.mxu0 %v1910
        %2385 = vmatprep.subr.bf16.mxu0 %v1914
        %2386 = vmatpush1.bf16.msra.mxu0 %v1913
        %2387 = vmatprep.subr.bf16.mxu0 %v1917
        %2388 = vmatpush1.bf16.msra.mxu0 %v1916
        %2389 = vmatprep.subr.bf16.mxu0 0
        %2390 = vmatpush1.bf16.msra.mxu0 0
        %2391 = vmatprep.subr.bf16.mxu0 0
        %2392 = vmatpush1.bf16.msra.mxu0 0
        %2393 = vmatprep.subr.bf16.mxu0 0
        %2394 = vmatpush1.bf16.msra.mxu0 0
        %2395 = vmatprep.subr.bf16.mxu0 0
        %2396 = vmatpush1.bf16.msra.mxu0 0
        %2397 = vmatprep.subr.bf16.mxu0 0
        %2398 = vmatpush1.bf16.msra.mxu0 0
        %2399 = vmatprep.subr.bf16.mxu0 0
        %2400 = vmatpush1.bf16.msra.mxu0 0
        %2401 = vmatprep.subr.bf16.mxu0 0
        %2402 = vmatpush1.bf16.msra.mxu0 0
        %2403 = vmatprep.subr.bf16.mxu0 0
        %2404 = vmatpush1.bf16.msra.mxu0 0
        %2405 = vmatprep.mubr.bf16.mxu0 0
        %2406 = vmatmul.mubr.bf16.gmra.mrb[0].mxu0 %v2372
        %v2407 = vpop.f32.mrb[0].mxu0
        %v2408 = vadd.f32 %v1803, %v2407
        %v2409 = vpop.f32.mrb[0].mxu0
        %v2410 = vadd.f32 %v1807, %v2409
        %v2411 = vpop.f32.mrb[0].mxu0
        %v2412 = vpop.f32.mrb[0].mxu0
        %2413 = vdwg.mxu0
        %2414 = vmatprep.subr.bf16.mxu0 0
        %2415 = vmatpush1.bf16.msra.mxu0 %v1897
        %2416 = vmatprep.subr.bf16.mxu0 0
        %2417 = vmatpush1.bf16.msra.mxu0 %v1900
        %2418 = vmatprep.subr.bf16.mxu0 0
        %2419 = vmatpush1.bf16.msra.mxu0 %v1903
        %2420 = vmatprep.subr.bf16.mxu0 0
        %2421 = vmatpush1.bf16.msra.mxu0 %v1906
        %2422 = vmatprep.subr.bf16.mxu0 0
        %2423 = vmatpush1.bf16.msra.mxu0 %v1909
        %2424 = vmatprep.subr.bf16.mxu0 0
        %2425 = vmatpush1.bf16.msra.mxu0 %v1912
        %2426 = vmatprep.subr.bf16.mxu0 0
        %2427 = vmatpush1.bf16.msra.mxu0 %v1915
        %2428 = vmatprep.subr.bf16.mxu0 0
        %2429 = vmatpush1.bf16.msra.mxu0 %v1918
        %2430 = vmatprep.subr.bf16.mxu0 0
        %2431 = vmatpush1.bf16.msra.mxu0 0
        %2432 = vmatprep.subr.bf16.mxu0 0
        %2433 = vmatpush1.bf16.msra.mxu0 0
        %2434 = vmatprep.subr.bf16.mxu0 0
        %2435 = vmatpush1.bf16.msra.mxu0 0
        %2436 = vmatprep.subr.bf16.mxu0 0
        %2437 = vmatpush1.bf16.msra.mxu0 0
        %2438 = vmatprep.subr.bf16.mxu0 0
        %2439 = vmatpush1.bf16.msra.mxu0 0
        %2440 = vmatprep.subr.bf16.mxu0 0
        %2441 = vmatpush1.bf16.msra.mxu0 0
        %2442 = vmatprep.subr.bf16.mxu0 0
        %2443 = vmatpush1.bf16.msra.mxu0 0
        %2444 = vmatprep.subr.bf16.mxu0 0
        %2445 = vmatpush1.bf16.msra.mxu0 0
        %2446 = vmatprep.mubr.bf16.mxu0 0
        %2447 = vmatmul.mubr.bf16.gmra.mrb[0].mxu0 %v2372
        %v2448 = vpop.f32.mrb[0].mxu0
        %v2449 = vadd.f32 %v1811, %v2448
        %v2450 = vpop.f32.mrb[0].mxu0
        %v2451 = vpop.f32.mrb[0].mxu0
        %v2452 = vpop.f32.mrb[0].mxu0
        %2453 = vdwg.mxu0
        %v2454 = vpack.c.bf16 %v2269, %v2269
        %2455 = vmatprep.subr.bf16.mxu0 %v2121
        %2456 = vmatpush1.bf16.msra.mxu0 %v2120
        %2457 = vmatprep.subr.bf16.mxu0 %v2124
        %2458 = vmatpush1.bf16.msra.mxu0 %v2123
        %2459 = vmatprep.subr.bf16.mxu0 %v2127
        %2460 = vmatpush1.bf16.msra.mxu0 %v2126
        %2461 = vmatprep.subr.bf16.mxu0 %v2130
        %2462 = vmatpush1.bf16.msra.mxu0 %v2129
        %2463 = vmatprep.subr.bf16.mxu0 %v2133
        %2464 = vmatpush1.bf16.msra.mxu0 %v2132
        %2465 = vmatprep.subr.bf16.mxu0 %v2136
        %2466 = vmatpush1.bf16.msra.mxu0 %v2135
        %2467 = vmatprep.subr.bf16.mxu0 %v2139
        %2468 = vmatpush1.bf16.msra.mxu0 %v2138
        %2469 = vmatprep.subr.bf16.mxu0 %v2142
        %2470 = vmatpush1.bf16.msra.mxu0 %v2141
        %2471 = vmatprep.subr.bf16.mxu0 0
        %2472 = vmatpush1.bf16.msra.mxu0 0
        %2473 = vmatprep.subr.bf16.mxu0 0
        %2474 = vmatpush1.bf16.msra.mxu0 0
        %2475 = vmatprep.subr.bf16.mxu0 0
        %2476 = vmatpush1.bf16.msra.mxu0 0
        %2477 = vmatprep.subr.bf16.mxu0 0
        %2478 = vmatpush1.bf16.msra.mxu0 0
        %2479 = vmatprep.subr.bf16.mxu0 0
        %2480 = vmatpush1.bf16.msra.mxu0 0
        %2481 = vmatprep.subr.bf16.mxu0 0
        %2482 = vmatpush1.bf16.msra.mxu0 0
        %2483 = vmatprep.subr.bf16.mxu0 0
        %2484 = vmatpush1.bf16.msra.mxu0 0
        %2485 = vmatprep.subr.bf16.mxu0 0
        %2486 = vmatpush1.bf16.msra.mxu0 0
        %2487 = vmatprep.mubr.bf16.mxu0 0
        %2488 = vmatmul.mubr.bf16.gmra.mrb[0].mxu0 %v2454
        %v2489 = vpop.f32.mrb[0].mxu0
        %v2490 = vadd.f32 %v2028, %v2489
        %v2491 = vpop.f32.mrb[0].mxu0
        %v2492 = vadd.f32 %v2032, %v2491
        %v2493 = vpop.f32.mrb[0].mxu0
        %v2494 = vpop.f32.mrb[0].mxu0
        %2495 = vdwg.mxu0
        %2496 = vmatprep.subr.bf16.mxu0 0
        %2497 = vmatpush1.bf16.msra.mxu0 %v2122
        %2498 = vmatprep.subr.bf16.mxu0 0
        %2499 = vmatpush1.bf16.msra.mxu0 %v2125
        %2500 = vmatprep.subr.bf16.mxu0 0
        %2501 = vmatpush1.bf16.msra.mxu0 %v2128
        %2502 = vmatprep.subr.bf16.mxu0 0
        %2503 = vmatpush1.bf16.msra.mxu0 %v2131
        %2504 = vmatprep.subr.bf16.mxu0 0
        %2505 = vmatpush1.bf16.msra.mxu0 %v2134
        %2506 = vmatprep.subr.bf16.mxu0 0
        %2507 = vmatpush1.bf16.msra.mxu0 %v2137
        %2508 = vmatprep.subr.bf16.mxu0 0
        %2509 = vmatpush1.bf16.msra.mxu0 %v2140
        %2510 = vmatprep.subr.bf16.mxu0 0
        %2511 = vmatpush1.bf16.msra.mxu0 %v2143
        %2512 = vmatprep.subr.bf16.mxu0 0
        %2513 = vmatpush1.bf16.msra.mxu0 0
        %2514 = vmatprep.subr.bf16.mxu0 0
        %2515 = vmatpush1.bf16.msra.mxu0 0
        %2516 = vmatprep.subr.bf16.mxu0 0
        %2517 = vmatpush1.bf16.msra.mxu0 0
        %2518 = vmatprep.subr.bf16.mxu0 0
        %2519 = vmatpush1.bf16.msra.mxu0 0
        %2520 = vmatprep.subr.bf16.mxu0 0
        %2521 = vmatpush1.bf16.msra.mxu0 0
        %2522 = vmatprep.subr.bf16.mxu0 0
        %2523 = vmatpush1.bf16.msra.mxu0 0
        %2524 = vmatprep.subr.bf16.mxu0 0
        %2525 = vmatpush1.bf16.msra.mxu0 0
        %2526 = vmatprep.subr.bf16.mxu0 0
        %2527 = vmatpush1.bf16.msra.mxu0 0
        %2528 = vmatprep.mubr.bf16.mxu0 0
        %2529 = vmatmul.mubr.bf16.gmra.mrb[0].mxu0 %v2454
        %v2530 = vpop.f32.mrb[0].mxu0
        %v2531 = vadd.f32 %v2036, %v2530
        %v2532 = vpop.f32.mrb[0].mxu0
        %v2533 = vpop.f32.mrb[0].mxu0
        %v2534 = vpop.f32.mrb[0].mxu0
        %2535 = vdwg.mxu0
        %v2536 = vadd.f32 %v2408, %v2490
        %v2537 = vxor.u32 %v2536, 2147483648
        %v2538 = vmul.f32 %v2537, 1.442695
        %v2539 = vpow.pop %v2538
        %v2540 = vadd.f32 %v2539, 1.0
        %v2541 = vrcp.pop %v2540
        %v2542 = vmul.f32 1.0, %v2541
        %v2543 = vadd.f32 %v2410, %v2492
        %v2544 = vxor.u32 %v2543, 2147483648
        %v2545 = vmul.f32 %v2544, 1.442695
        %v2546 = vpow.pop %v2545
        %v2547 = vadd.f32 %v2546, 1.0
        %v2548 = vrcp.pop %v2547
        %v2549 = vmul.f32 1.0, %v2548
        %v2550 = vmul.f32 %v2542, %v2531
        %v2551 = vadd.f32 %v2449, %v2550
        %v2552 = vtanh.pop %v2551
        %v2553 = vsub.f32 1.0, %v2549
        %v2554 = vmul.f32 %v2553, %v2552
        %v2555 = vmul.f32 %v2549, %v2269
        %v2556 = vadd.f32 %v2554, %v2555
        %2557 = vmatprep.subr.bf16.mxu0 %v1649
        %2558 = vmatpush1.bf16.msra.mxu0 %v1648
        %2559 = vmatprep.subr.bf16.mxu0 %v1652
        %2560 = vmatpush1.bf16.msra.mxu0 %v1651
        %2561 = vmatprep.subr.bf16.mxu0 %v1655
        %2562 = vmatpush1.bf16.msra.mxu0 %v1654
        %2563 = vmatprep.subr.bf16.mxu0 %v1658
        %2564 = vmatpush1.bf16.msra.mxu0 %v1657
        %2565 = vmatprep.subr.bf16.mxu0 %v1661
        %2566 = vmatpush1.bf16.msra.mxu0 %v1660
        %2567 = vmatprep.subr.bf16.mxu0 %v1664
        %2568 = vmatpush1.bf16.msra.mxu0 %v1663
        %2569 = vmatprep.subr.bf16.mxu0 %v1667
        %2570 = vmatpush1.bf16.msra.mxu0 %v1666
        %2571 = vmatprep.subr.bf16.mxu0 %v1670
        %2572 = vmatpush1.bf16.msra.mxu0 %v1669
        %2573 = vmatprep.subr.bf16.mxu0 0
        %2574 = vmatpush1.bf16.msra.mxu0 0
        %2575 = vmatprep.subr.bf16.mxu0 0
        %2576 = vmatpush1.bf16.msra.mxu0 0
        %2577 = vmatprep.subr.bf16.mxu0 0
        %2578 = vmatpush1.bf16.msra.mxu0 0
        %2579 = vmatprep.subr.bf16.mxu0 0
        %2580 = vmatpush1.bf16.msra.mxu0 0
        %2581 = vmatprep.subr.bf16.mxu0 0
        %2582 = vmatpush1.bf16.msra.mxu0 0
        %2583 = vmatprep.subr.bf16.mxu0 0
        %2584 = vmatpush1.bf16.msra.mxu0 0
        %2585 = vmatprep.subr.bf16.mxu0 0
        %2586 = vmatpush1.bf16.msra.mxu0 0
        %2587 = vmatprep.subr.bf16.mxu0 0
        %2588 = vmatpush1.bf16.msra.mxu0 0
        %2589 = vmatprep.mubr.bf16.mxu0 0
        %2590 = vmatmul.mubr.bf16.gmra.mrb[0].mxu0 %v2372
        %v2591 = vpop.f32.mrb[0].mxu0
        %v2592 = vadd.f32 %v1556, %v2591
        %v2593 = vpop.f32.mrb[0].mxu0
        %v2594 = vadd.f32 %v1560, %v2593
        %v2595 = vpop.f32.mrb[0].mxu0
        %v2596 = vpop.f32.mrb[0].mxu0
        %2597 = vdwg.mxu0
        %2598 = vmatprep.subr.bf16.mxu0 0
        %2599 = vmatpush1.bf16.msra.mxu0 %v1650
        %2600 = vmatprep.subr.bf16.mxu0 0
        %2601 = vmatpush1.bf16.msra.mxu0 %v1653
        %2602 = vmatprep.subr.bf16.mxu0 0
        %2603 = vmatpush1.bf16.msra.mxu0 %v1656
        %2604 = vmatprep.subr.bf16.mxu0 0
        %2605 = vmatpush1.bf16.msra.mxu0 %v1659
        %2606 = vmatprep.subr.bf16.mxu0 0
        %2607 = vmatpush1.bf16.msra.mxu0 %v1662
        %2608 = vmatprep.subr.bf16.mxu0 0
        %2609 = vmatpush1.bf16.msra.mxu0 %v1665
        %2610 = vmatprep.subr.bf16.mxu0 0
        %2611 = vmatpush1.bf16.msra.mxu0 %v1668
        %2612 = vmatprep.subr.bf16.mxu0 0
        %2613 = vmatpush1.bf16.msra.mxu0 %v1671
        %2614 = vmatprep.subr.bf16.mxu0 0
        %2615 = vmatpush1.bf16.msra.mxu0 0
        %2616 = vmatprep.subr.bf16.mxu0 0
        %2617 = vmatpush1.bf16.msra.mxu0 0
        %2618 = vmatprep.subr.bf16.mxu0 0
        %2619 = vmatpush1.bf16.msra.mxu0 0
        %2620 = vmatprep.subr.bf16.mxu0 0
        %2621 = vmatpush1.bf16.msra.mxu0 0
        %2622 = vmatprep.subr.bf16.mxu0 0
        %2623 = vmatpush1.bf16.msra.mxu0 0
        %2624 = vmatprep.subr.bf16.mxu0 0
        %2625 = vmatpush1.bf16.msra.mxu0 0
        %2626 = vmatprep.subr.bf16.mxu0 0
        %2627 = vmatpush1.bf16.msra.mxu0 0
        %2628 = vmatprep.subr.bf16.mxu0 0
        %2629 = vmatpush1.bf16.msra.mxu0 0
        %2630 = vmatprep.mubr.bf16.mxu0 0
        %2631 = vmatmul.mubr.bf16.gmra.mrb[0].mxu0 %v2372
        %v2632 = vpop.f32.mrb[0].mxu0
        %v2633 = vadd.f32 %v1564, %v2632
        %v2634 = vpop.f32.mrb[0].mxu0
        %v2635 = vpop.f32.mrb[0].mxu0
        %v2636 = vpop.f32.mrb[0].mxu0
        %2637 = vdwg.mxu0
        %v2638 = vadd.f32 %v1360, %v2592
        %v2639 = vxor.u32 %v2638, 2147483648
        %v2640 = vmul.f32 %v2639, 1.442695
        %v2641 = vpow.pop %v2640
        %v2642 = vadd.f32 %v2641, 1.0
        %v2643 = vrcp.pop %v2642
        %v2644 = vmul.f32 1.0, %v2643
        %v2645 = vadd.f32 %v1362, %v2594
        %v2646 = vxor.u32 %v2645, 2147483648
        %v2647 = vmul.f32 %v2646, 1.442695
        %v2648 = vpow.pop %v2647
        %v2649 = vadd.f32 %v2648, 1.0
        %v2650 = vrcp.pop %v2649
        %v2651 = vmul.f32 1.0, %v2650
        %v2652 = vmul.f32 %v2644, %v2633
        %v2653 = vadd.f32 %v1431, %v2652
        %v2654 = vtanh.pop %v2653
        %v2655 = vsub.f32 1.0, %v2651
        %v2656 = vmul.f32 %v2655, %v2654
        %v2657 = vmul.f32 %v2651, %v2371
        %v2658 = vadd.f32 %v2656, %v2657
        %v2659 = vpack.c.bf16 %v2658, %v2658
        %2660 = vmatprep.subr.bf16.mxu0 %v1896
        %2661 = vmatpush1.bf16.msra.mxu0 %v1895
        %2662 = vmatprep.subr.bf16.mxu0 %v1899
        %2663 = vmatpush1.bf16.msra.mxu0 %v1898
        %2664 = vmatprep.subr.bf16.mxu0 %v1902
        %2665 = vmatpush1.bf16.msra.mxu0 %v1901
        %2666 = vmatprep.subr.bf16.mxu0 %v1905
        %2667 = vmatpush1.bf16.msra.mxu0 %v1904
        %2668 = vmatprep.subr.bf16.mxu0 %v1908
        %2669 = vmatpush1.bf16.msra.mxu0 %v1907
        %2670 = vmatprep.subr.bf16.mxu0 %v1911
        %2671 = vmatpush1.bf16.msra.mxu0 %v1910
        %2672 = vmatprep.subr.bf16.mxu0 %v1914
        %2673 = vmatpush1.bf16.msra.mxu0 %v1913
        %2674 = vmatprep.subr.bf16.mxu0 %v1917
        %2675 = vmatpush1.bf16.msra.mxu0 %v1916
        %2676 = vmatprep.subr.bf16.mxu0 0
        %2677 = vmatpush1.bf16.msra.mxu0 0
        %2678 = vmatprep.subr.bf16.mxu0 0
        %2679 = vmatpush1.bf16.msra.mxu0 0
        %2680 = vmatprep.subr.bf16.mxu0 0
        %2681 = vmatpush1.bf16.msra.mxu0 0
        %2682 = vmatprep.subr.bf16.mxu0 0
        %2683 = vmatpush1.bf16.msra.mxu0 0
        %2684 = vmatprep.subr.bf16.mxu0 0
        %2685 = vmatpush1.bf16.msra.mxu0 0
        %2686 = vmatprep.subr.bf16.mxu0 0
        %2687 = vmatpush1.bf16.msra.mxu0 0
        %2688 = vmatprep.subr.bf16.mxu0 0
        %2689 = vmatpush1.bf16.msra.mxu0 0
        %2690 = vmatprep.subr.bf16.mxu0 0
        %2691 = vmatpush1.bf16.msra.mxu0 0
        %2692 = vmatprep.mubr.bf16.mxu0 0
        %2693 = vmatmul.mubr.bf16.gmra.mrb[0].mxu0 %v2659
        %v2694 = vpop.f32.mrb[0].mxu0
        %v2695 = vadd.f32 %v1803, %v2694
        %v2696 = vpop.f32.mrb[0].mxu0
        %v2697 = vadd.f32 %v1807, %v2696
        %v2698 = vpop.f32.mrb[0].mxu0
        %v2699 = vpop.f32.mrb[0].mxu0
        %2700 = vdwg.mxu0
        %2701 = vmatprep.subr.bf16.mxu0 0
        %2702 = vmatpush1.bf16.msra.mxu0 %v1897
        %2703 = vmatprep.subr.bf16.mxu0 0
        %2704 = vmatpush1.bf16.msra.mxu0 %v1900
        %2705 = vmatprep.subr.bf16.mxu0 0
        %2706 = vmatpush1.bf16.msra.mxu0 %v1903
        %2707 = vmatprep.subr.bf16.mxu0 0
        %2708 = vmatpush1.bf16.msra.mxu0 %v1906
        %2709 = vmatprep.subr.bf16.mxu0 0
        %2710 = vmatpush1.bf16.msra.mxu0 %v1909
        %2711 = vmatprep.subr.bf16.mxu0 0
        %2712 = vmatpush1.bf16.msra.mxu0 %v1912
        %2713 = vmatprep.subr.bf16.mxu0 0
        %2714 = vmatpush1.bf16.msra.mxu0 %v1915
        %2715 = vmatprep.subr.bf16.mxu0 0
        %2716 = vmatpush1.bf16.msra.mxu0 %v1918
        %2717 = vmatprep.subr.bf16.mxu0 0
        %2718 = vmatpush1.bf16.msra.mxu0 0
        %2719 = vmatprep.subr.bf16.mxu0 0
        %2720 = vmatpush1.bf16.msra.mxu0 0
        %2721 = vmatprep.subr.bf16.mxu0 0
        %2722 = vmatpush1.bf16.msra.mxu0 0
        %2723 = vmatprep.subr.bf16.mxu0 0
        %2724 = vmatpush1.bf16.msra.mxu0 0
        %2725 = vmatprep.subr.bf16.mxu0 0
        %2726 = vmatpush1.bf16.msra.mxu0 0
        %2727 = vmatprep.subr.bf16.mxu0 0
        %2728 = vmatpush1.bf16.msra.mxu0 0
        %2729 = vmatprep.subr.bf16.mxu0 0
        %2730 = vmatpush1.bf16.msra.mxu0 0
        %2731 = vmatprep.subr.bf16.mxu0 0
        %2732 = vmatpush1.bf16.msra.mxu0 0
        %2733 = vmatprep.mubr.bf16.mxu0 0
        %2734 = vmatmul.mubr.bf16.gmra.mrb[0].mxu0 %v2659
        %v2735 = vpop.f32.mrb[0].mxu0
        %v2736 = vadd.f32 %v1811, %v2735
        %v2737 = vpop.f32.mrb[0].mxu0
        %v2738 = vpop.f32.mrb[0].mxu0
        %v2739 = vpop.f32.mrb[0].mxu0
        %2740 = vdwg.mxu0
        %v2741 = vpack.c.bf16 %v2556, %v2556
        %2742 = vmatprep.subr.bf16.mxu0 %v2121
        %2743 = vmatpush1.bf16.msra.mxu0 %v2120
        %2744 = vmatprep.subr.bf16.mxu0 %v2124
        %2745 = vmatpush1.bf16.msra.mxu0 %v2123
        %2746 = vmatprep.subr.bf16.mxu0 %v2127
        %2747 = vmatpush1.bf16.msra.mxu0 %v2126
        %2748 = vmatprep.subr.bf16.mxu0 %v2130
        %2749 = vmatpush1.bf16.msra.mxu0 %v2129
        %2750 = vmatprep.subr.bf16.mxu0 %v2133
        %2751 = vmatpush1.bf16.msra.mxu0 %v2132
        %2752 = vmatprep.subr.bf16.mxu0 %v2136
        %2753 = vmatpush1.bf16.msra.mxu0 %v2135
        %2754 = vmatprep.subr.bf16.mxu0 %v2139
        %2755 = vmatpush1.bf16.msra.mxu0 %v2138
        %2756 = vmatprep.subr.bf16.mxu0 %v2142
        %2757 = vmatpush1.bf16.msra.mxu0 %v2141
        %2758 = vmatprep.subr.bf16.mxu0 0
        %2759 = vmatpush1.bf16.msra.mxu0 0
        %2760 = vmatprep.subr.bf16.mxu0 0
        %2761 = vmatpush1.bf16.msra.mxu0 0
        %2762 = vmatprep.subr.bf16.mxu0 0
        %2763 = vmatpush1.bf16.msra.mxu0 0
        %2764 = vmatprep.subr.bf16.mxu0 0
        %2765 = vmatpush1.bf16.msra.mxu0 0
        %2766 = vmatprep.subr.bf16.mxu0 0
        %2767 = vmatpush1.bf16.msra.mxu0 0
        %2768 = vmatprep.subr.bf16.mxu0 0
        %2769 = vmatpush1.bf16.msra.mxu0 0
        %2770 = vmatprep.subr.bf16.mxu0 0
        %2771 = vmatpush1.bf16.msra.mxu0 0
        %2772 = vmatprep.subr.bf16.mxu0 0
        %2773 = vmatpush1.bf16.msra.mxu0 0
        %2774 = vmatprep.mubr.bf16.mxu0 0
        %2775 = vmatmul.mubr.bf16.gmra.mrb[0].mxu0 %v2741
        %v2776 = vpop.f32.mrb[0].mxu0
        %v2777 = vadd.f32 %v2028, %v2776
        %v2778 = vpop.f32.mrb[0].mxu0
        %v2779 = vadd.f32 %v2032, %v2778
        %v2780 = vpop.f32.mrb[0].mxu0
        %v2781 = vpop.f32.mrb[0].mxu0
        %2782 = vdwg.mxu0
        %2783 = vmatprep.subr.bf16.mxu0 0
        %2784 = vmatpush1.bf16.msra.mxu0 %v2122
        %2785 = vmatprep.subr.bf16.mxu0 0
        %2786 = vmatpush1.bf16.msra.mxu0 %v2125
        %2787 = vmatprep.subr.bf16.mxu0 0
        %2788 = vmatpush1.bf16.msra.mxu0 %v2128
        %2789 = vmatprep.subr.bf16.mxu0 0
        %2790 = vmatpush1.bf16.msra.mxu0 %v2131
        %2791 = vmatprep.subr.bf16.mxu0 0
        %2792 = vmatpush1.bf16.msra.mxu0 %v2134
        %2793 = vmatprep.subr.bf16.mxu0 0
        %2794 = vmatpush1.bf16.msra.mxu0 %v2137
        %2795 = vmatprep.subr.bf16.mxu0 0
        %2796 = vmatpush1.bf16.msra.mxu0 %v2140
        %2797 = vmatprep.subr.bf16.mxu0 0
        %2798 = vmatpush1.bf16.msra.mxu0 %v2143
        %2799 = vmatprep.subr.bf16.mxu0 0
        %2800 = vmatpush1.bf16.msra.mxu0 0
        %2801 = vmatprep.subr.bf16.mxu0 0
        %2802 = vmatpush1.bf16.msra.mxu0 0
        %2803 = vmatprep.subr.bf16.mxu0 0
        %2804 = vmatpush1.bf16.msra.mxu0 0
        %2805 = vmatprep.subr.bf16.mxu0 0
        %2806 = vmatpush1.bf16.msra.mxu0 0
        %2807 = vmatprep.subr.bf16.mxu0 0
        %2808 = vmatpush1.bf16.msra.mxu0 0
        %2809 = vmatprep.subr.bf16.mxu0 0
        %2810 = vmatpush1.bf16.msra.mxu0 0
        %2811 = vmatprep.subr.bf16.mxu0 0
        %2812 = vmatpush1.bf16.msra.mxu0 0
        %2813 = vmatprep.subr.bf16.mxu0 0
        %2814 = vmatpush1.bf16.msra.mxu0 0
        %2815 = vmatprep.mubr.bf16.mxu0 0
        %2816 = vmatmul.mubr.bf16.gmra.mrb[0].mxu0 %v2741
        %v2817 = vpop.f32.mrb[0].mxu0
        %v2818 = vadd.f32 %v2036, %v2817
        %v2819 = vpop.f32.mrb[0].mxu0
        %v2820 = vpop.f32.mrb[0].mxu0
        %v2821 = vpop.f32.mrb[0].mxu0
        %2822 = vdwg.mxu0
        %v2823 = vadd.f32 %v2695, %v2777
        %v2824 = vxor.u32 %v2823, 2147483648
        %v2825 = vmul.f32 %v2824, 1.442695
        %v2826 = vpow.pop %v2825
        %v2827 = vadd.f32 %v2826, 1.0
        %v2828 = vrcp.pop %v2827
        %v2829 = vmul.f32 1.0, %v2828
        %v2830 = vadd.f32 %v2697, %v2779
        %v2831 = vxor.u32 %v2830, 2147483648
        %v2832 = vmul.f32 %v2831, 1.442695
        %v2833 = vpow.pop %v2832
        %v2834 = vadd.f32 %v2833, 1.0
        %v2835 = vrcp.pop %v2834
        %v2836 = vmul.f32 1.0, %v2835
        %v2837 = vmul.f32 %v2829, %v2818
        %v2838 = vadd.f32 %v2736, %v2837
        %v2839 = vtanh.pop %v2838
        %v2840 = vsub.f32 1.0, %v2836
        %v2841 = vmul.f32 %v2840, %v2839
        %v2842 = vmul.f32 %v2836, %v2556
        %v2843 = vadd.f32 %v2841, %v2842
        %2844 = vmatprep.subr.bf16.mxu0 %v1649
        %2845 = vmatpush1.bf16.msra.mxu0 %v1648
        %2846 = vmatprep.subr.bf16.mxu0 %v1652
        %2847 = vmatpush1.bf16.msra.mxu0 %v1651
        %2848 = vmatprep.subr.bf16.mxu0 %v1655
        %2849 = vmatpush1.bf16.msra.mxu0 %v1654
        %2850 = vmatprep.subr.bf16.mxu0 %v1658
        %2851 = vmatpush1.bf16.msra.mxu0 %v1657
        %2852 = vmatprep.subr.bf16.mxu0 %v1661
        %2853 = vmatpush1.bf16.msra.mxu0 %v1660
        %2854 = vmatprep.subr.bf16.mxu0 %v1664
        %2855 = vmatpush1.bf16.msra.mxu0 %v1663
        %2856 = vmatprep.subr.bf16.mxu0 %v1667
        %2857 = vmatpush1.bf16.msra.mxu0 %v1666
        %2858 = vmatprep.subr.bf16.mxu0 %v1670
        %2859 = vmatpush1.bf16.msra.mxu0 %v1669
        %2860 = vmatprep.subr.bf16.mxu0 0
        %2861 = vmatpush1.bf16.msra.mxu0 0
        %2862 = vmatprep.subr.bf16.mxu0 0
        %2863 = vmatpush1.bf16.msra.mxu0 0
        %2864 = vmatprep.subr.bf16.mxu0 0
        %2865 = vmatpush1.bf16.msra.mxu0 0
        %2866 = vmatprep.subr.bf16.mxu0 0
        %2867 = vmatpush1.bf16.msra.mxu0 0
        %2868 = vmatprep.subr.bf16.mxu0 0
        %2869 = vmatpush1.bf16.msra.mxu0 0
        %2870 = vmatprep.subr.bf16.mxu0 0
        %2871 = vmatpush1.bf16.msra.mxu0 0
        %2872 = vmatprep.subr.bf16.mxu0 0
        %2873 = vmatpush1.bf16.msra.mxu0 0
        %2874 = vmatprep.subr.bf16.mxu0 0
        %2875 = vmatpush1.bf16.msra.mxu0 0
        %2876 = vmatprep.mubr.bf16.mxu0 0
        %2877 = vmatmul.mubr.bf16.gmra.mrb[0].mxu0 %v2659
        %v2878 = vpop.f32.mrb[0].mxu0
        %v2879 = vadd.f32 %v1556, %v2878
        %v2880 = vpop.f32.mrb[0].mxu0
        %v2881 = vadd.f32 %v1560, %v2880
        %v2882 = vpop.f32.mrb[0].mxu0
        %v2883 = vpop.f32.mrb[0].mxu0
        %2884 = vdwg.mxu0
        %2885 = vmatprep.subr.bf16.mxu0 0
        %2886 = vmatpush1.bf16.msra.mxu0 %v1650
        %2887 = vmatprep.subr.bf16.mxu0 0
        %2888 = vmatpush1.bf16.msra.mxu0 %v1653
        %2889 = vmatprep.subr.bf16.mxu0 0
        %2890 = vmatpush1.bf16.msra.mxu0 %v1656
        %2891 = vmatprep.subr.bf16.mxu0 0
        %2892 = vmatpush1.bf16.msra.mxu0 %v1659
        %2893 = vmatprep.subr.bf16.mxu0 0
        %2894 = vmatpush1.bf16.msra.mxu0 %v1662
        %2895 = vmatprep.subr.bf16.mxu0 0
        %2896 = vmatpush1.bf16.msra.mxu0 %v1665
        %2897 = vmatprep.subr.bf16.mxu0 0
        %2898 = vmatpush1.bf16.msra.mxu0 %v1668
        %2899 = vmatprep.subr.bf16.mxu0 0
        %2900 = vmatpush1.bf16.msra.mxu0 %v1671
        %2901 = vmatprep.subr.bf16.mxu0 0
        %2902 = vmatpush1.bf16.msra.mxu0 0
        %2903 = vmatprep.subr.bf16.mxu0 0
        %2904 = vmatpush1.bf16.msra.mxu0 0
        %2905 = vmatprep.subr.bf16.mxu0 0
        %2906 = vmatpush1.bf16.msra.mxu0 0
        %2907 = vmatprep.subr.bf16.mxu0 0
        %2908 = vmatpush1.bf16.msra.mxu0 0
        %2909 = vmatprep.subr.bf16.mxu0 0
        %2910 = vmatpush1.bf16.msra.mxu0 0
        %2911 = vmatprep.subr.bf16.mxu0 0
        %2912 = vmatpush1.bf16.msra.mxu0 0
        %2913 = vmatprep.subr.bf16.mxu0 0
        %2914 = vmatpush1.bf16.msra.mxu0 0
        %2915 = vmatprep.subr.bf16.mxu0 0
        %2916 = vmatpush1.bf16.msra.mxu0 0
        %2917 = vmatprep.mubr.bf16.mxu0 0
        %2918 = vmatmul.mubr.bf16.gmra.mrb[0].mxu0 %v2659
        %v2919 = vpop.f32.mrb[0].mxu0
        %v2920 = vadd.f32 %v1564, %v2919
        %v2921 = vpop.f32.mrb[0].mxu0
        %v2922 = vpop.f32.mrb[0].mxu0
        %v2923 = vpop.f32.mrb[0].mxu0
        %2924 = vdwg.mxu0
        %v2925 = vadd.f32 %v1364, %v2879
        %v2926 = vxor.u32 %v2925, 2147483648
        %v2927 = vmul.f32 %v2926, 1.442695
        %v2928 = vpow.pop %v2927
        %v2929 = vadd.f32 %v2928, 1.0
        %v2930 = vrcp.pop %v2929
        %v2931 = vmul.f32 1.0, %v2930
        %v2932 = vadd.f32 %v1366, %v2881
        %v2933 = vxor.u32 %v2932, 2147483648
        %v2934 = vmul.f32 %v2933, 1.442695
        %v2935 = vpow.pop %v2934
        %v2936 = vadd.f32 %v2935, 1.0
        %v2937 = vrcp.pop %v2936
        %v2938 = vmul.f32 1.0, %v2937
        %v2939 = vmul.f32 %v2931, %v2920
        %v2940 = vadd.f32 %v1434, %v2939
        %v2941 = vtanh.pop %v2940
        %v2942 = vsub.f32 1.0, %v2938
        %v2943 = vmul.f32 %v2942, %v2941
        %v2944 = vmul.f32 %v2938, %v2658
        %v2945 = vadd.f32 %v2943, %v2944
        %v2946 = vpack.c.bf16 %v2945, %v2945
        %2947 = vmatprep.subr.bf16.mxu0 %v1896
        %2948 = vmatpush1.bf16.msra.mxu0 %v1895
        %2949 = vmatprep.subr.bf16.mxu0 %v1899
        %2950 = vmatpush1.bf16.msra.mxu0 %v1898
        %2951 = vmatprep.subr.bf16.mxu0 %v1902
        %2952 = vmatpush1.bf16.msra.mxu0 %v1901
        %2953 = vmatprep.subr.bf16.mxu0 %v1905
        %2954 = vmatpush1.bf16.msra.mxu0 %v1904
        %2955 = vmatprep.subr.bf16.mxu0 %v1908
        %2956 = vmatpush1.bf16.msra.mxu0 %v1907
        %2957 = vmatprep.subr.bf16.mxu0 %v1911
        %2958 = vmatpush1.bf16.msra.mxu0 %v1910
        %2959 = vmatprep.subr.bf16.mxu0 %v1914
        %2960 = vmatpush1.bf16.msra.mxu0 %v1913
        %2961 = vmatprep.subr.bf16.mxu0 %v1917
        %2962 = vmatpush1.bf16.msra.mxu0 %v1916
        %2963 = vmatprep.subr.bf16.mxu0 0
        %2964 = vmatpush1.bf16.msra.mxu0 0
        %2965 = vmatprep.subr.bf16.mxu0 0
        %2966 = vmatpush1.bf16.msra.mxu0 0
        %2967 = vmatprep.subr.bf16.mxu0 0
        %2968 = vmatpush1.bf16.msra.mxu0 0
        %2969 = vmatprep.subr.bf16.mxu0 0
        %2970 = vmatpush1.bf16.msra.mxu0 0
        %2971 = vmatprep.subr.bf16.mxu0 0
        %2972 = vmatpush1.bf16.msra.mxu0 0
        %2973 = vmatprep.subr.bf16.mxu0 0
        %2974 = vmatpush1.bf16.msra.mxu0 0
        %2975 = vmatprep.subr.bf16.mxu0 0
        %2976 = vmatpush1.bf16.msra.mxu0 0
        %2977 = vmatprep.subr.bf16.mxu0 0
        %2978 = vmatpush1.bf16.msra.mxu0 0
        %2979 = vmatprep.mubr.bf16.mxu0 0
        %2980 = vmatmul.mubr.bf16.gmra.mrb[0].mxu0 %v2946
        %v2981 = vpop.f32.mrb[0].mxu0
        %v2982 = vadd.f32 %v1803, %v2981
        %v2983 = vpop.f32.mrb[0].mxu0
        %v2984 = vadd.f32 %v1807, %v2983
        %v2985 = vpop.f32.mrb[0].mxu0
        %v2986 = vpop.f32.mrb[0].mxu0
        %2987 = vdwg.mxu0
        %2988 = vmatprep.subr.bf16.mxu0 0
        %2989 = vmatpush1.bf16.msra.mxu0 %v1897
        %2990 = vmatprep.subr.bf16.mxu0 0
        %2991 = vmatpush1.bf16.msra.mxu0 %v1900
        %2992 = vmatprep.subr.bf16.mxu0 0
        %2993 = vmatpush1.bf16.msra.mxu0 %v1903
        %2994 = vmatprep.subr.bf16.mxu0 0
        %2995 = vmatpush1.bf16.msra.mxu0 %v1906
        %2996 = vmatprep.subr.bf16.mxu0 0
        %2997 = vmatpush1.bf16.msra.mxu0 %v1909
        %2998 = vmatprep.subr.bf16.mxu0 0
        %2999 = vmatpush1.bf16.msra.mxu0 %v1912
        %3000 = vmatprep.subr.bf16.mxu0 0
        %3001 = vmatpush1.bf16.msra.mxu0 %v1915
        %3002 = vmatprep.subr.bf16.mxu0 0
        %3003 = vmatpush1.bf16.msra.mxu0 %v1918
        %3004 = vmatprep.subr.bf16.mxu0 0
        %3005 = vmatpush1.bf16.msra.mxu0 0
        %3006 = vmatprep.subr.bf16.mxu0 0
        %3007 = vmatpush1.bf16.msra.mxu0 0
        %3008 = vmatprep.subr.bf16.mxu0 0
        %3009 = vmatpush1.bf16.msra.mxu0 0
        %3010 = vmatprep.subr.bf16.mxu0 0
        %3011 = vmatpush1.bf16.msra.mxu0 0
        %3012 = vmatprep.subr.bf16.mxu0 0
        %3013 = vmatpush1.bf16.msra.mxu0 0
        %3014 = vmatprep.subr.bf16.mxu0 0
        %3015 = vmatpush1.bf16.msra.mxu0 0
        %3016 = vmatprep.subr.bf16.mxu0 0
        %3017 = vmatpush1.bf16.msra.mxu0 0
        %3018 = vmatprep.subr.bf16.mxu0 0
        %3019 = vmatpush1.bf16.msra.mxu0 0
        %3020 = vmatprep.mubr.bf16.mxu0 0
        %3021 = vmatmul.mubr.bf16.gmra.mrb[0].mxu0 %v2946
        %v3022 = vpop.f32.mrb[0].mxu0
        %v3023 = vadd.f32 %v1811, %v3022
        %v3024 = vpop.f32.mrb[0].mxu0
        %v3025 = vpop.f32.mrb[0].mxu0
        %v3026 = vpop.f32.mrb[0].mxu0
        %3027 = vdwg.mxu0
        %v3028 = vpack.c.bf16 %v2843, %v2843
        %3029 = vmatprep.subr.bf16.mxu0 %v2121
        %3030 = vmatpush1.bf16.msra.mxu0 %v2120
        %3031 = vmatprep.subr.bf16.mxu0 %v2124
        %3032 = vmatpush1.bf16.msra.mxu0 %v2123
        %3033 = vmatprep.subr.bf16.mxu0 %v2127
        %3034 = vmatpush1.bf16.msra.mxu0 %v2126
        %3035 = vmatprep.subr.bf16.mxu0 %v2130
        %3036 = vmatpush1.bf16.msra.mxu0 %v2129
        %3037 = vmatprep.subr.bf16.mxu0 %v2133
        %3038 = vmatpush1.bf16.msra.mxu0 %v2132
        %3039 = vmatprep.subr.bf16.mxu0 %v2136
        %3040 = vmatpush1.bf16.msra.mxu0 %v2135
        %3041 = vmatprep.subr.bf16.mxu0 %v2139
        %3042 = vmatpush1.bf16.msra.mxu0 %v2138
        %3043 = vmatprep.subr.bf16.mxu0 %v2142
        %3044 = vmatpush1.bf16.msra.mxu0 %v2141
        %3045 = vmatprep.subr.bf16.mxu0 0
        %3046 = vmatpush1.bf16.msra.mxu0 0
        %3047 = vmatprep.subr.bf16.mxu0 0
        %3048 = vmatpush1.bf16.msra.mxu0 0
        %3049 = vmatprep.subr.bf16.mxu0 0
        %3050 = vmatpush1.bf16.msra.mxu0 0
        %3051 = vmatprep.subr.bf16.mxu0 0
        %3052 = vmatpush1.bf16.msra.mxu0 0
        %3053 = vmatprep.subr.bf16.mxu0 0
        %3054 = vmatpush1.bf16.msra.mxu0 0
        %3055 = vmatprep.subr.bf16.mxu0 0
        %3056 = vmatpush1.bf16.msra.mxu0 0
        %3057 = vmatprep.subr.bf16.mxu0 0
        %3058 = vmatpush1.bf16.msra.mxu0 0
        %3059 = vmatprep.subr.bf16.mxu0 0
        %3060 = vmatpush1.bf16.msra.mxu0 0
        %3061 = vmatprep.mubr.bf16.mxu0 0
        %3062 = vmatmul.mubr.bf16.gmra.mrb[0].mxu0 %v3028
        %v3063 = vpop.f32.mrb[0].mxu0
        %v3064 = vadd.f32 %v2028, %v3063
        %v3065 = vpop.f32.mrb[0].mxu0
        %v3066 = vadd.f32 %v2032, %v3065
        %v3067 = vpop.f32.mrb[0].mxu0
        %v3068 = vpop.f32.mrb[0].mxu0
        %3069 = vdwg.mxu0
        %3070 = vmatprep.subr.bf16.mxu0 0
        %3071 = vmatpush1.bf16.msra.mxu0 %v2122
        %3072 = vmatprep.subr.bf16.mxu0 0
        %3073 = vmatpush1.bf16.msra.mxu0 %v2125
        %3074 = vmatprep.subr.bf16.mxu0 0
        %3075 = vmatpush1.bf16.msra.mxu0 %v2128
        %3076 = vmatprep.subr.bf16.mxu0 0
        %3077 = vmatpush1.bf16.msra.mxu0 %v2131
        %3078 = vmatprep.subr.bf16.mxu0 0
        %3079 = vmatpush1.bf16.msra.mxu0 %v2134
        %3080 = vmatprep.subr.bf16.mxu0 0
        %3081 = vmatpush1.bf16.msra.mxu0 %v2137
        %3082 = vmatprep.subr.bf16.mxu0 0
        %3083 = vmatpush1.bf16.msra.mxu0 %v2140
        %3084 = vmatprep.subr.bf16.mxu0 0
        %3085 = vmatpush1.bf16.msra.mxu0 %v2143
        %3086 = vmatprep.subr.bf16.mxu0 0
        %3087 = vmatpush1.bf16.msra.mxu0 0
        %3088 = vmatprep.subr.bf16.mxu0 0
        %3089 = vmatpush1.bf16.msra.mxu0 0
        %3090 = vmatprep.subr.bf16.mxu0 0
        %3091 = vmatpush1.bf16.msra.mxu0 0
        %3092 = vmatprep.subr.bf16.mxu0 0
        %3093 = vmatpush1.bf16.msra.mxu0 0
        %3094 = vmatprep.subr.bf16.mxu0 0
        %3095 = vmatpush1.bf16.msra.mxu0 0
        %3096 = vmatprep.subr.bf16.mxu0 0
        %3097 = vmatpush1.bf16.msra.mxu0 0
        %3098 = vmatprep.subr.bf16.mxu0 0
        %3099 = vmatpush1.bf16.msra.mxu0 0
        %3100 = vmatprep.subr.bf16.mxu0 0
        %3101 = vmatpush1.bf16.msra.mxu0 0
        %3102 = vmatprep.mubr.bf16.mxu0 0
        %3103 = vmatmul.mubr.bf16.gmra.mrb[0].mxu0 %v3028
        %v3104 = vpop.f32.mrb[0].mxu0
        %v3105 = vadd.f32 %v2036, %v3104
        %v3106 = vpop.f32.mrb[0].mxu0
        %v3107 = vpop.f32.mrb[0].mxu0
        %v3108 = vpop.f32.mrb[0].mxu0
        %3109 = vdwg.mxu0
        %v3110 = vadd.f32 %v2982, %v3064
        %v3111 = vxor.u32 %v3110, 2147483648
        %v3112 = vmul.f32 %v3111, 1.442695
        %v3113 = vpow.pop %v3112
        %v3114 = vadd.f32 %v3113, 1.0
        %v3115 = vrcp.pop %v3114
        %v3116 = vmul.f32 1.0, %v3115
        %v3117 = vadd.f32 %v2984, %v3066
        %v3118 = vxor.u32 %v3117, 2147483648
        %v3119 = vmul.f32 %v3118, 1.442695
        %v3120 = vpow.pop %v3119
        %v3121 = vadd.f32 %v3120, 1.0
        %v3122 = vrcp.pop %v3121
        %v3123 = vmul.f32 1.0, %v3122
        %v3124 = vmul.f32 %v3116, %v3105
        %v3125 = vadd.f32 %v3023, %v3124
        %v3126 = vtanh.pop %v3125
        %v3127 = vsub.f32 1.0, %v3123
        %v3128 = vmul.f32 %v3127, %v3126
        %v3129 = vmul.f32 %v3123, %v2843
        %v3130 = vadd.f32 %v3128, %v3129
        %3131 = vmatprep.subr.bf16.mxu0 %v1649
        %3132 = vmatpush1.bf16.msra.mxu0 %v1648
        %3133 = vmatprep.subr.bf16.mxu0 %v1652
        %3134 = vmatpush1.bf16.msra.mxu0 %v1651
        %3135 = vmatprep.subr.bf16.mxu0 %v1655
        %3136 = vmatpush1.bf16.msra.mxu0 %v1654
        %3137 = vmatprep.subr.bf16.mxu0 %v1658
        %3138 = vmatpush1.bf16.msra.mxu0 %v1657
        %3139 = vmatprep.subr.bf16.mxu0 %v1661
        %3140 = vmatpush1.bf16.msra.mxu0 %v1660
        %3141 = vmatprep.subr.bf16.mxu0 %v1664
        %3142 = vmatpush1.bf16.msra.mxu0 %v1663
        %3143 = vmatprep.subr.bf16.mxu0 %v1667
        %3144 = vmatpush1.bf16.msra.mxu0 %v1666
        %3145 = vmatprep.subr.bf16.mxu0 %v1670
        %3146 = vmatpush1.bf16.msra.mxu0 %v1669
        %3147 = vmatprep.subr.bf16.mxu0 0
        %3148 = vmatpush1.bf16.msra.mxu0 0
        %3149 = vmatprep.subr.bf16.mxu0 0
        %3150 = vmatpush1.bf16.msra.mxu0 0
        %3151 = vmatprep.subr.bf16.mxu0 0
        %3152 = vmatpush1.bf16.msra.mxu0 0
        %3153 = vmatprep.subr.bf16.mxu0 0
        %3154 = vmatpush1.bf16.msra.mxu0 0
        %3155 = vmatprep.subr.bf16.mxu0 0
        %3156 = vmatpush1.bf16.msra.mxu0 0
        %3157 = vmatprep.subr.bf16.mxu0 0
        %3158 = vmatpush1.bf16.msra.mxu0 0
        %3159 = vmatprep.subr.bf16.mxu0 0
        %3160 = vmatpush1.bf16.msra.mxu0 0
        %3161 = vmatprep.subr.bf16.mxu0 0
        %3162 = vmatpush1.bf16.msra.mxu0 0
        %3163 = vmatprep.mubr.bf16.mxu0 0
        %3164 = vmatmul.mubr.bf16.gmra.mrb[0].mxu0 %v2946
        %v3165 = vpop.f32.mrb[0].mxu0
        %v3166 = vadd.f32 %v1556, %v3165
        %v3167 = vpop.f32.mrb[0].mxu0
        %v3168 = vadd.f32 %v1560, %v3167
        %v3169 = vpop.f32.mrb[0].mxu0
        %v3170 = vpop.f32.mrb[0].mxu0
        %3171 = vdwg.mxu0
        %3172 = vmatprep.subr.bf16.mxu0 0
        %3173 = vmatpush1.bf16.msra.mxu0 %v1650
        %3174 = vmatprep.subr.bf16.mxu0 0
        %3175 = vmatpush1.bf16.msra.mxu0 %v1653
        %3176 = vmatprep.subr.bf16.mxu0 0
        %3177 = vmatpush1.bf16.msra.mxu0 %v1656
        %3178 = vmatprep.subr.bf16.mxu0 0
        %3179 = vmatpush1.bf16.msra.mxu0 %v1659
        %3180 = vmatprep.subr.bf16.mxu0 0
        %3181 = vmatpush1.bf16.msra.mxu0 %v1662
        %3182 = vmatprep.subr.bf16.mxu0 0
        %3183 = vmatpush1.bf16.msra.mxu0 %v1665
        %3184 = vmatprep.subr.bf16.mxu0 0
        %3185 = vmatpush1.bf16.msra.mxu0 %v1668
        %3186 = vmatprep.subr.bf16.mxu0 0
        %3187 = vmatpush1.bf16.msra.mxu0 %v1671
        %3188 = vmatprep.subr.bf16.mxu0 0
        %3189 = vmatpush1.bf16.msra.mxu0 0
        %3190 = vmatprep.subr.bf16.mxu0 0
        %3191 = vmatpush1.bf16.msra.mxu0 0
        %3192 = vmatprep.subr.bf16.mxu0 0
        %3193 = vmatpush1.bf16.msra.mxu0 0
        %3194 = vmatprep.subr.bf16.mxu0 0
        %3195 = vmatpush1.bf16.msra.mxu0 0
        %3196 = vmatprep.subr.bf16.mxu0 0
        %3197 = vmatpush1.bf16.msra.mxu0 0
        %3198 = vmatprep.subr.bf16.mxu0 0
        %3199 = vmatpush1.bf16.msra.mxu0 0
        %3200 = vmatprep.subr.bf16.mxu0 0
        %3201 = vmatpush1.bf16.msra.mxu0 0
        %3202 = vmatprep.subr.bf16.mxu0 0
        %3203 = vmatpush1.bf16.msra.mxu0 0
        %3204 = vmatprep.mubr.bf16.mxu0 0
        %3205 = vmatmul.mubr.bf16.gmra.mrb[0].mxu0 %v2946
        %v3206 = vpop.f32.mrb[0].mxu0
        %v3207 = vadd.f32 %v1564, %v3206
        %v3208 = vpop.f32.mrb[0].mxu0
        %v3209 = vpop.f32.mrb[0].mxu0
        %v3210 = vpop.f32.mrb[0].mxu0
        %3211 = vdwg.mxu0
        %v3212 = vadd.f32 %v1370, %v3166
        %v3213 = vxor.u32 %v3212, 2147483648
        %v3214 = vmul.f32 %v3213, 1.442695
        %v3215 = vpow.pop %v3214
        %v3216 = vadd.f32 %v3215, 1.0
        %v3217 = vrcp.pop %v3216
        %v3218 = vmul.f32 1.0, %v3217
        %v3219 = vadd.f32 %v1372, %v3168
        %v3220 = vxor.u32 %v3219, 2147483648
        %v3221 = vmul.f32 %v3220, 1.442695
        %v3222 = vpow.pop %v3221
        %v3223 = vadd.f32 %v3222, 1.0
        %v3224 = vrcp.pop %v3223
        %v3225 = vmul.f32 1.0, %v3224
        %v3226 = vmul.f32 %v3218, %v3207
        %v3227 = vadd.f32 %v1439, %v3226
        %v3228 = vtanh.pop %v3227
        %v3229 = vsub.f32 1.0, %v3225
        %v3230 = vmul.f32 %v3229, %v3228
        %v3231 = vmul.f32 %v3225, %v2945
        %v3232 = vadd.f32 %v3230, %v3231
        %v3233 = vpack.c.bf16 %v3232, %v3232
        %3234 = vmatprep.subr.bf16.mxu0 %v1896
        %3235 = vmatpush1.bf16.msra.mxu0 %v1895
        %3236 = vmatprep.subr.bf16.mxu0 %v1899
        %3237 = vmatpush1.bf16.msra.mxu0 %v1898
        %3238 = vmatprep.subr.bf16.mxu0 %v1902
        %3239 = vmatpush1.bf16.msra.mxu0 %v1901
        %3240 = vmatprep.subr.bf16.mxu0 %v1905
        %3241 = vmatpush1.bf16.msra.mxu0 %v1904
        %3242 = vmatprep.subr.bf16.mxu0 %v1908
        %3243 = vmatpush1.bf16.msra.mxu0 %v1907
        %3244 = vmatprep.subr.bf16.mxu0 %v1911
        %3245 = vmatpush1.bf16.msra.mxu0 %v1910
        %3246 = vmatprep.subr.bf16.mxu0 %v1914
        %3247 = vmatpush1.bf16.msra.mxu0 %v1913
        %3248 = vmatprep.subr.bf16.mxu0 %v1917
        %3249 = vmatpush1.bf16.msra.mxu0 %v1916
        %3250 = vmatprep.subr.bf16.mxu0 0
        %3251 = vmatpush1.bf16.msra.mxu0 0
        %3252 = vmatprep.subr.bf16.mxu0 0
        %3253 = vmatpush1.bf16.msra.mxu0 0
        %3254 = vmatprep.subr.bf16.mxu0 0
        %3255 = vmatpush1.bf16.msra.mxu0 0
        %3256 = vmatprep.subr.bf16.mxu0 0
        %3257 = vmatpush1.bf16.msra.mxu0 0
        %3258 = vmatprep.subr.bf16.mxu0 0
        %3259 = vmatpush1.bf16.msra.mxu0 0
        %3260 = vmatprep.subr.bf16.mxu0 0
        %3261 = vmatpush1.bf16.msra.mxu0 0
        %3262 = vmatprep.subr.bf16.mxu0 0
        %3263 = vmatpush1.bf16.msra.mxu0 0
        %3264 = vmatprep.subr.bf16.mxu0 0
        %3265 = vmatpush1.bf16.msra.mxu0 0
        %3266 = vmatprep.mubr.bf16.mxu0 0
        %3267 = vmatmul.mubr.bf16.gmra.mrb[0].mxu0 %v3233
        %v3268 = vpop.f32.mrb[0].mxu0
        %v3269 = vadd.f32 %v1803, %v3268
        %v3270 = vpop.f32.mrb[0].mxu0
        %v3271 = vadd.f32 %v1807, %v3270
        %v3272 = vpop.f32.mrb[0].mxu0
        %v3273 = vpop.f32.mrb[0].mxu0
        %3274 = vdwg.mxu0
        %3275 = vmatprep.subr.bf16.mxu0 0
        %3276 = vmatpush1.bf16.msra.mxu0 %v1897
        %3277 = vmatprep.subr.bf16.mxu0 0
        %3278 = vmatpush1.bf16.msra.mxu0 %v1900
        %3279 = vmatprep.subr.bf16.mxu0 0
        %3280 = vmatpush1.bf16.msra.mxu0 %v1903
        %3281 = vmatprep.subr.bf16.mxu0 0
        %3282 = vmatpush1.bf16.msra.mxu0 %v1906
        %3283 = vmatprep.subr.bf16.mxu0 0
        %3284 = vmatpush1.bf16.msra.mxu0 %v1909
        %3285 = vmatprep.subr.bf16.mxu0 0
        %3286 = vmatpush1.bf16.msra.mxu0 %v1912
        %3287 = vmatprep.subr.bf16.mxu0 0
        %3288 = vmatpush1.bf16.msra.mxu0 %v1915
        %3289 = vmatprep.subr.bf16.mxu0 0
        %3290 = vmatpush1.bf16.msra.mxu0 %v1918
        %3291 = vmatprep.subr.bf16.mxu0 0
        %3292 = vmatpush1.bf16.msra.mxu0 0
        %3293 = vmatprep.subr.bf16.mxu0 0
        %3294 = vmatpush1.bf16.msra.mxu0 0
        %3295 = vmatprep.subr.bf16.mxu0 0
        %3296 = vmatpush1.bf16.msra.mxu0 0
        %3297 = vmatprep.subr.bf16.mxu0 0
        %3298 = vmatpush1.bf16.msra.mxu0 0
        %3299 = vmatprep.subr.bf16.mxu0 0
        %3300 = vmatpush1.bf16.msra.mxu0 0
        %3301 = vmatprep.subr.bf16.mxu0 0
        %3302 = vmatpush1.bf16.msra.mxu0 0
        %3303 = vmatprep.subr.bf16.mxu0 0
        %3304 = vmatpush1.bf16.msra.mxu0 0
        %3305 = vmatprep.subr.bf16.mxu0 0
        %3306 = vmatpush1.bf16.msra.mxu0 0
        %3307 = vmatprep.mubr.bf16.mxu0 0
        %3308 = vmatmul.mubr.bf16.gmra.mrb[0].mxu0 %v3233
        %v3309 = vpop.f32.mrb[0].mxu0
        %v3310 = vadd.f32 %v1811, %v3309
        %v3311 = vpop.f32.mrb[0].mxu0
        %v3312 = vpop.f32.mrb[0].mxu0
        %v3313 = vpop.f32.mrb[0].mxu0
        %3314 = vdwg.mxu0
        %v3315 = vpack.c.bf16 %v3130, %v3130
        %3316 = vmatprep.subr.bf16.mxu0 %v2121
        %3317 = vmatpush1.bf16.msra.mxu0 %v2120
        %3318 = vmatprep.subr.bf16.mxu0 %v2124
        %3319 = vmatpush1.bf16.msra.mxu0 %v2123
        %3320 = vmatprep.subr.bf16.mxu0 %v2127
        %3321 = vmatpush1.bf16.msra.mxu0 %v2126
        %3322 = vmatprep.subr.bf16.mxu0 %v2130
        %3323 = vmatpush1.bf16.msra.mxu0 %v2129
        %3324 = vmatprep.subr.bf16.mxu0 %v2133
        %3325 = vmatpush1.bf16.msra.mxu0 %v2132
        %3326 = vmatprep.subr.bf16.mxu0 %v2136
        %3327 = vmatpush1.bf16.msra.mxu0 %v2135
        %3328 = vmatprep.subr.bf16.mxu0 %v2139
        %3329 = vmatpush1.bf16.msra.mxu0 %v2138
        %3330 = vmatprep.subr.bf16.mxu0 %v2142
        %3331 = vmatpush1.bf16.msra.mxu0 %v2141
        %3332 = vmatprep.subr.bf16.mxu0 0
        %3333 = vmatpush1.bf16.msra.mxu0 0
        %3334 = vmatprep.subr.bf16.mxu0 0
        %3335 = vmatpush1.bf16.msra.mxu0 0
        %3336 = vmatprep.subr.bf16.mxu0 0
        %3337 = vmatpush1.bf16.msra.mxu0 0
        %3338 = vmatprep.subr.bf16.mxu0 0
        %3339 = vmatpush1.bf16.msra.mxu0 0
        %3340 = vmatprep.subr.bf16.mxu0 0
        %3341 = vmatpush1.bf16.msra.mxu0 0
        %3342 = vmatprep.subr.bf16.mxu0 0
        %3343 = vmatpush1.bf16.msra.mxu0 0
        %3344 = vmatprep.subr.bf16.mxu0 0
        %3345 = vmatpush1.bf16.msra.mxu0 0
        %3346 = vmatprep.subr.bf16.mxu0 0
        %3347 = vmatpush1.bf16.msra.mxu0 0
        %3348 = vmatprep.mubr.bf16.mxu0 0
        %3349 = vmatmul.mubr.bf16.gmra.mrb[0].mxu0 %v3315
        %v3350 = vpop.f32.mrb[0].mxu0
        %v3351 = vadd.f32 %v2028, %v3350
        %v3352 = vpop.f32.mrb[0].mxu0
        %v3353 = vadd.f32 %v2032, %v3352
        %v3354 = vpop.f32.mrb[0].mxu0
        %v3355 = vpop.f32.mrb[0].mxu0
        %3356 = vdwg.mxu0
        %3357 = vmatprep.subr.bf16.mxu0 0
        %3358 = vmatpush1.bf16.msra.mxu0 %v2122
        %3359 = vmatprep.subr.bf16.mxu0 0
        %3360 = vmatpush1.bf16.msra.mxu0 %v2125
        %3361 = vmatprep.subr.bf16.mxu0 0
        %3362 = vmatpush1.bf16.msra.mxu0 %v2128
        %3363 = vmatprep.subr.bf16.mxu0 0
        %3364 = vmatpush1.bf16.msra.mxu0 %v2131
        %3365 = vmatprep.subr.bf16.mxu0 0
        %3366 = vmatpush1.bf16.msra.mxu0 %v2134
        %3367 = vmatprep.subr.bf16.mxu0 0
        %3368 = vmatpush1.bf16.msra.mxu0 %v2137
        %3369 = vmatprep.subr.bf16.mxu0 0
        %3370 = vmatpush1.bf16.msra.mxu0 %v2140
        %3371 = vmatprep.subr.bf16.mxu0 0
        %3372 = vmatpush1.bf16.msra.mxu0 %v2143
        %3373 = vmatprep.subr.bf16.mxu0 0
        %3374 = vmatpush1.bf16.msra.mxu0 0
        %3375 = vmatprep.subr.bf16.mxu0 0
        %3376 = vmatpush1.bf16.msra.mxu0 0
        %3377 = vmatprep.subr.bf16.mxu0 0
        %3378 = vmatpush1.bf16.msra.mxu0 0
        %3379 = vmatprep.subr.bf16.mxu0 0
        %3380 = vmatpush1.bf16.msra.mxu0 0
        %3381 = vmatprep.subr.bf16.mxu0 0
        %3382 = vmatpush1.bf16.msra.mxu0 0
        %3383 = vmatprep.subr.bf16.mxu0 0
        %3384 = vmatpush1.bf16.msra.mxu0 0
        %3385 = vmatprep.subr.bf16.mxu0 0
        %3386 = vmatpush1.bf16.msra.mxu0 0
        %3387 = vmatprep.subr.bf16.mxu0 0
        %3388 = vmatpush1.bf16.msra.mxu0 0
        %3389 = vmatprep.mubr.bf16.mxu0 0
        %3390 = vmatmul.mubr.bf16.gmra.mrb[0].mxu0 %v3315
        %v3391 = vpop.f32.mrb[0].mxu0
        %v3392 = vadd.f32 %v2036, %v3391
        %v3393 = vpop.f32.mrb[0].mxu0
        %v3394 = vpop.f32.mrb[0].mxu0
        %v3395 = vpop.f32.mrb[0].mxu0
        %3396 = vdwg.mxu0
        %v3397 = vadd.f32 %v3269, %v3351
        %v3398 = vxor.u32 %v3397, 2147483648
        %v3399 = vmul.f32 %v3398, 1.442695
        %v3400 = vpow.pop %v3399
        %v3401 = vadd.f32 %v3400, 1.0
        %v3402 = vrcp.pop %v3401
        %v3403 = vmul.f32 1.0, %v3402
        %v3404 = vadd.f32 %v3271, %v3353
        %v3405 = vxor.u32 %v3404, 2147483648
        %v3406 = vmul.f32 %v3405, 1.442695
        %v3407 = vpow.pop %v3406
        %v3408 = vadd.f32 %v3407, 1.0
        %v3409 = vrcp.pop %v3408
        %v3410 = vmul.f32 1.0, %v3409
        %v3411 = vmul.f32 %v3403, %v3392
        %v3412 = vadd.f32 %v3310, %v3411
        %v3413 = vtanh.pop %v3412
        %v3414 = vsub.f32 1.0, %v3410
        %v3415 = vmul.f32 %v3414, %v3413
        %v3416 = vmul.f32 %v3410, %v3130
        %v3417 = vadd.f32 %v3415, %v3416
        %3418 = vmatprep.subr.bf16.mxu0 %v1649
        %3419 = vmatpush1.bf16.msra.mxu0 %v1648
        %3420 = vmatprep.subr.bf16.mxu0 %v1652
        %3421 = vmatpush1.bf16.msra.mxu0 %v1651
        %3422 = vmatprep.subr.bf16.mxu0 %v1655
        %3423 = vmatpush1.bf16.msra.mxu0 %v1654
        %3424 = vmatprep.subr.bf16.mxu0 %v1658
        %3425 = vmatpush1.bf16.msra.mxu0 %v1657
        %3426 = vmatprep.subr.bf16.mxu0 %v1661
        %3427 = vmatpush1.bf16.msra.mxu0 %v1660
        %3428 = vmatprep.subr.bf16.mxu0 %v1664
        %3429 = vmatpush1.bf16.msra.mxu0 %v1663
        %3430 = vmatprep.subr.bf16.mxu0 %v1667
        %3431 = vmatpush1.bf16.msra.mxu0 %v1666
        %3432 = vmatprep.subr.bf16.mxu0 %v1670
        %3433 = vmatpush1.bf16.msra.mxu0 %v1669
        %3434 = vmatprep.subr.bf16.mxu0 0
        %3435 = vmatpush1.bf16.msra.mxu0 0
        %3436 = vmatprep.subr.bf16.mxu0 0
        %3437 = vmatpush1.bf16.msra.mxu0 0
        %3438 = vmatprep.subr.bf16.mxu0 0
        %3439 = vmatpush1.bf16.msra.mxu0 0
        %3440 = vmatprep.subr.bf16.mxu0 0
        %3441 = vmatpush1.bf16.msra.mxu0 0
        %3442 = vmatprep.subr.bf16.mxu0 0
        %3443 = vmatpush1.bf16.msra.mxu0 0
        %3444 = vmatprep.subr.bf16.mxu0 0
        %3445 = vmatpush1.bf16.msra.mxu0 0
        %3446 = vmatprep.subr.bf16.mxu0 0
        %3447 = vmatpush1.bf16.msra.mxu0 0
        %3448 = vmatprep.subr.bf16.mxu0 0
        %3449 = vmatpush1.bf16.msra.mxu0 0
        %3450 = vmatprep.mubr.bf16.mxu0 0
        %3451 = vmatmul.mubr.bf16.gmra.mrb[0].mxu0 %v3233
        %v3452 = vpop.f32.mrb[0].mxu0
        %v3453 = vadd.f32 %v1556, %v3452
        %v3454 = vpop.f32.mrb[0].mxu0
        %v3455 = vadd.f32 %v1560, %v3454
        %v3456 = vpop.f32.mrb[0].mxu0
        %v3457 = vpop.f32.mrb[0].mxu0
        %3458 = vdwg.mxu0
        %3459 = vmatprep.subr.bf16.mxu0 0
        %3460 = vmatpush1.bf16.msra.mxu0 %v1650
        %3461 = vmatprep.subr.bf16.mxu0 0
        %3462 = vmatpush1.bf16.msra.mxu0 %v1653
        %3463 = vmatprep.subr.bf16.mxu0 0
        %3464 = vmatpush1.bf16.msra.mxu0 %v1656
        %3465 = vmatprep.subr.bf16.mxu0 0
        %3466 = vmatpush1.bf16.msra.mxu0 %v1659
        %3467 = vmatprep.subr.bf16.mxu0 0
        %3468 = vmatpush1.bf16.msra.mxu0 %v1662
        %3469 = vmatprep.subr.bf16.mxu0 0
        %3470 = vmatpush1.bf16.msra.mxu0 %v1665
        %3471 = vmatprep.subr.bf16.mxu0 0
        %3472 = vmatpush1.bf16.msra.mxu0 %v1668
        %3473 = vmatprep.subr.bf16.mxu0 0
        %3474 = vmatpush1.bf16.msra.mxu0 %v1671
        %3475 = vmatprep.subr.bf16.mxu0 0
        %3476 = vmatpush1.bf16.msra.mxu0 0
        %3477 = vmatprep.subr.bf16.mxu0 0
        %3478 = vmatpush1.bf16.msra.mxu0 0
        %3479 = vmatprep.subr.bf16.mxu0 0
        %3480 = vmatpush1.bf16.msra.mxu0 0
        %3481 = vmatprep.subr.bf16.mxu0 0
        %3482 = vmatpush1.bf16.msra.mxu0 0
        %3483 = vmatprep.subr.bf16.mxu0 0
        %3484 = vmatpush1.bf16.msra.mxu0 0
        %3485 = vmatprep.subr.bf16.mxu0 0
        %3486 = vmatpush1.bf16.msra.mxu0 0
        %3487 = vmatprep.subr.bf16.mxu0 0
        %3488 = vmatpush1.bf16.msra.mxu0 0
        %3489 = vmatprep.subr.bf16.mxu0 0
        %3490 = vmatpush1.bf16.msra.mxu0 0
        %3491 = vmatprep.mubr.bf16.mxu0 0
        %3492 = vmatmul.mubr.bf16.gmra.mrb[0].mxu0 %v3233
        %v3493 = vpop.f32.mrb[0].mxu0
        %v3494 = vadd.f32 %v1564, %v3493
        %v3495 = vpop.f32.mrb[0].mxu0
        %v3496 = vpop.f32.mrb[0].mxu0
        %v3497 = vpop.f32.mrb[0].mxu0
        %3498 = vdwg.mxu0
        %v3499 = vadd.f32 %v1374, %v3453
        %v3500 = vxor.u32 %v3499, 2147483648
        %v3501 = vmul.f32 %v3500, 1.442695
        %v3502 = vpow.pop %v3501
        %v3503 = vadd.f32 %v3502, 1.0
        %v3504 = vrcp.pop %v3503
        %v3505 = vmul.f32 1.0, %v3504
        %v3506 = vadd.f32 %v1376, %v3455
        %v3507 = vxor.u32 %v3506, 2147483648
        %v3508 = vmul.f32 %v3507, 1.442695
        %v3509 = vpow.pop %v3508
        %v3510 = vadd.f32 %v3509, 1.0
        %v3511 = vrcp.pop %v3510
        %v3512 = vmul.f32 1.0, %v3511
        %v3513 = vmul.f32 %v3505, %v3494
        %v3514 = vadd.f32 %v1442, %v3513
        %v3515 = vtanh.pop %v3514
        %v3516 = vsub.f32 1.0, %v3512
        %v3517 = vmul.f32 %v3516, %v3515
        %v3518 = vmul.f32 %v3512, %v3232
        %v3519 = vadd.f32 %v3517, %v3518
        %v3520 = vpack.c.bf16 %v3519, %v3519
        %3521 = vmatprep.subr.bf16.mxu0 %v1896
        %3522 = vmatpush1.bf16.msra.mxu0 %v1895
        %3523 = vmatprep.subr.bf16.mxu0 %v1899
        %3524 = vmatpush1.bf16.msra.mxu0 %v1898
        %3525 = vmatprep.subr.bf16.mxu0 %v1902
        %3526 = vmatpush1.bf16.msra.mxu0 %v1901
        %3527 = vmatprep.subr.bf16.mxu0 %v1905
        %3528 = vmatpush1.bf16.msra.mxu0 %v1904
        %3529 = vmatprep.subr.bf16.mxu0 %v1908
        %3530 = vmatpush1.bf16.msra.mxu0 %v1907
        %3531 = vmatprep.subr.bf16.mxu0 %v1911
        %3532 = vmatpush1.bf16.msra.mxu0 %v1910
        %3533 = vmatprep.subr.bf16.mxu0 %v1914
        %3534 = vmatpush1.bf16.msra.mxu0 %v1913
        %3535 = vmatprep.subr.bf16.mxu0 %v1917
        %3536 = vmatpush1.bf16.msra.mxu0 %v1916
        %3537 = vmatprep.subr.bf16.mxu0 0
        %3538 = vmatpush1.bf16.msra.mxu0 0
        %3539 = vmatprep.subr.bf16.mxu0 0
        %3540 = vmatpush1.bf16.msra.mxu0 0
        %3541 = vmatprep.subr.bf16.mxu0 0
        %3542 = vmatpush1.bf16.msra.mxu0 0
        %3543 = vmatprep.subr.bf16.mxu0 0
        %3544 = vmatpush1.bf16.msra.mxu0 0
        %3545 = vmatprep.subr.bf16.mxu0 0
        %3546 = vmatpush1.bf16.msra.mxu0 0
        %3547 = vmatprep.subr.bf16.mxu0 0
        %3548 = vmatpush1.bf16.msra.mxu0 0
        %3549 = vmatprep.subr.bf16.mxu0 0
        %3550 = vmatpush1.bf16.msra.mxu0 0
        %3551 = vmatprep.subr.bf16.mxu0 0
        %3552 = vmatpush1.bf16.msra.mxu0 0
        %3553 = vmatprep.mubr.bf16.mxu0 0
        %3554 = vmatmul.mubr.bf16.gmra.mrb[0].mxu0 %v3520
        %v3555 = vpop.f32.mrb[0].mxu0
        %v3556 = vadd.f32 %v1803, %v3555
        %v3557 = vpop.f32.mrb[0].mxu0
        %v3558 = vadd.f32 %v1807, %v3557
        %v3559 = vpop.f32.mrb[0].mxu0
        %v3560 = vpop.f32.mrb[0].mxu0
        %3561 = vdwg.mxu0
        %3562 = vmatprep.subr.bf16.mxu0 0
        %3563 = vmatpush1.bf16.msra.mxu0 %v1897
        %3564 = vmatprep.subr.bf16.mxu0 0
        %3565 = vmatpush1.bf16.msra.mxu0 %v1900
        %3566 = vmatprep.subr.bf16.mxu0 0
        %3567 = vmatpush1.bf16.msra.mxu0 %v1903
        %3568 = vmatprep.subr.bf16.mxu0 0
        %3569 = vmatpush1.bf16.msra.mxu0 %v1906
        %3570 = vmatprep.subr.bf16.mxu0 0
        %3571 = vmatpush1.bf16.msra.mxu0 %v1909
        %3572 = vmatprep.subr.bf16.mxu0 0
        %3573 = vmatpush1.bf16.msra.mxu0 %v1912
        %3574 = vmatprep.subr.bf16.mxu0 0
        %3575 = vmatpush1.bf16.msra.mxu0 %v1915
        %3576 = vmatprep.subr.bf16.mxu0 0
        %3577 = vmatpush1.bf16.msra.mxu0 %v1918
        %3578 = vmatprep.subr.bf16.mxu0 0
        %3579 = vmatpush1.bf16.msra.mxu0 0
        %3580 = vmatprep.subr.bf16.mxu0 0
        %3581 = vmatpush1.bf16.msra.mxu0 0
        %3582 = vmatprep.subr.bf16.mxu0 0
        %3583 = vmatpush1.bf16.msra.mxu0 0
        %3584 = vmatprep.subr.bf16.mxu0 0
        %3585 = vmatpush1.bf16.msra.mxu0 0
        %3586 = vmatprep.subr.bf16.mxu0 0
        %3587 = vmatpush1.bf16.msra.mxu0 0
        %3588 = vmatprep.subr.bf16.mxu0 0
        %3589 = vmatpush1.bf16.msra.mxu0 0
        %3590 = vmatprep.subr.bf16.mxu0 0
        %3591 = vmatpush1.bf16.msra.mxu0 0
        %3592 = vmatprep.subr.bf16.mxu0 0
        %3593 = vmatpush1.bf16.msra.mxu0 0
        %3594 = vmatprep.mubr.bf16.mxu0 0
        %3595 = vmatmul.mubr.bf16.gmra.mrb[0].mxu0 %v3520
        %v3596 = vpop.f32.mrb[0].mxu0
        %v3597 = vadd.f32 %v1811, %v3596
        %v3598 = vpop.f32.mrb[0].mxu0
        %v3599 = vpop.f32.mrb[0].mxu0
        %v3600 = vpop.f32.mrb[0].mxu0
        %3601 = vdwg.mxu0
        %v3602 = vpack.c.bf16 %v3417, %v3417
        %3603 = vmatprep.subr.bf16.mxu0 %v2121
        %3604 = vmatpush1.bf16.msra.mxu0 %v2120
        %3605 = vmatprep.subr.bf16.mxu0 %v2124
        %3606 = vmatpush1.bf16.msra.mxu0 %v2123
        %3607 = vmatprep.subr.bf16.mxu0 %v2127
        %3608 = vmatpush1.bf16.msra.mxu0 %v2126
        %3609 = vmatprep.subr.bf16.mxu0 %v2130
        %3610 = vmatpush1.bf16.msra.mxu0 %v2129
        %3611 = vmatprep.subr.bf16.mxu0 %v2133
        %3612 = vmatpush1.bf16.msra.mxu0 %v2132
        %3613 = vmatprep.subr.bf16.mxu0 %v2136
        %3614 = vmatpush1.bf16.msra.mxu0 %v2135
        %3615 = vmatprep.subr.bf16.mxu0 %v2139
        %3616 = vmatpush1.bf16.msra.mxu0 %v2138
        %3617 = vmatprep.subr.bf16.mxu0 %v2142
        %3618 = vmatpush1.bf16.msra.mxu0 %v2141
        %3619 = vmatprep.subr.bf16.mxu0 0
        %3620 = vmatpush1.bf16.msra.mxu0 0
        %3621 = vmatprep.subr.bf16.mxu0 0
        %3622 = vmatpush1.bf16.msra.mxu0 0
        %3623 = vmatprep.subr.bf16.mxu0 0
        %3624 = vmatpush1.bf16.msra.mxu0 0
        %3625 = vmatprep.subr.bf16.mxu0 0
        %3626 = vmatpush1.bf16.msra.mxu0 0
        %3627 = vmatprep.subr.bf16.mxu0 0
        %3628 = vmatpush1.bf16.msra.mxu0 0
        %3629 = vmatprep.subr.bf16.mxu0 0
        %3630 = vmatpush1.bf16.msra.mxu0 0
        %3631 = vmatprep.subr.bf16.mxu0 0
        %3632 = vmatpush1.bf16.msra.mxu0 0
        %3633 = vmatprep.subr.bf16.mxu0 0
        %3634 = vmatpush1.bf16.msra.mxu0 0
        %3635 = vmatprep.mubr.bf16.mxu0 0
        %3636 = vmatmul.mubr.bf16.gmra.mrb[0].mxu0 %v3602
        %v3637 = vpop.f32.mrb[0].mxu0
        %v3638 = vadd.f32 %v2028, %v3637
        %v3639 = vpop.f32.mrb[0].mxu0
        %v3640 = vadd.f32 %v2032, %v3639
        %v3641 = vpop.f32.mrb[0].mxu0
        %v3642 = vpop.f32.mrb[0].mxu0
        %3643 = vdwg.mxu0
        %3644 = vmatprep.subr.bf16.mxu0 0
        %3645 = vmatpush1.bf16.msra.mxu0 %v2122
        %3646 = vmatprep.subr.bf16.mxu0 0
        %3647 = vmatpush1.bf16.msra.mxu0 %v2125
        %3648 = vmatprep.subr.bf16.mxu0 0
        %3649 = vmatpush1.bf16.msra.mxu0 %v2128
        %3650 = vmatprep.subr.bf16.mxu0 0
        %3651 = vmatpush1.bf16.msra.mxu0 %v2131
        %3652 = vmatprep.subr.bf16.mxu0 0
        %3653 = vmatpush1.bf16.msra.mxu0 %v2134
        %3654 = vmatprep.subr.bf16.mxu0 0
        %3655 = vmatpush1.bf16.msra.mxu0 %v2137
        %3656 = vmatprep.subr.bf16.mxu0 0
        %3657 = vmatpush1.bf16.msra.mxu0 %v2140
        %3658 = vmatprep.subr.bf16.mxu0 0
        %3659 = vmatpush1.bf16.msra.mxu0 %v2143
        %3660 = vmatprep.subr.bf16.mxu0 0
        %3661 = vmatpush1.bf16.msra.mxu0 0
        %3662 = vmatprep.subr.bf16.mxu0 0
        %3663 = vmatpush1.bf16.msra.mxu0 0
        %3664 = vmatprep.subr.bf16.mxu0 0
        %3665 = vmatpush1.bf16.msra.mxu0 0
        %3666 = vmatprep.subr.bf16.mxu0 0
        %3667 = vmatpush1.bf16.msra.mxu0 0
        %3668 = vmatprep.subr.bf16.mxu0 0
        %3669 = vmatpush1.bf16.msra.mxu0 0
        %3670 = vmatprep.subr.bf16.mxu0 0
        %3671 = vmatpush1.bf16.msra.mxu0 0
        %3672 = vmatprep.subr.bf16.mxu0 0
        %3673 = vmatpush1.bf16.msra.mxu0 0
        %3674 = vmatprep.subr.bf16.mxu0 0
        %3675 = vmatpush1.bf16.msra.mxu0 0
        %3676 = vmatprep.mubr.bf16.mxu0 0
        %3677 = vmatmul.mubr.bf16.gmra.mrb[0].mxu0 %v3602
        %v3678 = vpop.f32.mrb[0].mxu0
        %v3679 = vadd.f32 %v2036, %v3678
        %v3680 = vpop.f32.mrb[0].mxu0
        %v3681 = vpop.f32.mrb[0].mxu0
        %v3682 = vpop.f32.mrb[0].mxu0
        %3683 = vdwg.mxu0
        %v3684 = vadd.f32 %v3556, %v3638
        %v3685 = vxor.u32 %v3684, 2147483648
        %v3686 = vmul.f32 %v3685, 1.442695
        %v3687 = vpow.pop %v3686
        %v3688 = vadd.f32 %v3687, 1.0
        %v3689 = vrcp.pop %v3688
        %v3690 = vmul.f32 1.0, %v3689
        %v3691 = vadd.f32 %v3558, %v3640
        %v3692 = vxor.u32 %v3691, 2147483648
        %v3693 = vmul.f32 %v3692, 1.442695
        %v3694 = vpow.pop %v3693
        %v3695 = vadd.f32 %v3694, 1.0
        %v3696 = vrcp.pop %v3695
        %v3697 = vmul.f32 1.0, %v3696
        %v3698 = vmul.f32 %v3690, %v3679
        %v3699 = vadd.f32 %v3597, %v3698
        %v3700 = vtanh.pop %v3699
        %v3701 = vsub.f32 1.0, %v3697
        %v3702 = vmul.f32 %v3701, %v3700
        %v3703 = vmul.f32 %v3697, %v3417
        %v3704 = vadd.f32 %v3702, %v3703
        %3705 = vmatprep.subr.bf16.mxu0 %v1649
        %3706 = vmatpush1.bf16.msra.mxu0 %v1648
        %3707 = vmatprep.subr.bf16.mxu0 %v1652
        %3708 = vmatpush1.bf16.msra.mxu0 %v1651
        %3709 = vmatprep.subr.bf16.mxu0 %v1655
        %3710 = vmatpush1.bf16.msra.mxu0 %v1654
        %3711 = vmatprep.subr.bf16.mxu0 %v1658
        %3712 = vmatpush1.bf16.msra.mxu0 %v1657
        %3713 = vmatprep.subr.bf16.mxu0 %v1661
        %3714 = vmatpush1.bf16.msra.mxu0 %v1660
        %3715 = vmatprep.subr.bf16.mxu0 %v1664
        %3716 = vmatpush1.bf16.msra.mxu0 %v1663
        %3717 = vmatprep.subr.bf16.mxu0 %v1667
        %3718 = vmatpush1.bf16.msra.mxu0 %v1666
        %3719 = vmatprep.subr.bf16.mxu0 %v1670
        %3720 = vmatpush1.bf16.msra.mxu0 %v1669
        %3721 = vmatprep.subr.bf16.mxu0 0
        %3722 = vmatpush1.bf16.msra.mxu0 0
        %3723 = vmatprep.subr.bf16.mxu0 0
        %3724 = vmatpush1.bf16.msra.mxu0 0
        %3725 = vmatprep.subr.bf16.mxu0 0
        %3726 = vmatpush1.bf16.msra.mxu0 0
        %3727 = vmatprep.subr.bf16.mxu0 0
        %3728 = vmatpush1.bf16.msra.mxu0 0
        %3729 = vmatprep.subr.bf16.mxu0 0
        %3730 = vmatpush1.bf16.msra.mxu0 0
        %3731 = vmatprep.subr.bf16.mxu0 0
        %3732 = vmatpush1.bf16.msra.mxu0 0
        %3733 = vmatprep.subr.bf16.mxu0 0
        %3734 = vmatpush1.bf16.msra.mxu0 0
        %3735 = vmatprep.subr.bf16.mxu0 0
        %3736 = vmatpush1.bf16.msra.mxu0 0
        %3737 = vmatprep.mubr.bf16.mxu0 0
        %3738 = vmatmul.mubr.bf16.gmra.mrb[0].mxu0 %v3520
        %v3739 = vpop.f32.mrb[0].mxu0
        %v3740 = vadd.f32 %v1556, %v3739
        %v3741 = vpop.f32.mrb[0].mxu0
        %v3742 = vadd.f32 %v1560, %v3741
        %v3743 = vpop.f32.mrb[0].mxu0
        %v3744 = vpop.f32.mrb[0].mxu0
        %3745 = vdwg.mxu0
        %3746 = vmatprep.subr.bf16.mxu0 0
        %3747 = vmatpush1.bf16.msra.mxu0 %v1650
        %3748 = vmatprep.subr.bf16.mxu0 0
        %3749 = vmatpush1.bf16.msra.mxu0 %v1653
        %3750 = vmatprep.subr.bf16.mxu0 0
        %3751 = vmatpush1.bf16.msra.mxu0 %v1656
        %3752 = vmatprep.subr.bf16.mxu0 0
        %3753 = vmatpush1.bf16.msra.mxu0 %v1659
        %3754 = vmatprep.subr.bf16.mxu0 0
        %3755 = vmatpush1.bf16.msra.mxu0 %v1662
        %3756 = vmatprep.subr.bf16.mxu0 0
        %3757 = vmatpush1.bf16.msra.mxu0 %v1665
        %3758 = vmatprep.subr.bf16.mxu0 0
        %3759 = vmatpush1.bf16.msra.mxu0 %v1668
        %3760 = vmatprep.subr.bf16.mxu0 0
        %3761 = vmatpush1.bf16.msra.mxu0 %v1671
        %3762 = vmatprep.subr.bf16.mxu0 0
        %3763 = vmatpush1.bf16.msra.mxu0 0
        %3764 = vmatprep.subr.bf16.mxu0 0
        %3765 = vmatpush1.bf16.msra.mxu0 0
        %3766 = vmatprep.subr.bf16.mxu0 0
        %3767 = vmatpush1.bf16.msra.mxu0 0
        %3768 = vmatprep.subr.bf16.mxu0 0
        %3769 = vmatpush1.bf16.msra.mxu0 0
        %3770 = vmatprep.subr.bf16.mxu0 0
        %3771 = vmatpush1.bf16.msra.mxu0 0
        %3772 = vmatprep.subr.bf16.mxu0 0
        %3773 = vmatpush1.bf16.msra.mxu0 0
        %3774 = vmatprep.subr.bf16.mxu0 0
        %3775 = vmatpush1.bf16.msra.mxu0 0
        %3776 = vmatprep.subr.bf16.mxu0 0
        %3777 = vmatpush1.bf16.msra.mxu0 0
        %3778 = vmatprep.mubr.bf16.mxu0 0
        %3779 = vmatmul.mubr.bf16.gmra.mrb[0].mxu0 %v3520
        %v3780 = vpop.f32.mrb[0].mxu0
        %v3781 = vadd.f32 %v1564, %v3780
        %v3782 = vpop.f32.mrb[0].mxu0
        %v3783 = vpop.f32.mrb[0].mxu0
        %v3784 = vpop.f32.mrb[0].mxu0
        %3785 = vdwg.mxu0
        %v3786 = vadd.f32 %v1380, %v3740
        %v3787 = vxor.u32 %v3786, 2147483648
        %v3788 = vmul.f32 %v3787, 1.442695
        %v3789 = vpow.pop %v3788
        %v3790 = vadd.f32 %v3789, 1.0
        %v3791 = vrcp.pop %v3790
        %v3792 = vmul.f32 1.0, %v3791
        %v3793 = vadd.f32 %v1382, %v3742
        %v3794 = vxor.u32 %v3793, 2147483648
        %v3795 = vmul.f32 %v3794, 1.442695
        %v3796 = vpow.pop %v3795
        %v3797 = vadd.f32 %v3796, 1.0
        %v3798 = vrcp.pop %v3797
        %v3799 = vmul.f32 1.0, %v3798
        %v3800 = vmul.f32 %v3792, %v3781
        %v3801 = vadd.f32 %v1447, %v3800
        %v3802 = vtanh.pop %v3801
        %v3803 = vsub.f32 1.0, %v3799
        %v3804 = vmul.f32 %v3803, %v3802
        %v3805 = vmul.f32 %v3799, %v3519
        %v3806 = vadd.f32 %v3804, %v3805
        %v3807 = vpack.c.bf16 %v3806, %v3806
        %3808 = vmatprep.subr.bf16.mxu0 %v1896
        %3809 = vmatpush1.bf16.msra.mxu0 %v1895
        %3810 = vmatprep.subr.bf16.mxu0 %v1899
        %3811 = vmatpush1.bf16.msra.mxu0 %v1898
        %3812 = vmatprep.subr.bf16.mxu0 %v1902
        %3813 = vmatpush1.bf16.msra.mxu0 %v1901
        %3814 = vmatprep.subr.bf16.mxu0 %v1905
        %3815 = vmatpush1.bf16.msra.mxu0 %v1904
        %3816 = vmatprep.subr.bf16.mxu0 %v1908
        %3817 = vmatpush1.bf16.msra.mxu0 %v1907
        %3818 = vmatprep.subr.bf16.mxu0 %v1911
        %3819 = vmatpush1.bf16.msra.mxu0 %v1910
        %3820 = vmatprep.subr.bf16.mxu0 %v1914
        %3821 = vmatpush1.bf16.msra.mxu0 %v1913
        %3822 = vmatprep.subr.bf16.mxu0 %v1917
        %3823 = vmatpush1.bf16.msra.mxu0 %v1916
        %3824 = vmatprep.subr.bf16.mxu0 0
        %3825 = vmatpush1.bf16.msra.mxu0 0
        %3826 = vmatprep.subr.bf16.mxu0 0
        %3827 = vmatpush1.bf16.msra.mxu0 0
        %3828 = vmatprep.subr.bf16.mxu0 0
        %3829 = vmatpush1.bf16.msra.mxu0 0
        %3830 = vmatprep.subr.bf16.mxu0 0
        %3831 = vmatpush1.bf16.msra.mxu0 0
        %3832 = vmatprep.subr.bf16.mxu0 0
        %3833 = vmatpush1.bf16.msra.mxu0 0
        %3834 = vmatprep.subr.bf16.mxu0 0
        %3835 = vmatpush1.bf16.msra.mxu0 0
        %3836 = vmatprep.subr.bf16.mxu0 0
        %3837 = vmatpush1.bf16.msra.mxu0 0
        %3838 = vmatprep.subr.bf16.mxu0 0
        %3839 = vmatpush1.bf16.msra.mxu0 0
        %3840 = vmatprep.mubr.bf16.mxu0 0
        %3841 = vmatmul.mubr.bf16.gmra.mrb[0].mxu0 %v3807
        %v3842 = vpop.f32.mrb[0].mxu0
        %v3843 = vadd.f32 %v1803, %v3842
        %v3844 = vpop.f32.mrb[0].mxu0
        %v3845 = vadd.f32 %v1807, %v3844
        %v3846 = vpop.f32.mrb[0].mxu0
        %v3847 = vpop.f32.mrb[0].mxu0
        %3848 = vdwg.mxu0
        %3849 = vmatprep.subr.bf16.mxu0 0
        %3850 = vmatpush1.bf16.msra.mxu0 %v1897
        %3851 = vmatprep.subr.bf16.mxu0 0
        %3852 = vmatpush1.bf16.msra.mxu0 %v1900
        %3853 = vmatprep.subr.bf16.mxu0 0
        %3854 = vmatpush1.bf16.msra.mxu0 %v1903
        %3855 = vmatprep.subr.bf16.mxu0 0
        %3856 = vmatpush1.bf16.msra.mxu0 %v1906
        %3857 = vmatprep.subr.bf16.mxu0 0
        %3858 = vmatpush1.bf16.msra.mxu0 %v1909
        %3859 = vmatprep.subr.bf16.mxu0 0
        %3860 = vmatpush1.bf16.msra.mxu0 %v1912
        %3861 = vmatprep.subr.bf16.mxu0 0
        %3862 = vmatpush1.bf16.msra.mxu0 %v1915
        %3863 = vmatprep.subr.bf16.mxu0 0
        %3864 = vmatpush1.bf16.msra.mxu0 %v1918
        %3865 = vmatprep.subr.bf16.mxu0 0
        %3866 = vmatpush1.bf16.msra.mxu0 0
        %3867 = vmatprep.subr.bf16.mxu0 0
        %3868 = vmatpush1.bf16.msra.mxu0 0
        %3869 = vmatprep.subr.bf16.mxu0 0
        %3870 = vmatpush1.bf16.msra.mxu0 0
        %3871 = vmatprep.subr.bf16.mxu0 0
        %3872 = vmatpush1.bf16.msra.mxu0 0
        %3873 = vmatprep.subr.bf16.mxu0 0
        %3874 = vmatpush1.bf16.msra.mxu0 0
        %3875 = vmatprep.subr.bf16.mxu0 0
        %3876 = vmatpush1.bf16.msra.mxu0 0
        %3877 = vmatprep.subr.bf16.mxu0 0
        %3878 = vmatpush1.bf16.msra.mxu0 0
        %3879 = vmatprep.subr.bf16.mxu0 0
        %3880 = vmatpush1.bf16.msra.mxu0 0
        %3881 = vmatprep.mubr.bf16.mxu0 0
        %3882 = vmatmul.mubr.bf16.gmra.mrb[0].mxu0 %v3807
        %v3883 = vpop.f32.mrb[0].mxu0
        %v3884 = vadd.f32 %v1811, %v3883
        %v3885 = vpop.f32.mrb[0].mxu0
        %v3886 = vpop.f32.mrb[0].mxu0
        %v3887 = vpop.f32.mrb[0].mxu0
        %3888 = vdwg.mxu0
        %v3889 = vpack.c.bf16 %v3704, %v3704
        %3890 = vmatprep.subr.bf16.mxu0 %v2121
        %3891 = vmatpush1.bf16.msra.mxu0 %v2120
        %3892 = vmatprep.subr.bf16.mxu0 %v2124
        %3893 = vmatpush1.bf16.msra.mxu0 %v2123
        %3894 = vmatprep.subr.bf16.mxu0 %v2127
        %3895 = vmatpush1.bf16.msra.mxu0 %v2126
        %3896 = vmatprep.subr.bf16.mxu0 %v2130
        %3897 = vmatpush1.bf16.msra.mxu0 %v2129
        %3898 = vmatprep.subr.bf16.mxu0 %v2133
        %3899 = vmatpush1.bf16.msra.mxu0 %v2132
        %3900 = vmatprep.subr.bf16.mxu0 %v2136
        %3901 = vmatpush1.bf16.msra.mxu0 %v2135
        %3902 = vmatprep.subr.bf16.mxu0 %v2139
        %3903 = vmatpush1.bf16.msra.mxu0 %v2138
        %3904 = vmatprep.subr.bf16.mxu0 %v2142
        %3905 = vmatpush1.bf16.msra.mxu0 %v2141
        %3906 = vmatprep.subr.bf16.mxu0 0
        %3907 = vmatpush1.bf16.msra.mxu0 0
        %3908 = vmatprep.subr.bf16.mxu0 0
        %3909 = vmatpush1.bf16.msra.mxu0 0
        %3910 = vmatprep.subr.bf16.mxu0 0
        %3911 = vmatpush1.bf16.msra.mxu0 0
        %3912 = vmatprep.subr.bf16.mxu0 0
        %3913 = vmatpush1.bf16.msra.mxu0 0
        %3914 = vmatprep.subr.bf16.mxu0 0
        %3915 = vmatpush1.bf16.msra.mxu0 0
        %3916 = vmatprep.subr.bf16.mxu0 0
        %3917 = vmatpush1.bf16.msra.mxu0 0
        %3918 = vmatprep.subr.bf16.mxu0 0
        %3919 = vmatpush1.bf16.msra.mxu0 0
        %3920 = vmatprep.subr.bf16.mxu0 0
        %3921 = vmatpush1.bf16.msra.mxu0 0
        %3922 = vmatprep.mubr.bf16.mxu0 0
        %3923 = vmatmul.mubr.bf16.gmra.mrb[0].mxu0 %v3889
        %v3924 = vpop.f32.mrb[0].mxu0
        %v3925 = vadd.f32 %v2028, %v3924
        %v3926 = vpop.f32.mrb[0].mxu0
        %v3927 = vadd.f32 %v2032, %v3926
        %v3928 = vpop.f32.mrb[0].mxu0
        %v3929 = vpop.f32.mrb[0].mxu0
        %3930 = vdwg.mxu0
        %3931 = vmatprep.subr.bf16.mxu0 0
        %3932 = vmatpush1.bf16.msra.mxu0 %v2122
        %3933 = vmatprep.subr.bf16.mxu0 0
        %3934 = vmatpush1.bf16.msra.mxu0 %v2125
        %3935 = vmatprep.subr.bf16.mxu0 0
        %3936 = vmatpush1.bf16.msra.mxu0 %v2128
        %3937 = vmatprep.subr.bf16.mxu0 0
        %3938 = vmatpush1.bf16.msra.mxu0 %v2131
        %3939 = vmatprep.subr.bf16.mxu0 0
        %3940 = vmatpush1.bf16.msra.mxu0 %v2134
        %3941 = vmatprep.subr.bf16.mxu0 0
        %3942 = vmatpush1.bf16.msra.mxu0 %v2137
        %3943 = vmatprep.subr.bf16.mxu0 0
        %3944 = vmatpush1.bf16.msra.mxu0 %v2140
        %3945 = vmatprep.subr.bf16.mxu0 0
        %3946 = vmatpush1.bf16.msra.mxu0 %v2143
        %3947 = vmatprep.subr.bf16.mxu0 0
        %3948 = vmatpush1.bf16.msra.mxu0 0
        %3949 = vmatprep.subr.bf16.mxu0 0
        %3950 = vmatpush1.bf16.msra.mxu0 0
        %3951 = vmatprep.subr.bf16.mxu0 0
        %3952 = vmatpush1.bf16.msra.mxu0 0
        %3953 = vmatprep.subr.bf16.mxu0 0
        %3954 = vmatpush1.bf16.msra.mxu0 0
        %3955 = vmatprep.subr.bf16.mxu0 0
        %3956 = vmatpush1.bf16.msra.mxu0 0
        %3957 = vmatprep.subr.bf16.mxu0 0
        %3958 = vmatpush1.bf16.msra.mxu0 0
        %3959 = vmatprep.subr.bf16.mxu0 0
        %3960 = vmatpush1.bf16.msra.mxu0 0
        %3961 = vmatprep.subr.bf16.mxu0 0
        %3962 = vmatpush1.bf16.msra.mxu0 0
        %3963 = vmatprep.mubr.bf16.mxu0 0
        %3964 = vmatmul.mubr.bf16.gmra.mrb[0].mxu0 %v3889
        %v3965 = vpop.f32.mrb[0].mxu0
        %v3966 = vadd.f32 %v2036, %v3965
        %v3967 = vpop.f32.mrb[0].mxu0
        %v3968 = vpop.f32.mrb[0].mxu0
        %v3969 = vpop.f32.mrb[0].mxu0
        %3970 = vdwg.mxu0
        %v3971 = vadd.f32 %v3843, %v3925
        %v3972 = vxor.u32 %v3971, 2147483648
        %v3973 = vmul.f32 %v3972, 1.442695
        %v3974 = vpow.pop %v3973
        %v3975 = vadd.f32 %v3974, 1.0
        %v3976 = vrcp.pop %v3975
        %v3977 = vmul.f32 1.0, %v3976
        %v3978 = vadd.f32 %v3845, %v3927
        %v3979 = vxor.u32 %v3978, 2147483648
        %v3980 = vmul.f32 %v3979, 1.442695
        %v3981 = vpow.pop %v3980
        %v3982 = vadd.f32 %v3981, 1.0
        %v3983 = vrcp.pop %v3982
        %v3984 = vmul.f32 1.0, %v3983
        %v3985 = vmul.f32 %v3977, %v3966
        %v3986 = vadd.f32 %v3884, %v3985
        %v3987 = vtanh.pop %v3986
        %v3988 = vsub.f32 1.0, %v3984
        %v3989 = vmul.f32 %v3988, %v3987
        %v3990 = vmul.f32 %v3984, %v3704
        %v3991 = vadd.f32 %v3989, %v3990
        %3992 = vmatprep.subr.bf16.mxu0 %v1649
        %3993 = vmatpush1.bf16.msra.mxu0 %v1648
        %3994 = vmatprep.subr.bf16.mxu0 %v1652
        %3995 = vmatpush1.bf16.msra.mxu0 %v1651
        %3996 = vmatprep.subr.bf16.mxu0 %v1655
        %3997 = vmatpush1.bf16.msra.mxu0 %v1654
        %3998 = vmatprep.subr.bf16.mxu0 %v1658
        %3999 = vmatpush1.bf16.msra.mxu0 %v1657
        %4000 = vmatprep.subr.bf16.mxu0 %v1661
        %4001 = vmatpush1.bf16.msra.mxu0 %v1660
        %4002 = vmatprep.subr.bf16.mxu0 %v1664
        %4003 = vmatpush1.bf16.msra.mxu0 %v1663
        %4004 = vmatprep.subr.bf16.mxu0 %v1667
        %4005 = vmatpush1.bf16.msra.mxu0 %v1666
        %4006 = vmatprep.subr.bf16.mxu0 %v1670
        %4007 = vmatpush1.bf16.msra.mxu0 %v1669
        %4008 = vmatprep.subr.bf16.mxu0 0
        %4009 = vmatpush1.bf16.msra.mxu0 0
        %4010 = vmatprep.subr.bf16.mxu0 0
        %4011 = vmatpush1.bf16.msra.mxu0 0
        %4012 = vmatprep.subr.bf16.mxu0 0
        %4013 = vmatpush1.bf16.msra.mxu0 0
        %4014 = vmatprep.subr.bf16.mxu0 0
        %4015 = vmatpush1.bf16.msra.mxu0 0
        %4016 = vmatprep.subr.bf16.mxu0 0
        %4017 = vmatpush1.bf16.msra.mxu0 0
        %4018 = vmatprep.subr.bf16.mxu0 0
        %4019 = vmatpush1.bf16.msra.mxu0 0
        %4020 = vmatprep.subr.bf16.mxu0 0
        %4021 = vmatpush1.bf16.msra.mxu0 0
        %4022 = vmatprep.subr.bf16.mxu0 0
        %4023 = vmatpush1.bf16.msra.mxu0 0
        %4024 = vmatprep.mubr.bf16.mxu0 0
        %4025 = vmatmul.mubr.bf16.gmra.mrb[0].mxu0 %v3807
        %v4026 = vpop.f32.mrb[0].mxu0
        %v4027 = vadd.f32 %v1556, %v4026
        %v4028 = vpop.f32.mrb[0].mxu0
        %v4029 = vadd.f32 %v1560, %v4028
        %v4030 = vpop.f32.mrb[0].mxu0
        %v4031 = vpop.f32.mrb[0].mxu0
        %4032 = vdwg.mxu0
        %4033 = vmatprep.subr.bf16.mxu0 0
        %4034 = vmatpush1.bf16.msra.mxu0 %v1650
        %4035 = vmatprep.subr.bf16.mxu0 0
        %4036 = vmatpush1.bf16.msra.mxu0 %v1653
        %4037 = vmatprep.subr.bf16.mxu0 0
        %4038 = vmatpush1.bf16.msra.mxu0 %v1656
        %4039 = vmatprep.subr.bf16.mxu0 0
        %4040 = vmatpush1.bf16.msra.mxu0 %v1659
        %4041 = vmatprep.subr.bf16.mxu0 0
        %4042 = vmatpush1.bf16.msra.mxu0 %v1662
        %4043 = vmatprep.subr.bf16.mxu0 0
        %4044 = vmatpush1.bf16.msra.mxu0 %v1665
        %4045 = vmatprep.subr.bf16.mxu0 0
        %4046 = vmatpush1.bf16.msra.mxu0 %v1668
        %4047 = vmatprep.subr.bf16.mxu0 0
        %4048 = vmatpush1.bf16.msra.mxu0 %v1671
        %4049 = vmatprep.subr.bf16.mxu0 0
        %4050 = vmatpush1.bf16.msra.mxu0 0
        %4051 = vmatprep.subr.bf16.mxu0 0
        %4052 = vmatpush1.bf16.msra.mxu0 0
        %4053 = vmatprep.subr.bf16.mxu0 0
        %4054 = vmatpush1.bf16.msra.mxu0 0
        %4055 = vmatprep.subr.bf16.mxu0 0
        %4056 = vmatpush1.bf16.msra.mxu0 0
        %4057 = vmatprep.subr.bf16.mxu0 0
        %4058 = vmatpush1.bf16.msra.mxu0 0
        %4059 = vmatprep.subr.bf16.mxu0 0
        %4060 = vmatpush1.bf16.msra.mxu0 0
        %4061 = vmatprep.subr.bf16.mxu0 0
        %4062 = vmatpush1.bf16.msra.mxu0 0
        %4063 = vmatprep.subr.bf16.mxu0 0
        %4064 = vmatpush1.bf16.msra.mxu0 0
        %4065 = vmatprep.mubr.bf16.mxu0 0
        %4066 = vmatmul.mubr.bf16.gmra.mrb[0].mxu0 %v3807
        %v4067 = vpop.f32.mrb[0].mxu0
        %v4068 = vadd.f32 %v1564, %v4067
        %v4069 = vpop.f32.mrb[0].mxu0
        %v4070 = vpop.f32.mrb[0].mxu0
        %v4071 = vpop.f32.mrb[0].mxu0
        %4072 = vdwg.mxu0
        %v4073 = vadd.f32 %v1384, %v4027
        %v4074 = vxor.u32 %v4073, 2147483648
        %v4075 = vmul.f32 %v4074, 1.442695
        %v4076 = vpow.pop %v4075
        %v4077 = vadd.f32 %v4076, 1.0
        %v4078 = vrcp.pop %v4077
        %v4079 = vmul.f32 1.0, %v4078
        %v4080 = vadd.f32 %v1386, %v4029
        %v4081 = vxor.u32 %v4080, 2147483648
        %v4082 = vmul.f32 %v4081, 1.442695
        %v4083 = vpow.pop %v4082
        %v4084 = vadd.f32 %v4083, 1.0
        %v4085 = vrcp.pop %v4084
        %v4086 = vmul.f32 1.0, %v4085
        %v4087 = vmul.f32 %v4079, %v4068
        %v4088 = vadd.f32 %v1450, %v4087
        %v4089 = vtanh.pop %v4088
        %v4090 = vsub.f32 1.0, %v4086
        %v4091 = vmul.f32 %v4090, %v4089
        %v4092 = vmul.f32 %v4086, %v3806
        %v4093 = vadd.f32 %v4091, %v4092
        %v4094 = vpack.c.bf16 %v4093, %v4093
        %4095 = vmatprep.subr.bf16.mxu0 %v1896
        %4096 = vmatpush1.bf16.msra.mxu0 %v1895
        %4097 = vmatprep.subr.bf16.mxu0 %v1899
        %4098 = vmatpush1.bf16.msra.mxu0 %v1898
        %4099 = vmatprep.subr.bf16.mxu0 %v1902
        %4100 = vmatpush1.bf16.msra.mxu0 %v1901
        %4101 = vmatprep.subr.bf16.mxu0 %v1905
        %4102 = vmatpush1.bf16.msra.mxu0 %v1904
        %4103 = vmatprep.subr.bf16.mxu0 %v1908
        %4104 = vmatpush1.bf16.msra.mxu0 %v1907
        %4105 = vmatprep.subr.bf16.mxu0 %v1911
        %4106 = vmatpush1.bf16.msra.mxu0 %v1910
        %4107 = vmatprep.subr.bf16.mxu0 %v1914
        %4108 = vmatpush1.bf16.msra.mxu0 %v1913
        %4109 = vmatprep.subr.bf16.mxu0 %v1917
        %4110 = vmatpush1.bf16.msra.mxu0 %v1916
        %4111 = vmatprep.subr.bf16.mxu0 0
        %4112 = vmatpush1.bf16.msra.mxu0 0
        %4113 = vmatprep.subr.bf16.mxu0 0
        %4114 = vmatpush1.bf16.msra.mxu0 0
        %4115 = vmatprep.subr.bf16.mxu0 0
        %4116 = vmatpush1.bf16.msra.mxu0 0
        %4117 = vmatprep.subr.bf16.mxu0 0
        %4118 = vmatpush1.bf16.msra.mxu0 0
        %4119 = vmatprep.subr.bf16.mxu0 0
        %4120 = vmatpush1.bf16.msra.mxu0 0
        %4121 = vmatprep.subr.bf16.mxu0 0
        %4122 = vmatpush1.bf16.msra.mxu0 0
        %4123 = vmatprep.subr.bf16.mxu0 0
        %4124 = vmatpush1.bf16.msra.mxu0 0
        %4125 = vmatprep.subr.bf16.mxu0 0
        %4126 = vmatpush1.bf16.msra.mxu0 0
        %4127 = vmatprep.mubr.bf16.mxu0 0
        %4128 = vmatmul.mubr.bf16.gmra.mrb[0].mxu0 %v4094
        %v4129 = vpop.f32.mrb[0].mxu0
        %v4130 = vadd.f32 %v1803, %v4129
        %v4131 = vpop.f32.mrb[0].mxu0
        %v4132 = vadd.f32 %v1807, %v4131
        %v4133 = vpop.f32.mrb[0].mxu0
        %v4134 = vpop.f32.mrb[0].mxu0
        %4135 = vdwg.mxu0
        %4136 = vmatprep.subr.bf16.mxu0 0
        %4137 = vmatpush1.bf16.msra.mxu0 %v1897
        %4138 = vmatprep.subr.bf16.mxu0 0
        %4139 = vmatpush1.bf16.msra.mxu0 %v1900
        %4140 = vmatprep.subr.bf16.mxu0 0
        %4141 = vmatpush1.bf16.msra.mxu0 %v1903
        %4142 = vmatprep.subr.bf16.mxu0 0
        %4143 = vmatpush1.bf16.msra.mxu0 %v1906
        %4144 = vmatprep.subr.bf16.mxu0 0
        %4145 = vmatpush1.bf16.msra.mxu0 %v1909
        %4146 = vmatprep.subr.bf16.mxu0 0
        %4147 = vmatpush1.bf16.msra.mxu0 %v1912
        %4148 = vmatprep.subr.bf16.mxu0 0
        %4149 = vmatpush1.bf16.msra.mxu0 %v1915
        %4150 = vmatprep.subr.bf16.mxu0 0
        %4151 = vmatpush1.bf16.msra.mxu0 %v1918
        %4152 = vmatprep.subr.bf16.mxu0 0
        %4153 = vmatpush1.bf16.msra.mxu0 0
        %4154 = vmatprep.subr.bf16.mxu0 0
        %4155 = vmatpush1.bf16.msra.mxu0 0
        %4156 = vmatprep.subr.bf16.mxu0 0
        %4157 = vmatpush1.bf16.msra.mxu0 0
        %4158 = vmatprep.subr.bf16.mxu0 0
        %4159 = vmatpush1.bf16.msra.mxu0 0
        %4160 = vmatprep.subr.bf16.mxu0 0
        %4161 = vmatpush1.bf16.msra.mxu0 0
        %4162 = vmatprep.subr.bf16.mxu0 0
        %4163 = vmatpush1.bf16.msra.mxu0 0
        %4164 = vmatprep.subr.bf16.mxu0 0
        %4165 = vmatpush1.bf16.msra.mxu0 0
        %4166 = vmatprep.subr.bf16.mxu0 0
        %4167 = vmatpush1.bf16.msra.mxu0 0
        %4168 = vmatprep.mubr.bf16.mxu0 0
        %4169 = vmatmul.mubr.bf16.gmra.mrb[0].mxu0 %v4094
        %v4170 = vpop.f32.mrb[0].mxu0
        %v4171 = vadd.f32 %v1811, %v4170
        %v4172 = vpop.f32.mrb[0].mxu0
        %v4173 = vpop.f32.mrb[0].mxu0
        %v4174 = vpop.f32.mrb[0].mxu0
        %4175 = vdwg.mxu0
        %v4176 = vpack.c.bf16 %v3991, %v3991
        %4177 = vmatprep.subr.bf16.mxu0 %v2121
        %4178 = vmatpush1.bf16.msra.mxu0 %v2120
        %4179 = vmatprep.subr.bf16.mxu0 %v2124
        %4180 = vmatpush1.bf16.msra.mxu0 %v2123
        %4181 = vmatprep.subr.bf16.mxu0 %v2127
        %4182 = vmatpush1.bf16.msra.mxu0 %v2126
        %4183 = vmatprep.subr.bf16.mxu0 %v2130
        %4184 = vmatpush1.bf16.msra.mxu0 %v2129
        %4185 = vmatprep.subr.bf16.mxu0 %v2133
        %4186 = vmatpush1.bf16.msra.mxu0 %v2132
        %4187 = vmatprep.subr.bf16.mxu0 %v2136
        %4188 = vmatpush1.bf16.msra.mxu0 %v2135
        %4189 = vmatprep.subr.bf16.mxu0 %v2139
        %4190 = vmatpush1.bf16.msra.mxu0 %v2138
        %4191 = vmatprep.subr.bf16.mxu0 %v2142
        %4192 = vmatpush1.bf16.msra.mxu0 %v2141
        %4193 = vmatprep.subr.bf16.mxu0 0
        %4194 = vmatpush1.bf16.msra.mxu0 0
        %4195 = vmatprep.subr.bf16.mxu0 0
        %4196 = vmatpush1.bf16.msra.mxu0 0
        %4197 = vmatprep.subr.bf16.mxu0 0
        %4198 = vmatpush1.bf16.msra.mxu0 0
        %4199 = vmatprep.subr.bf16.mxu0 0
        %4200 = vmatpush1.bf16.msra.mxu0 0
        %4201 = vmatprep.subr.bf16.mxu0 0
        %4202 = vmatpush1.bf16.msra.mxu0 0
        %4203 = vmatprep.subr.bf16.mxu0 0
        %4204 = vmatpush1.bf16.msra.mxu0 0
        %4205 = vmatprep.subr.bf16.mxu0 0
        %4206 = vmatpush1.bf16.msra.mxu0 0
        %4207 = vmatprep.subr.bf16.mxu0 0
        %4208 = vmatpush1.bf16.msra.mxu0 0
        %4209 = vmatprep.mubr.bf16.mxu0 0
        %4210 = vmatmul.mubr.bf16.gmra.mrb[0].mxu0 %v4176
        %v4211 = vpop.f32.mrb[0].mxu0
        %v4212 = vadd.f32 %v2028, %v4211
        %v4213 = vpop.f32.mrb[0].mxu0
        %v4214 = vadd.f32 %v2032, %v4213
        %v4215 = vpop.f32.mrb[0].mxu0
        %v4216 = vpop.f32.mrb[0].mxu0
        %4217 = vdwg.mxu0
        %4218 = vmatprep.subr.bf16.mxu0 0
        %4219 = vmatpush1.bf16.msra.mxu0 %v2122
        %4220 = vmatprep.subr.bf16.mxu0 0
        %4221 = vmatpush1.bf16.msra.mxu0 %v2125
        %4222 = vmatprep.subr.bf16.mxu0 0
        %4223 = vmatpush1.bf16.msra.mxu0 %v2128
        %4224 = vmatprep.subr.bf16.mxu0 0
        %4225 = vmatpush1.bf16.msra.mxu0 %v2131
        %4226 = vmatprep.subr.bf16.mxu0 0
        %4227 = vmatpush1.bf16.msra.mxu0 %v2134
        %4228 = vmatprep.subr.bf16.mxu0 0
        %4229 = vmatpush1.bf16.msra.mxu0 %v2137
        %4230 = vmatprep.subr.bf16.mxu0 0
        %4231 = vmatpush1.bf16.msra.mxu0 %v2140
        %4232 = vmatprep.subr.bf16.mxu0 0
        %4233 = vmatpush1.bf16.msra.mxu0 %v2143
        %4234 = vmatprep.subr.bf16.mxu0 0
        %4235 = vmatpush1.bf16.msra.mxu0 0
        %4236 = vmatprep.subr.bf16.mxu0 0
        %4237 = vmatpush1.bf16.msra.mxu0 0
        %4238 = vmatprep.subr.bf16.mxu0 0
        %4239 = vmatpush1.bf16.msra.mxu0 0
        %4240 = vmatprep.subr.bf16.mxu0 0
        %4241 = vmatpush1.bf16.msra.mxu0 0
        %4242 = vmatprep.subr.bf16.mxu0 0
        %4243 = vmatpush1.bf16.msra.mxu0 0
        %4244 = vmatprep.subr.bf16.mxu0 0
        %4245 = vmatpush1.bf16.msra.mxu0 0
        %4246 = vmatprep.subr.bf16.mxu0 0
        %4247 = vmatpush1.bf16.msra.mxu0 0
        %4248 = vmatprep.subr.bf16.mxu0 0
        %4249 = vmatpush1.bf16.msra.mxu0 0
        %4250 = vmatprep.mubr.bf16.mxu0 0
        %4251 = vmatmul.mubr.bf16.gmra.mrb[0].mxu0 %v4176
        %v4252 = vpop.f32.mrb[0].mxu0
        %v4253 = vadd.f32 %v2036, %v4252
        %v4254 = vpop.f32.mrb[0].mxu0
        %v4255 = vpop.f32.mrb[0].mxu0
        %v4256 = vpop.f32.mrb[0].mxu0
        %4257 = vdwg.mxu0
        %v4258 = vadd.f32 %v4130, %v4212
        %v4259 = vxor.u32 %v4258, 2147483648
        %v4260 = vmul.f32 %v4259, 1.442695
        %v4261 = vpow.pop %v4260
        %v4262 = vadd.f32 %v4261, 1.0
        %v4263 = vrcp.pop %v4262
        %v4264 = vmul.f32 1.0, %v4263
        %v4265 = vadd.f32 %v4132, %v4214
        %v4266 = vxor.u32 %v4265, 2147483648
        %v4267 = vmul.f32 %v4266, 1.442695
        %v4268 = vpow.pop %v4267
        %v4269 = vadd.f32 %v4268, 1.0
        %v4270 = vrcp.pop %v4269
        %v4271 = vmul.f32 1.0, %v4270
        %v4272 = vmul.f32 %v4264, %v4253
        %v4273 = vadd.f32 %v4171, %v4272
        %v4274 = vtanh.pop %v4273
        %v4275 = vsub.f32 1.0, %v4271
        %v4276 = vmul.f32 %v4275, %v4274
        %v4277 = vmul.f32 %v4271, %v3991
        %v4278 = vadd.f32 %v4276, %v4277
        %v4279 = vld [vmem:[%s1103] sm:$0xf]
        %v4280 = vld [vmem:[%s1103 + $0x4] sm:$0xf]
        %v4281 = vld [vmem:[%s1103 + $0x8] sm:$0xf]
        %v4282 = vld [vmem:[%s1103 + $0xc] sm:$0xf]
        %v4283 = vld [vmem:[%s1103 + $0x10] sm:$0xf]
        %v4284 = vld [vmem:[%s1103 + $0x14] sm:$0xf]
        %v4285 = vld [vmem:[%s1103 + $0x18] sm:$0xf]
        %v4286 = vld [vmem:[%s1103 + $0x1c] sm:$0xf]
        %v4287 = vld [vmem:[%s1103 + $0x20] sm:$0xf]
        %v4288 = vld [vmem:[%s1103 + $0x24] sm:$0xf]
        %v4289 = vld [vmem:[%s1103 + $0x28] sm:$0xf]
        %v4290 = vld [vmem:[%s1103 + $0x2c] sm:$0xf]
        %v4291 = vld [vmem:[%s1103 + $0x30] sm:$0xf]
        %v4292 = vld [vmem:[%s1103 + $0x34] sm:$0xf]
        %v4293 = vld [vmem:[%s1103 + $0x38] sm:$0xf]
        %v4294 = vld [vmem:[%s1103 + $0x3c] sm:$0xf]
        %v4295 = vld [vmem:[%s10] sm:$0xf]
        %v4296 = vld [vmem:[%s10 + $0x4] sm:$0xf]
        %v4297 = vld [vmem:[%s10 + $0x8] sm:$0xf]
        %v4298 = vld [vmem:[%s10 + $0xc] sm:$0xf]
        %v4299 = vld [vmem:[%s10 + $0x10] sm:$0xf]
        %v4300 = vld [vmem:[%s10 + $0x14] sm:$0xf]
        %v4301 = vld [vmem:[%s10 + $0x18] sm:$0xf]
        %v4302 = vld [vmem:[%s10 + $0x1c] sm:$0xf]
        %v4303 = vld [vmem:[%s11] sm:$0x1]
        %v4305 = vlaneseq
        %v4306 = vshrl.u32 %v4305, 7
        %v4307 = vsub.s32 0, %v4306
        %v4308 = vrot.slane %v4303, %v4307
        %v4326 = vunpack.c.l.b16 %v4279
        %v4327 = vunpack.c.l.b16 %v4280
        %v4328 = vunpack.c.l.b16 %v4281
        %v4329 = vunpack.c.l.b16 %v4282
        %v4330 = vunpack.c.l.b16 %v4283
        %v4331 = vunpack.c.l.b16 %v4284
        %v4332 = vunpack.c.l.b16 %v4285
        %v4333 = vunpack.c.l.b16 %v4286
        %v4334 = vunpack.c.l.b16 %v4287
        %v4335 = vunpack.c.l.b16 %v4288
        %v4336 = vunpack.c.l.b16 %v4289
        %v4337 = vunpack.c.l.b16 %v4290
        %v4338 = vunpack.c.l.b16 %v4291
        %v4339 = vunpack.c.l.b16 %v4292
        %v4340 = vunpack.c.l.b16 %v4293
        %v4341 = vunpack.c.l.b16 %v4294
        %v4342 = vpack.c.b16 %v4327, %v4326
        %v4343 = vpack.c.b16 %v4329, %v4328
        %v4344 = vpack.c.b16 %v4331, %v4330
        %v4345 = vpack.c.b16 %v4333, %v4332
        %v4346 = vpack.c.b16 %v4335, %v4334
        %v4347 = vpack.c.b16 %v4337, %v4336
        %v4348 = vpack.c.b16 %v4339, %v4338
        %v4349 = vpack.c.b16 %v4341, %v4340
        %v4358 = vunpack.c.l.b16 %v4295
        %v4359 = vunpack.c.l.b16 %v4296
        %v4360 = vunpack.c.l.b16 %v4297
        %v4361 = vunpack.c.l.b16 %v4298
        %v4362 = vunpack.c.l.b16 %v4299
        %v4363 = vunpack.c.l.b16 %v4300
        %v4364 = vunpack.c.l.b16 %v4301
        %v4365 = vunpack.c.l.b16 %v4302
        %v4366 = vpack.c.b16 %v4359, %v4358
        %v4367 = vpack.c.b16 %v4361, %v4360
        %v4368 = vpack.c.b16 %v4363, %v4362
        %v4369 = vpack.c.b16 %v4365, %v4364
        %vm4374 = vcmask 523264
        %v4376 = vsel %vm4374, %v4342, 0
        %v4379 = vsel %vm4374, %v4343, 0
        %v4382 = vsel %vm4374, %v4344, 0
        %v4385 = vsel %vm4374, %v4345, 0
        %v4388 = vsel %vm4374, %v4346, 0
        %v4391 = vsel %vm4374, %v4347, 0
        %v4394 = vsel %vm4374, %v4348, 0
        %v4397 = vsel %vm4374, %v4349, 0
        %4399 = vmatprep.subr.bf16.mxu0 0
        %4400 = vmatpush1.bf16.msra.mxu0 %v4366
        %4401 = vmatprep.subr.bf16.mxu0 0
        %4402 = vmatpush1.bf16.msra.mxu0 %v4367
        %4403 = vmatprep.subr.bf16.mxu0 0
        %4404 = vmatpush1.bf16.msra.mxu0 %v4368
        %4405 = vmatprep.subr.bf16.mxu0 0
        %4406 = vmatpush1.bf16.msra.mxu0 %v4369
        %4407 = vmatprep.subr.bf16.mxu0 0
        %4408 = vmatpush1.bf16.msra.mxu0 0
        %4409 = vmatprep.subr.bf16.mxu0 0
        %4410 = vmatpush1.bf16.msra.mxu0 0
        %4411 = vmatprep.subr.bf16.mxu0 0
        %4412 = vmatpush1.bf16.msra.mxu0 0
        %4413 = vmatprep.subr.bf16.mxu0 0
        %4414 = vmatpush1.bf16.msra.mxu0 0
        %4415 = vmatprep.subr.bf16.mxu0 0
        %4416 = vmatpush1.bf16.msra.mxu0 0
        %4417 = vmatprep.subr.bf16.mxu0 0
        %4418 = vmatpush1.bf16.msra.mxu0 0
        %4419 = vmatprep.subr.bf16.mxu0 0
        %4420 = vmatpush1.bf16.msra.mxu0 0
        %4421 = vmatprep.subr.bf16.mxu0 0
        %4422 = vmatpush1.bf16.msra.mxu0 0
        %4423 = vmatprep.subr.bf16.mxu0 0
        %4424 = vmatpush1.bf16.msra.mxu0 0
        %4425 = vmatprep.subr.bf16.mxu0 0
        %4426 = vmatpush1.bf16.msra.mxu0 0
        %4427 = vmatprep.subr.bf16.mxu0 0
        %4428 = vmatpush1.bf16.msra.mxu0 0
        %4429 = vmatprep.subr.bf16.mxu0 0
        %4430 = vmatpush1.bf16.msra.mxu0 0
        %4431 = vmatprep.mubr.bf16.mxu0 0
        %4432 = vmatmul.mubr.bf16.gmra.mrb[0].mxu0 %v4376
        %v4433 = vpop.f32.mrb[0].mxu0
        %v4434 = vadd.f32 %v4308, %v4433
        %v4435 = vpop.f32.mrb[0].mxu0
        %v4436 = vpop.f32.mrb[0].mxu0
        %v4437 = vadd.f32 %v4308, %v4436
        %v4438 = vpop.f32.mrb[0].mxu0
        %4439 = vmatprep.mubr.bf16.mxu0 0
        %4440 = vmatmul.mubr.bf16.gmra.mrb[0].mxu0 %v4379
        %v4441 = vpop.f32.mrb[0].mxu0
        %v4442 = vadd.f32 %v4308, %v4441
        %v4443 = vpop.f32.mrb[0].mxu0
        %v4444 = vpop.f32.mrb[0].mxu0
        %v4445 = vadd.f32 %v4308, %v4444
        %v4446 = vpop.f32.mrb[0].mxu0
        %4447 = vmatprep.mubr.bf16.mxu0 0
        %4448 = vmatmul.mubr.bf16.gmra.mrb[0].mxu0 %v4382
        %v4449 = vpop.f32.mrb[0].mxu0
        %v4450 = vadd.f32 %v4308, %v4449
        %v4451 = vpop.f32.mrb[0].mxu0
        %v4452 = vpop.f32.mrb[0].mxu0
        %v4453 = vadd.f32 %v4308, %v4452
        %v4454 = vpop.f32.mrb[0].mxu0
        %4455 = vmatprep.mubr.bf16.mxu0 0
        %4456 = vmatmul.mubr.bf16.gmra.mrb[0].mxu0 %v4385
        %v4457 = vpop.f32.mrb[0].mxu0
        %v4458 = vadd.f32 %v4308, %v4457
        %v4459 = vpop.f32.mrb[0].mxu0
        %v4460 = vpop.f32.mrb[0].mxu0
        %v4461 = vadd.f32 %v4308, %v4460
        %v4462 = vpop.f32.mrb[0].mxu0
        %4463 = vmatprep.mubr.bf16.mxu0 0
        %4464 = vmatmul.mubr.bf16.gmra.mrb[0].mxu0 %v4388
        %v4465 = vpop.f32.mrb[0].mxu0
        %v4466 = vadd.f32 %v4308, %v4465
        %v4467 = vpop.f32.mrb[0].mxu0
        %v4468 = vpop.f32.mrb[0].mxu0
        %v4469 = vadd.f32 %v4308, %v4468
        %v4470 = vpop.f32.mrb[0].mxu0
        %4471 = vmatprep.mubr.bf16.mxu0 0
        %4472 = vmatmul.mubr.bf16.gmra.mrb[0].mxu0 %v4391
        %v4473 = vpop.f32.mrb[0].mxu0
        %v4474 = vadd.f32 %v4308, %v4473
        %v4475 = vpop.f32.mrb[0].mxu0
        %v4476 = vpop.f32.mrb[0].mxu0
        %v4477 = vadd.f32 %v4308, %v4476
        %v4478 = vpop.f32.mrb[0].mxu0
        %4479 = vmatprep.mubr.bf16.mxu0 0
        %4480 = vmatmul.mubr.bf16.gmra.mrb[0].mxu0 %v4394
        %v4481 = vpop.f32.mrb[0].mxu0
        %v4482 = vadd.f32 %v4308, %v4481
        %v4483 = vpop.f32.mrb[0].mxu0
        %v4484 = vpop.f32.mrb[0].mxu0
        %v4485 = vadd.f32 %v4308, %v4484
        %v4486 = vpop.f32.mrb[0].mxu0
        %4487 = vmatprep.mubr.bf16.mxu0 0
        %4488 = vmatmul.mubr.bf16.gmra.mrb[0].mxu0 %v4397
        %v4489 = vpop.f32.mrb[0].mxu0
        %v4490 = vadd.f32 %v4308, %v4489
        %v4491 = vpop.f32.mrb[0].mxu0
        %v4492 = vpop.f32.mrb[0].mxu0
        %v4493 = vadd.f32 %v4308, %v4492
        %v4494 = vpop.f32.mrb[0].mxu0
        %4495 = vdwg.mxu0
        %v4496 = vpack.c.bf16 %v4278, %v4278
        %v4497 = vld [vmem:[%s12] sm:$0xf]
        %v4498 = vld [vmem:[%s12 + $0x4] sm:$0xf]
        %v4499 = vld [vmem:[%s12 + $0x8] sm:$0xf]
        %v4500 = vld [vmem:[%s12 + $0xc] sm:$0xf]
        %v4501 = vld [vmem:[%s12 + $0x10] sm:$0xf]
        %v4502 = vld [vmem:[%s12 + $0x14] sm:$0xf]
        %v4503 = vld [vmem:[%s12 + $0x18] sm:$0xf]
        %v4504 = vld [vmem:[%s12 + $0x1c] sm:$0xf]
        %v4505 = vld [vmem:[%s12 + $0x20] sm:$0xf]
        %v4506 = vld [vmem:[%s12 + $0x24] sm:$0xf]
        %v4507 = vld [vmem:[%s12 + $0x28] sm:$0xf]
        %v4508 = vld [vmem:[%s12 + $0x2c] sm:$0xf]
        %v4509 = vld [vmem:[%s12 + $0x30] sm:$0xf]
        %v4510 = vld [vmem:[%s12 + $0x34] sm:$0xf]
        %v4511 = vld [vmem:[%s12 + $0x38] sm:$0xf]
        %v4512 = vld [vmem:[%s12 + $0x3c] sm:$0xf]
        %v4513 = vld [vmem:[#allocation12] sm:$0x1]
        %v4515 = vlaneseq
        %v4516 = vshrl.u32 %v4515, 7
        %v4517 = vsub.s32 0, %v4516
        %v4518 = vrot.slane %v4513, %v4517
        %v4536 = vunpack.c.l.b16 %v4497
        %v4537 = vunpack.c.l.b16 %v4498
        %v4538 = vunpack.c.l.b16 %v4499
        %v4539 = vunpack.c.l.b16 %v4500
        %v4540 = vunpack.c.l.b16 %v4501
        %v4541 = vunpack.c.l.b16 %v4502
        %v4542 = vunpack.c.l.b16 %v4503
        %v4543 = vunpack.c.l.b16 %v4504
        %v4544 = vunpack.c.l.b16 %v4505
        %v4545 = vunpack.c.l.b16 %v4506
        %v4546 = vunpack.c.l.b16 %v4507
        %v4547 = vunpack.c.l.b16 %v4508
        %v4548 = vunpack.c.l.b16 %v4509
        %v4549 = vunpack.c.l.b16 %v4510
        %v4550 = vunpack.c.l.b16 %v4511
        %v4551 = vunpack.c.l.b16 %v4512
        %v4552 = vpack.c.b16 %v4537, %v4536
        %v4553 = vpack.c.b16 %v4539, %v4538
        %v4554 = vpack.c.b16 %v4541, %v4540
        %v4555 = vpack.c.b16 %v4543, %v4542
        %v4556 = vpack.c.b16 %v4545, %v4544
        %v4557 = vpack.c.b16 %v4547, %v4546
        %v4558 = vpack.c.b16 %v4549, %v4548
        %v4559 = vpack.c.b16 %v4551, %v4550
        %4568 = vmatprep.subr.bf16.mxu0 0
        %4569 = vmatpush1.bf16.msra.mxu0 %v4552
        %4570 = vmatprep.subr.bf16.mxu0 0
        %4571 = vmatpush1.bf16.msra.mxu0 %v4553
        %4572 = vmatprep.subr.bf16.mxu0 0
        %4573 = vmatpush1.bf16.msra.mxu0 %v4554
        %4574 = vmatprep.subr.bf16.mxu0 0
        %4575 = vmatpush1.bf16.msra.mxu0 %v4555
        %4576 = vmatprep.subr.bf16.mxu0 0
        %4577 = vmatpush1.bf16.msra.mxu0 %v4556
        %4578 = vmatprep.subr.bf16.mxu0 0
        %4579 = vmatpush1.bf16.msra.mxu0 %v4557
        %4580 = vmatprep.subr.bf16.mxu0 0
        %4581 = vmatpush1.bf16.msra.mxu0 %v4558
        %4582 = vmatprep.subr.bf16.mxu0 0
        %4583 = vmatpush1.bf16.msra.mxu0 %v4559
        %4584 = vmatprep.subr.bf16.mxu0 0
        %4585 = vmatpush1.bf16.msra.mxu0 0
        %4586 = vmatprep.subr.bf16.mxu0 0
        %4587 = vmatpush1.bf16.msra.mxu0 0
        %4588 = vmatprep.subr.bf16.mxu0 0
        %4589 = vmatpush1.bf16.msra.mxu0 0
        %4590 = vmatprep.subr.bf16.mxu0 0
        %4591 = vmatpush1.bf16.msra.mxu0 0
        %4592 = vmatprep.subr.bf16.mxu0 0
        %4593 = vmatpush1.bf16.msra.mxu0 0
        %4594 = vmatprep.subr.bf16.mxu0 0
        %4595 = vmatpush1.bf16.msra.mxu0 0
        %4596 = vmatprep.subr.bf16.mxu0 0
        %4597 = vmatpush1.bf16.msra.mxu0 0
        %4598 = vmatprep.subr.bf16.mxu0 0
        %4599 = vmatpush1.bf16.msra.mxu0 0
        %4600 = vmatprep.mubr.bf16.mxu0 0
        %4601 = vmatmul.mubr.bf16.gmra.mrb[0].mxu0 %v4496
        %v4602 = vpop.f32.mrb[0].mxu0
        %v4603 = vadd.f32 %v4518, %v4602
        %v4604 = vpop.f32.mrb[0].mxu0
        %v4605 = vpop.f32.mrb[0].mxu0
        %v4606 = vpop.f32.mrb[0].mxu0
        %4607 = vdwg.mxu0
        %v4609 = vcombine.high %v4603, %v4603
        %v4611 = vunpack.c.l.s4 1966171168
        %v4612 = vunpack.c.0.s8 %v4611
        %v4613 = vlaneseq
        %v4614 = vshrl.u32 %v4613, 7
        %v4615 = vsub.s32 %v4612, %v4614
        %v4616 = vrot.slane %v4603, %v4615
        %v4618 = vunpack.c.l.s4 1966171168
        %v4619 = vunpack.c.0.s8 %v4618
        %v4620 = vlaneseq
        %v4621 = vshrl.u32 %v4620, 7
        %v4622 = vsub.s32 %v4619, %v4621
        %v4623 = vrot.slane %v4609, %v4622
        %v4624 = vcombine.high %v4616, %v4616
        %v4625 = vcombine.high %v4623, %v4623
        %v4627 = vunpack.c.l.s4 1966171168
        %v4628 = vunpack.c.0.s8 %v4627
        %v4629 = vlaneseq
        %v4630 = vshrl.u32 %v4629, 7
        %v4631 = vsub.s32 %v4628, %v4630
        %v4632 = vrot.slane %v4616, %v4631
        %v4634 = vunpack.c.l.s4 1966171168
        %v4635 = vunpack.c.0.s8 %v4634
        %v4636 = vlaneseq
        %v4637 = vshrl.u32 %v4636, 7
        %v4638 = vsub.s32 %v4635, %v4637
        %v4639 = vrot.slane %v4623, %v4638
        %v4641 = vunpack.c.l.s4 1966171168
        %v4642 = vunpack.c.0.s8 %v4641
        %v4643 = vlaneseq
        %v4644 = vshrl.u32 %v4643, 7
        %v4645 = vsub.s32 %v4642, %v4644
        %v4646 = vrot.slane %v4624, %v4645
        %v4648 = vunpack.c.l.s4 1966171168
        %v4649 = vunpack.c.0.s8 %v4648
        %v4650 = vlaneseq
        %v4651 = vshrl.u32 %v4650, 7
        %v4652 = vsub.s32 %v4649, %v4651
        %v4653 = vrot.slane %v4625, %v4652
        %v4654 = vcombine.high %v4632, %v4632
        %v4655 = vcombine.high %v4639, %v4639
        %v4656 = vcombine.high %v4646, %v4646
        %v4657 = vcombine.high %v4653, %v4653
        %v4658 = vlaneseq
        %v4659 = vshrl.u32 %v4658, 7
        %v4660 = vsub.s32 0, %v4659
        %v4661 = vrot.slane %v4632, %v4660
        %v4662 = vlaneseq
        %v4663 = vshrl.u32 %v4662, 7
        %v4664 = vsub.s32 0, %v4663
        %v4665 = vrot.slane %v4646, %v4664
        %v4666 = vlaneseq
        %v4667 = vshrl.u32 %v4666, 7
        %v4668 = vsub.s32 0, %v4667
        %v4669 = vrot.slane %v4654, %v4668
        %v4670 = vlaneseq
        %v4671 = vshrl.u32 %v4670, 7
        %v4672 = vsub.s32 0, %v4671
        %v4673 = vrot.slane %v4656, %v4672
        %v4674 = vlaneseq
        %v4675 = vshrl.u32 %v4674, 7
        %v4676 = vsub.s32 0, %v4675
        %v4677 = vrot.slane %v4639, %v4676
        %v4678 = vlaneseq
        %v4679 = vshrl.u32 %v4678, 7
        %v4680 = vsub.s32 0, %v4679
        %v4681 = vrot.slane %v4653, %v4680
        %v4682 = vlaneseq
        %v4683 = vshrl.u32 %v4682, 7
        %v4684 = vsub.s32 0, %v4683
        %v4685 = vrot.slane %v4655, %v4684
        %v4686 = vlaneseq
        %v4687 = vshrl.u32 %v4686, 7
        %v4688 = vsub.s32 0, %v4687
        %v4689 = vrot.slane %v4657, %v4688
        %v4698 = vadd.f32 %v4434, %v4661
        %v4699 = vadd.f32 %v4437, %v4661
        %v4700 = vadd.f32 %v4442, %v4665
        %v4701 = vadd.f32 %v4445, %v4665
        %v4702 = vadd.f32 %v4450, %v4669
        %v4703 = vadd.f32 %v4453, %v4669
        %v4704 = vadd.f32 %v4458, %v4673
        %v4705 = vadd.f32 %v4461, %v4673
        %v4706 = vadd.f32 %v4466, %v4677
        %v4707 = vadd.f32 %v4469, %v4677
        %v4708 = vadd.f32 %v4474, %v4681
        %v4709 = vadd.f32 %v4477, %v4681
        %v4710 = vadd.f32 %v4482, %v4685
        %v4711 = vadd.f32 %v4485, %v4685
        %v4712 = vadd.f32 %v4490, %v4689
        %v4713 = vadd.f32 %v4493, %v4689
        %v4714 = vtanh.pop %v4698
        %v4715 = vtanh.pop %v4699
        %v4716 = vtanh.pop %v4700
        %v4717 = vtanh.pop %v4701
        %v4718 = vtanh.pop %v4702
        %v4719 = vtanh.pop %v4703
        %v4720 = vtanh.pop %v4704
        %v4721 = vtanh.pop %v4705
        %v4722 = vtanh.pop %v4706
        %v4723 = vtanh.pop %v4707
        %v4724 = vtanh.pop %v4708
        %v4725 = vtanh.pop %v4709
        %v4726 = vtanh.pop %v4710
        %v4727 = vtanh.pop %v4711
        %v4728 = vtanh.pop %v4712
        %v4729 = vtanh.pop %v4713
        %v4730 = vld [vmem:[#allocation13] sm:$0x1]
        %v4732 = vlaneseq
        %v4733 = vshrl.u32 %v4732, 7
        %v4734 = vsub.s32 0, %v4733
        %v4735 = vrot.slane %v4730, %v4734
        %v4737 = vmul.f32 %v4714, %v4735
        %v4738 = vmul.f32 %v4715, %v4735
        %v4739 = vmul.f32 %v4716, %v4735
        %v4740 = vmul.f32 %v4717, %v4735
        %v4741 = vmul.f32 %v4718, %v4735
        %v4742 = vmul.f32 %v4719, %v4735
        %v4743 = vmul.f32 %v4720, %v4735
        %v4744 = vmul.f32 %v4721, %v4735
        %v4745 = vmul.f32 %v4722, %v4735
        %v4746 = vmul.f32 %v4723, %v4735
        %v4747 = vmul.f32 %v4724, %v4735
        %v4748 = vmul.f32 %v4725, %v4735
        %v4749 = vmul.f32 %v4726, %v4735
        %v4750 = vmul.f32 %v4727, %v4735
        %v4751 = vmul.f32 %v4728, %v4735
        %v4752 = vmul.f32 %v4729, %v4735
        %4753 = vadd.xlane.f32.xlu0 %v4737
        %v4754 = vpop.xlane.xlu0 %4753
        %4755 = vadd.xlane.f32.xlu0 %v4738
        %v4756 = vpop.xlane.xlu0 %4755
        %4757 = vadd.xlane.f32.xlu0 %v4739
        %v4758 = vpop.xlane.xlu0 %4757
        %4759 = vadd.xlane.f32.xlu0 %v4740
        %v4760 = vpop.xlane.xlu0 %4759
        %4761 = vadd.xlane.f32.xlu0 %v4741
        %v4762 = vpop.xlane.xlu0 %4761
        %4763 = vadd.xlane.f32.xlu0 %v4742
        %v4764 = vpop.xlane.xlu0 %4763
        %4765 = vadd.xlane.f32.xlu0 %v4743
        %v4766 = vpop.xlane.xlu0 %4765
        %4767 = vadd.xlane.f32.xlu0 %v4744
        %v4768 = vpop.xlane.xlu0 %4767
        %4769 = vadd.xlane.f32.xlu0 %v4745
        %v4770 = vpop.xlane.xlu0 %4769
        %4771 = vadd.xlane.f32.xlu0 %v4746
        %v4772 = vpop.xlane.xlu0 %4771
        %4773 = vadd.xlane.f32.xlu0 %v4747
        %v4774 = vpop.xlane.xlu0 %4773
        %4775 = vadd.xlane.f32.xlu0 %v4748
        %v4776 = vpop.xlane.xlu0 %4775
        %4777 = vadd.xlane.f32.xlu0 %v4749
        %v4778 = vpop.xlane.xlu0 %4777
        %4779 = vadd.xlane.f32.xlu0 %v4750
        %v4780 = vpop.xlane.xlu0 %4779
        %4781 = vadd.xlane.f32.xlu0 %v4751
        %v4782 = vpop.xlane.xlu0 %4781
        %4783 = vadd.xlane.f32.xlu0 %v4752
        %v4784 = vpop.xlane.xlu0 %4783
        %s4785 = sld [smem:[#allocation2]]
        %v4786 = vstv %s4785
        %v4787 = vadd.f32 %v4754, %v4786
        %v4788 = vadd.f32 %v4756, %v4786
        %v4789 = vadd.f32 %v4758, %v4786
        %v4790 = vadd.f32 %v4760, %v4786
        %v4791 = vadd.f32 %v4762, %v4786
        %v4792 = vadd.f32 %v4764, %v4786
        %v4793 = vadd.f32 %v4766, %v4786
        %v4794 = vadd.f32 %v4768, %v4786
        %v4795 = vadd.f32 %v4770, %v4786
        %v4796 = vadd.f32 %v4772, %v4786
        %v4797 = vadd.f32 %v4774, %v4786
        %v4798 = vadd.f32 %v4776, %v4786
        %v4799 = vadd.f32 %v4778, %v4786
        %v4800 = vadd.f32 %v4780, %v4786
        %v4801 = vadd.f32 %v4782, %v4786
        %v4802 = vadd.f32 %v4784, %v4786
        %v4819 = vlaneseq
        %v4820 = vand.u32 %v4819, 127
        %v4821 = vlaneseq
        %v4822 = vshrl.u32 %v4821, 7
        %v4823 = vsub.s32 %v4820, %v4822
        %v4824 = vrot.slane %v4787, %v4823
        %v4825 = vadd.s32 %v4820, 4294967288
        %v4826 = vlaneseq
        %v4827 = vshrl.u32 %v4826, 7
        %v4828 = vsub.s32 %v4825, %v4827
        %v4829 = vrot.slane %v4788, %v4828
        %vm4830 = vcmask 130112
        %v4831 = vsel %vm4830, %v4829, %v4824
        %v4832 = vlaneseq
        %v4833 = vshrl.u32 %v4832, 7
        %v4834 = vsub.s32 %v4820, %v4833
        %v4835 = vrot.slane %v4789, %v4834
        %v4836 = vlaneseq
        %v4837 = vshrl.u32 %v4836, 7
        %v4838 = vsub.s32 %v4825, %v4837
        %v4839 = vrot.slane %v4790, %v4838
        %v4840 = vsel %vm4830, %v4839, %v4835
        %v4841 = vlaneseq
        %v4842 = vshrl.u32 %v4841, 7
        %v4843 = vsub.s32 %v4820, %v4842
        %v4844 = vrot.slane %v4791, %v4843
        %v4845 = vlaneseq
        %v4846 = vshrl.u32 %v4845, 7
        %v4847 = vsub.s32 %v4825, %v4846
        %v4848 = vrot.slane %v4792, %v4847
        %v4849 = vsel %vm4830, %v4848, %v4844
        %v4850 = vlaneseq
        %v4851 = vshrl.u32 %v4850, 7
        %v4852 = vsub.s32 %v4820, %v4851
        %v4853 = vrot.slane %v4793, %v4852
        %v4854 = vlaneseq
        %v4855 = vshrl.u32 %v4854, 7
        %v4856 = vsub.s32 %v4825, %v4855
        %v4857 = vrot.slane %v4794, %v4856
        %v4858 = vsel %vm4830, %v4857, %v4853
        %v4859 = vlaneseq
        %v4860 = vshrl.u32 %v4859, 7
        %v4861 = vsub.s32 %v4820, %v4860
        %v4862 = vrot.slane %v4795, %v4861
        %v4863 = vlaneseq
        %v4864 = vshrl.u32 %v4863, 7
        %v4865 = vsub.s32 %v4825, %v4864
        %v4866 = vrot.slane %v4796, %v4865
        %v4867 = vsel %vm4830, %v4866, %v4862
        %v4868 = vlaneseq
        %v4869 = vshrl.u32 %v4868, 7
        %v4870 = vsub.s32 %v4820, %v4869
        %v4871 = vrot.slane %v4797, %v4870
        %v4872 = vlaneseq
        %v4873 = vshrl.u32 %v4872, 7
        %v4874 = vsub.s32 %v4825, %v4873
        %v4875 = vrot.slane %v4798, %v4874
        %v4876 = vsel %vm4830, %v4875, %v4871
        %v4877 = vlaneseq
        %v4878 = vshrl.u32 %v4877, 7
        %v4879 = vsub.s32 %v4820, %v4878
        %v4880 = vrot.slane %v4799, %v4879
        %v4881 = vlaneseq
        %v4882 = vshrl.u32 %v4881, 7
        %v4883 = vsub.s32 %v4825, %v4882
        %v4884 = vrot.slane %v4800, %v4883
        %v4885 = vsel %vm4830, %v4884, %v4880
        %v4886 = vlaneseq
        %v4887 = vshrl.u32 %v4886, 7
        %v4888 = vsub.s32 %v4820, %v4887
        %v4889 = vrot.slane %v4801, %v4888
        %v4890 = vlaneseq
        %v4891 = vshrl.u32 %v4890, 7
        %v4892 = vsub.s32 %v4825, %v4891
        %v4893 = vrot.slane %v4802, %v4892
        %v4894 = vsel %vm4830, %v4893, %v4889
        %vm4895 = vcmask 1041409
        %v4896 = vsel %vm4895, %v4840, %v4831
        %vm4897 = vcmask 1042434
        %v4898 = vsel %vm4897, %v4849, %v4896
        %vm4899 = vcmask 1043459
        %v4900 = vsel %vm4899, %v4858, %v4898
        %vm4901 = vcmask 1044484
        %v4902 = vsel %vm4901, %v4867, %v4900
        %vm4903 = vcmask 1045509
        %v4904 = vsel %vm4903, %v4876, %v4902
        %vm4905 = vcmask 1046534
        %v4906 = vsel %vm4905, %v4885, %v4904
        %vm4907 = vcmask 1047559
        %v4908 = vsel %vm4907, %v4894, %v4906
        %vm4910 = vcmask 130048
        %v4911 = vsel %vm4910, %v4908, -inf
        %4912 = vmax.xlane.f32.xlu0 %v4911
        %v4913 = vpop.xlane.xlu0 %4912
        %v4915 = vlaneseq
        %v4916 = vshrl.u32 %v4915, 7
        %v4917 = vsub.s32 0, %v4916
        %v4918 = vrot.slane %v4913, %v4917
        %v4919 = vlaneseq
        %v4920 = vshrl.u32 %v4919, 7
        %v4921 = vsub.s32 1, %v4920
        %v4922 = vrot.slane %v4913, %v4921
        %v4923 = vlaneseq
        %v4924 = vshrl.u32 %v4923, 7
        %v4925 = vsub.s32 2, %v4924
        %v4926 = vrot.slane %v4913, %v4925
        %v4927 = vlaneseq
        %v4928 = vshrl.u32 %v4927, 7
        %v4929 = vsub.s32 3, %v4928
        %v4930 = vrot.slane %v4913, %v4929
        %v4931 = vlaneseq
        %v4932 = vshrl.u32 %v4931, 7
        %v4933 = vsub.s32 4, %v4932
        %v4934 = vrot.slane %v4913, %v4933
        %v4935 = vlaneseq
        %v4936 = vshrl.u32 %v4935, 7
        %v4937 = vsub.s32 5, %v4936
        %v4938 = vrot.slane %v4913, %v4937
        %v4939 = vlaneseq
        %v4940 = vshrl.u32 %v4939, 7
        %v4941 = vsub.s32 6, %v4940
        %v4942 = vrot.slane %v4913, %v4941
        %v4943 = vlaneseq
        %v4944 = vshrl.u32 %v4943, 7
        %v4945 = vsub.s32 7, %v4944
        %v4946 = vrot.slane %v4913, %v4945
        %v4955 = vsub.f32 %v4787, %v4918
        %v4956 = vsub.f32 %v4788, %v4918
        %v4957 = vsub.f32 %v4789, %v4922
        %v4958 = vsub.f32 %v4790, %v4922
        %v4959 = vsub.f32 %v4791, %v4926
        %v4960 = vsub.f32 %v4792, %v4926
        %v4961 = vsub.f32 %v4793, %v4930
        %v4962 = vsub.f32 %v4794, %v4930
        %v4963 = vsub.f32 %v4795, %v4934
        %v4964 = vsub.f32 %v4796, %v4934
        %v4965 = vsub.f32 %v4797, %v4938
        %v4966 = vsub.f32 %v4798, %v4938
        %v4967 = vsub.f32 %v4799, %v4942
        %v4968 = vsub.f32 %v4800, %v4942
        %v4969 = vsub.f32 %v4801, %v4946
        %v4970 = vsub.f32 %v4802, %v4946
        %v4971 = vmul.f32 %v4955, 1.442695
        %v4972 = vpow.pop %v4971
        %v4973 = vmul.f32 %v4956, 1.442695
        %v4974 = vpow.pop %v4973
        %v4975 = vmul.f32 %v4957, 1.442695
        %v4976 = vpow.pop %v4975
        %v4977 = vmul.f32 %v4958, 1.442695
        %v4978 = vpow.pop %v4977
        %v4979 = vmul.f32 %v4959, 1.442695
        %v4980 = vpow.pop %v4979
        %v4981 = vmul.f32 %v4960, 1.442695
        %v4982 = vpow.pop %v4981
        %v4983 = vmul.f32 %v4961, 1.442695
        %v4984 = vpow.pop %v4983
        %v4985 = vmul.f32 %v4962, 1.442695
        %v4986 = vpow.pop %v4985
        %v4987 = vmul.f32 %v4963, 1.442695
        %v4988 = vpow.pop %v4987
        %v4989 = vmul.f32 %v4964, 1.442695
        %v4990 = vpow.pop %v4989
        %v4991 = vmul.f32 %v4965, 1.442695
        %v4992 = vpow.pop %v4991
        %v4993 = vmul.f32 %v4966, 1.442695
        %v4994 = vpow.pop %v4993
        %v4995 = vmul.f32 %v4967, 1.442695
        %v4996 = vpow.pop %v4995
        %v4997 = vmul.f32 %v4968, 1.442695
        %v4998 = vpow.pop %v4997
        %v4999 = vmul.f32 %v4969, 1.442695
        %v5000 = vpow.pop %v4999
        %v5001 = vmul.f32 %v4970, 1.442695
        %v5002 = vpow.pop %v5001
        %5019 = vset.pattern.permute.xlu0 0
        %5020 = vperm.xlu0 %5019, %v4972
        %v5021 = vpop.permute.xlu0 %5020
        %5022 = vset.pattern.permute.xlu0 0
        %5023 = vperm.xlu0 %5022, %v4974
        %v5024 = vpop.permute.xlu0 %5023
        %5025 = vset.pattern.permute.xlu0 0
        %5026 = vperm.xlu0 %5025, %v4976
        %v5027 = vpop.permute.xlu0 %5026
        %5028 = vset.pattern.permute.xlu0 0
        %5029 = vperm.xlu0 %5028, %v4978
        %v5030 = vpop.permute.xlu0 %5029
        %5031 = vset.pattern.permute.xlu0 0
        %5032 = vperm.xlu0 %5031, %v4980
        %v5033 = vpop.permute.xlu0 %5032
        %5034 = vset.pattern.permute.xlu0 0
        %5035 = vperm.xlu0 %5034, %v4982
        %v5036 = vpop.permute.xlu0 %5035
        %5037 = vset.pattern.permute.xlu0 0
        %5038 = vperm.xlu0 %5037, %v4984
        %v5039 = vpop.permute.xlu0 %5038
        %5040 = vset.pattern.permute.xlu0 0
        %5041 = vperm.xlu0 %5040, %v4986
        %v5042 = vpop.permute.xlu0 %5041
        %5043 = vset.pattern.permute.xlu0 0
        %5044 = vperm.xlu0 %5043, %v4988
        %v5045 = vpop.permute.xlu0 %5044
        %5046 = vset.pattern.permute.xlu0 0
        %5047 = vperm.xlu0 %5046, %v4990
        %v5048 = vpop.permute.xlu0 %5047
        %5049 = vset.pattern.permute.xlu0 0
        %5050 = vperm.xlu0 %5049, %v4992
        %v5051 = vpop.permute.xlu0 %5050
        %5052 = vset.pattern.permute.xlu0 0
        %5053 = vperm.xlu0 %5052, %v4994
        %v5054 = vpop.permute.xlu0 %5053
        %5055 = vset.pattern.permute.xlu0 0
        %5056 = vperm.xlu0 %5055, %v4996
        %v5057 = vpop.permute.xlu0 %5056
        %5058 = vset.pattern.permute.xlu0 0
        %5059 = vperm.xlu0 %5058, %v4998
        %v5060 = vpop.permute.xlu0 %5059
        %5061 = vset.pattern.permute.xlu0 0
        %5062 = vperm.xlu0 %5061, %v5000
        %v5063 = vpop.permute.xlu0 %5062
        %5064 = vset.pattern.permute.xlu0 0
        %5065 = vperm.xlu0 %5064, %v5002
        %v5066 = vpop.permute.xlu0 %5065
        %v5067 = vlaneseq
        %v5068 = vshrl.u32 %v5067, 7
        %v5069 = vsub.s32 %v4820, %v5068
        %v5070 = vrot.slane %v5021, %v5069
        %v5071 = vlaneseq
        %v5072 = vshrl.u32 %v5071, 7
        %v5073 = vsub.s32 %v4825, %v5072
        %v5074 = vrot.slane %v5024, %v5073
        %v5075 = vsel %vm4830, %v5074, %v5070
        %v5076 = vlaneseq
        %v5077 = vshrl.u32 %v5076, 7
        %v5078 = vsub.s32 %v4820, %v5077
        %v5079 = vrot.slane %v5027, %v5078
        %v5080 = vlaneseq
        %v5081 = vshrl.u32 %v5080, 7
        %v5082 = vsub.s32 %v4825, %v5081
        %v5083 = vrot.slane %v5030, %v5082
        %v5084 = vsel %vm4830, %v5083, %v5079
        %v5085 = vlaneseq
        %v5086 = vshrl.u32 %v5085, 7
        %v5087 = vsub.s32 %v4820, %v5086
        %v5088 = vrot.slane %v5033, %v5087
        %v5089 = vlaneseq
        %v5090 = vshrl.u32 %v5089, 7
        %v5091 = vsub.s32 %v4825, %v5090
        %v5092 = vrot.slane %v5036, %v5091
        %v5093 = vsel %vm4830, %v5092, %v5088
        %v5094 = vlaneseq
        %v5095 = vshrl.u32 %v5094, 7
        %v5096 = vsub.s32 %v4820, %v5095
        %v5097 = vrot.slane %v5039, %v5096
        %v5098 = vlaneseq
        %v5099 = vshrl.u32 %v5098, 7
        %v5100 = vsub.s32 %v4825, %v5099
        %v5101 = vrot.slane %v5042, %v5100
        %v5102 = vsel %vm4830, %v5101, %v5097
        %v5103 = vlaneseq
        %v5104 = vshrl.u32 %v5103, 7
        %v5105 = vsub.s32 %v4820, %v5104
        %v5106 = vrot.slane %v5045, %v5105
        %v5107 = vlaneseq
        %v5108 = vshrl.u32 %v5107, 7
        %v5109 = vsub.s32 %v4825, %v5108
        %v5110 = vrot.slane %v5048, %v5109
        %v5111 = vsel %vm4830, %v5110, %v5106
        %v5112 = vlaneseq
        %v5113 = vshrl.u32 %v5112, 7
        %v5114 = vsub.s32 %v4820, %v5113
        %v5115 = vrot.slane %v5051, %v5114
        %v5116 = vlaneseq
        %v5117 = vshrl.u32 %v5116, 7
        %v5118 = vsub.s32 %v4825, %v5117
        %v5119 = vrot.slane %v5054, %v5118
        %v5120 = vsel %vm4830, %v5119, %v5115
        %v5121 = vlaneseq
        %v5122 = vshrl.u32 %v5121, 7
        %v5123 = vsub.s32 %v4820, %v5122
        %v5124 = vrot.slane %v5057, %v5123
        %v5125 = vlaneseq
        %v5126 = vshrl.u32 %v5125, 7
        %v5127 = vsub.s32 %v4825, %v5126
        %v5128 = vrot.slane %v5060, %v5127
        %v5129 = vsel %vm4830, %v5128, %v5124
        %v5130 = vlaneseq
        %v5131 = vshrl.u32 %v5130, 7
        %v5132 = vsub.s32 %v4820, %v5131
        %v5133 = vrot.slane %v5063, %v5132
        %v5134 = vlaneseq
        %v5135 = vshrl.u32 %v5134, 7
        %v5136 = vsub.s32 %v4825, %v5135
        %v5137 = vrot.slane %v5066, %v5136
        %v5138 = vsel %vm4830, %v5137, %v5133
        %v5139 = vsel %vm4895, %v5084, %v5075
        %v5140 = vsel %vm4897, %v5093, %v5139
        %v5141 = vsel %vm4899, %v5102, %v5140
        %v5142 = vsel %vm4901, %v5111, %v5141
        %v5143 = vsel %vm4903, %v5120, %v5142
        %v5144 = vsel %vm4905, %v5129, %v5143
        %v5145 = vsel %vm4907, %v5138, %v5144
        %v5147 = vsel %vm4910, %v5145, 0.0
        %5148 = vadd.xlane.f32.xlu0 %v5147
        %v5149 = vpop.xlane.xlu0 %5148
        %v5151 = vlaneseq
        %v5152 = vshrl.u32 %v5151, 7
        %v5153 = vsub.s32 0, %v5152
        %v5154 = vrot.slane %v5149, %v5153
        %v5155 = vlaneseq
        %v5156 = vshrl.u32 %v5155, 7
        %v5157 = vsub.s32 1, %v5156
        %v5158 = vrot.slane %v5149, %v5157
        %v5159 = vlaneseq
        %v5160 = vshrl.u32 %v5159, 7
        %v5161 = vsub.s32 2, %v5160
        %v5162 = vrot.slane %v5149, %v5161
        %v5163 = vlaneseq
        %v5164 = vshrl.u32 %v5163, 7
        %v5165 = vsub.s32 3, %v5164
        %v5166 = vrot.slane %v5149, %v5165
        %v5167 = vlaneseq
        %v5168 = vshrl.u32 %v5167, 7
        %v5169 = vsub.s32 4, %v5168
        %v5170 = vrot.slane %v5149, %v5169
        %v5171 = vlaneseq
        %v5172 = vshrl.u32 %v5171, 7
        %v5173 = vsub.s32 5, %v5172
        %v5174 = vrot.slane %v5149, %v5173
        %v5175 = vlaneseq
        %v5176 = vshrl.u32 %v5175, 7
        %v5177 = vsub.s32 6, %v5176
        %v5178 = vrot.slane %v5149, %v5177
        %v5179 = vlaneseq
        %v5180 = vshrl.u32 %v5179, 7
        %v5181 = vsub.s32 7, %v5180
        %v5182 = vrot.slane %v5149, %v5181
        %v5191 = vrcp.pop %v5154
        %v5192 = vmul.f32 %v4972, %v5191
        %v5193 = vmul.f32 %v4974, %v5191
        %v5194 = vrcp.pop %v5158
        %v5195 = vmul.f32 %v4976, %v5194
        %v5196 = vmul.f32 %v4978, %v5194
        %v5197 = vrcp.pop %v5162
        %v5198 = vmul.f32 %v4980, %v5197
        %v5199 = vmul.f32 %v4982, %v5197
        %v5200 = vrcp.pop %v5166
        %v5201 = vmul.f32 %v4984, %v5200
        %v5202 = vmul.f32 %v4986, %v5200
        %v5203 = vrcp.pop %v5170
        %v5204 = vmul.f32 %v4988, %v5203
        %v5205 = vmul.f32 %v4990, %v5203
        %v5206 = vrcp.pop %v5174
        %v5207 = vmul.f32 %v4992, %v5206
        %v5208 = vmul.f32 %v4994, %v5206
        %v5209 = vrcp.pop %v5178
        %v5210 = vmul.f32 %v4996, %v5209
        %v5211 = vmul.f32 %v4998, %v5209
        %v5212 = vrcp.pop %v5182
        %v5213 = vmul.f32 %v5000, %v5212
        %v5214 = vmul.f32 %v5002, %v5212
        %5231 = vset.pattern.permute.xlu0 0
        %5232 = vperm.xlu0 %5231, %v5192
        %v5233 = vpop.permute.xlu0 %5232
        %5234 = vset.pattern.permute.xlu0 0
        %5235 = vperm.xlu0 %5234, %v5193
        %v5236 = vpop.permute.xlu0 %5235
        %5237 = vset.pattern.permute.xlu0 0
        %5238 = vperm.xlu0 %5237, %v5195
        %v5239 = vpop.permute.xlu0 %5238
        %5240 = vset.pattern.permute.xlu0 0
        %5241 = vperm.xlu0 %5240, %v5196
        %v5242 = vpop.permute.xlu0 %5241
        %5243 = vset.pattern.permute.xlu0 0
        %5244 = vperm.xlu0 %5243, %v5198
        %v5245 = vpop.permute.xlu0 %5244
        %5246 = vset.pattern.permute.xlu0 0
        %5247 = vperm.xlu0 %5246, %v5199
        %v5248 = vpop.permute.xlu0 %5247
        %5249 = vset.pattern.permute.xlu0 0
        %5250 = vperm.xlu0 %5249, %v5201
        %v5251 = vpop.permute.xlu0 %5250
        %5252 = vset.pattern.permute.xlu0 0
        %5253 = vperm.xlu0 %5252, %v5202
        %v5254 = vpop.permute.xlu0 %5253
        %5255 = vset.pattern.permute.xlu0 0
        %5256 = vperm.xlu0 %5255, %v5204
        %v5257 = vpop.permute.xlu0 %5256
        %5258 = vset.pattern.permute.xlu0 0
        %5259 = vperm.xlu0 %5258, %v5205
        %v5260 = vpop.permute.xlu0 %5259
        %5261 = vset.pattern.permute.xlu0 0
        %5262 = vperm.xlu0 %5261, %v5207
        %v5263 = vpop.permute.xlu0 %5262
        %5264 = vset.pattern.permute.xlu0 0
        %5265 = vperm.xlu0 %5264, %v5208
        %v5266 = vpop.permute.xlu0 %5265
        %5267 = vset.pattern.permute.xlu0 0
        %5268 = vperm.xlu0 %5267, %v5210
        %v5269 = vpop.permute.xlu0 %5268
        %5270 = vset.pattern.permute.xlu0 0
        %5271 = vperm.xlu0 %5270, %v5211
        %v5272 = vpop.permute.xlu0 %5271
        %5273 = vset.pattern.permute.xlu0 0
        %5274 = vperm.xlu0 %5273, %v5213
        %v5275 = vpop.permute.xlu0 %5274
        %5276 = vset.pattern.permute.xlu0 0
        %5277 = vperm.xlu0 %5276, %v5214
        %v5278 = vpop.permute.xlu0 %5277
        %v5279 = vlaneseq
        %v5280 = vshrl.u32 %v5279, 7
        %v5281 = vsub.s32 %v4820, %v5280
        %v5282 = vrot.slane %v5233, %v5281
        %v5283 = vlaneseq
        %v5284 = vshrl.u32 %v5283, 7
        %v5285 = vsub.s32 %v4825, %v5284
        %v5286 = vrot.slane %v5236, %v5285
        %v5287 = vsel %vm4830, %v5286, %v5282
        %v5288 = vlaneseq
        %v5289 = vshrl.u32 %v5288, 7
        %v5290 = vsub.s32 %v4820, %v5289
        %v5291 = vrot.slane %v5239, %v5290
        %v5292 = vlaneseq
        %v5293 = vshrl.u32 %v5292, 7
        %v5294 = vsub.s32 %v4825, %v5293
        %v5295 = vrot.slane %v5242, %v5294
        %v5296 = vsel %vm4830, %v5295, %v5291
        %v5297 = vlaneseq
        %v5298 = vshrl.u32 %v5297, 7
        %v5299 = vsub.s32 %v4820, %v5298
        %v5300 = vrot.slane %v5245, %v5299
        %v5301 = vlaneseq
        %v5302 = vshrl.u32 %v5301, 7
        %v5303 = vsub.s32 %v4825, %v5302
        %v5304 = vrot.slane %v5248, %v5303
        %v5305 = vsel %vm4830, %v5304, %v5300
        %v5306 = vlaneseq
        %v5307 = vshrl.u32 %v5306, 7
        %v5308 = vsub.s32 %v4820, %v5307
        %v5309 = vrot.slane %v5251, %v5308
        %v5310 = vlaneseq
        %v5311 = vshrl.u32 %v5310, 7
        %v5312 = vsub.s32 %v4825, %v5311
        %v5313 = vrot.slane %v5254, %v5312
        %v5314 = vsel %vm4830, %v5313, %v5309
        %v5315 = vlaneseq
        %v5316 = vshrl.u32 %v5315, 7
        %v5317 = vsub.s32 %v4820, %v5316
        %v5318 = vrot.slane %v5257, %v5317
        %v5319 = vlaneseq
        %v5320 = vshrl.u32 %v5319, 7
        %v5321 = vsub.s32 %v4825, %v5320
        %v5322 = vrot.slane %v5260, %v5321
        %v5323 = vsel %vm4830, %v5322, %v5318
        %v5324 = vlaneseq
        %v5325 = vshrl.u32 %v5324, 7
        %v5326 = vsub.s32 %v4820, %v5325
        %v5327 = vrot.slane %v5263, %v5326
        %v5328 = vlaneseq
        %v5329 = vshrl.u32 %v5328, 7
        %v5330 = vsub.s32 %v4825, %v5329
        %v5331 = vrot.slane %v5266, %v5330
        %v5332 = vsel %vm4830, %v5331, %v5327
        %v5333 = vlaneseq
        %v5334 = vshrl.u32 %v5333, 7
        %v5335 = vsub.s32 %v4820, %v5334
        %v5336 = vrot.slane %v5269, %v5335
        %v5337 = vlaneseq
        %v5338 = vshrl.u32 %v5337, 7
        %v5339 = vsub.s32 %v4825, %v5338
        %v5340 = vrot.slane %v5272, %v5339
        %v5341 = vsel %vm4830, %v5340, %v5336
        %v5342 = vlaneseq
        %v5343 = vshrl.u32 %v5342, 7
        %v5344 = vsub.s32 %v4820, %v5343
        %v5345 = vrot.slane %v5275, %v5344
        %v5346 = vlaneseq
        %v5347 = vshrl.u32 %v5346, 7
        %v5348 = vsub.s32 %v4825, %v5347
        %v5349 = vrot.slane %v5278, %v5348
        %v5350 = vsel %vm4830, %v5349, %v5345
        %v5351 = vsel %vm4895, %v5296, %v5287
        %v5352 = vsel %vm4897, %v5305, %v5351
        %v5353 = vsel %vm4899, %v5314, %v5352
        %v5354 = vsel %vm4901, %v5323, %v5353
        %v5355 = vsel %vm4903, %v5332, %v5354
        %v5356 = vsel %vm4905, %v5341, %v5355
        %v5357 = vsel %vm4907, %v5350, %v5356
        %v5359 = vsel %vm4910, %v5357, 0.0
        %5360 = vst [vmem:[%s1097] sm:$0xff] %v5359
        %v5361 = vunpack.c.l.bf16 %v4279
        %v5362 = vunpack.c.l.bf16 %v4280
        %v5363 = vunpack.c.l.bf16 %v4281
        %v5364 = vunpack.c.l.bf16 %v4282
        %v5365 = vunpack.c.l.bf16 %v4283
        %v5366 = vunpack.c.l.bf16 %v4284
        %v5367 = vunpack.c.l.bf16 %v4285
        %v5368 = vunpack.c.l.bf16 %v4286
        %v5369 = vunpack.c.l.bf16 %v4287
        %v5370 = vunpack.c.l.bf16 %v4288
        %v5371 = vunpack.c.l.bf16 %v4289
        %v5372 = vunpack.c.l.bf16 %v4290
        %v5373 = vunpack.c.l.bf16 %v4291
        %v5374 = vunpack.c.l.bf16 %v4292
        %v5375 = vunpack.c.l.bf16 %v4293
        %v5376 = vunpack.c.l.bf16 %v4294
        %v5393 = vmul.f32 %v5233, %v5361
        %v5394 = vmul.f32 %v5236, %v5362
        %v5395 = vmul.f32 %v5239, %v5363
        %v5396 = vmul.f32 %v5242, %v5364
        %v5397 = vmul.f32 %v5245, %v5365
        %v5398 = vmul.f32 %v5248, %v5366
        %v5399 = vmul.f32 %v5251, %v5367
        %v5400 = vmul.f32 %v5254, %v5368
        %v5401 = vmul.f32 %v5257, %v5369
        %v5402 = vmul.f32 %v5260, %v5370
        %v5403 = vmul.f32 %v5263, %v5371
        %v5404 = vmul.f32 %v5266, %v5372
        %v5405 = vmul.f32 %v5269, %v5373
        %v5406 = vmul.f32 %v5272, %v5374
        %v5407 = vmul.f32 %v5275, %v5375
        %v5408 = vmul.f32 %v5278, %v5376
        %v5409 = vsel %vm4374, %v5393, 0.0
        %v5410 = vsel %vm4374, %v5394, 0.0
        %v5411 = vadd.f32 %v5409, %v5410
        %v5412 = vrot.slane %v5411, 4
        %v5413 = vadd.f32 %v5411, %v5412
        %v5414 = vrot.slane %v5413, 2
        %v5415 = vadd.f32 %v5413, %v5414
        %v5416 = vrot.slane %v5415, 1
        %v5417 = vadd.f32 %v5415, %v5416
        %v5418 = vsel %vm4374, %v5395, 0.0
        %v5419 = vsel %vm4374, %v5396, 0.0
        %v5420 = vadd.f32 %v5418, %v5419
        %v5421 = vrot.slane %v5420, 4
        %v5422 = vadd.f32 %v5420, %v5421
        %v5423 = vrot.slane %v5422, 2
        %v5424 = vadd.f32 %v5422, %v5423
        %v5425 = vrot.slane %v5424, 1
        %v5426 = vadd.f32 %v5424, %v5425
        %v5427 = vsel %vm4374, %v5397, 0.0
        %v5428 = vsel %vm4374, %v5398, 0.0
        %v5429 = vadd.f32 %v5427, %v5428
        %v5430 = vrot.slane %v5429, 4
        %v5431 = vadd.f32 %v5429, %v5430
        %v5432 = vrot.slane %v5431, 2
        %v5433 = vadd.f32 %v5431, %v5432
        %v5434 = vrot.slane %v5433, 1
        %v5435 = vadd.f32 %v5433, %v5434
        %v5436 = vsel %vm4374, %v5399, 0.0
        %v5437 = vsel %vm4374, %v5400, 0.0
        %v5438 = vadd.f32 %v5436, %v5437
        %v5439 = vrot.slane %v5438, 4
        %v5440 = vadd.f32 %v5438, %v5439
        %v5441 = vrot.slane %v5440, 2
        %v5442 = vadd.f32 %v5440, %v5441
        %v5443 = vrot.slane %v5442, 1
        %v5444 = vadd.f32 %v5442, %v5443
        %v5445 = vsel %vm4374, %v5401, 0.0
        %v5446 = vsel %vm4374, %v5402, 0.0
        %v5447 = vadd.f32 %v5445, %v5446
        %v5448 = vrot.slane %v5447, 4
        %v5449 = vadd.f32 %v5447, %v5448
        %v5450 = vrot.slane %v5449, 2
        %v5451 = vadd.f32 %v5449, %v5450
        %v5452 = vrot.slane %v5451, 1
        %v5453 = vadd.f32 %v5451, %v5452
        %v5454 = vsel %vm4374, %v5403, 0.0
        %v5455 = vsel %vm4374, %v5404, 0.0
        %v5456 = vadd.f32 %v5454, %v5455
        %v5457 = vrot.slane %v5456, 4
        %v5458 = vadd.f32 %v5456, %v5457
        %v5459 = vrot.slane %v5458, 2
        %v5460 = vadd.f32 %v5458, %v5459
        %v5461 = vrot.slane %v5460, 1
        %v5462 = vadd.f32 %v5460, %v5461
        %v5463 = vsel %vm4374, %v5405, 0.0
        %v5464 = vsel %vm4374, %v5406, 0.0
        %v5465 = vadd.f32 %v5463, %v5464
        %v5466 = vrot.slane %v5465, 4
        %v5467 = vadd.f32 %v5465, %v5466
        %v5468 = vrot.slane %v5467, 2
        %v5469 = vadd.f32 %v5467, %v5468
        %v5470 = vrot.slane %v5469, 1
        %v5471 = vadd.f32 %v5469, %v5470
        %v5472 = vsel %vm4374, %v5407, 0.0
        %v5473 = vsel %vm4374, %v5408, 0.0
        %v5474 = vadd.f32 %v5472, %v5473
        %v5475 = vrot.slane %v5474, 4
        %v5476 = vadd.f32 %v5474, %v5475
        %v5477 = vrot.slane %v5476, 2
        %v5478 = vadd.f32 %v5476, %v5477
        %v5479 = vrot.slane %v5478, 1
        %v5480 = vadd.f32 %v5478, %v5479
        %v5481 = vpack.c.bf16 %v5417, %v5417
        %v5482 = vpack.c.bf16 %v5426, %v5426
        %v5483 = vpack.c.bf16 %v5435, %v5435
        %v5484 = vpack.c.bf16 %v5444, %v5444
        %v5485 = vpack.c.bf16 %v5453, %v5453
        %v5486 = vpack.c.bf16 %v5462, %v5462
        %v5487 = vpack.c.bf16 %v5471, %v5471
        %v5488 = vpack.c.bf16 %v5480, %v5480
        %v5489 = vld [vmem:[#allocation15] sm:$0xf]
        %v5490 = vld [vmem:[#allocation15 + $0x4] sm:$0xf]
        %v5491 = vld [vmem:[#allocation15 + $0x8] sm:$0xf]
        %v5492 = vld [vmem:[#allocation15 + $0xc] sm:$0xf]
        %v5493 = vld [vmem:[#allocation15 + $0x10] sm:$0xf]
        %v5494 = vld [vmem:[#allocation15 + $0x14] sm:$0xf]
        %v5495 = vld [vmem:[#allocation15 + $0x18] sm:$0xf]
        %v5496 = vld [vmem:[#allocation15 + $0x1c] sm:$0xf]
        %v5497 = vld [vmem:[#allocation16] sm:$0x1]
        %v5499 = vlaneseq
        %v5500 = vshrl.u32 %v5499, 7
        %v5501 = vsub.s32 0, %v5500
        %v5502 = vrot.slane %v5497, %v5501
        %v5512 = vunpack.c.l.b16 %v5481
        %v5513 = vunpack.c.l.b16 %v5482
        %v5514 = vunpack.c.l.b16 %v5483
        %v5515 = vunpack.c.l.b16 %v5484
        %v5516 = vunpack.c.l.b16 %v5485
        %v5517 = vunpack.c.l.b16 %v5486
        %v5518 = vunpack.c.l.b16 %v5487
        %v5519 = vunpack.c.l.b16 %v5488
        %v5520 = vsel %vm4895, %v5513, %v5512
        %v5521 = vsel %vm4897, %v5514, %v5520
        %v5522 = vsel %vm4899, %v5515, %v5521
        %v5523 = vsel %vm4901, %v5516, %v5522
        %v5524 = vsel %vm4903, %v5517, %v5523
        %v5525 = vsel %vm4905, %v5518, %v5524
        %v5526 = vsel %vm4907, %v5519, %v5525
        %v5527 = vpack.c.b16 %v5526, %v5526
        %v5536 = vunpack.c.l.b16 %v5489
        %v5537 = vunpack.c.l.b16 %v5490
        %v5538 = vunpack.c.l.b16 %v5491
        %v5539 = vunpack.c.l.b16 %v5492
        %v5540 = vunpack.c.l.b16 %v5493
        %v5541 = vunpack.c.l.b16 %v5494
        %v5542 = vunpack.c.l.b16 %v5495
        %v5543 = vunpack.c.l.b16 %v5496
        %v5544 = vpack.c.b16 %v5537, %v5536
        %v5545 = vpack.c.b16 %v5539, %v5538
        %v5546 = vpack.c.b16 %v5541, %v5540
        %v5547 = vpack.c.b16 %v5543, %v5542
        %v5553 = vsel %vm4374, %v5527, 0
        %5555 = vmatprep.subr.bf16.mxu0 0
        %5556 = vmatpush1.bf16.msra.mxu0 %v5544
        %5557 = vmatprep.subr.bf16.mxu0 0
        %5558 = vmatpush1.bf16.msra.mxu0 %v5545
        %5559 = vmatprep.subr.bf16.mxu0 0
        %5560 = vmatpush1.bf16.msra.mxu0 %v5546
        %5561 = vmatprep.subr.bf16.mxu0 0
        %5562 = vmatpush1.bf16.msra.mxu0 %v5547
        %5563 = vmatprep.subr.bf16.mxu0 0
        %5564 = vmatpush1.bf16.msra.mxu0 0
        %5565 = vmatprep.subr.bf16.mxu0 0
        %5566 = vmatpush1.bf16.msra.mxu0 0
        %5567 = vmatprep.subr.bf16.mxu0 0
        %5568 = vmatpush1.bf16.msra.mxu0 0
        %5569 = vmatprep.subr.bf16.mxu0 0
        %5570 = vmatpush1.bf16.msra.mxu0 0
        %5571 = vmatprep.subr.bf16.mxu0 0
        %5572 = vmatpush1.bf16.msra.mxu0 0
        %5573 = vmatprep.subr.bf16.mxu0 0
        %5574 = vmatpush1.bf16.msra.mxu0 0
        %5575 = vmatprep.subr.bf16.mxu0 0
        %5576 = vmatpush1.bf16.msra.mxu0 0
        %5577 = vmatprep.subr.bf16.mxu0 0
        %5578 = vmatpush1.bf16.msra.mxu0 0
        %5579 = vmatprep.subr.bf16.mxu0 0
        %5580 = vmatpush1.bf16.msra.mxu0 0
        %5581 = vmatprep.subr.bf16.mxu0 0
        %5582 = vmatpush1.bf16.msra.mxu0 0
        %5583 = vmatprep.subr.bf16.mxu0 0
        %5584 = vmatpush1.bf16.msra.mxu0 0
        %5585 = vmatprep.subr.bf16.mxu0 0
        %5586 = vmatpush1.bf16.msra.mxu0 0
        %5587 = vmatprep.mubr.bf16.mxu0 0
        %5588 = vmatmul.mubr.bf16.gmra.mrb[0].mxu0 %v5553
        %v5589 = vpop.f32.mrb[0].mxu0
        %v5590 = vadd.f32 %v5502, %v5589
        %v5591 = vpop.f32.mrb[0].mxu0
        %v5592 = vpop.f32.mrb[0].mxu0
        %v5593 = vpop.f32.mrb[0].mxu0
        %5594 = vdwg.mxu0
        %v5595 = vmul.f32 %v5590, %v4278
        %v5596 = vpack.c.bf16 %v5595, %v5595
        %v5597 = vld [vmem:[%s18] sm:$0xf]
        %v5598 = vld [vmem:[%s18 + $0x4] sm:$0xf]
        %v5599 = vld [vmem:[%s18 + $0x8] sm:$0xf]
        %v5600 = vld [vmem:[%s18 + $0xc] sm:$0xf]
        %v5601 = vld [vmem:[%s18 + $0x10] sm:$0xf]
        %v5602 = vld [vmem:[%s18 + $0x14] sm:$0xf]
        %v5603 = vld [vmem:[%s18 + $0x18] sm:$0xf]
        %v5604 = vld [vmem:[%s18 + $0x1c] sm:$0xf]
        %v5605 = vld [vmem:[%s18 + $0x20] sm:$0xf]
        %v5606 = vld [vmem:[%s18 + $0x24] sm:$0xf]
        %v5607 = vld [vmem:[%s18 + $0x28] sm:$0xf]
        %v5608 = vld [vmem:[%s18 + $0x2c] sm:$0xf]
        %v5609 = vld [vmem:[%s18 + $0x30] sm:$0xf]
        %v5610 = vld [vmem:[%s18 + $0x34] sm:$0xf]
        %v5611 = vld [vmem:[%s18 + $0x38] sm:$0xf]
        %v5612 = vld [vmem:[%s18 + $0x3c] sm:$0xf]
        %v5613 = vld [vmem:[#allocation18] sm:$0x1]
        %v5615 = vlaneseq
        %v5616 = vshrl.u32 %v5615, 7
        %v5617 = vsub.s32 0, %v5616
        %v5618 = vrot.slane %v5613, %v5617
        %v5636 = vunpack.c.l.b16 %v5597
        %v5637 = vunpack.c.l.b16 %v5598
        %v5638 = vunpack.c.l.b16 %v5599
        %v5639 = vunpack.c.l.b16 %v5600
        %v5640 = vunpack.c.l.b16 %v5601
        %v5641 = vunpack.c.l.b16 %v5602
        %v5642 = vunpack.c.l.b16 %v5603
        %v5643 = vunpack.c.l.b16 %v5604
        %v5644 = vunpack.c.l.b16 %v5605
        %v5645 = vunpack.c.l.b16 %v5606
        %v5646 = vunpack.c.l.b16 %v5607
        %v5647 = vunpack.c.l.b16 %v5608
        %v5648 = vunpack.c.l.b16 %v5609
        %v5649 = vunpack.c.l.b16 %v5610
        %v5650 = vunpack.c.l.b16 %v5611
        %v5651 = vunpack.c.l.b16 %v5612
        %v5652 = vpack.c.b16 %v5637, %v5636
        %v5653 = vpack.c.b16 %v5639, %v5638
        %v5654 = vpack.c.b16 %v5641, %v5640
        %v5655 = vpack.c.b16 %v5643, %v5642
        %v5656 = vpack.c.b16 %v5645, %v5644
        %v5657 = vpack.c.b16 %v5647, %v5646
        %v5658 = vpack.c.b16 %v5649, %v5648
        %v5659 = vpack.c.b16 %v5651, %v5650
        %5668 = vmatprep.subr.bf16.mxu0 0
        %5669 = vmatpush1.bf16.msra.mxu0 %v5652
        %5670 = vmatprep.subr.bf16.mxu0 0
        %5671 = vmatpush1.bf16.msra.mxu0 %v5653
        %5672 = vmatprep.subr.bf16.mxu0 0
        %5673 = vmatpush1.bf16.msra.mxu0 %v5654
        %5674 = vmatprep.subr.bf16.mxu0 0
        %5675 = vmatpush1.bf16.msra.mxu0 %v5655
        %5676 = vmatprep.subr.bf16.mxu0 0
        %5677 = vmatpush1.bf16.msra.mxu0 %v5656
        %5678 = vmatprep.subr.bf16.mxu0 0
        %5679 = vmatpush1.bf16.msra.mxu0 %v5657
        %5680 = vmatprep.subr.bf16.mxu0 0
        %5681 = vmatpush1.bf16.msra.mxu0 %v5658
        %5682 = vmatprep.subr.bf16.mxu0 0
        %5683 = vmatpush1.bf16.msra.mxu0 %v5659
        %5684 = vmatprep.subr.bf16.mxu0 0
        %5685 = vmatpush1.bf16.msra.mxu0 0
        %5686 = vmatprep.subr.bf16.mxu0 0
        %5687 = vmatpush1.bf16.msra.mxu0 0
        %5688 = vmatprep.subr.bf16.mxu0 0
        %5689 = vmatpush1.bf16.msra.mxu0 0
        %5690 = vmatprep.subr.bf16.mxu0 0
        %5691 = vmatpush1.bf16.msra.mxu0 0
        %5692 = vmatprep.subr.bf16.mxu0 0
        %5693 = vmatpush1.bf16.msra.mxu0 0
        %5694 = vmatprep.subr.bf16.mxu0 0
        %5695 = vmatpush1.bf16.msra.mxu0 0
        %5696 = vmatprep.subr.bf16.mxu0 0
        %5697 = vmatpush1.bf16.msra.mxu0 0
        %5698 = vmatprep.subr.bf16.mxu0 0
        %5699 = vmatpush1.bf16.msra.mxu0 0
        %5700 = vmatprep.mubr.bf16.mxu0 0
        %5701 = vmatmul.mubr.bf16.gmra.mrb[0].mxu0 %v5596
        %v5702 = vpop.f32.mrb[0].mxu0
        %v5703 = vadd.f32 %v5618, %v5702
        %v5704 = vpop.f32.mrb[0].mxu0
        %v5705 = vpop.f32.mrb[0].mxu0
        %v5706 = vpop.f32.mrb[0].mxu0
        %5707 = vdwg.mxu0
        %v5708 = vtanh.pop %v5703
        %v5709 = vld [vmem:[%s20] sm:$0xf]
        %v5710 = vld [vmem:[%s20 + $0x4] sm:$0xf]
        %v5711 = vld [vmem:[%s20 + $0x8] sm:$0xf]
        %v5712 = vld [vmem:[%s20 + $0xc] sm:$0xf]
        %v5713 = vld [vmem:[%s20 + $0x10] sm:$0xf]
        %v5714 = vld [vmem:[%s20 + $0x14] sm:$0xf]
        %v5715 = vld [vmem:[%s20 + $0x18] sm:$0xf]
        %v5716 = vld [vmem:[%s20 + $0x1c] sm:$0xf]
        %v5717 = vld [vmem:[%s20 + $0x20] sm:$0xf]
        %v5718 = vld [vmem:[%s20 + $0x24] sm:$0xf]
        %v5719 = vld [vmem:[%s20 + $0x28] sm:$0xf]
        %v5720 = vld [vmem:[%s20 + $0x2c] sm:$0xf]
        %v5721 = vld [vmem:[%s20 + $0x30] sm:$0xf]
        %v5722 = vld [vmem:[%s20 + $0x34] sm:$0xf]
        %v5723 = vld [vmem:[%s20 + $0x38] sm:$0xf]
        %v5724 = vld [vmem:[%s20 + $0x3c] sm:$0xf]
        %v5725 = vld [vmem:[#allocation19] sm:$0x1]
        %v5727 = vlaneseq
        %v5728 = vshrl.u32 %v5727, 7
        %v5729 = vsub.s32 0, %v5728
        %v5730 = vrot.slane %v5725, %v5729
        %v5748 = vunpack.c.l.b16 %v5709
        %v5749 = vunpack.c.l.b16 %v5710
        %v5750 = vunpack.c.l.b16 %v5711
        %v5751 = vunpack.c.l.b16 %v5712
        %v5752 = vunpack.c.l.b16 %v5713
        %v5753 = vunpack.c.l.b16 %v5714
        %v5754 = vunpack.c.l.b16 %v5715
        %v5755 = vunpack.c.l.b16 %v5716
        %v5756 = vunpack.c.l.b16 %v5717
        %v5757 = vunpack.c.l.b16 %v5718
        %v5758 = vunpack.c.l.b16 %v5719
        %v5759 = vunpack.c.l.b16 %v5720
        %v5760 = vunpack.c.l.b16 %v5721
        %v5761 = vunpack.c.l.b16 %v5722
        %v5762 = vunpack.c.l.b16 %v5723
        %v5763 = vunpack.c.l.b16 %v5724
        %v5764 = vpack.c.b16 %v5749, %v5748
        %v5765 = vpack.c.b16 %v5751, %v5750
        %v5766 = vpack.c.b16 %v5753, %v5752
        %v5767 = vpack.c.b16 %v5755, %v5754
        %v5768 = vpack.c.b16 %v5757, %v5756
        %v5769 = vpack.c.b16 %v5759, %v5758
        %v5770 = vpack.c.b16 %v5761, %v5760
        %v5771 = vpack.c.b16 %v5763, %v5762
        %5780 = vmatprep.subr.bf16.mxu0 0
        %5781 = vmatpush1.bf16.msra.mxu0 %v5764
        %5782 = vmatprep.subr.bf16.mxu0 0
        %5783 = vmatpush1.bf16.msra.mxu0 %v5765
        %5784 = vmatprep.subr.bf16.mxu0 0
        %5785 = vmatpush1.bf16.msra.mxu0 %v5766
        %5786 = vmatprep.subr.bf16.mxu0 0
        %5787 = vmatpush1.bf16.msra.mxu0 %v5767
        %5788 = vmatprep.subr.bf16.mxu0 0
        %5789 = vmatpush1.bf16.msra.mxu0 %v5768
        %5790 = vmatprep.subr.bf16.mxu0 0
        %5791 = vmatpush1.bf16.msra.mxu0 %v5769
        %5792 = vmatprep.subr.bf16.mxu0 0
        %5793 = vmatpush1.bf16.msra.mxu0 %v5770
        %5794 = vmatprep.subr.bf16.mxu0 0
        %5795 = vmatpush1.bf16.msra.mxu0 %v5771
        %5796 = vmatprep.subr.bf16.mxu0 0
        %5797 = vmatpush1.bf16.msra.mxu0 0
        %5798 = vmatprep.subr.bf16.mxu0 0
        %5799 = vmatpush1.bf16.msra.mxu0 0
        %5800 = vmatprep.subr.bf16.mxu0 0
        %5801 = vmatpush1.bf16.msra.mxu0 0
        %5802 = vmatprep.subr.bf16.mxu0 0
        %5803 = vmatpush1.bf16.msra.mxu0 0
        %5804 = vmatprep.subr.bf16.mxu0 0
        %5805 = vmatpush1.bf16.msra.mxu0 0
        %5806 = vmatprep.subr.bf16.mxu0 0
        %5807 = vmatpush1.bf16.msra.mxu0 0
        %5808 = vmatprep.subr.bf16.mxu0 0
        %5809 = vmatpush1.bf16.msra.mxu0 0
        %5810 = vmatprep.subr.bf16.mxu0 0
        %5811 = vmatpush1.bf16.msra.mxu0 0
        %5812 = vmatprep.mubr.bf16.mxu0 0
        %5813 = vmatmul.mubr.bf16.gmra.mrb[0].mxu0 %v5596
        %v5814 = vpop.f32.mrb[0].mxu0
        %v5815 = vadd.f32 %v5730, %v5814
        %v5816 = vpop.f32.mrb[0].mxu0
        %v5817 = vpop.f32.mrb[0].mxu0
        %v5818 = vpop.f32.mrb[0].mxu0
        %5819 = vdwg.mxu0
        %v5820 = vxor.u32 %v5815, 2147483648
        %v5821 = vmul.f32 %v5820, 1.442695
        %v5822 = vpow.pop %v5821
        %v5823 = vadd.f32 %v5822, 1.0
        %v5824 = vrcp.pop %v5823
        %v5825 = vmul.f32 1.0, %v5824
        %v5826 = vmul.f32 %v5708, %v5825
        %v5827 = vpack.c.bf16 %v5826, %v5826
        %v5828 = vld [vmem:[#allocation21] sm:$0xf]
        %v5829 = vld [vmem:[#allocation21 + $0x4] sm:$0xf]
        %v5830 = vld [vmem:[#allocation21 + $0x8] sm:$0xf]
        %v5831 = vld [vmem:[#allocation21 + $0xc] sm:$0xf]
        %v5832 = vld [vmem:[#allocation21 + $0x10] sm:$0xf]
        %v5833 = vld [vmem:[#allocation21 + $0x14] sm:$0xf]
        %v5834 = vld [vmem:[#allocation21 + $0x18] sm:$0xf]
        %v5835 = vld [vmem:[#allocation21 + $0x1c] sm:$0xf]
        %v5836 = vld [vmem:[#allocation21 + $0x20] sm:$0xf]
        %v5837 = vld [vmem:[#allocation21 + $0x24] sm:$0xf]
        %v5838 = vld [vmem:[#allocation21 + $0x28] sm:$0xf]
        %v5839 = vld [vmem:[#allocation21 + $0x2c] sm:$0xf]
        %v5840 = vld [vmem:[#allocation21 + $0x30] sm:$0xf]
        %v5841 = vld [vmem:[#allocation21 + $0x34] sm:$0xf]
        %v5842 = vld [vmem:[#allocation21 + $0x38] sm:$0xf]
        %v5843 = vld [vmem:[#allocation21 + $0x3c] sm:$0xf]
        %v5844 = vld [vmem:[#allocation22] sm:$0x1]
        %v5846 = vlaneseq
        %v5847 = vshrl.u32 %v5846, 7
        %v5848 = vsub.s32 0, %v5847
        %v5849 = vrot.slane %v5844, %v5848
        %v5867 = vunpack.c.l.b16 %v5828
        %v5868 = vunpack.c.l.b16 %v5829
        %v5869 = vunpack.c.l.b16 %v5830
        %v5870 = vunpack.c.l.b16 %v5831
        %v5871 = vunpack.c.l.b16 %v5832
        %v5872 = vunpack.c.l.b16 %v5833
        %v5873 = vunpack.c.l.b16 %v5834
        %v5874 = vunpack.c.l.b16 %v5835
        %v5875 = vunpack.c.l.b16 %v5836
        %v5876 = vunpack.c.l.b16 %v5837
        %v5877 = vunpack.c.l.b16 %v5838
        %v5878 = vunpack.c.l.b16 %v5839
        %v5879 = vunpack.c.l.b16 %v5840
        %v5880 = vunpack.c.l.b16 %v5841
        %v5881 = vunpack.c.l.b16 %v5842
        %v5882 = vunpack.c.l.b16 %v5843
        %v5883 = vpack.c.b16 %v5868, %v5867
        %v5884 = vpack.c.b16 %v5870, %v5869
        %v5885 = vpack.c.b16 %v5872, %v5871
        %v5886 = vpack.c.b16 %v5874, %v5873
        %v5887 = vpack.c.b16 %v5876, %v5875
        %v5888 = vpack.c.b16 %v5878, %v5877
        %v5889 = vpack.c.b16 %v5880, %v5879
        %v5890 = vpack.c.b16 %v5882, %v5881
        %5899 = vmatprep.subr.bf16.mxu0 0
        %5900 = vmatpush1.bf16.msra.mxu0 %v5883
        %5901 = vmatprep.subr.bf16.mxu0 0
        %5902 = vmatpush1.bf16.msra.mxu0 %v5884
        %5903 = vmatprep.subr.bf16.mxu0 0
        %5904 = vmatpush1.bf16.msra.mxu0 %v5885
        %5905 = vmatprep.subr.bf16.mxu0 0
        %5906 = vmatpush1.bf16.msra.mxu0 %v5886
        %5907 = vmatprep.subr.bf16.mxu0 0
        %5908 = vmatpush1.bf16.msra.mxu0 %v5887
        %5909 = vmatprep.subr.bf16.mxu0 0
        %5910 = vmatpush1.bf16.msra.mxu0 %v5888
        %5911 = vmatprep.subr.bf16.mxu0 0
        %5912 = vmatpush1.bf16.msra.mxu0 %v5889
        %5913 = vmatprep.subr.bf16.mxu0 0
        %5914 = vmatpush1.bf16.msra.mxu0 %v5890
        %5915 = vmatprep.subr.bf16.mxu0 0
        %5916 = vmatpush1.bf16.msra.mxu0 0
        %5917 = vmatprep.subr.bf16.mxu0 0
        %5918 = vmatpush1.bf16.msra.mxu0 0
        %5919 = vmatprep.subr.bf16.mxu0 0
        %5920 = vmatpush1.bf16.msra.mxu0 0
        %5921 = vmatprep.subr.bf16.mxu0 0
        %5922 = vmatpush1.bf16.msra.mxu0 0
        %5923 = vmatprep.subr.bf16.mxu0 0
        %5924 = vmatpush1.bf16.msra.mxu0 0
        %5925 = vmatprep.subr.bf16.mxu0 0
        %5926 = vmatpush1.bf16.msra.mxu0 0
        %5927 = vmatprep.subr.bf16.mxu0 0
        %5928 = vmatpush1.bf16.msra.mxu0 0
        %5929 = vmatprep.subr.bf16.mxu0 0
        %5930 = vmatpush1.bf16.msra.mxu0 0
        %5931 = vmatprep.mubr.bf16.mxu0 0
        %5932 = vmatmul.mubr.bf16.gmra.mrb[0].mxu0 %v5827
        %v5933 = vpop.f32.mrb[0].mxu0
        %v5934 = vadd.f32 %v5849, %v5933
        %v5935 = vpop.f32.mrb[0].mxu0
        %v5936 = vpop.f32.mrb[0].mxu0
        %v5937 = vpop.f32.mrb[0].mxu0
        %5938 = vdwg.mxu0
        %v5939 = vmax.f32 %v5934, 0.0
        %v5940 = vpack.c.bf16 %v5939, %v5939
        %v5941 = vld [vmem:[#allocation24] sm:$0xf]
        %v5942 = vld [vmem:[#allocation24 + $0x4] sm:$0xf]
        %v5943 = vld [vmem:[#allocation24 + $0x8] sm:$0xf]
        %v5944 = vld [vmem:[#allocation24 + $0xc] sm:$0xf]
        %v5945 = vld [vmem:[#allocation24 + $0x10] sm:$0xf]
        %v5946 = vld [vmem:[#allocation24 + $0x14] sm:$0xf]
        %v5947 = vld [vmem:[#allocation24 + $0x18] sm:$0xf]
        %v5948 = vld [vmem:[#allocation24 + $0x1c] sm:$0xf]
        %v5949 = vld [vmem:[#allocation24 + $0x20] sm:$0xf]
        %v5950 = vld [vmem:[#allocation24 + $0x24] sm:$0xf]
        %v5951 = vld [vmem:[#allocation24 + $0x28] sm:$0xf]
        %v5952 = vld [vmem:[#allocation24 + $0x2c] sm:$0xf]
        %v5953 = vld [vmem:[#allocation24 + $0x30] sm:$0xf]
        %v5954 = vld [vmem:[#allocation24 + $0x34] sm:$0xf]
        %v5955 = vld [vmem:[#allocation24 + $0x38] sm:$0xf]
        %v5956 = vld [vmem:[#allocation24 + $0x3c] sm:$0xf]
        %v5957 = vld [vmem:[#allocation25] sm:$0x1]
        %v5959 = vlaneseq
        %v5960 = vshrl.u32 %v5959, 7
        %v5961 = vsub.s32 0, %v5960
        %v5962 = vrot.slane %v5957, %v5961
        %v5980 = vunpack.c.l.b16 %v5941
        %v5981 = vunpack.c.l.b16 %v5942
        %v5982 = vunpack.c.l.b16 %v5943
        %v5983 = vunpack.c.l.b16 %v5944
        %v5984 = vunpack.c.l.b16 %v5945
        %v5985 = vunpack.c.l.b16 %v5946
        %v5986 = vunpack.c.l.b16 %v5947
        %v5987 = vunpack.c.l.b16 %v5948
        %v5988 = vunpack.c.l.b16 %v5949
        %v5989 = vunpack.c.l.b16 %v5950
        %v5990 = vunpack.c.l.b16 %v5951
        %v5991 = vunpack.c.l.b16 %v5952
        %v5992 = vunpack.c.l.b16 %v5953
        %v5993 = vunpack.c.l.b16 %v5954
        %v5994 = vunpack.c.l.b16 %v5955
        %v5995 = vunpack.c.l.b16 %v5956
        %v5996 = vpack.c.b16 %v5981, %v5980
        %v5997 = vpack.c.b16 %v5983, %v5982
        %v5998 = vpack.c.b16 %v5985, %v5984
        %v5999 = vpack.c.b16 %v5987, %v5986
        %v6000 = vpack.c.b16 %v5989, %v5988
        %v6001 = vpack.c.b16 %v5991, %v5990
        %v6002 = vpack.c.b16 %v5993, %v5992
        %v6003 = vpack.c.b16 %v5995, %v5994
        %6012 = vmatprep.subr.bf16.mxu0 0
        %6013 = vmatpush1.bf16.msra.mxu0 %v5996
        %6014 = vmatprep.subr.bf16.mxu0 0
        %6015 = vmatpush1.bf16.msra.mxu0 %v5997
        %6016 = vmatprep.subr.bf16.mxu0 0
        %6017 = vmatpush1.bf16.msra.mxu0 %v5998
        %6018 = vmatprep.subr.bf16.mxu0 0
        %6019 = vmatpush1.bf16.msra.mxu0 %v5999
        %6020 = vmatprep.subr.bf16.mxu0 0
        %6021 = vmatpush1.bf16.msra.mxu0 %v6000
        %6022 = vmatprep.subr.bf16.mxu0 0
        %6023 = vmatpush1.bf16.msra.mxu0 %v6001
        %6024 = vmatprep.subr.bf16.mxu0 0
        %6025 = vmatpush1.bf16.msra.mxu0 %v6002
        %6026 = vmatprep.subr.bf16.mxu0 0
        %6027 = vmatpush1.bf16.msra.mxu0 %v6003
        %6028 = vmatprep.subr.bf16.mxu0 0
        %6029 = vmatpush1.bf16.msra.mxu0 0
        %6030 = vmatprep.subr.bf16.mxu0 0
        %6031 = vmatpush1.bf16.msra.mxu0 0
        %6032 = vmatprep.subr.bf16.mxu0 0
        %6033 = vmatpush1.bf16.msra.mxu0 0
        %6034 = vmatprep.subr.bf16.mxu0 0
        %6035 = vmatpush1.bf16.msra.mxu0 0
        %6036 = vmatprep.subr.bf16.mxu0 0
        %6037 = vmatpush1.bf16.msra.mxu0 0
        %6038 = vmatprep.subr.bf16.mxu0 0
        %6039 = vmatpush1.bf16.msra.mxu0 0
        %6040 = vmatprep.subr.bf16.mxu0 0
        %6041 = vmatpush1.bf16.msra.mxu0 0
        %6042 = vmatprep.subr.bf16.mxu0 0
        %6043 = vmatpush1.bf16.msra.mxu0 0
        %6044 = vmatprep.mubr.bf16.mxu0 0
        %6045 = vmatmul.mubr.bf16.gmra.mrb[0].mxu0 %v5940
        %v6046 = vpop.f32.mrb[0].mxu0
        %v6047 = vadd.f32 %v5962, %v6046
        %v6048 = vpop.f32.mrb[0].mxu0
        %v6049 = vpop.f32.mrb[0].mxu0
        %v6050 = vpop.f32.mrb[0].mxu0
        %6051 = vdwg.mxu0
        %6052 = vst [vmem:[%s1090] sm:$0xff] %v6047
        %s6053 = sand.u32 %s618, 1
        %s6054 = scalar_lea.sflag [#allocation6], %s6053
        %s6055 = sand.u32 %s618, 1
        %s6056 = smul.addr %s6055, 8
        %s6057 = scalar_lea.vmem [#allocation27], %s6056
        %s6058 = sand.u32 %s644, 1
        %s6059 = scalar_lea.sflag [#allocation29], %s6058
        %s6060 = sand.u32 %s644, 1
        %s6061 = smul.addr %s6060, 8
        %s6062 = scalar_lea.vmem [#allocation28], %s6061
        // Predicated region
        $region222: #{vqa_forward.1} parent=160 // pred_check
          %p6063 = pneg %p628
        $region223: #{vqa_forward.1} parent=160 // pred_check_branch
          %6065 = sbr.rel (%p6063) target = $region225
        $region224: #{vqa_forward.1} parent=160 // pred_region
          %s6067 = ssub.s32 128, 128
          %6068 = vsyncadd %s6054, %s6067
          %s6069 = smul.addr %s54, 128
          %s6070 = scalar_lea.hbm %s26, %s6069
          %s6072 = sshll.u32 %s6057, 4
          %s6073 = int_to_ptr.vmem [resolvable:$true] %s6072
          %6075 = dma.vmem_to_hbm [thread:$0]  %s6073, 128, %s6070, %s6054
        $region225: #{vqa_forward.1} parent=160 // pred_fallthru
          _
        // Predicated region
        $region226: #{vqa_forward.1} parent=160 // pred_check
          %p6076 = pneg %p654
        $region227: #{vqa_forward.1} parent=160 // pred_check_branch
          %6078 = sbr.rel (%p6076) target = $region229
        $region228: #{vqa_forward.1} parent=160 // pred_region
          %s6080 = ssub.s32 128, 128
          %6081 = vsyncadd %s6059, %s6080
          %s6082 = smul.addr %s54, 128
          %s6083 = scalar_lea.hbm %s27, %s6082
          %s6085 = sshll.u32 %s6062, 4
          %s6086 = int_to_ptr.vmem [resolvable:$true] %s6085
          %6088 = dma.vmem_to_hbm [thread:$0]  %s6086, 128, %s6083, %s6059
        $region229: #{vqa_forward.1} parent=160 // pred_fallthru
          _
      $region161: #{vqa_forward.1} parent=5 // pred_fallthru
        _
      %p6089 = scmp.le.s32.totalorder 2, %s49
      // Predicated region
      $region230: #{vqa_forward.1} parent=5 // pred_check
        %p6090 = pneg %p6089
      $region231: #{vqa_forward.1} parent=5 // pred_check_branch
        %6092 = sbr.rel (%p6090) target = $region233
      $region232: #{vqa_forward.1} parent=5 // pred_region
        %s6093 = ssub.s32 %s49, 2
        // Predicated region
        $region234: #{vqa_forward.1} parent=232 // pred_check
          %p6094 = pneg %p634
        $region235: #{vqa_forward.1} parent=232 // pred_check_branch
          %6096 = sbr.rel (%p6094) target = $region237
        $region236: #{vqa_forward.1} parent=232 // pred_region
          %s6097 = sand.u32 %s619, 1
          %s6098 = scalar_lea.sflag [#allocation6], %s6097
          %s6099 = sand.u32 %s619, 1
          %s6100 = smul.addr %s6099, 8
          %s6101 = scalar_lea.vmem [#allocation27], %s6100
          %6102 = dma.done %s6098, 128
        $region237: #{vqa_forward.1} parent=232 // pred_fallthru
          _
        // Predicated region
        $region238: #{vqa_forward.1} parent=232 // pred_check
          %p6103 = pneg %p660
        $region239: #{vqa_forward.1} parent=232 // pred_check_branch
          %6105 = sbr.rel (%p6103) target = $region241
        $region240: #{vqa_forward.1} parent=232 // pred_region
          %s6106 = sand.u32 %s645, 1
          %s6107 = scalar_lea.sflag [#allocation29], %s6106
          %s6108 = sand.u32 %s645, 1
          %s6109 = smul.addr %s6108, 8
          %s6110 = scalar_lea.vmem [#allocation28], %s6109
          %6111 = dma.done %s6107, 128
        $region241: #{vqa_forward.1} parent=232 // pred_fallthru
          _
      $region233: #{vqa_forward.1} parent=5 // pred_fallthru
        _
    $region6: #{vqa_forward.1} parent=1 // loop_footer
      %s53 = sadd.s32 1, %s49
    $region7: #{vqa_forward.1} parent=1 // loop_footer_branch
      %48 = sbr.rel target = $region3
    $region8: #{vqa_forward.1} parent=1 // loop_exit
      _
    %6112 = vsyncpa [#allocation5], 1
    %s6113 = scalar_lea.sflag [#allocation5], 1
    %6114 = vsyncpa %s6113, 1
    %6115 = vsyncpa [#allocation8], 1
    %6116 = vsyncpa [#allocation11], 1
    %6117 = vsyncpa [#allocation14], 1
    %6118 = vsyncpa [#allocation17], 1
    %6119 = vsyncpa [#allocation20], 1
    %6120 = vsyncpa [#allocation23], 1
    %6121 = vsyncpa [#allocation26], 1
    %6122 = vsyncpa [#allocation6], 1
    %s6123 = scalar_lea.sflag [#allocation6], 1
    %6124 = vsyncpa %s6123, 1
    %6125 = vsyncpa [#allocation29], 1
    %s6126 = scalar_lea.sflag [#allocation29], 1
    %6127 = vsyncpa %s6126, 1

</llo_original>
